<compile_context>
chip_gen: v5e
topology: v5e:2x2
jax: 0.10.0
libtpu: 0.0.40
codegen_flags: <defaults>
</compile_context>

<pallas_src>
import functools

import jax
import jax.numpy as jnp
from jax import lax
from jax.experimental import pallas as pl
from jax.experimental.pallas import tpu as pltpu


# Conv stack of the SpatialSoftmaxCNN vision encoder: (cin, cout, kernel, stride)
_CONV_CFGS = ((3, 8, 8, 4), (8, 16, 4, 2), (16, 16, 3, 1))
_C1, _C2, _C3 = 8, 16, 16
_K1, _S1 = 8, 4
_K2, _S2 = 4, 2
_K3, _S3 = 3, 1


def _conv_out(n, k, s):
    return (n - k) // s + 1


def _encoder_sizes(h, w):
    oh1, ow1 = _conv_out(h, _K1, _S1), _conv_out(w, _K1, _S1)
    oh2, ow2 = _conv_out(oh1, _K2, _S2), _conv_out(ow1, _K2, _S2)
    oh3, ow3 = _conv_out(oh2, _K3, _S3), _conv_out(ow2, _K3, _S3)
    return oh1, ow1, oh2, ow2, oh3, ow3


# ---------------------------------------------------------------------------
# Fused encoder kernel: 3x (conv + ReLU) + spatial softmax for ONE image.
# ---------------------------------------------------------------------------
def _encoder_kernel(x_ref, coords_ref, w1_ref, b1_ref, w2_ref, b2_ref,
                    w3_ref, b3_ref, out_ref, x2_s, x3_s, f_s, *, sizes):
    oh1, ow1, oh2, ow2, oh3, ow3 = sizes
    f32 = jnp.float32
    nb2 = ow2 + (_K2 // _S2) - 1            # column blocks conv2 consumes

    # Selection matrices (hoisted once): de-interleave conv1 output columns
    # into the stride-2 blocked layout conv2 reads (even cols -> lanes 0:8,
    # odd cols -> lanes 8:16).
    bi = lax.broadcasted_iota(jnp.int32, (nb2, ow1), 0)
    ci = lax.broadcasted_iota(jnp.int32, (nb2, ow1), 1)
    sel_even = (ci == 2 * bi).astype(f32)
    sel_odd = (ci == 2 * bi + 1).astype(f32)

    # ---- conv1: image block (H, W/4, 4*3) -> x2_s (oh1, nb2, 2*C1) ----------
    for oi in range(oh1):
        parts = []
        for di in range(_K1):
            for bj in range(_K1 // _S1):
                parts.append(x_ref[0, _S1 * oi + di, bj:bj + ow1, :])
        p = jnp.concatenate(parts, axis=-1).astype(jnp.bfloat16)      # (ow1, K1*K1*3)
        row = jnp.dot(p, w1_ref[...], preferred_element_type=f32) + b1_ref[...]
        row = jnp.maximum(row, 0.0)                                    # (ow1, C1)
        even = jnp.dot(sel_even, row, preferred_element_type=f32)      # (nb2, C1)
        odd = jnp.dot(sel_odd, row, preferred_element_type=f32)        # (nb2, C1)
        x2_s[oi] = jnp.concatenate([even, odd], axis=-1)               # (nb2, 2*C1)

    # ---- conv2: x2_s -> x3_s (oh2, ow2, C2) ---------------------------------
    for oi in range(oh2):
        parts = []
        for di in range(_K2):
            for bj in range(_K2 // _S2):
                parts.append(x2_s[_S2 * oi + di, bj:bj + ow2, :])
        p = jnp.concatenate(parts, axis=-1).astype(jnp.bfloat16)       # (ow2, K2*K2*C1)
        row = jnp.dot(p, w2_ref[...], preferred_element_type=f32) + b2_ref[...]
        x3_s[oi] = jnp.maximum(row, 0.0)                                # (ow2, C2)

    # ---- conv3 (stride 1): x3_s -> f_s (positions, channels) ---------------
    for oi in range(oh3):
        parts = []
        for di in range(_K3):
            for bj in range(_K3):
                parts.append(x3_s[oi + di, bj:bj + ow3, :])
        p = jnp.concatenate(parts, axis=-1).astype(jnp.bfloat16)        # (ow3, K3*K3*C2)
        row = jnp.dot(p, w3_ref[...], preferred_element_type=f32) + b3_ref[...]
        f_s[oi * ow3:(oi + 1) * ow3, :] = jnp.maximum(row, 0.0)         # (ow3, C3)

    # ---- spatial softmax over positions (sublanes), per channel (lanes) ----
    # 1/temperature is already folded into w3/b3.
    feat = f_s[...]                                                     # (P, C3)
    m = jnp.max(feat, axis=0, keepdims=True)
    e = jnp.exp(feat - m)
    z = jnp.sum(e, axis=0, keepdims=True)
    prob = e * pl.reciprocal(z, approx=True)                            # (P, C3)

    exy = jnp.dot(coords_ref[...], prob, preferred_element_type=f32)    # (2, C3)
    ex, ey = exy[0:1, :], exy[1:2, :]

    # Interleave to [x0, y0, x1, y1, ...] with two tiny selection matmuls.
    ri = lax.broadcasted_iota(jnp.int32, (_C3, 2 * _C3), 0)
    fi = lax.broadcasted_iota(jnp.int32, (_C3, 2 * _C3), 1)
    gx = (fi == 2 * ri).astype(f32)
    gy = (fi == 2 * ri + 1).astype(f32)
    out_ref[0] = (jnp.dot(ex, gx, preferred_element_type=f32)
                  + jnp.dot(ey, gy, preferred_element_type=f32))        # (1, 2*C3)


def spatial_softmax_encoder(x_blocked, coords, enc_params):
    """x_blocked: (N, H, W//4, 4*3) f32 (column-blocked NHWC).  Returns (N, 2*C3)."""
    n, h, wb, lc = x_blocked.shape
    sizes = _encoder_sizes(h, wb * _S1)
    oh1, ow1, oh2, ow2, oh3, ow3 = sizes
    nb2 = ow2 + (_K2 // _S2) - 1
    w1, b1, w2, b2, w3, b3 = enc_params

    kernel = functools.partial(_encoder_kernel, sizes=sizes)
    grid_spec = pltpu.PrefetchScalarGridSpec(
        num_scalar_prefetch=0,
        grid=(n,),
        in_specs=[
            pl.BlockSpec((1, h, wb, lc), lambda i: (i, 0, 0, 0)),
            pl.BlockSpec(coords.shape, lambda i: (0, 0)),
            pl.BlockSpec(w1.shape, lambda i: (0, 0)),
            pl.BlockSpec(b1.shape, lambda i: (0, 0)),
            pl.BlockSpec(w2.shape, lambda i: (0, 0)),
            pl.BlockSpec(b2.shape, lambda i: (0, 0)),
            pl.BlockSpec(w3.shape, lambda i: (0, 0)),
            pl.BlockSpec(b3.shape, lambda i: (0, 0)),
        ],
        out_specs=pl.BlockSpec((1, 1, 2 * _C3), lambda i: (i, 0, 0)),
        scratch_shapes=[
            pltpu.VMEM((oh1, nb2, 2 * _C1), jnp.float32),   # conv1 out (blocked)
            pltpu.VMEM((oh2, ow2, _C2), jnp.float32),       # conv2 out
            pltpu.VMEM((oh3 * ow3, _C3), jnp.float32),      # conv3 out (positions x chan)
        ],
    )
    out = pl.pallas_call(
        kernel,
        out_shape=jax.ShapeDtypeStruct((n, 1, 2 * _C3), jnp.float32),
        grid_spec=grid_spec,
        compiler_params=pltpu.CompilerParams(dimension_semantics=("parallel",)),
    )(x_blocked, coords, w1, b1, w2, b2, w3, b3)
    return out.reshape(n, 2 * _C3)


# ---------------------------------------------------------------------------
# Prior head: optional L2 normalize (dim=1) + optional prototypes Linear.
# ---------------------------------------------------------------------------
def _normalize_kernel(rep_ref, out_ref):
    r = rep_ref[...]
    nrm = jnp.sqrt(jnp.sum(r * r, axis=-1, keepdims=True))
    out_ref[...] = r / jnp.maximum(nrm, 1e-12)


def _prototypes_kernel(rep_ref, proto_ref, out_ref, *, normalize):
    r = rep_ref[...]
    if normalize:
        nrm = jnp.sqrt(jnp.sum(r * r, axis=-1, keepdims=True))
        r = r / jnp.maximum(nrm, 1e-12)
    out_ref[...] = jnp.dot(r, proto_ref[...], preferred_element_type=jnp.float32)


def prior_head(rep, proto_t=None, normalize=False):
    vmem = pl.BlockSpec(memory_space=pltpu.MemorySpace.VMEM)
    if proto_t is None:
        if not normalize:
            return rep
        return pl.pallas_call(
            _normalize_kernel,
            out_shape=jax.ShapeDtypeStruct(rep.shape, jnp.float32),
            in_specs=[vmem],
            out_specs=vmem,
        )(rep)
    kernel = functools.partial(_prototypes_kernel, normalize=normalize)
    return pl.pallas_call(
        kernel,
        out_shape=jax.ShapeDtypeStruct((rep.shape[0], proto_t.shape[1]), jnp.float32),
        in_specs=[vmem, vmem],
        out_specs=vmem,
    )(rep, proto_t)


# ---------------------------------------------------------------------------
# Parameter preparation (host-side, plain JAX glue)
# ---------------------------------------------------------------------------
def init_torch_style_params(key, nmb_prototypes, out_size):
    """Deterministic PyTorch-default-style init (uniform +-1/sqrt(fan_in))."""
    convs = []
    for (cin, cout, k, s) in _CONV_CFGS:
        key, kw, kb = jax.random.split(key, 3)
        bound = 1.0 / float((cin * k * k) ** 0.5)
        w = jax.random.uniform(kw, (cout, cin, k, k), jnp.float32, -bound, bound)
        b = jax.random.uniform(kb, (cout,), jnp.float32, -bound, bound)
        convs.append((w, b, k, s, cin, cout))
    proto_t = None
    if nmb_prototypes > 0:
        key, kp = jax.random.split(key)
        bound = 1.0 / float(out_size ** 0.5)
        proto = jax.random.uniform(kp, (nmb_prototypes, out_size), jnp.float32,
                                   -bound, bound)        # torch Linear weight (out, in)
        proto_t = jnp.transpose(proto)                   # pre-transposed: (in, out)
    return convs, proto_t


def pack_encoder_params(convs, temperature):
    """Torch-layout conv weights -> lane-ordered matmul weights (bf16) + f32 bias.

    Row order matches the in-kernel patch build: (di, bj, c, cin) with dj = s*bj + c.
    1/temperature is folded into the last conv (relu(z)/T == relu(z/T) for T > 0).
    """
    packed = []
    last = len(convs) - 1
    for idx, (w, b, k, s, cin, cout) in enumerate(convs):
        scale = 1.0 / float(temperature) if idx == last else 1.0
        wm = jnp.transpose(w, (2, 3, 1, 0))            # (kh, kw, cin, cout)
        wm = wm.reshape(k, k // s, s, cin, cout)       # split dj -> (bj, c)
        wm = wm.reshape(k * k * cin, cout) * scale
        packed.append(wm.astype(jnp.bfloat16))
        packed.append((b.reshape(1, cout) * scale).astype(jnp.float32))
    return tuple(packed)


def make_coords(oh, ow):
    """Normalized meshgrid, NCHW flatten order, packed as one (2, oh*ow) array."""
    xs = jnp.linspace(-1.0, 1.0, ow, dtype=jnp.float32)
    ys = jnp.linspace(-1.0, 1.0, oh, dtype=jnp.float32)
    pos_x = jnp.tile(xs, oh)            # pos_x[i*ow + j] = xs[j]
    pos_y = jnp.repeat(ys, ow)          # pos_y[i*ow + j] = ys[i]
    return jnp.stack([pos_x, pos_y], axis=0)


# ---------------------------------------------------------------------------
# VisualMotionPrior forward
# ---------------------------------------------------------------------------
def visual_motion_prior_forward(images, state, enc_params, coords,
                                proto_t=None, normalize=False):
    """images: (b, t, 3, H, W); state: (b, t, f) bounding boxes (unused, as in
    the PyTorch reference's get_state_representation)."""
    del state
    b, t, c, h, w = images.shape
    n = b * t
    x = images.reshape(n, c, h, w)
    x = jnp.transpose(x, (0, 2, 3, 1)).astype(jnp.float32)     # NCHW -> NHWC
    x = x.reshape(n, h, w // _S1, _S1 * c)                     # column-blocked for conv1
    feats = spatial_softmax_encoder(x, coords, enc_params)     # (n, 2*C3)
    rep = feats.reshape(b, t * feats.shape[-1])                # '(b t) f -> b (t f)'
    return prior_head(rep, proto_t, normalize)


if __name__ == "__main__":
    key = jax.random.PRNGKey(0)
    k_img, k_par = jax.random.split(key)

    # Smallest spatial size that passes cleanly through k8/s4 -> k4/s2 -> k3/s1.
    b, t, c, h, w = 2, 2, 3, 64, 64
    images = jax.random.normal(k_img, (b, t, c, h, w), dtype=jnp.float32)
    state = jnp.zeros((b, t, 4), dtype=jnp.float32)   # bounding boxes (unused in forward)

    temperature = 1.0
    out_size = t * 2 * _C3                             # prior representation size
    nmb_prototypes = 32

    convs, proto_t = init_torch_style_params(k_par, nmb_prototypes, out_size)
    enc_params = pack_encoder_params(convs, temperature)
    oh3, ow3 = _encoder_sizes(h, w)[4:]
    coords = make_coords(oh3, ow3)

    fwd = jax.jit(visual_motion_prior_forward, static_argnames=("normalize",))

    # Default module config (nmb_prototypes=0, normalize=False): raw representation.
    rep = jax.block_until_ready(fwd(images, state, enc_params, coords))
    assert rep.shape == (b, out_size), (rep.shape, (b, out_size))
    assert bool(jnp.all(jnp.isfinite(rep)))

    # Full head: L2-normalized representation projected onto prototypes.
    out = jax.block_until_ready(
        fwd(images, state, enc_params, coords, proto_t=proto_t, normalize=True))
    assert out.shape == (b, nmb_prototypes), (out.shape, (b, nmb_prototypes))
    assert bool(jnp.all(jnp.isfinite(out)))

    print("KERNEL_OK")
</pallas_src>

<mosaic_0001>
module attributes {stable_mosaic.version = 11 : i64} {
  func.func @_encoder_kernel(%arg0: i32, %arg1: memref<1x64x16x12xf32, #tpu.memory_space<vmem>>, %arg2: memref<2x16xf32, #tpu.memory_space<vmem>>, %arg3: memref<192x8xbf16, #tpu.memory_space<vmem>>, %arg4: memref<1x8xf32, #tpu.memory_space<vmem>>, %arg5: memref<128x16xbf16, #tpu.memory_space<vmem>>, %arg6: memref<1x16xf32, #tpu.memory_space<vmem>>, %arg7: memref<144x16xbf16, #tpu.memory_space<vmem>>, %arg8: memref<1x16xf32, #tpu.memory_space<vmem>>, %arg9: memref<1x1x32xf32, #tpu.memory_space<vmem>>, %arg10: memref<15x7x16xf32, #tpu.memory_space<vmem>>, %arg11: memref<6x6x16xf32, #tpu.memory_space<vmem>>, %arg12: memref<16x16xf32, #tpu.memory_space<vmem>>) attributes {dimension_semantics = [#tpu.dimension_semantics<parallel>], iteration_bounds = array<i64: 4>, scalar_prefetch = 0 : i64, scratch_operands = 3 : i64, tpu.core_type = #tpu.core_type<tc>, window_params = [{transform_indices = @transform_0, window_bounds = array<i64: 1, 64, 16, 12>}, {pipeline_mode = #tpu.pipeline_mode<synchronous>, transform_indices = @transform_1, window_bounds = array<i64: 2, 16>}, {pipeline_mode = #tpu.pipeline_mode<synchronous>, transform_indices = @transform_2, window_bounds = array<i64: 192, 8>}, {pipeline_mode = #tpu.pipeline_mode<synchronous>, transform_indices = @transform_3, window_bounds = array<i64: 1, 8>}, {pipeline_mode = #tpu.pipeline_mode<synchronous>, transform_indices = @transform_4, window_bounds = array<i64: 128, 16>}, {pipeline_mode = #tpu.pipeline_mode<synchronous>, transform_indices = @transform_5, window_bounds = array<i64: 1, 16>}, {pipeline_mode = #tpu.pipeline_mode<synchronous>, transform_indices = @transform_6, window_bounds = array<i64: 144, 16>}, {pipeline_mode = #tpu.pipeline_mode<synchronous>, transform_indices = @transform_7, window_bounds = array<i64: 1, 16>}, {transform_indices = @transform_8, window_bounds = array<i64: 1, 1, 32>}]} {
    %0 = tpu.iota {dimensions = array<i32: 0>} : vector<7x15xi32>
    %1 = tpu.iota {dimensions = array<i32: 1>} : vector<7x15xi32>
    %c2_i32 = arith.constant 2 : i32
    %2 = vector.broadcast %c2_i32 : i32 to vector<7x15xi32>
    %3 = arith.muli %2, %0 : vector<7x15xi32>
    %4 = arith.cmpi eq, %1, %3 : vector<7x15xi32>
    %5 = arith.extui %4 : vector<7x15xi1> to vector<7x15xi32>
    %6 = arith.sitofp %5 : vector<7x15xi32> to vector<7x15xf32>
    %c2_i32_0 = arith.constant 2 : i32
    %7 = vector.broadcast %c2_i32_0 : i32 to vector<7x15xi32>
    %8 = arith.muli %7, %0 : vector<7x15xi32>
    %c1_i32 = arith.constant 1 : i32
    %9 = vector.broadcast %c1_i32 : i32 to vector<7x15xi32>
    %10 = arith.addi %8, %9 : vector<7x15xi32>
    %11 = arith.cmpi eq, %1, %10 : vector<7x15xi32>
    %12 = arith.extui %11 : vector<7x15xi1> to vector<7x15xi32>
    %13 = arith.sitofp %12 : vector<7x15xi32> to vector<7x15xf32>
    %c0 = arith.constant 0 : index
    %c0_1 = arith.constant 0 : index
    %c0_2 = arith.constant 0 : index
    %c0_3 = arith.constant 0 : index
    %14 = vector.load %arg1[%c0, %c0_1, %c0_2, %c0_3] : memref<1x64x16x12xf32, #tpu.memory_space<vmem>>, vector<1x1x15x12xf32>
    %15 = vector.shape_cast %14 : vector<1x1x15x12xf32> to vector<15x12xf32>
    %c0_4 = arith.constant 0 : index
    %c0_5 = arith.constant 0 : index
    %c1 = arith.constant 1 : index
    %c0_6 = arith.constant 0 : index
    %16 = vector.load %arg1[%c0_4, %c0_5, %c1, %c0_6] : memref<1x64x16x12xf32, #tpu.memory_space<vmem>>, vector<1x1x15x12xf32>
    %17 = vector.shape_cast %16 : vector<1x1x15x12xf32> to vector<15x12xf32>
    %c0_7 = arith.constant 0 : index
    %c1_8 = arith.constant 1 : index
    %c0_9 = arith.constant 0 : index
    %c0_10 = arith.constant 0 : index
    %18 = vector.load %arg1[%c0_7, %c1_8, %c0_9, %c0_10] : memref<1x64x16x12xf32, #tpu.memory_space<vmem>>, vector<1x1x15x12xf32>
    %19 = vector.shape_cast %18 : vector<1x1x15x12xf32> to vector<15x12xf32>
    %c0_11 = arith.constant 0 : index
    %c1_12 = arith.constant 1 : index
    %c1_13 = arith.constant 1 : index
    %c0_14 = arith.constant 0 : index
    %20 = vector.load %arg1[%c0_11, %c1_12, %c1_13, %c0_14] : memref<1x64x16x12xf32, #tpu.memory_space<vmem>>, vector<1x1x15x12xf32>
    %21 = vector.shape_cast %20 : vector<1x1x15x12xf32> to vector<15x12xf32>
    %c0_15 = arith.constant 0 : index
    %c2 = arith.constant 2 : index
    %c0_16 = arith.constant 0 : index
    %c0_17 = arith.constant 0 : index
    %22 = vector.load %arg1[%c0_15, %c2, %c0_16, %c0_17] : memref<1x64x16x12xf32, #tpu.memory_space<vmem>>, vector<1x1x15x12xf32>
    %23 = vector.shape_cast %22 : vector<1x1x15x12xf32> to vector<15x12xf32>
    %c0_18 = arith.constant 0 : index
    %c2_19 = arith.constant 2 : index
    %c1_20 = arith.constant 1 : index
    %c0_21 = arith.constant 0 : index
    %24 = vector.load %arg1[%c0_18, %c2_19, %c1_20, %c0_21] : memref<1x64x16x12xf32, #tpu.memory_space<vmem>>, vector<1x1x15x12xf32>
    %25 = vector.shape_cast %24 : vector<1x1x15x12xf32> to vector<15x12xf32>
    %c0_22 = arith.constant 0 : index
    %c3 = arith.constant 3 : index
    %c0_23 = arith.constant 0 : index
    %c0_24 = arith.constant 0 : index
    %26 = vector.load %arg1[%c0_22, %c3, %c0_23, %c0_24] : memref<1x64x16x12xf32, #tpu.memory_space<vmem>>, vector<1x1x15x12xf32>
    %27 = vector.shape_cast %26 : vector<1x1x15x12xf32> to vector<15x12xf32>
    %c0_25 = arith.constant 0 : index
    %c3_26 = arith.constant 3 : index
    %c1_27 = arith.constant 1 : index
    %c0_28 = arith.constant 0 : index
    %28 = vector.load %arg1[%c0_25, %c3_26, %c1_27, %c0_28] : memref<1x64x16x12xf32, #tpu.memory_space<vmem>>, vector<1x1x15x12xf32>
    %29 = vector.shape_cast %28 : vector<1x1x15x12xf32> to vector<15x12xf32>
    %c0_29 = arith.constant 0 : index
    %c4 = arith.constant 4 : index
    %c0_30 = arith.constant 0 : index
    %c0_31 = arith.constant 0 : index
    %30 = vector.load %arg1[%c0_29, %c4, %c0_30, %c0_31] : memref<1x64x16x12xf32, #tpu.memory_space<vmem>>, vector<1x1x15x12xf32>
    %31 = vector.shape_cast %30 : vector<1x1x15x12xf32> to vector<15x12xf32>
    %c0_32 = arith.constant 0 : index
    %c4_33 = arith.constant 4 : index
    %c1_34 = arith.constant 1 : index
    %c0_35 = arith.constant 0 : index
    %32 = vector.load %arg1[%c0_32, %c4_33, %c1_34, %c0_35] : memref<1x64x16x12xf32, #tpu.memory_space<vmem>>, vector<1x1x15x12xf32>
    %33 = vector.shape_cast %32 : vector<1x1x15x12xf32> to vector<15x12xf32>
    %c0_36 = arith.constant 0 : index
    %c5 = arith.constant 5 : index
    %c0_37 = arith.constant 0 : index
    %c0_38 = arith.constant 0 : index
    %34 = vector.load %arg1[%c0_36, %c5, %c0_37, %c0_38] : memref<1x64x16x12xf32, #tpu.memory_space<vmem>>, vector<1x1x15x12xf32>
    %35 = vector.shape_cast %34 : vector<1x1x15x12xf32> to vector<15x12xf32>
    %c0_39 = arith.constant 0 : index
    %c5_40 = arith.constant 5 : index
    %c1_41 = arith.constant 1 : index
    %c0_42 = arith.constant 0 : index
    %36 = vector.load %arg1[%c0_39, %c5_40, %c1_41, %c0_42] : memref<1x64x16x12xf32, #tpu.memory_space<vmem>>, vector<1x1x15x12xf32>
    %37 = vector.shape_cast %36 : vector<1x1x15x12xf32> to vector<15x12xf32>
    %c0_43 = arith.constant 0 : index
    %c6 = arith.constant 6 : index
    %c0_44 = arith.constant 0 : index
    %c0_45 = arith.constant 0 : index
    %38 = vector.load %arg1[%c0_43, %c6, %c0_44, %c0_45] : memref<1x64x16x12xf32, #tpu.memory_space<vmem>>, vector<1x1x15x12xf32>
    %39 = vector.shape_cast %38 : vector<1x1x15x12xf32> to vector<15x12xf32>
    %c0_46 = arith.constant 0 : index
    %c6_47 = arith.constant 6 : index
    %c1_48 = arith.constant 1 : index
    %c0_49 = arith.constant 0 : index
    %40 = vector.load %arg1[%c0_46, %c6_47, %c1_48, %c0_49] : memref<1x64x16x12xf32, #tpu.memory_space<vmem>>, vector<1x1x15x12xf32>
    %41 = vector.shape_cast %40 : vector<1x1x15x12xf32> to vector<15x12xf32>
    %c0_50 = arith.constant 0 : index
    %c7 = arith.constant 7 : index
    %c0_51 = arith.constant 0 : index
    %c0_52 = arith.constant 0 : index
    %42 = vector.load %arg1[%c0_50, %c7, %c0_51, %c0_52] : memref<1x64x16x12xf32, #tpu.memory_space<vmem>>, vector<1x1x15x12xf32>
    %43 = vector.shape_cast %42 : vector<1x1x15x12xf32> to vector<15x12xf32>
    %c0_53 = arith.constant 0 : index
    %c7_54 = arith.constant 7 : index
    %c1_55 = arith.constant 1 : index
    %c0_56 = arith.constant 0 : index
    %44 = vector.load %arg1[%c0_53, %c7_54, %c1_55, %c0_56] : memref<1x64x16x12xf32, #tpu.memory_space<vmem>>, vector<1x1x15x12xf32>
    %45 = vector.shape_cast %44 : vector<1x1x15x12xf32> to vector<15x12xf32>
    %46 = tpu.concatenate %15, %17, %19, %21, %23, %25, %27, %29, %31, %33, %35, %37, %39, %41, %43, %45 in 1 : vector<15x12xf32>, vector<15x12xf32>, vector<15x12xf32>, vector<15x12xf32>, vector<15x12xf32>, vector<15x12xf32>, vector<15x12xf32>, vector<15x12xf32>, vector<15x12xf32>, vector<15x12xf32>, vector<15x12xf32>, vector<15x12xf32>, vector<15x12xf32>, vector<15x12xf32>, vector<15x12xf32>, vector<15x12xf32> -> vector<15x192xf32>
    %47 = arith.truncf %46 : vector<15x192xf32> to vector<15x192xbf16>
    %c0_57 = arith.constant 0 : index
    %c0_58 = arith.constant 0 : index
    %48 = vector.load %arg3[%c0_57, %c0_58] : memref<192x8xbf16, #tpu.memory_space<vmem>>, vector<192x8xbf16>
    %cst = arith.constant dense<0.000000e+00> : vector<15x8xf32>
    %49 = tpu.matmul %47, %48, %cst {dimension_numbers = #tpu.dot_dimension_numbers<[1], [0], [0], [1], [0, 0, 1, 1], [], []>} : vector<15x192xbf16>, vector<192x8xbf16>, vector<15x8xf32> -> vector<15x8xf32>
    %c0_59 = arith.constant 0 : index
    %c0_60 = arith.constant 0 : index
    %50 = vector.load %arg4[%c0_59, %c0_60] : memref<1x8xf32, #tpu.memory_space<vmem>>, vector<1x8xf32>
    %51 = vector.broadcast %50 : vector<1x8xf32> to vector<15x8xf32>
    %52 = arith.addf %49, %51 : vector<15x8xf32>
    %cst_61 = arith.constant 0.000000e+00 : f32
    %53 = vector.broadcast %cst_61 : f32 to vector<15x8xf32>
    %54 = arith.maximumf %52, %53 : vector<15x8xf32>
    %cst_62 = arith.constant dense<0.000000e+00> : vector<7x8xf32>
    %55 = tpu.matmul %6, %54, %cst_62 {dimension_numbers = #tpu.dot_dimension_numbers<[1], [0], [0], [1], [0, 0, 1, 1], [], []>} : vector<7x15xf32>, vector<15x8xf32>, vector<7x8xf32> -> vector<7x8xf32>
    %cst_63 = arith.constant dense<0.000000e+00> : vector<7x8xf32>
    %56 = tpu.matmul %13, %54, %cst_63 {dimension_numbers = #tpu.dot_dimension_numbers<[1], [0], [0], [1], [0, 0, 1, 1], [], []>} : vector<7x15xf32>, vector<15x8xf32>, vector<7x8xf32> -> vector<7x8xf32>
    %57 = tpu.concatenate %55, %56 in 1 : vector<7x8xf32>, vector<7x8xf32> -> vector<7x16xf32>
    %c0_64 = arith.constant 0 : index
    %c0_65 = arith.constant 0 : index
    %c0_66 = arith.constant 0 : index
    %58 = vector.load %arg10[%c0_64, %c0_65, %c0_66] : memref<15x7x16xf32, #tpu.memory_space<vmem>>, vector<1x7x16xf32>
    %59 = vector.shape_cast %58 : vector<1x7x16xf32> to vector<7x16xf32>
    %60 = vector.shape_cast %57 : vector<7x16xf32> to vector<1x7x16xf32>
    tpu.vector_store %arg10[%c0_64, %c0_65, %c0_66], %60 {strides = array<i32>} : memref<15x7x16xf32, #tpu.memory_space<vmem>>, vector<1x7x16xf32>,
    %c0_67 = arith.constant 0 : index
    %c4_68 = arith.constant 4 : index
    %c0_69 = arith.constant 0 : index
    %c0_70 = arith.constant 0 : index
    %61 = vector.load %arg1[%c0_67, %c4_68, %c0_69, %c0_70] : memref<1x64x16x12xf32, #tpu.memory_space<vmem>>, vector<1x1x15x12xf32>
    %62 = vector.shape_cast %61 : vector<1x1x15x12xf32> to vector<15x12xf32>
    %c0_71 = arith.constant 0 : index
    %c4_72 = arith.constant 4 : index
    %c1_73 = arith.constant 1 : index
    %c0_74 = arith.constant 0 : index
    %63 = vector.load %arg1[%c0_71, %c4_72, %c1_73, %c0_74] : memref<1x64x16x12xf32, #tpu.memory_space<vmem>>, vector<1x1x15x12xf32>
    %64 = vector.shape_cast %63 : vector<1x1x15x12xf32> to vector<15x12xf32>
    %c0_75 = arith.constant 0 : index
    %c5_76 = arith.constant 5 : index
    %c0_77 = arith.constant 0 : index
    %c0_78 = arith.constant 0 : index
    %65 = vector.load %arg1[%c0_75, %c5_76, %c0_77, %c0_78] : memref<1x64x16x12xf32, #tpu.memory_space<vmem>>, vector<1x1x15x12xf32>
    %66 = vector.shape_cast %65 : vector<1x1x15x12xf32> to vector<15x12xf32>
    %c0_79 = arith.constant 0 : index
    %c5_80 = arith.constant 5 : index
    %c1_81 = arith.constant 1 : index
    %c0_82 = arith.constant 0 : index
    %67 = vector.load %arg1[%c0_79, %c5_80, %c1_81, %c0_82] : memref<1x64x16x12xf32, #tpu.memory_space<vmem>>, vector<1x1x15x12xf32>
    %68 = vector.shape_cast %67 : vector<1x1x15x12xf32> to vector<15x12xf32>
    %c0_83 = arith.constant 0 : index
    %c6_84 = arith.constant 6 : index
    %c0_85 = arith.constant 0 : index
    %c0_86 = arith.constant 0 : index
    %69 = vector.load %arg1[%c0_83, %c6_84, %c0_85, %c0_86] : memref<1x64x16x12xf32, #tpu.memory_space<vmem>>, vector<1x1x15x12xf32>
    %70 = vector.shape_cast %69 : vector<1x1x15x12xf32> to vector<15x12xf32>
    %c0_87 = arith.constant 0 : index
    %c6_88 = arith.constant 6 : index
    %c1_89 = arith.constant 1 : index
    %c0_90 = arith.constant 0 : index
    %71 = vector.load %arg1[%c0_87, %c6_88, %c1_89, %c0_90] : memref<1x64x16x12xf32, #tpu.memory_space<vmem>>, vector<1x1x15x12xf32>
    %72 = vector.shape_cast %71 : vector<1x1x15x12xf32> to vector<15x12xf32>
    %c0_91 = arith.constant 0 : index
    %c7_92 = arith.constant 7 : index
    %c0_93 = arith.constant 0 : index
    %c0_94 = arith.constant 0 : index
    %73 = vector.load %arg1[%c0_91, %c7_92, %c0_93, %c0_94] : memref<1x64x16x12xf32, #tpu.memory_space<vmem>>, vector<1x1x15x12xf32>
    %74 = vector.shape_cast %73 : vector<1x1x15x12xf32> to vector<15x12xf32>
    %c0_95 = arith.constant 0 : index
    %c7_96 = arith.constant 7 : index
    %c1_97 = arith.constant 1 : index
    %c0_98 = arith.constant 0 : index
    %75 = vector.load %arg1[%c0_95, %c7_96, %c1_97, %c0_98] : memref<1x64x16x12xf32, #tpu.memory_space<vmem>>, vector<1x1x15x12xf32>
    %76 = vector.shape_cast %75 : vector<1x1x15x12xf32> to vector<15x12xf32>
    %c0_99 = arith.constant 0 : index
    %c8 = arith.constant 8 : index
    %c0_100 = arith.constant 0 : index
    %c0_101 = arith.constant 0 : index
    %77 = vector.load %arg1[%c0_99, %c8, %c0_100, %c0_101] : memref<1x64x16x12xf32, #tpu.memory_space<vmem>>, vector<1x1x15x12xf32>
    %78 = vector.shape_cast %77 : vector<1x1x15x12xf32> to vector<15x12xf32>
    %c0_102 = arith.constant 0 : index
    %c8_103 = arith.constant 8 : index
    %c1_104 = arith.constant 1 : index
    %c0_105 = arith.constant 0 : index
    %79 = vector.load %arg1[%c0_102, %c8_103, %c1_104, %c0_105] : memref<1x64x16x12xf32, #tpu.memory_space<vmem>>, vector<1x1x15x12xf32>
    %80 = vector.shape_cast %79 : vector<1x1x15x12xf32> to vector<15x12xf32>
    %c0_106 = arith.constant 0 : index
    %c9 = arith.constant 9 : index
    %c0_107 = arith.constant 0 : index
    %c0_108 = arith.constant 0 : index
    %81 = vector.load %arg1[%c0_106, %c9, %c0_107, %c0_108] : memref<1x64x16x12xf32, #tpu.memory_space<vmem>>, vector<1x1x15x12xf32>
    %82 = vector.shape_cast %81 : vector<1x1x15x12xf32> to vector<15x12xf32>
    %c0_109 = arith.constant 0 : index
    %c9_110 = arith.constant 9 : index
    %c1_111 = arith.constant 1 : index
    %c0_112 = arith.constant 0 : index
    %83 = vector.load %arg1[%c0_109, %c9_110, %c1_111, %c0_112] : memref<1x64x16x12xf32, #tpu.memory_space<vmem>>, vector<1x1x15x12xf32>
    %84 = vector.shape_cast %83 : vector<1x1x15x12xf32> to vector<15x12xf32>
    %c0_113 = arith.constant 0 : index
    %c10 = arith.constant 10 : index
    %c0_114 = arith.constant 0 : index
    %c0_115 = arith.constant 0 : index
    %85 = vector.load %arg1[%c0_113, %c10, %c0_114, %c0_115] : memref<1x64x16x12xf32, #tpu.memory_space<vmem>>, vector<1x1x15x12xf32>
    %86 = vector.shape_cast %85 : vector<1x1x15x12xf32> to vector<15x12xf32>
    %c0_116 = arith.constant 0 : index
    %c10_117 = arith.constant 10 : index
    %c1_118 = arith.constant 1 : index
    %c0_119 = arith.constant 0 : index
    %87 = vector.load %arg1[%c0_116, %c10_117, %c1_118, %c0_119] : memref<1x64x16x12xf32, #tpu.memory_space<vmem>>, vector<1x1x15x12xf32>
    %88 = vector.shape_cast %87 : vector<1x1x15x12xf32> to vector<15x12xf32>
    %c0_120 = arith.constant 0 : index
    %c11 = arith.constant 11 : index
    %c0_121 = arith.constant 0 : index
    %c0_122 = arith.constant 0 : index
    %89 = vector.load %arg1[%c0_120, %c11, %c0_121, %c0_122] : memref<1x64x16x12xf32, #tpu.memory_space<vmem>>, vector<1x1x15x12xf32>
    %90 = vector.shape_cast %89 : vector<1x1x15x12xf32> to vector<15x12xf32>
    %c0_123 = arith.constant 0 : index
    %c11_124 = arith.constant 11 : index
    %c1_125 = arith.constant 1 : index
    %c0_126 = arith.constant 0 : index
    %91 = vector.load %arg1[%c0_123, %c11_124, %c1_125, %c0_126] : memref<1x64x16x12xf32, #tpu.memory_space<vmem>>, vector<1x1x15x12xf32>
    %92 = vector.shape_cast %91 : vector<1x1x15x12xf32> to vector<15x12xf32>
    %93 = tpu.concatenate %62, %64, %66, %68, %70, %72, %74, %76, %78, %80, %82, %84, %86, %88, %90, %92 in 1 : vector<15x12xf32>, vector<15x12xf32>, vector<15x12xf32>, vector<15x12xf32>, vector<15x12xf32>, vector<15x12xf32>, vector<15x12xf32>, vector<15x12xf32>, vector<15x12xf32>, vector<15x12xf32>, vector<15x12xf32>, vector<15x12xf32>, vector<15x12xf32>, vector<15x12xf32>, vector<15x12xf32>, vector<15x12xf32> -> vector<15x192xf32>
    %94 = arith.truncf %93 : vector<15x192xf32> to vector<15x192xbf16>
    %c0_127 = arith.constant 0 : index
    %c0_128 = arith.constant 0 : index
    %95 = vector.load %arg3[%c0_127, %c0_128] : memref<192x8xbf16, #tpu.memory_space<vmem>>, vector<192x8xbf16>
    %cst_129 = arith.constant dense<0.000000e+00> : vector<15x8xf32>
    %96 = tpu.matmul %94, %95, %cst_129 {dimension_numbers = #tpu.dot_dimension_numbers<[1], [0], [0], [1], [0, 0, 1, 1], [], []>} : vector<15x192xbf16>, vector<192x8xbf16>, vector<15x8xf32> -> vector<15x8xf32>
    %c0_130 = arith.constant 0 : index
    %c0_131 = arith.constant 0 : index
    %97 = vector.load %arg4[%c0_130, %c0_131] : memref<1x8xf32, #tpu.memory_space<vmem>>, vector<1x8xf32>
    %98 = vector.broadcast %97 : vector<1x8xf32> to vector<15x8xf32>
    %99 = arith.addf %96, %98 : vector<15x8xf32>
    %cst_132 = arith.constant 0.000000e+00 : f32
    %100 = vector.broadcast %cst_132 : f32 to vector<15x8xf32>
    %101 = arith.maximumf %99, %100 : vector<15x8xf32>
    %cst_133 = arith.constant dense<0.000000e+00> : vector<7x8xf32>
    %102 = tpu.matmul %6, %101, %cst_133 {dimension_numbers = #tpu.dot_dimension_numbers<[1], [0], [0], [1], [0, 0, 1, 1], [], []>} : vector<7x15xf32>, vector<15x8xf32>, vector<7x8xf32> -> vector<7x8xf32>
    %cst_134 = arith.constant dense<0.000000e+00> : vector<7x8xf32>
    %103 = tpu.matmul %13, %101, %cst_134 {dimension_numbers = #tpu.dot_dimension_numbers<[1], [0], [0], [1], [0, 0, 1, 1], [], []>} : vector<7x15xf32>, vector<15x8xf32>, vector<7x8xf32> -> vector<7x8xf32>
    %104 = tpu.concatenate %102, %103 in 1 : vector<7x8xf32>, vector<7x8xf32> -> vector<7x16xf32>
    %c1_135 = arith.constant 1 : index
    %c0_136 = arith.constant 0 : index
    %c0_137 = arith.constant 0 : index
    %105 = vector.load %arg10[%c1_135, %c0_136, %c0_137] : memref<15x7x16xf32, #tpu.memory_space<vmem>>, vector<1x7x16xf32>
    %106 = vector.shape_cast %105 : vector<1x7x16xf32> to vector<7x16xf32>
    %107 = vector.shape_cast %104 : vector<7x16xf32> to vector<1x7x16xf32>
    tpu.vector_store %arg10[%c1_135, %c0_136, %c0_137], %107 {strides = array<i32>} : memref<15x7x16xf32, #tpu.memory_space<vmem>>, vector<1x7x16xf32>,
    %c0_138 = arith.constant 0 : index
    %c8_139 = arith.constant 8 : index
    %c0_140 = arith.constant 0 : index
    %c0_141 = arith.constant 0 : index
    %108 = vector.load %arg1[%c0_138, %c8_139, %c0_140, %c0_141] : memref<1x64x16x12xf32, #tpu.memory_space<vmem>>, vector<1x1x15x12xf32>
    %109 = vector.shape_cast %108 : vector<1x1x15x12xf32> to vector<15x12xf32>
    %c0_142 = arith.constant 0 : index
    %c8_143 = arith.constant 8 : index
    %c1_144 = arith.constant 1 : index
    %c0_145 = arith.constant 0 : index
    %110 = vector.load %arg1[%c0_142, %c8_143, %c1_144, %c0_145] : memref<1x64x16x12xf32, #tpu.memory_space<vmem>>, vector<1x1x15x12xf32>
    %111 = vector.shape_cast %110 : vector<1x1x15x12xf32> to vector<15x12xf32>
    %c0_146 = arith.constant 0 : index
    %c9_147 = arith.constant 9 : index
    %c0_148 = arith.constant 0 : index
    %c0_149 = arith.constant 0 : index
    %112 = vector.load %arg1[%c0_146, %c9_147, %c0_148, %c0_149] : memref<1x64x16x12xf32, #tpu.memory_space<vmem>>, vector<1x1x15x12xf32>
    %113 = vector.shape_cast %112 : vector<1x1x15x12xf32> to vector<15x12xf32>
    %c0_150 = arith.constant 0 : index
    %c9_151 = arith.constant 9 : index
    %c1_152 = arith.constant 1 : index
    %c0_153 = arith.constant 0 : index
    %114 = vector.load %arg1[%c0_150, %c9_151, %c1_152, %c0_153] : memref<1x64x16x12xf32, #tpu.memory_space<vmem>>, vector<1x1x15x12xf32>
    %115 = vector.shape_cast %114 : vector<1x1x15x12xf32> to vector<15x12xf32>
    %c0_154 = arith.constant 0 : index
    %c10_155 = arith.constant 10 : index
    %c0_156 = arith.constant 0 : index
    %c0_157 = arith.constant 0 : index
    %116 = vector.load %arg1[%c0_154, %c10_155, %c0_156, %c0_157] : memref<1x64x16x12xf32, #tpu.memory_space<vmem>>, vector<1x1x15x12xf32>
    %117 = vector.shape_cast %116 : vector<1x1x15x12xf32> to vector<15x12xf32>
    %c0_158 = arith.constant 0 : index
    %c10_159 = arith.constant 10 : index
    %c1_160 = arith.constant 1 : index
    %c0_161 = arith.constant 0 : index
    %118 = vector.load %arg1[%c0_158, %c10_159, %c1_160, %c0_161] : memref<1x64x16x12xf32, #tpu.memory_space<vmem>>, vector<1x1x15x12xf32>
    %119 = vector.shape_cast %118 : vector<1x1x15x12xf32> to vector<15x12xf32>
    %c0_162 = arith.constant 0 : index
    %c11_163 = arith.constant 11 : index
    %c0_164 = arith.constant 0 : index
    %c0_165 = arith.constant 0 : index
    %120 = vector.load %arg1[%c0_162, %c11_163, %c0_164, %c0_165] : memref<1x64x16x12xf32, #tpu.memory_space<vmem>>, vector<1x1x15x12xf32>
    %121 = vector.shape_cast %120 : vector<1x1x15x12xf32> to vector<15x12xf32>
    %c0_166 = arith.constant 0 : index
    %c11_167 = arith.constant 11 : index
    %c1_168 = arith.constant 1 : index
    %c0_169 = arith.constant 0 : index
    %122 = vector.load %arg1[%c0_166, %c11_167, %c1_168, %c0_169] : memref<1x64x16x12xf32, #tpu.memory_space<vmem>>, vector<1x1x15x12xf32>
    %123 = vector.shape_cast %122 : vector<1x1x15x12xf32> to vector<15x12xf32>
    %c0_170 = arith.constant 0 : index
    %c12 = arith.constant 12 : index
    %c0_171 = arith.constant 0 : index
    %c0_172 = arith.constant 0 : index
    %124 = vector.load %arg1[%c0_170, %c12, %c0_171, %c0_172] : memref<1x64x16x12xf32, #tpu.memory_space<vmem>>, vector<1x1x15x12xf32>
    %125 = vector.shape_cast %124 : vector<1x1x15x12xf32> to vector<15x12xf32>
    %c0_173 = arith.constant 0 : index
    %c12_174 = arith.constant 12 : index
    %c1_175 = arith.constant 1 : index
    %c0_176 = arith.constant 0 : index
    %126 = vector.load %arg1[%c0_173, %c12_174, %c1_175, %c0_176] : memref<1x64x16x12xf32, #tpu.memory_space<vmem>>, vector<1x1x15x12xf32>
    %127 = vector.shape_cast %126 : vector<1x1x15x12xf32> to vector<15x12xf32>
    %c0_177 = arith.constant 0 : index
    %c13 = arith.constant 13 : index
    %c0_178 = arith.constant 0 : index
    %c0_179 = arith.constant 0 : index
    %128 = vector.load %arg1[%c0_177, %c13, %c0_178, %c0_179] : memref<1x64x16x12xf32, #tpu.memory_space<vmem>>, vector<1x1x15x12xf32>
    %129 = vector.shape_cast %128 : vector<1x1x15x12xf32> to vector<15x12xf32>
    %c0_180 = arith.constant 0 : index
    %c13_181 = arith.constant 13 : index
    %c1_182 = arith.constant 1 : index
    %c0_183 = arith.constant 0 : index
    %130 = vector.load %arg1[%c0_180, %c13_181, %c1_182, %c0_183] : memref<1x64x16x12xf32, #tpu.memory_space<vmem>>, vector<1x1x15x12xf32>
    %131 = vector.shape_cast %130 : vector<1x1x15x12xf32> to vector<15x12xf32>
    %c0_184 = arith.constant 0 : index
    %c14 = arith.constant 14 : index
    %c0_185 = arith.constant 0 : index
    %c0_186 = arith.constant 0 : index
    %132 = vector.load %arg1[%c0_184, %c14, %c0_185, %c0_186] : memref<1x64x16x12xf32, #tpu.memory_space<vmem>>, vector<1x1x15x12xf32>
    %133 = vector.shape_cast %132 : vector<1x1x15x12xf32> to vector<15x12xf32>
    %c0_187 = arith.constant 0 : index
    %c14_188 = arith.constant 14 : index
    %c1_189 = arith.constant 1 : index
    %c0_190 = arith.constant 0 : index
    %134 = vector.load %arg1[%c0_187, %c14_188, %c1_189, %c0_190] : memref<1x64x16x12xf32, #tpu.memory_space<vmem>>, vector<1x1x15x12xf32>
    %135 = vector.shape_cast %134 : vector<1x1x15x12xf32> to vector<15x12xf32>
    %c0_191 = arith.constant 0 : index
    %c15 = arith.constant 15 : index
    %c0_192 = arith.constant 0 : index
    %c0_193 = arith.constant 0 : index
    %136 = vector.load %arg1[%c0_191, %c15, %c0_192, %c0_193] : memref<1x64x16x12xf32, #tpu.memory_space<vmem>>, vector<1x1x15x12xf32>
    %137 = vector.shape_cast %136 : vector<1x1x15x12xf32> to vector<15x12xf32>
    %c0_194 = arith.constant 0 : index
    %c15_195 = arith.constant 15 : index
    %c1_196 = arith.constant 1 : index
    %c0_197 = arith.constant 0 : index
    %138 = vector.load %arg1[%c0_194, %c15_195, %c1_196, %c0_197] : memref<1x64x16x12xf32, #tpu.memory_space<vmem>>, vector<1x1x15x12xf32>
    %139 = vector.shape_cast %138 : vector<1x1x15x12xf32> to vector<15x12xf32>
    %140 = tpu.concatenate %109, %111, %113, %115, %117, %119, %121, %123, %125, %127, %129, %131, %133, %135, %137, %139 in 1 : vector<15x12xf32>, vector<15x12xf32>, vector<15x12xf32>, vector<15x12xf32>, vector<15x12xf32>, vector<15x12xf32>, vector<15x12xf32>, vector<15x12xf32>, vector<15x12xf32>, vector<15x12xf32>, vector<15x12xf32>, vector<15x12xf32>, vector<15x12xf32>, vector<15x12xf32>, vector<15x12xf32>, vector<15x12xf32> -> vector<15x192xf32>
    %141 = arith.truncf %140 : vector<15x192xf32> to vector<15x192xbf16>
    %c0_198 = arith.constant 0 : index
    %c0_199 = arith.constant 0 : index
    %142 = vector.load %arg3[%c0_198, %c0_199] : memref<192x8xbf16, #tpu.memory_space<vmem>>, vector<192x8xbf16>
    %cst_200 = arith.constant dense<0.000000e+00> : vector<15x8xf32>
    %143 = tpu.matmul %141, %142, %cst_200 {dimension_numbers = #tpu.dot_dimension_numbers<[1], [0], [0], [1], [0, 0, 1, 1], [], []>} : vector<15x192xbf16>, vector<192x8xbf16>, vector<15x8xf32> -> vector<15x8xf32>
    %c0_201 = arith.constant 0 : index
    %c0_202 = arith.constant 0 : index
    %144 = vector.load %arg4[%c0_201, %c0_202] : memref<1x8xf32, #tpu.memory_space<vmem>>, vector<1x8xf32>
    %145 = vector.broadcast %144 : vector<1x8xf32> to vector<15x8xf32>
    %146 = arith.addf %143, %145 : vector<15x8xf32>
    %cst_203 = arith.constant 0.000000e+00 : f32
    %147 = vector.broadcast %cst_203 : f32 to vector<15x8xf32>
    %148 = arith.maximumf %146, %147 : vector<15x8xf32>
    %cst_204 = arith.constant dense<0.000000e+00> : vector<7x8xf32>
    %149 = tpu.matmul %6, %148, %cst_204 {dimension_numbers = #tpu.dot_dimension_numbers<[1], [0], [0], [1], [0, 0, 1, 1], [], []>} : vector<7x15xf32>, vector<15x8xf32>, vector<7x8xf32> -> vector<7x8xf32>
    %cst_205 = arith.constant dense<0.000000e+00> : vector<7x8xf32>
    %150 = tpu.matmul %13, %148, %cst_205 {dimension_numbers = #tpu.dot_dimension_numbers<[1], [0], [0], [1], [0, 0, 1, 1], [], []>} : vector<7x15xf32>, vector<15x8xf32>, vector<7x8xf32> -> vector<7x8xf32>
    %151 = tpu.concatenate %149, %150 in 1 : vector<7x8xf32>, vector<7x8xf32> -> vector<7x16xf32>
    %c2_206 = arith.constant 2 : index
    %c0_207 = arith.constant 0 : index
    %c0_208 = arith.constant 0 : index
    %152 = vector.load %arg10[%c2_206, %c0_207, %c0_208] : memref<15x7x16xf32, #tpu.memory_space<vmem>>, vector<1x7x16xf32>
    %153 = vector.shape_cast %152 : vector<1x7x16xf32> to vector<7x16xf32>
    %154 = vector.shape_cast %151 : vector<7x16xf32> to vector<1x7x16xf32>
    tpu.vector_store %arg10[%c2_206, %c0_207, %c0_208], %154 {strides = array<i32>} : memref<15x7x16xf32, #tpu.memory_space<vmem>>, vector<1x7x16xf32>,
    %c0_209 = arith.constant 0 : index
    %c12_210 = arith.constant 12 : index
    %c0_211 = arith.constant 0 : index
    %c0_212 = arith.constant 0 : index
    %155 = vector.load %arg1[%c0_209, %c12_210, %c0_211, %c0_212] : memref<1x64x16x12xf32, #tpu.memory_space<vmem>>, vector<1x1x15x12xf32>
    %156 = vector.shape_cast %155 : vector<1x1x15x12xf32> to vector<15x12xf32>
    %c0_213 = arith.constant 0 : index
    %c12_214 = arith.constant 12 : index
    %c1_215 = arith.constant 1 : index
    %c0_216 = arith.constant 0 : index
    %157 = vector.load %arg1[%c0_213, %c12_214, %c1_215, %c0_216] : memref<1x64x16x12xf32, #tpu.memory_space<vmem>>, vector<1x1x15x12xf32>
    %158 = vector.shape_cast %157 : vector<1x1x15x12xf32> to vector<15x12xf32>
    %c0_217 = arith.constant 0 : index
    %c13_218 = arith.constant 13 : index
    %c0_219 = arith.constant 0 : index
    %c0_220 = arith.constant 0 : index
    %159 = vector.load %arg1[%c0_217, %c13_218, %c0_219, %c0_220] : memref<1x64x16x12xf32, #tpu.memory_space<vmem>>, vector<1x1x15x12xf32>
    %160 = vector.shape_cast %159 : vector<1x1x15x12xf32> to vector<15x12xf32>
    %c0_221 = arith.constant 0 : index
    %c13_222 = arith.constant 13 : index
    %c1_223 = arith.constant 1 : index
    %c0_224 = arith.constant 0 : index
    %161 = vector.load %arg1[%c0_221, %c13_222, %c1_223, %c0_224] : memref<1x64x16x12xf32, #tpu.memory_space<vmem>>, vector<1x1x15x12xf32>
    %162 = vector.shape_cast %161 : vector<1x1x15x12xf32> to vector<15x12xf32>
    %c0_225 = arith.constant 0 : index
    %c14_226 = arith.constant 14 : index
    %c0_227 = arith.constant 0 : index
    %c0_228 = arith.constant 0 : index
    %163 = vector.load %arg1[%c0_225, %c14_226, %c0_227, %c0_228] : memref<1x64x16x12xf32, #tpu.memory_space<vmem>>, vector<1x1x15x12xf32>
    %164 = vector.shape_cast %163 : vector<1x1x15x12xf32> to vector<15x12xf32>
    %c0_229 = arith.constant 0 : index
    %c14_230 = arith.constant 14 : index
    %c1_231 = arith.constant 1 : index
    %c0_232 = arith.constant 0 : index
    %165 = vector.load %arg1[%c0_229, %c14_230, %c1_231, %c0_232] : memref<1x64x16x12xf32, #tpu.memory_space<vmem>>, vector<1x1x15x12xf32>
    %166 = vector.shape_cast %165 : vector<1x1x15x12xf32> to vector<15x12xf32>
    %c0_233 = arith.constant 0 : index
    %c15_234 = arith.constant 15 : index
    %c0_235 = arith.constant 0 : index
    %c0_236 = arith.constant 0 : index
    %167 = vector.load %arg1[%c0_233, %c15_234, %c0_235, %c0_236] : memref<1x64x16x12xf32, #tpu.memory_space<vmem>>, vector<1x1x15x12xf32>
    %168 = vector.shape_cast %167 : vector<1x1x15x12xf32> to vector<15x12xf32>
    %c0_237 = arith.constant 0 : index
    %c15_238 = arith.constant 15 : index
    %c1_239 = arith.constant 1 : index
    %c0_240 = arith.constant 0 : index
    %169 = vector.load %arg1[%c0_237, %c15_238, %c1_239, %c0_240] : memref<1x64x16x12xf32, #tpu.memory_space<vmem>>, vector<1x1x15x12xf32>
    %170 = vector.shape_cast %169 : vector<1x1x15x12xf32> to vector<15x12xf32>
    %c0_241 = arith.constant 0 : index
    %c16 = arith.constant 16 : index
    %c0_242 = arith.constant 0 : index
    %c0_243 = arith.constant 0 : index
    %171 = vector.load %arg1[%c0_241, %c16, %c0_242, %c0_243] : memref<1x64x16x12xf32, #tpu.memory_space<vmem>>, vector<1x1x15x12xf32>
    %172 = vector.shape_cast %171 : vector<1x1x15x12xf32> to vector<15x12xf32>
    %c0_244 = arith.constant 0 : index
    %c16_245 = arith.constant 16 : index
    %c1_246 = arith.constant 1 : index
    %c0_247 = arith.constant 0 : index
    %173 = vector.load %arg1[%c0_244, %c16_245, %c1_246, %c0_247] : memref<1x64x16x12xf32, #tpu.memory_space<vmem>>, vector<1x1x15x12xf32>
    %174 = vector.shape_cast %173 : vector<1x1x15x12xf32> to vector<15x12xf32>
    %c0_248 = arith.constant 0 : index
    %c17 = arith.constant 17 : index
    %c0_249 = arith.constant 0 : index
    %c0_250 = arith.constant 0 : index
    %175 = vector.load %arg1[%c0_248, %c17, %c0_249, %c0_250] : memref<1x64x16x12xf32, #tpu.memory_space<vmem>>, vector<1x1x15x12xf32>
    %176 = vector.shape_cast %175 : vector<1x1x15x12xf32> to vector<15x12xf32>
    %c0_251 = arith.constant 0 : index
    %c17_252 = arith.constant 17 : index
    %c1_253 = arith.constant 1 : index
    %c0_254 = arith.constant 0 : index
    %177 = vector.load %arg1[%c0_251, %c17_252, %c1_253, %c0_254] : memref<1x64x16x12xf32, #tpu.memory_space<vmem>>, vector<1x1x15x12xf32>
    %178 = vector.shape_cast %177 : vector<1x1x15x12xf32> to vector<15x12xf32>
    %c0_255 = arith.constant 0 : index
    %c18 = arith.constant 18 : index
    %c0_256 = arith.constant 0 : index
    %c0_257 = arith.constant 0 : index
    %179 = vector.load %arg1[%c0_255, %c18, %c0_256, %c0_257] : memref<1x64x16x12xf32, #tpu.memory_space<vmem>>, vector<1x1x15x12xf32>
    %180 = vector.shape_cast %179 : vector<1x1x15x12xf32> to vector<15x12xf32>
    %c0_258 = arith.constant 0 : index
    %c18_259 = arith.constant 18 : index
    %c1_260 = arith.constant 1 : index
    %c0_261 = arith.constant 0 : index
    %181 = vector.load %arg1[%c0_258, %c18_259, %c1_260, %c0_261] : memref<1x64x16x12xf32, #tpu.memory_space<vmem>>, vector<1x1x15x12xf32>
    %182 = vector.shape_cast %181 : vector<1x1x15x12xf32> to vector<15x12xf32>
    %c0_262 = arith.constant 0 : index
    %c19 = arith.constant 19 : index
    %c0_263 = arith.constant 0 : index
    %c0_264 = arith.constant 0 : index
    %183 = vector.load %arg1[%c0_262, %c19, %c0_263, %c0_264] : memref<1x64x16x12xf32, #tpu.memory_space<vmem>>, vector<1x1x15x12xf32>
    %184 = vector.shape_cast %183 : vector<1x1x15x12xf32> to vector<15x12xf32>
    %c0_265 = arith.constant 0 : index
    %c19_266 = arith.constant 19 : index
    %c1_267 = arith.constant 1 : index
    %c0_268 = arith.constant 0 : index
    %185 = vector.load %arg1[%c0_265, %c19_266, %c1_267, %c0_268] : memref<1x64x16x12xf32, #tpu.memory_space<vmem>>, vector<1x1x15x12xf32>
    %186 = vector.shape_cast %185 : vector<1x1x15x12xf32> to vector<15x12xf32>
    %187 = tpu.concatenate %156, %158, %160, %162, %164, %166, %168, %170, %172, %174, %176, %178, %180, %182, %184, %186 in 1 : vector<15x12xf32>, vector<15x12xf32>, vector<15x12xf32>, vector<15x12xf32>, vector<15x12xf32>, vector<15x12xf32>, vector<15x12xf32>, vector<15x12xf32>, vector<15x12xf32>, vector<15x12xf32>, vector<15x12xf32>, vector<15x12xf32>, vector<15x12xf32>, vector<15x12xf32>, vector<15x12xf32>, vector<15x12xf32> -> vector<15x192xf32>
    %188 = arith.truncf %187 : vector<15x192xf32> to vector<15x192xbf16>
    %c0_269 = arith.constant 0 : index
    %c0_270 = arith.constant 0 : index
    %189 = vector.load %arg3[%c0_269, %c0_270] : memref<192x8xbf16, #tpu.memory_space<vmem>>, vector<192x8xbf16>
    %cst_271 = arith.constant dense<0.000000e+00> : vector<15x8xf32>
    %190 = tpu.matmul %188, %189, %cst_271 {dimension_numbers = #tpu.dot_dimension_numbers<[1], [0], [0], [1], [0, 0, 1, 1], [], []>} : vector<15x192xbf16>, vector<192x8xbf16>, vector<15x8xf32> -> vector<15x8xf32>
    %c0_272 = arith.constant 0 : index
    %c0_273 = arith.constant 0 : index
    %191 = vector.load %arg4[%c0_272, %c0_273] : memref<1x8xf32, #tpu.memory_space<vmem>>, vector<1x8xf32>
    %192 = vector.broadcast %191 : vector<1x8xf32> to vector<15x8xf32>
    %193 = arith.addf %190, %192 : vector<15x8xf32>
    %cst_274 = arith.constant 0.000000e+00 : f32
    %194 = vector.broadcast %cst_274 : f32 to vector<15x8xf32>
    %195 = arith.maximumf %193, %194 : vector<15x8xf32>
    %cst_275 = arith.constant dense<0.000000e+00> : vector<7x8xf32>
    %196 = tpu.matmul %6, %195, %cst_275 {dimension_numbers = #tpu.dot_dimension_numbers<[1], [0], [0], [1], [0, 0, 1, 1], [], []>} : vector<7x15xf32>, vector<15x8xf32>, vector<7x8xf32> -> vector<7x8xf32>
    %cst_276 = arith.constant dense<0.000000e+00> : vector<7x8xf32>
    %197 = tpu.matmul %13, %195, %cst_276 {dimension_numbers = #tpu.dot_dimension_numbers<[1], [0], [0], [1], [0, 0, 1, 1], [], []>} : vector<7x15xf32>, vector<15x8xf32>, vector<7x8xf32> -> vector<7x8xf32>
    %198 = tpu.concatenate %196, %197 in 1 : vector<7x8xf32>, vector<7x8xf32> -> vector<7x16xf32>
    %c3_277 = arith.constant 3 : index
    %c0_278 = arith.constant 0 : index
    %c0_279 = arith.constant 0 : index
    %199 = vector.load %arg10[%c3_277, %c0_278, %c0_279] : memref<15x7x16xf32, #tpu.memory_space<vmem>>, vector<1x7x16xf32>
    %200 = vector.shape_cast %199 : vector<1x7x16xf32> to vector<7x16xf32>
    %201 = vector.shape_cast %198 : vector<7x16xf32> to vector<1x7x16xf32>
    tpu.vector_store %arg10[%c3_277, %c0_278, %c0_279], %201 {strides = array<i32>} : memref<15x7x16xf32, #tpu.memory_space<vmem>>, vector<1x7x16xf32>,
    %c0_280 = arith.constant 0 : index
    %c16_281 = arith.constant 16 : index
    %c0_282 = arith.constant 0 : index
    %c0_283 = arith.constant 0 : index
    %202 = vector.load %arg1[%c0_280, %c16_281, %c0_282, %c0_283] : memref<1x64x16x12xf32, #tpu.memory_space<vmem>>, vector<1x1x15x12xf32>
    %203 = vector.shape_cast %202 : vector<1x1x15x12xf32> to vector<15x12xf32>
    %c0_284 = arith.constant 0 : index
    %c16_285 = arith.constant 16 : index
    %c1_286 = arith.constant 1 : index
    %c0_287 = arith.constant 0 : index
    %204 = vector.load %arg1[%c0_284, %c16_285, %c1_286, %c0_287] : memref<1x64x16x12xf32, #tpu.memory_space<vmem>>, vector<1x1x15x12xf32>
    %205 = vector.shape_cast %204 : vector<1x1x15x12xf32> to vector<15x12xf32>
    %c0_288 = arith.constant 0 : index
    %c17_289 = arith.constant 17 : index
    %c0_290 = arith.constant 0 : index
    %c0_291 = arith.constant 0 : index
    %206 = vector.load %arg1[%c0_288, %c17_289, %c0_290, %c0_291] : memref<1x64x16x12xf32, #tpu.memory_space<vmem>>, vector<1x1x15x12xf32>
    %207 = vector.shape_cast %206 : vector<1x1x15x12xf32> to vector<15x12xf32>
    %c0_292 = arith.constant 0 : index
    %c17_293 = arith.constant 17 : index
    %c1_294 = arith.constant 1 : index
    %c0_295 = arith.constant 0 : index
    %208 = vector.load %arg1[%c0_292, %c17_293, %c1_294, %c0_295] : memref<1x64x16x12xf32, #tpu.memory_space<vmem>>, vector<1x1x15x12xf32>
    %209 = vector.shape_cast %208 : vector<1x1x15x12xf32> to vector<15x12xf32>
    %c0_296 = arith.constant 0 : index
    %c18_297 = arith.constant 18 : index
    %c0_298 = arith.constant 0 : index
    %c0_299 = arith.constant 0 : index
    %210 = vector.load %arg1[%c0_296, %c18_297, %c0_298, %c0_299] : memref<1x64x16x12xf32, #tpu.memory_space<vmem>>, vector<1x1x15x12xf32>
    %211 = vector.shape_cast %210 : vector<1x1x15x12xf32> to vector<15x12xf32>
    %c0_300 = arith.constant 0 : index
    %c18_301 = arith.constant 18 : index
    %c1_302 = arith.constant 1 : index
    %c0_303 = arith.constant 0 : index
    %212 = vector.load %arg1[%c0_300, %c18_301, %c1_302, %c0_303] : memref<1x64x16x12xf32, #tpu.memory_space<vmem>>, vector<1x1x15x12xf32>
    %213 = vector.shape_cast %212 : vector<1x1x15x12xf32> to vector<15x12xf32>
    %c0_304 = arith.constant 0 : index
    %c19_305 = arith.constant 19 : index
    %c0_306 = arith.constant 0 : index
    %c0_307 = arith.constant 0 : index
    %214 = vector.load %arg1[%c0_304, %c19_305, %c0_306, %c0_307] : memref<1x64x16x12xf32, #tpu.memory_space<vmem>>, vector<1x1x15x12xf32>
    %215 = vector.shape_cast %214 : vector<1x1x15x12xf32> to vector<15x12xf32>
    %c0_308 = arith.constant 0 : index
    %c19_309 = arith.constant 19 : index
    %c1_310 = arith.constant 1 : index
    %c0_311 = arith.constant 0 : index
    %216 = vector.load %arg1[%c0_308, %c19_309, %c1_310, %c0_311] : memref<1x64x16x12xf32, #tpu.memory_space<vmem>>, vector<1x1x15x12xf32>
    %217 = vector.shape_cast %216 : vector<1x1x15x12xf32> to vector<15x12xf32>
    %c0_312 = arith.constant 0 : index
    %c20 = arith.constant 20 : index
    %c0_313 = arith.constant 0 : index
    %c0_314 = arith.constant 0 : index
    %218 = vector.load %arg1[%c0_312, %c20, %c0_313, %c0_314] : memref<1x64x16x12xf32, #tpu.memory_space<vmem>>, vector<1x1x15x12xf32>
    %219 = vector.shape_cast %218 : vector<1x1x15x12xf32> to vector<15x12xf32>
    %c0_315 = arith.constant 0 : index
    %c20_316 = arith.constant 20 : index
    %c1_317 = arith.constant 1 : index
    %c0_318 = arith.constant 0 : index
    %220 = vector.load %arg1[%c0_315, %c20_316, %c1_317, %c0_318] : memref<1x64x16x12xf32, #tpu.memory_space<vmem>>, vector<1x1x15x12xf32>
    %221 = vector.shape_cast %220 : vector<1x1x15x12xf32> to vector<15x12xf32>
    %c0_319 = arith.constant 0 : index
    %c21 = arith.constant 21 : index
    %c0_320 = arith.constant 0 : index
    %c0_321 = arith.constant 0 : index
    %222 = vector.load %arg1[%c0_319, %c21, %c0_320, %c0_321] : memref<1x64x16x12xf32, #tpu.memory_space<vmem>>, vector<1x1x15x12xf32>
    %223 = vector.shape_cast %222 : vector<1x1x15x12xf32> to vector<15x12xf32>
    %c0_322 = arith.constant 0 : index
    %c21_323 = arith.constant 21 : index
    %c1_324 = arith.constant 1 : index
    %c0_325 = arith.constant 0 : index
    %224 = vector.load %arg1[%c0_322, %c21_323, %c1_324, %c0_325] : memref<1x64x16x12xf32, #tpu.memory_space<vmem>>, vector<1x1x15x12xf32>
    %225 = vector.shape_cast %224 : vector<1x1x15x12xf32> to vector<15x12xf32>
    %c0_326 = arith.constant 0 : index
    %c22 = arith.constant 22 : index
    %c0_327 = arith.constant 0 : index
    %c0_328 = arith.constant 0 : index
    %226 = vector.load %arg1[%c0_326, %c22, %c0_327, %c0_328] : memref<1x64x16x12xf32, #tpu.memory_space<vmem>>, vector<1x1x15x12xf32>
    %227 = vector.shape_cast %226 : vector<1x1x15x12xf32> to vector<15x12xf32>
    %c0_329 = arith.constant 0 : index
    %c22_330 = arith.constant 22 : index
    %c1_331 = arith.constant 1 : index
    %c0_332 = arith.constant 0 : index
    %228 = vector.load %arg1[%c0_329, %c22_330, %c1_331, %c0_332] : memref<1x64x16x12xf32, #tpu.memory_space<vmem>>, vector<1x1x15x12xf32>
    %229 = vector.shape_cast %228 : vector<1x1x15x12xf32> to vector<15x12xf32>
    %c0_333 = arith.constant 0 : index
    %c23 = arith.constant 23 : index
    %c0_334 = arith.constant 0 : index
    %c0_335 = arith.constant 0 : index
    %230 = vector.load %arg1[%c0_333, %c23, %c0_334, %c0_335] : memref<1x64x16x12xf32, #tpu.memory_space<vmem>>, vector<1x1x15x12xf32>
    %231 = vector.shape_cast %230 : vector<1x1x15x12xf32> to vector<15x12xf32>
    %c0_336 = arith.constant 0 : index
    %c23_337 = arith.constant 23 : index
    %c1_338 = arith.constant 1 : index
    %c0_339 = arith.constant 0 : index
    %232 = vector.load %arg1[%c0_336, %c23_337, %c1_338, %c0_339] : memref<1x64x16x12xf32, #tpu.memory_space<vmem>>, vector<1x1x15x12xf32>
    %233 = vector.shape_cast %232 : vector<1x1x15x12xf32> to vector<15x12xf32>
    %234 = tpu.concatenate %203, %205, %207, %209, %211, %213, %215, %217, %219, %221, %223, %225, %227, %229, %231, %233 in 1 : vector<15x12xf32>, vector<15x12xf32>, vector<15x12xf32>, vector<15x12xf32>, vector<15x12xf32>, vector<15x12xf32>, vector<15x12xf32>, vector<15x12xf32>, vector<15x12xf32>, vector<15x12xf32>, vector<15x12xf32>, vector<15x12xf32>, vector<15x12xf32>, vector<15x12xf32>, vector<15x12xf32>, vector<15x12xf32> -> vector<15x192xf32>
    %235 = arith.truncf %234 : vector<15x192xf32> to vector<15x192xbf16>
    %c0_340 = arith.constant 0 : index
    %c0_341 = arith.constant 0 : index
    %236 = vector.load %arg3[%c0_340, %c0_341] : memref<192x8xbf16, #tpu.memory_space<vmem>>, vector<192x8xbf16>
    %cst_342 = arith.constant dense<0.000000e+00> : vector<15x8xf32>
    %237 = tpu.matmul %235, %236, %cst_342 {dimension_numbers = #tpu.dot_dimension_numbers<[1], [0], [0], [1], [0, 0, 1, 1], [], []>} : vector<15x192xbf16>, vector<192x8xbf16>, vector<15x8xf32> -> vector<15x8xf32>
    %c0_343 = arith.constant 0 : index
    %c0_344 = arith.constant 0 : index
    %238 = vector.load %arg4[%c0_343, %c0_344] : memref<1x8xf32, #tpu.memory_space<vmem>>, vector<1x8xf32>
    %239 = vector.broadcast %238 : vector<1x8xf32> to vector<15x8xf32>
    %240 = arith.addf %237, %239 : vector<15x8xf32>
    %cst_345 = arith.constant 0.000000e+00 : f32
    %241 = vector.broadcast %cst_345 : f32 to vector<15x8xf32>
    %242 = arith.maximumf %240, %241 : vector<15x8xf32>
    %cst_346 = arith.constant dense<0.000000e+00> : vector<7x8xf32>
    %243 = tpu.matmul %6, %242, %cst_346 {dimension_numbers = #tpu.dot_dimension_numbers<[1], [0], [0], [1], [0, 0, 1, 1], [], []>} : vector<7x15xf32>, vector<15x8xf32>, vector<7x8xf32> -> vector<7x8xf32>
    %cst_347 = arith.constant dense<0.000000e+00> : vector<7x8xf32>
    %244 = tpu.matmul %13, %242, %cst_347 {dimension_numbers = #tpu.dot_dimension_numbers<[1], [0], [0], [1], [0, 0, 1, 1], [], []>} : vector<7x15xf32>, vector<15x8xf32>, vector<7x8xf32> -> vector<7x8xf32>
    %245 = tpu.concatenate %243, %244 in 1 : vector<7x8xf32>, vector<7x8xf32> -> vector<7x16xf32>
    %c4_348 = arith.constant 4 : index
    %c0_349 = arith.constant 0 : index
    %c0_350 = arith.constant 0 : index
    %246 = vector.load %arg10[%c4_348, %c0_349, %c0_350] : memref<15x7x16xf32, #tpu.memory_space<vmem>>, vector<1x7x16xf32>
    %247 = vector.shape_cast %246 : vector<1x7x16xf32> to vector<7x16xf32>
    %248 = vector.shape_cast %245 : vector<7x16xf32> to vector<1x7x16xf32>
    tpu.vector_store %arg10[%c4_348, %c0_349, %c0_350], %248 {strides = array<i32>} : memref<15x7x16xf32, #tpu.memory_space<vmem>>, vector<1x7x16xf32>,
    %c0_351 = arith.constant 0 : index
    %c20_352 = arith.constant 20 : index
    %c0_353 = arith.constant 0 : index
    %c0_354 = arith.constant 0 : index
    %249 = vector.load %arg1[%c0_351, %c20_352, %c0_353, %c0_354] : memref<1x64x16x12xf32, #tpu.memory_space<vmem>>, vector<1x1x15x12xf32>
    %250 = vector.shape_cast %249 : vector<1x1x15x12xf32> to vector<15x12xf32>
    %c0_355 = arith.constant 0 : index
    %c20_356 = arith.constant 20 : index
    %c1_357 = arith.constant 1 : index
    %c0_358 = arith.constant 0 : index
    %251 = vector.load %arg1[%c0_355, %c20_356, %c1_357, %c0_358] : memref<1x64x16x12xf32, #tpu.memory_space<vmem>>, vector<1x1x15x12xf32>
    %252 = vector.shape_cast %251 : vector<1x1x15x12xf32> to vector<15x12xf32>
    %c0_359 = arith.constant 0 : index
    %c21_360 = arith.constant 21 : index
    %c0_361 = arith.constant 0 : index
    %c0_362 = arith.constant 0 : index
    %253 = vector.load %arg1[%c0_359, %c21_360, %c0_361, %c0_362] : memref<1x64x16x12xf32, #tpu.memory_space<vmem>>, vector<1x1x15x12xf32>
    %254 = vector.shape_cast %253 : vector<1x1x15x12xf32> to vector<15x12xf32>
    %c0_363 = arith.constant 0 : index
    %c21_364 = arith.constant 21 : index
    %c1_365 = arith.constant 1 : index
    %c0_366 = arith.constant 0 : index
    %255 = vector.load %arg1[%c0_363, %c21_364, %c1_365, %c0_366] : memref<1x64x16x12xf32, #tpu.memory_space<vmem>>, vector<1x1x15x12xf32>
    %256 = vector.shape_cast %255 : vector<1x1x15x12xf32> to vector<15x12xf32>
    %c0_367 = arith.constant 0 : index
    %c22_368 = arith.constant 22 : index
    %c0_369 = arith.constant 0 : index
    %c0_370 = arith.constant 0 : index
    %257 = vector.load %arg1[%c0_367, %c22_368, %c0_369, %c0_370] : memref<1x64x16x12xf32, #tpu.memory_space<vmem>>, vector<1x1x15x12xf32>
    %258 = vector.shape_cast %257 : vector<1x1x15x12xf32> to vector<15x12xf32>
    %c0_371 = arith.constant 0 : index
    %c22_372 = arith.constant 22 : index
    %c1_373 = arith.constant 1 : index
    %c0_374 = arith.constant 0 : index
    %259 = vector.load %arg1[%c0_371, %c22_372, %c1_373, %c0_374] : memref<1x64x16x12xf32, #tpu.memory_space<vmem>>, vector<1x1x15x12xf32>
    %260 = vector.shape_cast %259 : vector<1x1x15x12xf32> to vector<15x12xf32>
    %c0_375 = arith.constant 0 : index
    %c23_376 = arith.constant 23 : index
    %c0_377 = arith.constant 0 : index
    %c0_378 = arith.constant 0 : index
    %261 = vector.load %arg1[%c0_375, %c23_376, %c0_377, %c0_378] : memref<1x64x16x12xf32, #tpu.memory_space<vmem>>, vector<1x1x15x12xf32>
    %262 = vector.shape_cast %261 : vector<1x1x15x12xf32> to vector<15x12xf32>
    %c0_379 = arith.constant 0 : index
    %c23_380 = arith.constant 23 : index
    %c1_381 = arith.constant 1 : index
    %c0_382 = arith.constant 0 : index
    %263 = vector.load %arg1[%c0_379, %c23_380, %c1_381, %c0_382] : memref<1x64x16x12xf32, #tpu.memory_space<vmem>>, vector<1x1x15x12xf32>
    %264 = vector.shape_cast %263 : vector<1x1x15x12xf32> to vector<15x12xf32>
    %c0_383 = arith.constant 0 : index
    %c24 = arith.constant 24 : index
    %c0_384 = arith.constant 0 : index
    %c0_385 = arith.constant 0 : index
    %265 = vector.load %arg1[%c0_383, %c24, %c0_384, %c0_385] : memref<1x64x16x12xf32, #tpu.memory_space<vmem>>, vector<1x1x15x12xf32>
    %266 = vector.shape_cast %265 : vector<1x1x15x12xf32> to vector<15x12xf32>
    %c0_386 = arith.constant 0 : index
    %c24_387 = arith.constant 24 : index
    %c1_388 = arith.constant 1 : index
    %c0_389 = arith.constant 0 : index
    %267 = vector.load %arg1[%c0_386, %c24_387, %c1_388, %c0_389] : memref<1x64x16x12xf32, #tpu.memory_space<vmem>>, vector<1x1x15x12xf32>
    %268 = vector.shape_cast %267 : vector<1x1x15x12xf32> to vector<15x12xf32>
    %c0_390 = arith.constant 0 : index
    %c25 = arith.constant 25 : index
    %c0_391 = arith.constant 0 : index
    %c0_392 = arith.constant 0 : index
    %269 = vector.load %arg1[%c0_390, %c25, %c0_391, %c0_392] : memref<1x64x16x12xf32, #tpu.memory_space<vmem>>, vector<1x1x15x12xf32>
    %270 = vector.shape_cast %269 : vector<1x1x15x12xf32> to vector<15x12xf32>
    %c0_393 = arith.constant 0 : index
    %c25_394 = arith.constant 25 : index
    %c1_395 = arith.constant 1 : index
    %c0_396 = arith.constant 0 : index
    %271 = vector.load %arg1[%c0_393, %c25_394, %c1_395, %c0_396] : memref<1x64x16x12xf32, #tpu.memory_space<vmem>>, vector<1x1x15x12xf32>
    %272 = vector.shape_cast %271 : vector<1x1x15x12xf32> to vector<15x12xf32>
    %c0_397 = arith.constant 0 : index
    %c26 = arith.constant 26 : index
    %c0_398 = arith.constant 0 : index
    %c0_399 = arith.constant 0 : index
    %273 = vector.load %arg1[%c0_397, %c26, %c0_398, %c0_399] : memref<1x64x16x12xf32, #tpu.memory_space<vmem>>, vector<1x1x15x12xf32>
    %274 = vector.shape_cast %273 : vector<1x1x15x12xf32> to vector<15x12xf32>
    %c0_400 = arith.constant 0 : index
    %c26_401 = arith.constant 26 : index
    %c1_402 = arith.constant 1 : index
    %c0_403 = arith.constant 0 : index
    %275 = vector.load %arg1[%c0_400, %c26_401, %c1_402, %c0_403] : memref<1x64x16x12xf32, #tpu.memory_space<vmem>>, vector<1x1x15x12xf32>
    %276 = vector.shape_cast %275 : vector<1x1x15x12xf32> to vector<15x12xf32>
    %c0_404 = arith.constant 0 : index
    %c27 = arith.constant 27 : index
    %c0_405 = arith.constant 0 : index
    %c0_406 = arith.constant 0 : index
    %277 = vector.load %arg1[%c0_404, %c27, %c0_405, %c0_406] : memref<1x64x16x12xf32, #tpu.memory_space<vmem>>, vector<1x1x15x12xf32>
    %278 = vector.shape_cast %277 : vector<1x1x15x12xf32> to vector<15x12xf32>
    %c0_407 = arith.constant 0 : index
    %c27_408 = arith.constant 27 : index
    %c1_409 = arith.constant 1 : index
    %c0_410 = arith.constant 0 : index
    %279 = vector.load %arg1[%c0_407, %c27_408, %c1_409, %c0_410] : memref<1x64x16x12xf32, #tpu.memory_space<vmem>>, vector<1x1x15x12xf32>
    %280 = vector.shape_cast %279 : vector<1x1x15x12xf32> to vector<15x12xf32>
    %281 = tpu.concatenate %250, %252, %254, %256, %258, %260, %262, %264, %266, %268, %270, %272, %274, %276, %278, %280 in 1 : vector<15x12xf32>, vector<15x12xf32>, vector<15x12xf32>, vector<15x12xf32>, vector<15x12xf32>, vector<15x12xf32>, vector<15x12xf32>, vector<15x12xf32>, vector<15x12xf32>, vector<15x12xf32>, vector<15x12xf32>, vector<15x12xf32>, vector<15x12xf32>, vector<15x12xf32>, vector<15x12xf32>, vector<15x12xf32> -> vector<15x192xf32>
    %282 = arith.truncf %281 : vector<15x192xf32> to vector<15x192xbf16>
    %c0_411 = arith.constant 0 : index
    %c0_412 = arith.constant 0 : index
    %283 = vector.load %arg3[%c0_411, %c0_412] : memref<192x8xbf16, #tpu.memory_space<vmem>>, vector<192x8xbf16>
    %cst_413 = arith.constant dense<0.000000e+00> : vector<15x8xf32>
    %284 = tpu.matmul %282, %283, %cst_413 {dimension_numbers = #tpu.dot_dimension_numbers<[1], [0], [0], [1], [0, 0, 1, 1], [], []>} : vector<15x192xbf16>, vector<192x8xbf16>, vector<15x8xf32> -> vector<15x8xf32>
    %c0_414 = arith.constant 0 : index
    %c0_415 = arith.constant 0 : index
    %285 = vector.load %arg4[%c0_414, %c0_415] : memref<1x8xf32, #tpu.memory_space<vmem>>, vector<1x8xf32>
    %286 = vector.broadcast %285 : vector<1x8xf32> to vector<15x8xf32>
    %287 = arith.addf %284, %286 : vector<15x8xf32>
    %cst_416 = arith.constant 0.000000e+00 : f32
    %288 = vector.broadcast %cst_416 : f32 to vector<15x8xf32>
    %289 = arith.maximumf %287, %288 : vector<15x8xf32>
    %cst_417 = arith.constant dense<0.000000e+00> : vector<7x8xf32>
    %290 = tpu.matmul %6, %289, %cst_417 {dimension_numbers = #tpu.dot_dimension_numbers<[1], [0], [0], [1], [0, 0, 1, 1], [], []>} : vector<7x15xf32>, vector<15x8xf32>, vector<7x8xf32> -> vector<7x8xf32>
    %cst_418 = arith.constant dense<0.000000e+00> : vector<7x8xf32>
    %291 = tpu.matmul %13, %289, %cst_418 {dimension_numbers = #tpu.dot_dimension_numbers<[1], [0], [0], [1], [0, 0, 1, 1], [], []>} : vector<7x15xf32>, vector<15x8xf32>, vector<7x8xf32> -> vector<7x8xf32>
    %292 = tpu.concatenate %290, %291 in 1 : vector<7x8xf32>, vector<7x8xf32> -> vector<7x16xf32>
    %c5_419 = arith.constant 5 : index
    %c0_420 = arith.constant 0 : index
    %c0_421 = arith.constant 0 : index
    %293 = vector.load %arg10[%c5_419, %c0_420, %c0_421] : memref<15x7x16xf32, #tpu.memory_space<vmem>>, vector<1x7x16xf32>
    %294 = vector.shape_cast %293 : vector<1x7x16xf32> to vector<7x16xf32>
    %295 = vector.shape_cast %292 : vector<7x16xf32> to vector<1x7x16xf32>
    tpu.vector_store %arg10[%c5_419, %c0_420, %c0_421], %295 {strides = array<i32>} : memref<15x7x16xf32, #tpu.memory_space<vmem>>, vector<1x7x16xf32>,
    %c0_422 = arith.constant 0 : index
    %c24_423 = arith.constant 24 : index
    %c0_424 = arith.constant 0 : index
    %c0_425 = arith.constant 0 : index
    %296 = vector.load %arg1[%c0_422, %c24_423, %c0_424, %c0_425] : memref<1x64x16x12xf32, #tpu.memory_space<vmem>>, vector<1x1x15x12xf32>
    %297 = vector.shape_cast %296 : vector<1x1x15x12xf32> to vector<15x12xf32>
    %c0_426 = arith.constant 0 : index
    %c24_427 = arith.constant 24 : index
    %c1_428 = arith.constant 1 : index
    %c0_429 = arith.constant 0 : index
    %298 = vector.load %arg1[%c0_426, %c24_427, %c1_428, %c0_429] : memref<1x64x16x12xf32, #tpu.memory_space<vmem>>, vector<1x1x15x12xf32>
    %299 = vector.shape_cast %298 : vector<1x1x15x12xf32> to vector<15x12xf32>
    %c0_430 = arith.constant 0 : index
    %c25_431 = arith.constant 25 : index
    %c0_432 = arith.constant 0 : index
    %c0_433 = arith.constant 0 : index
    %300 = vector.load %arg1[%c0_430, %c25_431, %c0_432, %c0_433] : memref<1x64x16x12xf32, #tpu.memory_space<vmem>>, vector<1x1x15x12xf32>
    %301 = vector.shape_cast %300 : vector<1x1x15x12xf32> to vector<15x12xf32>
    %c0_434 = arith.constant 0 : index
    %c25_435 = arith.constant 25 : index
    %c1_436 = arith.constant 1 : index
    %c0_437 = arith.constant 0 : index
    %302 = vector.load %arg1[%c0_434, %c25_435, %c1_436, %c0_437] : memref<1x64x16x12xf32, #tpu.memory_space<vmem>>, vector<1x1x15x12xf32>
    %303 = vector.shape_cast %302 : vector<1x1x15x12xf32> to vector<15x12xf32>
    %c0_438 = arith.constant 0 : index
    %c26_439 = arith.constant 26 : index
    %c0_440 = arith.constant 0 : index
    %c0_441 = arith.constant 0 : index
    %304 = vector.load %arg1[%c0_438, %c26_439, %c0_440, %c0_441] : memref<1x64x16x12xf32, #tpu.memory_space<vmem>>, vector<1x1x15x12xf32>
    %305 = vector.shape_cast %304 : vector<1x1x15x12xf32> to vector<15x12xf32>
    %c0_442 = arith.constant 0 : index
    %c26_443 = arith.constant 26 : index
    %c1_444 = arith.constant 1 : index
    %c0_445 = arith.constant 0 : index
    %306 = vector.load %arg1[%c0_442, %c26_443, %c1_444, %c0_445] : memref<1x64x16x12xf32, #tpu.memory_space<vmem>>, vector<1x1x15x12xf32>
    %307 = vector.shape_cast %306 : vector<1x1x15x12xf32> to vector<15x12xf32>
    %c0_446 = arith.constant 0 : index
    %c27_447 = arith.constant 27 : index
    %c0_448 = arith.constant 0 : index
    %c0_449 = arith.constant 0 : index
    %308 = vector.load %arg1[%c0_446, %c27_447, %c0_448, %c0_449] : memref<1x64x16x12xf32, #tpu.memory_space<vmem>>, vector<1x1x15x12xf32>
    %309 = vector.shape_cast %308 : vector<1x1x15x12xf32> to vector<15x12xf32>
    %c0_450 = arith.constant 0 : index
    %c27_451 = arith.constant 27 : index
    %c1_452 = arith.constant 1 : index
    %c0_453 = arith.constant 0 : index
    %310 = vector.load %arg1[%c0_450, %c27_451, %c1_452, %c0_453] : memref<1x64x16x12xf32, #tpu.memory_space<vmem>>, vector<1x1x15x12xf32>
    %311 = vector.shape_cast %310 : vector<1x1x15x12xf32> to vector<15x12xf32>
    %c0_454 = arith.constant 0 : index
    %c28 = arith.constant 28 : index
    %c0_455 = arith.constant 0 : index
    %c0_456 = arith.constant 0 : index
    %312 = vector.load %arg1[%c0_454, %c28, %c0_455, %c0_456] : memref<1x64x16x12xf32, #tpu.memory_space<vmem>>, vector<1x1x15x12xf32>
    %313 = vector.shape_cast %312 : vector<1x1x15x12xf32> to vector<15x12xf32>
    %c0_457 = arith.constant 0 : index
    %c28_458 = arith.constant 28 : index
    %c1_459 = arith.constant 1 : index
    %c0_460 = arith.constant 0 : index
    %314 = vector.load %arg1[%c0_457, %c28_458, %c1_459, %c0_460] : memref<1x64x16x12xf32, #tpu.memory_space<vmem>>, vector<1x1x15x12xf32>
    %315 = vector.shape_cast %314 : vector<1x1x15x12xf32> to vector<15x12xf32>
    %c0_461 = arith.constant 0 : index
    %c29 = arith.constant 29 : index
    %c0_462 = arith.constant 0 : index
    %c0_463 = arith.constant 0 : index
    %316 = vector.load %arg1[%c0_461, %c29, %c0_462, %c0_463] : memref<1x64x16x12xf32, #tpu.memory_space<vmem>>, vector<1x1x15x12xf32>
    %317 = vector.shape_cast %316 : vector<1x1x15x12xf32> to vector<15x12xf32>
    %c0_464 = arith.constant 0 : index
    %c29_465 = arith.constant 29 : index
    %c1_466 = arith.constant 1 : index
    %c0_467 = arith.constant 0 : index
    %318 = vector.load %arg1[%c0_464, %c29_465, %c1_466, %c0_467] : memref<1x64x16x12xf32, #tpu.memory_space<vmem>>, vector<1x1x15x12xf32>
    %319 = vector.shape_cast %318 : vector<1x1x15x12xf32> to vector<15x12xf32>
    %c0_468 = arith.constant 0 : index
    %c30 = arith.constant 30 : index
    %c0_469 = arith.constant 0 : index
    %c0_470 = arith.constant 0 : index
    %320 = vector.load %arg1[%c0_468, %c30, %c0_469, %c0_470] : memref<1x64x16x12xf32, #tpu.memory_space<vmem>>, vector<1x1x15x12xf32>
    %321 = vector.shape_cast %320 : vector<1x1x15x12xf32> to vector<15x12xf32>
    %c0_471 = arith.constant 0 : index
    %c30_472 = arith.constant 30 : index
    %c1_473 = arith.constant 1 : index
    %c0_474 = arith.constant 0 : index
    %322 = vector.load %arg1[%c0_471, %c30_472, %c1_473, %c0_474] : memref<1x64x16x12xf32, #tpu.memory_space<vmem>>, vector<1x1x15x12xf32>
    %323 = vector.shape_cast %322 : vector<1x1x15x12xf32> to vector<15x12xf32>
    %c0_475 = arith.constant 0 : index
    %c31 = arith.constant 31 : index
    %c0_476 = arith.constant 0 : index
    %c0_477 = arith.constant 0 : index
    %324 = vector.load %arg1[%c0_475, %c31, %c0_476, %c0_477] : memref<1x64x16x12xf32, #tpu.memory_space<vmem>>, vector<1x1x15x12xf32>
    %325 = vector.shape_cast %324 : vector<1x1x15x12xf32> to vector<15x12xf32>
    %c0_478 = arith.constant 0 : index
    %c31_479 = arith.constant 31 : index
    %c1_480 = arith.constant 1 : index
    %c0_481 = arith.constant 0 : index
    %326 = vector.load %arg1[%c0_478, %c31_479, %c1_480, %c0_481] : memref<1x64x16x12xf32, #tpu.memory_space<vmem>>, vector<1x1x15x12xf32>
    %327 = vector.shape_cast %326 : vector<1x1x15x12xf32> to vector<15x12xf32>
    %328 = tpu.concatenate %297, %299, %301, %303, %305, %307, %309, %311, %313, %315, %317, %319, %321, %323, %325, %327 in 1 : vector<15x12xf32>, vector<15x12xf32>, vector<15x12xf32>, vector<15x12xf32>, vector<15x12xf32>, vector<15x12xf32>, vector<15x12xf32>, vector<15x12xf32>, vector<15x12xf32>, vector<15x12xf32>, vector<15x12xf32>, vector<15x12xf32>, vector<15x12xf32>, vector<15x12xf32>, vector<15x12xf32>, vector<15x12xf32> -> vector<15x192xf32>
    %329 = arith.truncf %328 : vector<15x192xf32> to vector<15x192xbf16>
    %c0_482 = arith.constant 0 : index
    %c0_483 = arith.constant 0 : index
    %330 = vector.load %arg3[%c0_482, %c0_483] : memref<192x8xbf16, #tpu.memory_space<vmem>>, vector<192x8xbf16>
    %cst_484 = arith.constant dense<0.000000e+00> : vector<15x8xf32>
    %331 = tpu.matmul %329, %330, %cst_484 {dimension_numbers = #tpu.dot_dimension_numbers<[1], [0], [0], [1], [0, 0, 1, 1], [], []>} : vector<15x192xbf16>, vector<192x8xbf16>, vector<15x8xf32> -> vector<15x8xf32>
    %c0_485 = arith.constant 0 : index
    %c0_486 = arith.constant 0 : index
    %332 = vector.load %arg4[%c0_485, %c0_486] : memref<1x8xf32, #tpu.memory_space<vmem>>, vector<1x8xf32>
    %333 = vector.broadcast %332 : vector<1x8xf32> to vector<15x8xf32>
    %334 = arith.addf %331, %333 : vector<15x8xf32>
    %cst_487 = arith.constant 0.000000e+00 : f32
    %335 = vector.broadcast %cst_487 : f32 to vector<15x8xf32>
    %336 = arith.maximumf %334, %335 : vector<15x8xf32>
    %cst_488 = arith.constant dense<0.000000e+00> : vector<7x8xf32>
    %337 = tpu.matmul %6, %336, %cst_488 {dimension_numbers = #tpu.dot_dimension_numbers<[1], [0], [0], [1], [0, 0, 1, 1], [], []>} : vector<7x15xf32>, vector<15x8xf32>, vector<7x8xf32> -> vector<7x8xf32>
    %cst_489 = arith.constant dense<0.000000e+00> : vector<7x8xf32>
    %338 = tpu.matmul %13, %336, %cst_489 {dimension_numbers = #tpu.dot_dimension_numbers<[1], [0], [0], [1], [0, 0, 1, 1], [], []>} : vector<7x15xf32>, vector<15x8xf32>, vector<7x8xf32> -> vector<7x8xf32>
    %339 = tpu.concatenate %337, %338 in 1 : vector<7x8xf32>, vector<7x8xf32> -> vector<7x16xf32>
    %c6_490 = arith.constant 6 : index
    %c0_491 = arith.constant 0 : index
    %c0_492 = arith.constant 0 : index
    %340 = vector.load %arg10[%c6_490, %c0_491, %c0_492] : memref<15x7x16xf32, #tpu.memory_space<vmem>>, vector<1x7x16xf32>
    %341 = vector.shape_cast %340 : vector<1x7x16xf32> to vector<7x16xf32>
    %342 = vector.shape_cast %339 : vector<7x16xf32> to vector<1x7x16xf32>
    tpu.vector_store %arg10[%c6_490, %c0_491, %c0_492], %342 {strides = array<i32>} : memref<15x7x16xf32, #tpu.memory_space<vmem>>, vector<1x7x16xf32>,
    %c0_493 = arith.constant 0 : index
    %c28_494 = arith.constant 28 : index
    %c0_495 = arith.constant 0 : index
    %c0_496 = arith.constant 0 : index
    %343 = vector.load %arg1[%c0_493, %c28_494, %c0_495, %c0_496] : memref<1x64x16x12xf32, #tpu.memory_space<vmem>>, vector<1x1x15x12xf32>
    %344 = vector.shape_cast %343 : vector<1x1x15x12xf32> to vector<15x12xf32>
    %c0_497 = arith.constant 0 : index
    %c28_498 = arith.constant 28 : index
    %c1_499 = arith.constant 1 : index
    %c0_500 = arith.constant 0 : index
    %345 = vector.load %arg1[%c0_497, %c28_498, %c1_499, %c0_500] : memref<1x64x16x12xf32, #tpu.memory_space<vmem>>, vector<1x1x15x12xf32>
    %346 = vector.shape_cast %345 : vector<1x1x15x12xf32> to vector<15x12xf32>
    %c0_501 = arith.constant 0 : index
    %c29_502 = arith.constant 29 : index
    %c0_503 = arith.constant 0 : index
    %c0_504 = arith.constant 0 : index
    %347 = vector.load %arg1[%c0_501, %c29_502, %c0_503, %c0_504] : memref<1x64x16x12xf32, #tpu.memory_space<vmem>>, vector<1x1x15x12xf32>
    %348 = vector.shape_cast %347 : vector<1x1x15x12xf32> to vector<15x12xf32>
    %c0_505 = arith.constant 0 : index
    %c29_506 = arith.constant 29 : index
    %c1_507 = arith.constant 1 : index
    %c0_508 = arith.constant 0 : index
    %349 = vector.load %arg1[%c0_505, %c29_506, %c1_507, %c0_508] : memref<1x64x16x12xf32, #tpu.memory_space<vmem>>, vector<1x1x15x12xf32>
    %350 = vector.shape_cast %349 : vector<1x1x15x12xf32> to vector<15x12xf32>
    %c0_509 = arith.constant 0 : index
    %c30_510 = arith.constant 30 : index
    %c0_511 = arith.constant 0 : index
    %c0_512 = arith.constant 0 : index
    %351 = vector.load %arg1[%c0_509, %c30_510, %c0_511, %c0_512] : memref<1x64x16x12xf32, #tpu.memory_space<vmem>>, vector<1x1x15x12xf32>
    %352 = vector.shape_cast %351 : vector<1x1x15x12xf32> to vector<15x12xf32>
    %c0_513 = arith.constant 0 : index
    %c30_514 = arith.constant 30 : index
    %c1_515 = arith.constant 1 : index
    %c0_516 = arith.constant 0 : index
    %353 = vector.load %arg1[%c0_513, %c30_514, %c1_515, %c0_516] : memref<1x64x16x12xf32, #tpu.memory_space<vmem>>, vector<1x1x15x12xf32>
    %354 = vector.shape_cast %353 : vector<1x1x15x12xf32> to vector<15x12xf32>
    %c0_517 = arith.constant 0 : index
    %c31_518 = arith.constant 31 : index
    %c0_519 = arith.constant 0 : index
    %c0_520 = arith.constant 0 : index
    %355 = vector.load %arg1[%c0_517, %c31_518, %c0_519, %c0_520] : memref<1x64x16x12xf32, #tpu.memory_space<vmem>>, vector<1x1x15x12xf32>
    %356 = vector.shape_cast %355 : vector<1x1x15x12xf32> to vector<15x12xf32>
    %c0_521 = arith.constant 0 : index
    %c31_522 = arith.constant 31 : index
    %c1_523 = arith.constant 1 : index
    %c0_524 = arith.constant 0 : index
    %357 = vector.load %arg1[%c0_521, %c31_522, %c1_523, %c0_524] : memref<1x64x16x12xf32, #tpu.memory_space<vmem>>, vector<1x1x15x12xf32>
    %358 = vector.shape_cast %357 : vector<1x1x15x12xf32> to vector<15x12xf32>
    %c0_525 = arith.constant 0 : index
    %c32 = arith.constant 32 : index
    %c0_526 = arith.constant 0 : index
    %c0_527 = arith.constant 0 : index
    %359 = vector.load %arg1[%c0_525, %c32, %c0_526, %c0_527] : memref<1x64x16x12xf32, #tpu.memory_space<vmem>>, vector<1x1x15x12xf32>
    %360 = vector.shape_cast %359 : vector<1x1x15x12xf32> to vector<15x12xf32>
    %c0_528 = arith.constant 0 : index
    %c32_529 = arith.constant 32 : index
    %c1_530 = arith.constant 1 : index
    %c0_531 = arith.constant 0 : index
    %361 = vector.load %arg1[%c0_528, %c32_529, %c1_530, %c0_531] : memref<1x64x16x12xf32, #tpu.memory_space<vmem>>, vector<1x1x15x12xf32>
    %362 = vector.shape_cast %361 : vector<1x1x15x12xf32> to vector<15x12xf32>
    %c0_532 = arith.constant 0 : index
    %c33 = arith.constant 33 : index
    %c0_533 = arith.constant 0 : index
    %c0_534 = arith.constant 0 : index
    %363 = vector.load %arg1[%c0_532, %c33, %c0_533, %c0_534] : memref<1x64x16x12xf32, #tpu.memory_space<vmem>>, vector<1x1x15x12xf32>
    %364 = vector.shape_cast %363 : vector<1x1x15x12xf32> to vector<15x12xf32>
    %c0_535 = arith.constant 0 : index
    %c33_536 = arith.constant 33 : index
    %c1_537 = arith.constant 1 : index
    %c0_538 = arith.constant 0 : index
    %365 = vector.load %arg1[%c0_535, %c33_536, %c1_537, %c0_538] : memref<1x64x16x12xf32, #tpu.memory_space<vmem>>, vector<1x1x15x12xf32>
    %366 = vector.shape_cast %365 : vector<1x1x15x12xf32> to vector<15x12xf32>
    %c0_539 = arith.constant 0 : index
    %c34 = arith.constant 34 : index
    %c0_540 = arith.constant 0 : index
    %c0_541 = arith.constant 0 : index
    %367 = vector.load %arg1[%c0_539, %c34, %c0_540, %c0_541] : memref<1x64x16x12xf32, #tpu.memory_space<vmem>>, vector<1x1x15x12xf32>
    %368 = vector.shape_cast %367 : vector<1x1x15x12xf32> to vector<15x12xf32>
    %c0_542 = arith.constant 0 : index
    %c34_543 = arith.constant 34 : index
    %c1_544 = arith.constant 1 : index
    %c0_545 = arith.constant 0 : index
    %369 = vector.load %arg1[%c0_542, %c34_543, %c1_544, %c0_545] : memref<1x64x16x12xf32, #tpu.memory_space<vmem>>, vector<1x1x15x12xf32>
    %370 = vector.shape_cast %369 : vector<1x1x15x12xf32> to vector<15x12xf32>
    %c0_546 = arith.constant 0 : index
    %c35 = arith.constant 35 : index
    %c0_547 = arith.constant 0 : index
    %c0_548 = arith.constant 0 : index
    %371 = vector.load %arg1[%c0_546, %c35, %c0_547, %c0_548] : memref<1x64x16x12xf32, #tpu.memory_space<vmem>>, vector<1x1x15x12xf32>
    %372 = vector.shape_cast %371 : vector<1x1x15x12xf32> to vector<15x12xf32>
    %c0_549 = arith.constant 0 : index
    %c35_550 = arith.constant 35 : index
    %c1_551 = arith.constant 1 : index
    %c0_552 = arith.constant 0 : index
    %373 = vector.load %arg1[%c0_549, %c35_550, %c1_551, %c0_552] : memref<1x64x16x12xf32, #tpu.memory_space<vmem>>, vector<1x1x15x12xf32>
    %374 = vector.shape_cast %373 : vector<1x1x15x12xf32> to vector<15x12xf32>
    %375 = tpu.concatenate %344, %346, %348, %350, %352, %354, %356, %358, %360, %362, %364, %366, %368, %370, %372, %374 in 1 : vector<15x12xf32>, vector<15x12xf32>, vector<15x12xf32>, vector<15x12xf32>, vector<15x12xf32>, vector<15x12xf32>, vector<15x12xf32>, vector<15x12xf32>, vector<15x12xf32>, vector<15x12xf32>, vector<15x12xf32>, vector<15x12xf32>, vector<15x12xf32>, vector<15x12xf32>, vector<15x12xf32>, vector<15x12xf32> -> vector<15x192xf32>
    %376 = arith.truncf %375 : vector<15x192xf32> to vector<15x192xbf16>
    %c0_553 = arith.constant 0 : index
    %c0_554 = arith.constant 0 : index
    %377 = vector.load %arg3[%c0_553, %c0_554] : memref<192x8xbf16, #tpu.memory_space<vmem>>, vector<192x8xbf16>
    %cst_555 = arith.constant dense<0.000000e+00> : vector<15x8xf32>
    %378 = tpu.matmul %376, %377, %cst_555 {dimension_numbers = #tpu.dot_dimension_numbers<[1], [0], [0], [1], [0, 0, 1, 1], [], []>} : vector<15x192xbf16>, vector<192x8xbf16>, vector<15x8xf32> -> vector<15x8xf32>
    %c0_556 = arith.constant 0 : index
    %c0_557 = arith.constant 0 : index
    %379 = vector.load %arg4[%c0_556, %c0_557] : memref<1x8xf32, #tpu.memory_space<vmem>>, vector<1x8xf32>
    %380 = vector.broadcast %379 : vector<1x8xf32> to vector<15x8xf32>
    %381 = arith.addf %378, %380 : vector<15x8xf32>
    %cst_558 = arith.constant 0.000000e+00 : f32
    %382 = vector.broadcast %cst_558 : f32 to vector<15x8xf32>
    %383 = arith.maximumf %381, %382 : vector<15x8xf32>
    %cst_559 = arith.constant dense<0.000000e+00> : vector<7x8xf32>
    %384 = tpu.matmul %6, %383, %cst_559 {dimension_numbers = #tpu.dot_dimension_numbers<[1], [0], [0], [1], [0, 0, 1, 1], [], []>} : vector<7x15xf32>, vector<15x8xf32>, vector<7x8xf32> -> vector<7x8xf32>
    %cst_560 = arith.constant dense<0.000000e+00> : vector<7x8xf32>
    %385 = tpu.matmul %13, %383, %cst_560 {dimension_numbers = #tpu.dot_dimension_numbers<[1], [0], [0], [1], [0, 0, 1, 1], [], []>} : vector<7x15xf32>, vector<15x8xf32>, vector<7x8xf32> -> vector<7x8xf32>
    %386 = tpu.concatenate %384, %385 in 1 : vector<7x8xf32>, vector<7x8xf32> -> vector<7x16xf32>
    %c7_561 = arith.constant 7 : index
    %c0_562 = arith.constant 0 : index
    %c0_563 = arith.constant 0 : index
    %387 = vector.load %arg10[%c7_561, %c0_562, %c0_563] : memref<15x7x16xf32, #tpu.memory_space<vmem>>, vector<1x7x16xf32>
    %388 = vector.shape_cast %387 : vector<1x7x16xf32> to vector<7x16xf32>
    %389 = vector.shape_cast %386 : vector<7x16xf32> to vector<1x7x16xf32>
    tpu.vector_store %arg10[%c7_561, %c0_562, %c0_563], %389 {strides = array<i32>} : memref<15x7x16xf32, #tpu.memory_space<vmem>>, vector<1x7x16xf32>,
    %c0_564 = arith.constant 0 : index
    %c32_565 = arith.constant 32 : index
    %c0_566 = arith.constant 0 : index
    %c0_567 = arith.constant 0 : index
    %390 = vector.load %arg1[%c0_564, %c32_565, %c0_566, %c0_567] : memref<1x64x16x12xf32, #tpu.memory_space<vmem>>, vector<1x1x15x12xf32>
    %391 = vector.shape_cast %390 : vector<1x1x15x12xf32> to vector<15x12xf32>
    %c0_568 = arith.constant 0 : index
    %c32_569 = arith.constant 32 : index
    %c1_570 = arith.constant 1 : index
    %c0_571 = arith.constant 0 : index
    %392 = vector.load %arg1[%c0_568, %c32_569, %c1_570, %c0_571] : memref<1x64x16x12xf32, #tpu.memory_space<vmem>>, vector<1x1x15x12xf32>
    %393 = vector.shape_cast %392 : vector<1x1x15x12xf32> to vector<15x12xf32>
    %c0_572 = arith.constant 0 : index
    %c33_573 = arith.constant 33 : index
    %c0_574 = arith.constant 0 : index
    %c0_575 = arith.constant 0 : index
    %394 = vector.load %arg1[%c0_572, %c33_573, %c0_574, %c0_575] : memref<1x64x16x12xf32, #tpu.memory_space<vmem>>, vector<1x1x15x12xf32>
    %395 = vector.shape_cast %394 : vector<1x1x15x12xf32> to vector<15x12xf32>
    %c0_576 = arith.constant 0 : index
    %c33_577 = arith.constant 33 : index
    %c1_578 = arith.constant 1 : index
    %c0_579 = arith.constant 0 : index
    %396 = vector.load %arg1[%c0_576, %c33_577, %c1_578, %c0_579] : memref<1x64x16x12xf32, #tpu.memory_space<vmem>>, vector<1x1x15x12xf32>
    %397 = vector.shape_cast %396 : vector<1x1x15x12xf32> to vector<15x12xf32>
    %c0_580 = arith.constant 0 : index
    %c34_581 = arith.constant 34 : index
    %c0_582 = arith.constant 0 : index
    %c0_583 = arith.constant 0 : index
    %398 = vector.load %arg1[%c0_580, %c34_581, %c0_582, %c0_583] : memref<1x64x16x12xf32, #tpu.memory_space<vmem>>, vector<1x1x15x12xf32>
    %399 = vector.shape_cast %398 : vector<1x1x15x12xf32> to vector<15x12xf32>
    %c0_584 = arith.constant 0 : index
    %c34_585 = arith.constant 34 : index
    %c1_586 = arith.constant 1 : index
    %c0_587 = arith.constant 0 : index
    %400 = vector.load %arg1[%c0_584, %c34_585, %c1_586, %c0_587] : memref<1x64x16x12xf32, #tpu.memory_space<vmem>>, vector<1x1x15x12xf32>
    %401 = vector.shape_cast %400 : vector<1x1x15x12xf32> to vector<15x12xf32>
    %c0_588 = arith.constant 0 : index
    %c35_589 = arith.constant 35 : index
    %c0_590 = arith.constant 0 : index
    %c0_591 = arith.constant 0 : index
    %402 = vector.load %arg1[%c0_588, %c35_589, %c0_590, %c0_591] : memref<1x64x16x12xf32, #tpu.memory_space<vmem>>, vector<1x1x15x12xf32>
    %403 = vector.shape_cast %402 : vector<1x1x15x12xf32> to vector<15x12xf32>
    %c0_592 = arith.constant 0 : index
    %c35_593 = arith.constant 35 : index
    %c1_594 = arith.constant 1 : index
    %c0_595 = arith.constant 0 : index
    %404 = vector.load %arg1[%c0_592, %c35_593, %c1_594, %c0_595] : memref<1x64x16x12xf32, #tpu.memory_space<vmem>>, vector<1x1x15x12xf32>
    %405 = vector.shape_cast %404 : vector<1x1x15x12xf32> to vector<15x12xf32>
    %c0_596 = arith.constant 0 : index
    %c36 = arith.constant 36 : index
    %c0_597 = arith.constant 0 : index
    %c0_598 = arith.constant 0 : index
    %406 = vector.load %arg1[%c0_596, %c36, %c0_597, %c0_598] : memref<1x64x16x12xf32, #tpu.memory_space<vmem>>, vector<1x1x15x12xf32>
    %407 = vector.shape_cast %406 : vector<1x1x15x12xf32> to vector<15x12xf32>
    %c0_599 = arith.constant 0 : index
    %c36_600 = arith.constant 36 : index
    %c1_601 = arith.constant 1 : index
    %c0_602 = arith.constant 0 : index
    %408 = vector.load %arg1[%c0_599, %c36_600, %c1_601, %c0_602] : memref<1x64x16x12xf32, #tpu.memory_space<vmem>>, vector<1x1x15x12xf32>
    %409 = vector.shape_cast %408 : vector<1x1x15x12xf32> to vector<15x12xf32>
    %c0_603 = arith.constant 0 : index
    %c37 = arith.constant 37 : index
    %c0_604 = arith.constant 0 : index
    %c0_605 = arith.constant 0 : index
    %410 = vector.load %arg1[%c0_603, %c37, %c0_604, %c0_605] : memref<1x64x16x12xf32, #tpu.memory_space<vmem>>, vector<1x1x15x12xf32>
    %411 = vector.shape_cast %410 : vector<1x1x15x12xf32> to vector<15x12xf32>
    %c0_606 = arith.constant 0 : index
    %c37_607 = arith.constant 37 : index
    %c1_608 = arith.constant 1 : index
    %c0_609 = arith.constant 0 : index
    %412 = vector.load %arg1[%c0_606, %c37_607, %c1_608, %c0_609] : memref<1x64x16x12xf32, #tpu.memory_space<vmem>>, vector<1x1x15x12xf32>
    %413 = vector.shape_cast %412 : vector<1x1x15x12xf32> to vector<15x12xf32>
    %c0_610 = arith.constant 0 : index
    %c38 = arith.constant 38 : index
    %c0_611 = arith.constant 0 : index
    %c0_612 = arith.constant 0 : index
    %414 = vector.load %arg1[%c0_610, %c38, %c0_611, %c0_612] : memref<1x64x16x12xf32, #tpu.memory_space<vmem>>, vector<1x1x15x12xf32>
    %415 = vector.shape_cast %414 : vector<1x1x15x12xf32> to vector<15x12xf32>
    %c0_613 = arith.constant 0 : index
    %c38_614 = arith.constant 38 : index
    %c1_615 = arith.constant 1 : index
    %c0_616 = arith.constant 0 : index
    %416 = vector.load %arg1[%c0_613, %c38_614, %c1_615, %c0_616] : memref<1x64x16x12xf32, #tpu.memory_space<vmem>>, vector<1x1x15x12xf32>
    %417 = vector.shape_cast %416 : vector<1x1x15x12xf32> to vector<15x12xf32>
    %c0_617 = arith.constant 0 : index
    %c39 = arith.constant 39 : index
    %c0_618 = arith.constant 0 : index
    %c0_619 = arith.constant 0 : index
    %418 = vector.load %arg1[%c0_617, %c39, %c0_618, %c0_619] : memref<1x64x16x12xf32, #tpu.memory_space<vmem>>, vector<1x1x15x12xf32>
    %419 = vector.shape_cast %418 : vector<1x1x15x12xf32> to vector<15x12xf32>
    %c0_620 = arith.constant 0 : index
    %c39_621 = arith.constant 39 : index
    %c1_622 = arith.constant 1 : index
    %c0_623 = arith.constant 0 : index
    %420 = vector.load %arg1[%c0_620, %c39_621, %c1_622, %c0_623] : memref<1x64x16x12xf32, #tpu.memory_space<vmem>>, vector<1x1x15x12xf32>
    %421 = vector.shape_cast %420 : vector<1x1x15x12xf32> to vector<15x12xf32>
    %422 = tpu.concatenate %391, %393, %395, %397, %399, %401, %403, %405, %407, %409, %411, %413, %415, %417, %419, %421 in 1 : vector<15x12xf32>, vector<15x12xf32>, vector<15x12xf32>, vector<15x12xf32>, vector<15x12xf32>, vector<15x12xf32>, vector<15x12xf32>, vector<15x12xf32>, vector<15x12xf32>, vector<15x12xf32>, vector<15x12xf32>, vector<15x12xf32>, vector<15x12xf32>, vector<15x12xf32>, vector<15x12xf32>, vector<15x12xf32> -> vector<15x192xf32>
    %423 = arith.truncf %422 : vector<15x192xf32> to vector<15x192xbf16>
    %c0_624 = arith.constant 0 : index
    %c0_625 = arith.constant 0 : index
    %424 = vector.load %arg3[%c0_624, %c0_625] : memref<192x8xbf16, #tpu.memory_space<vmem>>, vector<192x8xbf16>
    %cst_626 = arith.constant dense<0.000000e+00> : vector<15x8xf32>
    %425 = tpu.matmul %423, %424, %cst_626 {dimension_numbers = #tpu.dot_dimension_numbers<[1], [0], [0], [1], [0, 0, 1, 1], [], []>} : vector<15x192xbf16>, vector<192x8xbf16>, vector<15x8xf32> -> vector<15x8xf32>
    %c0_627 = arith.constant 0 : index
    %c0_628 = arith.constant 0 : index
    %426 = vector.load %arg4[%c0_627, %c0_628] : memref<1x8xf32, #tpu.memory_space<vmem>>, vector<1x8xf32>
    %427 = vector.broadcast %426 : vector<1x8xf32> to vector<15x8xf32>
    %428 = arith.addf %425, %427 : vector<15x8xf32>
    %cst_629 = arith.constant 0.000000e+00 : f32
    %429 = vector.broadcast %cst_629 : f32 to vector<15x8xf32>
    %430 = arith.maximumf %428, %429 : vector<15x8xf32>
    %cst_630 = arith.constant dense<0.000000e+00> : vector<7x8xf32>
    %431 = tpu.matmul %6, %430, %cst_630 {dimension_numbers = #tpu.dot_dimension_numbers<[1], [0], [0], [1], [0, 0, 1, 1], [], []>} : vector<7x15xf32>, vector<15x8xf32>, vector<7x8xf32> -> vector<7x8xf32>
    %cst_631 = arith.constant dense<0.000000e+00> : vector<7x8xf32>
    %432 = tpu.matmul %13, %430, %cst_631 {dimension_numbers = #tpu.dot_dimension_numbers<[1], [0], [0], [1], [0, 0, 1, 1], [], []>} : vector<7x15xf32>, vector<15x8xf32>, vector<7x8xf32> -> vector<7x8xf32>
    %433 = tpu.concatenate %431, %432 in 1 : vector<7x8xf32>, vector<7x8xf32> -> vector<7x16xf32>
    %c8_632 = arith.constant 8 : index
    %c0_633 = arith.constant 0 : index
    %c0_634 = arith.constant 0 : index
    %434 = vector.load %arg10[%c8_632, %c0_633, %c0_634] : memref<15x7x16xf32, #tpu.memory_space<vmem>>, vector<1x7x16xf32>
    %435 = vector.shape_cast %434 : vector<1x7x16xf32> to vector<7x16xf32>
    %436 = vector.shape_cast %433 : vector<7x16xf32> to vector<1x7x16xf32>
    tpu.vector_store %arg10[%c8_632, %c0_633, %c0_634], %436 {strides = array<i32>} : memref<15x7x16xf32, #tpu.memory_space<vmem>>, vector<1x7x16xf32>,
    %c0_635 = arith.constant 0 : index
    %c36_636 = arith.constant 36 : index
    %c0_637 = arith.constant 0 : index
    %c0_638 = arith.constant 0 : index
    %437 = vector.load %arg1[%c0_635, %c36_636, %c0_637, %c0_638] : memref<1x64x16x12xf32, #tpu.memory_space<vmem>>, vector<1x1x15x12xf32>
    %438 = vector.shape_cast %437 : vector<1x1x15x12xf32> to vector<15x12xf32>
    %c0_639 = arith.constant 0 : index
    %c36_640 = arith.constant 36 : index
    %c1_641 = arith.constant 1 : index
    %c0_642 = arith.constant 0 : index
    %439 = vector.load %arg1[%c0_639, %c36_640, %c1_641, %c0_642] : memref<1x64x16x12xf32, #tpu.memory_space<vmem>>, vector<1x1x15x12xf32>
    %440 = vector.shape_cast %439 : vector<1x1x15x12xf32> to vector<15x12xf32>
    %c0_643 = arith.constant 0 : index
    %c37_644 = arith.constant 37 : index
    %c0_645 = arith.constant 0 : index
    %c0_646 = arith.constant 0 : index
    %441 = vector.load %arg1[%c0_643, %c37_644, %c0_645, %c0_646] : memref<1x64x16x12xf32, #tpu.memory_space<vmem>>, vector<1x1x15x12xf32>
    %442 = vector.shape_cast %441 : vector<1x1x15x12xf32> to vector<15x12xf32>
    %c0_647 = arith.constant 0 : index
    %c37_648 = arith.constant 37 : index
    %c1_649 = arith.constant 1 : index
    %c0_650 = arith.constant 0 : index
    %443 = vector.load %arg1[%c0_647, %c37_648, %c1_649, %c0_650] : memref<1x64x16x12xf32, #tpu.memory_space<vmem>>, vector<1x1x15x12xf32>
    %444 = vector.shape_cast %443 : vector<1x1x15x12xf32> to vector<15x12xf32>
    %c0_651 = arith.constant 0 : index
    %c38_652 = arith.constant 38 : index
    %c0_653 = arith.constant 0 : index
    %c0_654 = arith.constant 0 : index
    %445 = vector.load %arg1[%c0_651, %c38_652, %c0_653, %c0_654] : memref<1x64x16x12xf32, #tpu.memory_space<vmem>>, vector<1x1x15x12xf32>
    %446 = vector.shape_cast %445 : vector<1x1x15x12xf32> to vector<15x12xf32>
    %c0_655 = arith.constant 0 : index
    %c38_656 = arith.constant 38 : index
    %c1_657 = arith.constant 1 : index
    %c0_658 = arith.constant 0 : index
    %447 = vector.load %arg1[%c0_655, %c38_656, %c1_657, %c0_658] : memref<1x64x16x12xf32, #tpu.memory_space<vmem>>, vector<1x1x15x12xf32>
    %448 = vector.shape_cast %447 : vector<1x1x15x12xf32> to vector<15x12xf32>
    %c0_659 = arith.constant 0 : index
    %c39_660 = arith.constant 39 : index
    %c0_661 = arith.constant 0 : index
    %c0_662 = arith.constant 0 : index
    %449 = vector.load %arg1[%c0_659, %c39_660, %c0_661, %c0_662] : memref<1x64x16x12xf32, #tpu.memory_space<vmem>>, vector<1x1x15x12xf32>
    %450 = vector.shape_cast %449 : vector<1x1x15x12xf32> to vector<15x12xf32>
    %c0_663 = arith.constant 0 : index
    %c39_664 = arith.constant 39 : index
    %c1_665 = arith.constant 1 : index
    %c0_666 = arith.constant 0 : index
    %451 = vector.load %arg1[%c0_663, %c39_664, %c1_665, %c0_666] : memref<1x64x16x12xf32, #tpu.memory_space<vmem>>, vector<1x1x15x12xf32>
    %452 = vector.shape_cast %451 : vector<1x1x15x12xf32> to vector<15x12xf32>
    %c0_667 = arith.constant 0 : index
    %c40 = arith.constant 40 : index
    %c0_668 = arith.constant 0 : index
    %c0_669 = arith.constant 0 : index
    %453 = vector.load %arg1[%c0_667, %c40, %c0_668, %c0_669] : memref<1x64x16x12xf32, #tpu.memory_space<vmem>>, vector<1x1x15x12xf32>
    %454 = vector.shape_cast %453 : vector<1x1x15x12xf32> to vector<15x12xf32>
    %c0_670 = arith.constant 0 : index
    %c40_671 = arith.constant 40 : index
    %c1_672 = arith.constant 1 : index
    %c0_673 = arith.constant 0 : index
    %455 = vector.load %arg1[%c0_670, %c40_671, %c1_672, %c0_673] : memref<1x64x16x12xf32, #tpu.memory_space<vmem>>, vector<1x1x15x12xf32>
    %456 = vector.shape_cast %455 : vector<1x1x15x12xf32> to vector<15x12xf32>
    %c0_674 = arith.constant 0 : index
    %c41 = arith.constant 41 : index
    %c0_675 = arith.constant 0 : index
    %c0_676 = arith.constant 0 : index
    %457 = vector.load %arg1[%c0_674, %c41, %c0_675, %c0_676] : memref<1x64x16x12xf32, #tpu.memory_space<vmem>>, vector<1x1x15x12xf32>
    %458 = vector.shape_cast %457 : vector<1x1x15x12xf32> to vector<15x12xf32>
    %c0_677 = arith.constant 0 : index
    %c41_678 = arith.constant 41 : index
    %c1_679 = arith.constant 1 : index
    %c0_680 = arith.constant 0 : index
    %459 = vector.load %arg1[%c0_677, %c41_678, %c1_679, %c0_680] : memref<1x64x16x12xf32, #tpu.memory_space<vmem>>, vector<1x1x15x12xf32>
    %460 = vector.shape_cast %459 : vector<1x1x15x12xf32> to vector<15x12xf32>
    %c0_681 = arith.constant 0 : index
    %c42 = arith.constant 42 : index
    %c0_682 = arith.constant 0 : index
    %c0_683 = arith.constant 0 : index
    %461 = vector.load %arg1[%c0_681, %c42, %c0_682, %c0_683] : memref<1x64x16x12xf32, #tpu.memory_space<vmem>>, vector<1x1x15x12xf32>
    %462 = vector.shape_cast %461 : vector<1x1x15x12xf32> to vector<15x12xf32>
    %c0_684 = arith.constant 0 : index
    %c42_685 = arith.constant 42 : index
    %c1_686 = arith.constant 1 : index
    %c0_687 = arith.constant 0 : index
    %463 = vector.load %arg1[%c0_684, %c42_685, %c1_686, %c0_687] : memref<1x64x16x12xf32, #tpu.memory_space<vmem>>, vector<1x1x15x12xf32>
    %464 = vector.shape_cast %463 : vector<1x1x15x12xf32> to vector<15x12xf32>
    %c0_688 = arith.constant 0 : index
    %c43 = arith.constant 43 : index
    %c0_689 = arith.constant 0 : index
    %c0_690 = arith.constant 0 : index
    %465 = vector.load %arg1[%c0_688, %c43, %c0_689, %c0_690] : memref<1x64x16x12xf32, #tpu.memory_space<vmem>>, vector<1x1x15x12xf32>
    %466 = vector.shape_cast %465 : vector<1x1x15x12xf32> to vector<15x12xf32>
    %c0_691 = arith.constant 0 : index
    %c43_692 = arith.constant 43 : index
    %c1_693 = arith.constant 1 : index
    %c0_694 = arith.constant 0 : index
    %467 = vector.load %arg1[%c0_691, %c43_692, %c1_693, %c0_694] : memref<1x64x16x12xf32, #tpu.memory_space<vmem>>, vector<1x1x15x12xf32>
    %468 = vector.shape_cast %467 : vector<1x1x15x12xf32> to vector<15x12xf32>
    %469 = tpu.concatenate %438, %440, %442, %444, %446, %448, %450, %452, %454, %456, %458, %460, %462, %464, %466, %468 in 1 : vector<15x12xf32>, vector<15x12xf32>, vector<15x12xf32>, vector<15x12xf32>, vector<15x12xf32>, vector<15x12xf32>, vector<15x12xf32>, vector<15x12xf32>, vector<15x12xf32>, vector<15x12xf32>, vector<15x12xf32>, vector<15x12xf32>, vector<15x12xf32>, vector<15x12xf32>, vector<15x12xf32>, vector<15x12xf32> -> vector<15x192xf32>
    %470 = arith.truncf %469 : vector<15x192xf32> to vector<15x192xbf16>
    %c0_695 = arith.constant 0 : index
    %c0_696 = arith.constant 0 : index
    %471 = vector.load %arg3[%c0_695, %c0_696] : memref<192x8xbf16, #tpu.memory_space<vmem>>, vector<192x8xbf16>
    %cst_697 = arith.constant dense<0.000000e+00> : vector<15x8xf32>
    %472 = tpu.matmul %470, %471, %cst_697 {dimension_numbers = #tpu.dot_dimension_numbers<[1], [0], [0], [1], [0, 0, 1, 1], [], []>} : vector<15x192xbf16>, vector<192x8xbf16>, vector<15x8xf32> -> vector<15x8xf32>
    %c0_698 = arith.constant 0 : index
    %c0_699 = arith.constant 0 : index
    %473 = vector.load %arg4[%c0_698, %c0_699] : memref<1x8xf32, #tpu.memory_space<vmem>>, vector<1x8xf32>
    %474 = vector.broadcast %473 : vector<1x8xf32> to vector<15x8xf32>
    %475 = arith.addf %472, %474 : vector<15x8xf32>
    %cst_700 = arith.constant 0.000000e+00 : f32
    %476 = vector.broadcast %cst_700 : f32 to vector<15x8xf32>
    %477 = arith.maximumf %475, %476 : vector<15x8xf32>
    %cst_701 = arith.constant dense<0.000000e+00> : vector<7x8xf32>
    %478 = tpu.matmul %6, %477, %cst_701 {dimension_numbers = #tpu.dot_dimension_numbers<[1], [0], [0], [1], [0, 0, 1, 1], [], []>} : vector<7x15xf32>, vector<15x8xf32>, vector<7x8xf32> -> vector<7x8xf32>
    %cst_702 = arith.constant dense<0.000000e+00> : vector<7x8xf32>
    %479 = tpu.matmul %13, %477, %cst_702 {dimension_numbers = #tpu.dot_dimension_numbers<[1], [0], [0], [1], [0, 0, 1, 1], [], []>} : vector<7x15xf32>, vector<15x8xf32>, vector<7x8xf32> -> vector<7x8xf32>
    %480 = tpu.concatenate %478, %479 in 1 : vector<7x8xf32>, vector<7x8xf32> -> vector<7x16xf32>
    %c9_703 = arith.constant 9 : index
    %c0_704 = arith.constant 0 : index
    %c0_705 = arith.constant 0 : index
    %481 = vector.load %arg10[%c9_703, %c0_704, %c0_705] : memref<15x7x16xf32, #tpu.memory_space<vmem>>, vector<1x7x16xf32>
    %482 = vector.shape_cast %481 : vector<1x7x16xf32> to vector<7x16xf32>
    %483 = vector.shape_cast %480 : vector<7x16xf32> to vector<1x7x16xf32>
    tpu.vector_store %arg10[%c9_703, %c0_704, %c0_705], %483 {strides = array<i32>} : memref<15x7x16xf32, #tpu.memory_space<vmem>>, vector<1x7x16xf32>,
    %c0_706 = arith.constant 0 : index
    %c40_707 = arith.constant 40 : index
    %c0_708 = arith.constant 0 : index
    %c0_709 = arith.constant 0 : index
    %484 = vector.load %arg1[%c0_706, %c40_707, %c0_708, %c0_709] : memref<1x64x16x12xf32, #tpu.memory_space<vmem>>, vector<1x1x15x12xf32>
    %485 = vector.shape_cast %484 : vector<1x1x15x12xf32> to vector<15x12xf32>
    %c0_710 = arith.constant 0 : index
    %c40_711 = arith.constant 40 : index
    %c1_712 = arith.constant 1 : index
    %c0_713 = arith.constant 0 : index
    %486 = vector.load %arg1[%c0_710, %c40_711, %c1_712, %c0_713] : memref<1x64x16x12xf32, #tpu.memory_space<vmem>>, vector<1x1x15x12xf32>
    %487 = vector.shape_cast %486 : vector<1x1x15x12xf32> to vector<15x12xf32>
    %c0_714 = arith.constant 0 : index
    %c41_715 = arith.constant 41 : index
    %c0_716 = arith.constant 0 : index
    %c0_717 = arith.constant 0 : index
    %488 = vector.load %arg1[%c0_714, %c41_715, %c0_716, %c0_717] : memref<1x64x16x12xf32, #tpu.memory_space<vmem>>, vector<1x1x15x12xf32>
    %489 = vector.shape_cast %488 : vector<1x1x15x12xf32> to vector<15x12xf32>
    %c0_718 = arith.constant 0 : index
    %c41_719 = arith.constant 41 : index
    %c1_720 = arith.constant 1 : index
    %c0_721 = arith.constant 0 : index
    %490 = vector.load %arg1[%c0_718, %c41_719, %c1_720, %c0_721] : memref<1x64x16x12xf32, #tpu.memory_space<vmem>>, vector<1x1x15x12xf32>
    %491 = vector.shape_cast %490 : vector<1x1x15x12xf32> to vector<15x12xf32>
    %c0_722 = arith.constant 0 : index
    %c42_723 = arith.constant 42 : index
    %c0_724 = arith.constant 0 : index
    %c0_725 = arith.constant 0 : index
    %492 = vector.load %arg1[%c0_722, %c42_723, %c0_724, %c0_725] : memref<1x64x16x12xf32, #tpu.memory_space<vmem>>, vector<1x1x15x12xf32>
    %493 = vector.shape_cast %492 : vector<1x1x15x12xf32> to vector<15x12xf32>
    %c0_726 = arith.constant 0 : index
    %c42_727 = arith.constant 42 : index
    %c1_728 = arith.constant 1 : index
    %c0_729 = arith.constant 0 : index
    %494 = vector.load %arg1[%c0_726, %c42_727, %c1_728, %c0_729] : memref<1x64x16x12xf32, #tpu.memory_space<vmem>>, vector<1x1x15x12xf32>
    %495 = vector.shape_cast %494 : vector<1x1x15x12xf32> to vector<15x12xf32>
    %c0_730 = arith.constant 0 : index
    %c43_731 = arith.constant 43 : index
    %c0_732 = arith.constant 0 : index
    %c0_733 = arith.constant 0 : index
    %496 = vector.load %arg1[%c0_730, %c43_731, %c0_732, %c0_733] : memref<1x64x16x12xf32, #tpu.memory_space<vmem>>, vector<1x1x15x12xf32>
    %497 = vector.shape_cast %496 : vector<1x1x15x12xf32> to vector<15x12xf32>
    %c0_734 = arith.constant 0 : index
    %c43_735 = arith.constant 43 : index
    %c1_736 = arith.constant 1 : index
    %c0_737 = arith.constant 0 : index
    %498 = vector.load %arg1[%c0_734, %c43_735, %c1_736, %c0_737] : memref<1x64x16x12xf32, #tpu.memory_space<vmem>>, vector<1x1x15x12xf32>
    %499 = vector.shape_cast %498 : vector<1x1x15x12xf32> to vector<15x12xf32>
    %c0_738 = arith.constant 0 : index
    %c44 = arith.constant 44 : index
    %c0_739 = arith.constant 0 : index
    %c0_740 = arith.constant 0 : index
    %500 = vector.load %arg1[%c0_738, %c44, %c0_739, %c0_740] : memref<1x64x16x12xf32, #tpu.memory_space<vmem>>, vector<1x1x15x12xf32>
    %501 = vector.shape_cast %500 : vector<1x1x15x12xf32> to vector<15x12xf32>
    %c0_741 = arith.constant 0 : index
    %c44_742 = arith.constant 44 : index
    %c1_743 = arith.constant 1 : index
    %c0_744 = arith.constant 0 : index
    %502 = vector.load %arg1[%c0_741, %c44_742, %c1_743, %c0_744] : memref<1x64x16x12xf32, #tpu.memory_space<vmem>>, vector<1x1x15x12xf32>
    %503 = vector.shape_cast %502 : vector<1x1x15x12xf32> to vector<15x12xf32>
    %c0_745 = arith.constant 0 : index
    %c45 = arith.constant 45 : index
    %c0_746 = arith.constant 0 : index
    %c0_747 = arith.constant 0 : index
    %504 = vector.load %arg1[%c0_745, %c45, %c0_746, %c0_747] : memref<1x64x16x12xf32, #tpu.memory_space<vmem>>, vector<1x1x15x12xf32>
    %505 = vector.shape_cast %504 : vector<1x1x15x12xf32> to vector<15x12xf32>
    %c0_748 = arith.constant 0 : index
    %c45_749 = arith.constant 45 : index
    %c1_750 = arith.constant 1 : index
    %c0_751 = arith.constant 0 : index
    %506 = vector.load %arg1[%c0_748, %c45_749, %c1_750, %c0_751] : memref<1x64x16x12xf32, #tpu.memory_space<vmem>>, vector<1x1x15x12xf32>
    %507 = vector.shape_cast %506 : vector<1x1x15x12xf32> to vector<15x12xf32>
    %c0_752 = arith.constant 0 : index
    %c46 = arith.constant 46 : index
    %c0_753 = arith.constant 0 : index
    %c0_754 = arith.constant 0 : index
    %508 = vector.load %arg1[%c0_752, %c46, %c0_753, %c0_754] : memref<1x64x16x12xf32, #tpu.memory_space<vmem>>, vector<1x1x15x12xf32>
    %509 = vector.shape_cast %508 : vector<1x1x15x12xf32> to vector<15x12xf32>
    %c0_755 = arith.constant 0 : index
    %c46_756 = arith.constant 46 : index
    %c1_757 = arith.constant 1 : index
    %c0_758 = arith.constant 0 : index
    %510 = vector.load %arg1[%c0_755, %c46_756, %c1_757, %c0_758] : memref<1x64x16x12xf32, #tpu.memory_space<vmem>>, vector<1x1x15x12xf32>
    %511 = vector.shape_cast %510 : vector<1x1x15x12xf32> to vector<15x12xf32>
    %c0_759 = arith.constant 0 : index
    %c47 = arith.constant 47 : index
    %c0_760 = arith.constant 0 : index
    %c0_761 = arith.constant 0 : index
    %512 = vector.load %arg1[%c0_759, %c47, %c0_760, %c0_761] : memref<1x64x16x12xf32, #tpu.memory_space<vmem>>, vector<1x1x15x12xf32>
    %513 = vector.shape_cast %512 : vector<1x1x15x12xf32> to vector<15x12xf32>
    %c0_762 = arith.constant 0 : index
    %c47_763 = arith.constant 47 : index
    %c1_764 = arith.constant 1 : index
    %c0_765 = arith.constant 0 : index
    %514 = vector.load %arg1[%c0_762, %c47_763, %c1_764, %c0_765] : memref<1x64x16x12xf32, #tpu.memory_space<vmem>>, vector<1x1x15x12xf32>
    %515 = vector.shape_cast %514 : vector<1x1x15x12xf32> to vector<15x12xf32>
    %516 = tpu.concatenate %485, %487, %489, %491, %493, %495, %497, %499, %501, %503, %505, %507, %509, %511, %513, %515 in 1 : vector<15x12xf32>, vector<15x12xf32>, vector<15x12xf32>, vector<15x12xf32>, vector<15x12xf32>, vector<15x12xf32>, vector<15x12xf32>, vector<15x12xf32>, vector<15x12xf32>, vector<15x12xf32>, vector<15x12xf32>, vector<15x12xf32>, vector<15x12xf32>, vector<15x12xf32>, vector<15x12xf32>, vector<15x12xf32> -> vector<15x192xf32>
    %517 = arith.truncf %516 : vector<15x192xf32> to vector<15x192xbf16>
    %c0_766 = arith.constant 0 : index
    %c0_767 = arith.constant 0 : index
    %518 = vector.load %arg3[%c0_766, %c0_767] : memref<192x8xbf16, #tpu.memory_space<vmem>>, vector<192x8xbf16>
    %cst_768 = arith.constant dense<0.000000e+00> : vector<15x8xf32>
    %519 = tpu.matmul %517, %518, %cst_768 {dimension_numbers = #tpu.dot_dimension_numbers<[1], [0], [0], [1], [0, 0, 1, 1], [], []>} : vector<15x192xbf16>, vector<192x8xbf16>, vector<15x8xf32> -> vector<15x8xf32>
    %c0_769 = arith.constant 0 : index
    %c0_770 = arith.constant 0 : index
    %520 = vector.load %arg4[%c0_769, %c0_770] : memref<1x8xf32, #tpu.memory_space<vmem>>, vector<1x8xf32>
    %521 = vector.broadcast %520 : vector<1x8xf32> to vector<15x8xf32>
    %522 = arith.addf %519, %521 : vector<15x8xf32>
    %cst_771 = arith.constant 0.000000e+00 : f32
    %523 = vector.broadcast %cst_771 : f32 to vector<15x8xf32>
    %524 = arith.maximumf %522, %523 : vector<15x8xf32>
    %cst_772 = arith.constant dense<0.000000e+00> : vector<7x8xf32>
    %525 = tpu.matmul %6, %524, %cst_772 {dimension_numbers = #tpu.dot_dimension_numbers<[1], [0], [0], [1], [0, 0, 1, 1], [], []>} : vector<7x15xf32>, vector<15x8xf32>, vector<7x8xf32> -> vector<7x8xf32>
    %cst_773 = arith.constant dense<0.000000e+00> : vector<7x8xf32>
    %526 = tpu.matmul %13, %524, %cst_773 {dimension_numbers = #tpu.dot_dimension_numbers<[1], [0], [0], [1], [0, 0, 1, 1], [], []>} : vector<7x15xf32>, vector<15x8xf32>, vector<7x8xf32> -> vector<7x8xf32>
    %527 = tpu.concatenate %525, %526 in 1 : vector<7x8xf32>, vector<7x8xf32> -> vector<7x16xf32>
    %c10_774 = arith.constant 10 : index
    %c0_775 = arith.constant 0 : index
    %c0_776 = arith.constant 0 : index
    %528 = vector.load %arg10[%c10_774, %c0_775, %c0_776] : memref<15x7x16xf32, #tpu.memory_space<vmem>>, vector<1x7x16xf32>
    %529 = vector.shape_cast %528 : vector<1x7x16xf32> to vector<7x16xf32>
    %530 = vector.shape_cast %527 : vector<7x16xf32> to vector<1x7x16xf32>
    tpu.vector_store %arg10[%c10_774, %c0_775, %c0_776], %530 {strides = array<i32>} : memref<15x7x16xf32, #tpu.memory_space<vmem>>, vector<1x7x16xf32>,
    %c0_777 = arith.constant 0 : index
    %c44_778 = arith.constant 44 : index
    %c0_779 = arith.constant 0 : index
    %c0_780 = arith.constant 0 : index
    %531 = vector.load %arg1[%c0_777, %c44_778, %c0_779, %c0_780] : memref<1x64x16x12xf32, #tpu.memory_space<vmem>>, vector<1x1x15x12xf32>
    %532 = vector.shape_cast %531 : vector<1x1x15x12xf32> to vector<15x12xf32>
    %c0_781 = arith.constant 0 : index
    %c44_782 = arith.constant 44 : index
    %c1_783 = arith.constant 1 : index
    %c0_784 = arith.constant 0 : index
    %533 = vector.load %arg1[%c0_781, %c44_782, %c1_783, %c0_784] : memref<1x64x16x12xf32, #tpu.memory_space<vmem>>, vector<1x1x15x12xf32>
    %534 = vector.shape_cast %533 : vector<1x1x15x12xf32> to vector<15x12xf32>
    %c0_785 = arith.constant 0 : index
    %c45_786 = arith.constant 45 : index
    %c0_787 = arith.constant 0 : index
    %c0_788 = arith.constant 0 : index
    %535 = vector.load %arg1[%c0_785, %c45_786, %c0_787, %c0_788] : memref<1x64x16x12xf32, #tpu.memory_space<vmem>>, vector<1x1x15x12xf32>
    %536 = vector.shape_cast %535 : vector<1x1x15x12xf32> to vector<15x12xf32>
    %c0_789 = arith.constant 0 : index
    %c45_790 = arith.constant 45 : index
    %c1_791 = arith.constant 1 : index
    %c0_792 = arith.constant 0 : index
    %537 = vector.load %arg1[%c0_789, %c45_790, %c1_791, %c0_792] : memref<1x64x16x12xf32, #tpu.memory_space<vmem>>, vector<1x1x15x12xf32>
    %538 = vector.shape_cast %537 : vector<1x1x15x12xf32> to vector<15x12xf32>
    %c0_793 = arith.constant 0 : index
    %c46_794 = arith.constant 46 : index
    %c0_795 = arith.constant 0 : index
    %c0_796 = arith.constant 0 : index
    %539 = vector.load %arg1[%c0_793, %c46_794, %c0_795, %c0_796] : memref<1x64x16x12xf32, #tpu.memory_space<vmem>>, vector<1x1x15x12xf32>
    %540 = vector.shape_cast %539 : vector<1x1x15x12xf32> to vector<15x12xf32>
    %c0_797 = arith.constant 0 : index
    %c46_798 = arith.constant 46 : index
    %c1_799 = arith.constant 1 : index
    %c0_800 = arith.constant 0 : index
    %541 = vector.load %arg1[%c0_797, %c46_798, %c1_799, %c0_800] : memref<1x64x16x12xf32, #tpu.memory_space<vmem>>, vector<1x1x15x12xf32>
    %542 = vector.shape_cast %541 : vector<1x1x15x12xf32> to vector<15x12xf32>
    %c0_801 = arith.constant 0 : index
    %c47_802 = arith.constant 47 : index
    %c0_803 = arith.constant 0 : index
    %c0_804 = arith.constant 0 : index
    %543 = vector.load %arg1[%c0_801, %c47_802, %c0_803, %c0_804] : memref<1x64x16x12xf32, #tpu.memory_space<vmem>>, vector<1x1x15x12xf32>
    %544 = vector.shape_cast %543 : vector<1x1x15x12xf32> to vector<15x12xf32>
    %c0_805 = arith.constant 0 : index
    %c47_806 = arith.constant 47 : index
    %c1_807 = arith.constant 1 : index
    %c0_808 = arith.constant 0 : index
    %545 = vector.load %arg1[%c0_805, %c47_806, %c1_807, %c0_808] : memref<1x64x16x12xf32, #tpu.memory_space<vmem>>, vector<1x1x15x12xf32>
    %546 = vector.shape_cast %545 : vector<1x1x15x12xf32> to vector<15x12xf32>
    %c0_809 = arith.constant 0 : index
    %c48 = arith.constant 48 : index
    %c0_810 = arith.constant 0 : index
    %c0_811 = arith.constant 0 : index
    %547 = vector.load %arg1[%c0_809, %c48, %c0_810, %c0_811] : memref<1x64x16x12xf32, #tpu.memory_space<vmem>>, vector<1x1x15x12xf32>
    %548 = vector.shape_cast %547 : vector<1x1x15x12xf32> to vector<15x12xf32>
    %c0_812 = arith.constant 0 : index
    %c48_813 = arith.constant 48 : index
    %c1_814 = arith.constant 1 : index
    %c0_815 = arith.constant 0 : index
    %549 = vector.load %arg1[%c0_812, %c48_813, %c1_814, %c0_815] : memref<1x64x16x12xf32, #tpu.memory_space<vmem>>, vector<1x1x15x12xf32>
    %550 = vector.shape_cast %549 : vector<1x1x15x12xf32> to vector<15x12xf32>
    %c0_816 = arith.constant 0 : index
    %c49 = arith.constant 49 : index
    %c0_817 = arith.constant 0 : index
    %c0_818 = arith.constant 0 : index
    %551 = vector.load %arg1[%c0_816, %c49, %c0_817, %c0_818] : memref<1x64x16x12xf32, #tpu.memory_space<vmem>>, vector<1x1x15x12xf32>
    %552 = vector.shape_cast %551 : vector<1x1x15x12xf32> to vector<15x12xf32>
    %c0_819 = arith.constant 0 : index
    %c49_820 = arith.constant 49 : index
    %c1_821 = arith.constant 1 : index
    %c0_822 = arith.constant 0 : index
    %553 = vector.load %arg1[%c0_819, %c49_820, %c1_821, %c0_822] : memref<1x64x16x12xf32, #tpu.memory_space<vmem>>, vector<1x1x15x12xf32>
    %554 = vector.shape_cast %553 : vector<1x1x15x12xf32> to vector<15x12xf32>
    %c0_823 = arith.constant 0 : index
    %c50 = arith.constant 50 : index
    %c0_824 = arith.constant 0 : index
    %c0_825 = arith.constant 0 : index
    %555 = vector.load %arg1[%c0_823, %c50, %c0_824, %c0_825] : memref<1x64x16x12xf32, #tpu.memory_space<vmem>>, vector<1x1x15x12xf32>
    %556 = vector.shape_cast %555 : vector<1x1x15x12xf32> to vector<15x12xf32>
    %c0_826 = arith.constant 0 : index
    %c50_827 = arith.constant 50 : index
    %c1_828 = arith.constant 1 : index
    %c0_829 = arith.constant 0 : index
    %557 = vector.load %arg1[%c0_826, %c50_827, %c1_828, %c0_829] : memref<1x64x16x12xf32, #tpu.memory_space<vmem>>, vector<1x1x15x12xf32>
    %558 = vector.shape_cast %557 : vector<1x1x15x12xf32> to vector<15x12xf32>
    %c0_830 = arith.constant 0 : index
    %c51 = arith.constant 51 : index
    %c0_831 = arith.constant 0 : index
    %c0_832 = arith.constant 0 : index
    %559 = vector.load %arg1[%c0_830, %c51, %c0_831, %c0_832] : memref<1x64x16x12xf32, #tpu.memory_space<vmem>>, vector<1x1x15x12xf32>
    %560 = vector.shape_cast %559 : vector<1x1x15x12xf32> to vector<15x12xf32>
    %c0_833 = arith.constant 0 : index
    %c51_834 = arith.constant 51 : index
    %c1_835 = arith.constant 1 : index
    %c0_836 = arith.constant 0 : index
    %561 = vector.load %arg1[%c0_833, %c51_834, %c1_835, %c0_836] : memref<1x64x16x12xf32, #tpu.memory_space<vmem>>, vector<1x1x15x12xf32>
    %562 = vector.shape_cast %561 : vector<1x1x15x12xf32> to vector<15x12xf32>
    %563 = tpu.concatenate %532, %534, %536, %538, %540, %542, %544, %546, %548, %550, %552, %554, %556, %558, %560, %562 in 1 : vector<15x12xf32>, vector<15x12xf32>, vector<15x12xf32>, vector<15x12xf32>, vector<15x12xf32>, vector<15x12xf32>, vector<15x12xf32>, vector<15x12xf32>, vector<15x12xf32>, vector<15x12xf32>, vector<15x12xf32>, vector<15x12xf32>, vector<15x12xf32>, vector<15x12xf32>, vector<15x12xf32>, vector<15x12xf32> -> vector<15x192xf32>
    %564 = arith.truncf %563 : vector<15x192xf32> to vector<15x192xbf16>
    %c0_837 = arith.constant 0 : index
    %c0_838 = arith.constant 0 : index
    %565 = vector.load %arg3[%c0_837, %c0_838] : memref<192x8xbf16, #tpu.memory_space<vmem>>, vector<192x8xbf16>
    %cst_839 = arith.constant dense<0.000000e+00> : vector<15x8xf32>
    %566 = tpu.matmul %564, %565, %cst_839 {dimension_numbers = #tpu.dot_dimension_numbers<[1], [0], [0], [1], [0, 0, 1, 1], [], []>} : vector<15x192xbf16>, vector<192x8xbf16>, vector<15x8xf32> -> vector<15x8xf32>
    %c0_840 = arith.constant 0 : index
    %c0_841 = arith.constant 0 : index
    %567 = vector.load %arg4[%c0_840, %c0_841] : memref<1x8xf32, #tpu.memory_space<vmem>>, vector<1x8xf32>
    %568 = vector.broadcast %567 : vector<1x8xf32> to vector<15x8xf32>
    %569 = arith.addf %566, %568 : vector<15x8xf32>
    %cst_842 = arith.constant 0.000000e+00 : f32
    %570 = vector.broadcast %cst_842 : f32 to vector<15x8xf32>
    %571 = arith.maximumf %569, %570 : vector<15x8xf32>
    %cst_843 = arith.constant dense<0.000000e+00> : vector<7x8xf32>
    %572 = tpu.matmul %6, %571, %cst_843 {dimension_numbers = #tpu.dot_dimension_numbers<[1], [0], [0], [1], [0, 0, 1, 1], [], []>} : vector<7x15xf32>, vector<15x8xf32>, vector<7x8xf32> -> vector<7x8xf32>
    %cst_844 = arith.constant dense<0.000000e+00> : vector<7x8xf32>
    %573 = tpu.matmul %13, %571, %cst_844 {dimension_numbers = #tpu.dot_dimension_numbers<[1], [0], [0], [1], [0, 0, 1, 1], [], []>} : vector<7x15xf32>, vector<15x8xf32>, vector<7x8xf32> -> vector<7x8xf32>
    %574 = tpu.concatenate %572, %573 in 1 : vector<7x8xf32>, vector<7x8xf32> -> vector<7x16xf32>
    %c11_845 = arith.constant 11 : index
    %c0_846 = arith.constant 0 : index
    %c0_847 = arith.constant 0 : index
    %575 = vector.load %arg10[%c11_845, %c0_846, %c0_847] : memref<15x7x16xf32, #tpu.memory_space<vmem>>, vector<1x7x16xf32>
    %576 = vector.shape_cast %575 : vector<1x7x16xf32> to vector<7x16xf32>
    %577 = vector.shape_cast %574 : vector<7x16xf32> to vector<1x7x16xf32>
    tpu.vector_store %arg10[%c11_845, %c0_846, %c0_847], %577 {strides = array<i32>} : memref<15x7x16xf32, #tpu.memory_space<vmem>>, vector<1x7x16xf32>,
    %c0_848 = arith.constant 0 : index
    %c48_849 = arith.constant 48 : index
    %c0_850 = arith.constant 0 : index
    %c0_851 = arith.constant 0 : index
    %578 = vector.load %arg1[%c0_848, %c48_849, %c0_850, %c0_851] : memref<1x64x16x12xf32, #tpu.memory_space<vmem>>, vector<1x1x15x12xf32>
    %579 = vector.shape_cast %578 : vector<1x1x15x12xf32> to vector<15x12xf32>
    %c0_852 = arith.constant 0 : index
    %c48_853 = arith.constant 48 : index
    %c1_854 = arith.constant 1 : index
    %c0_855 = arith.constant 0 : index
    %580 = vector.load %arg1[%c0_852, %c48_853, %c1_854, %c0_855] : memref<1x64x16x12xf32, #tpu.memory_space<vmem>>, vector<1x1x15x12xf32>
    %581 = vector.shape_cast %580 : vector<1x1x15x12xf32> to vector<15x12xf32>
    %c0_856 = arith.constant 0 : index
    %c49_857 = arith.constant 49 : index
    %c0_858 = arith.constant 0 : index
    %c0_859 = arith.constant 0 : index
    %582 = vector.load %arg1[%c0_856, %c49_857, %c0_858, %c0_859] : memref<1x64x16x12xf32, #tpu.memory_space<vmem>>, vector<1x1x15x12xf32>
    %583 = vector.shape_cast %582 : vector<1x1x15x12xf32> to vector<15x12xf32>
    %c0_860 = arith.constant 0 : index
    %c49_861 = arith.constant 49 : index
    %c1_862 = arith.constant 1 : index
    %c0_863 = arith.constant 0 : index
    %584 = vector.load %arg1[%c0_860, %c49_861, %c1_862, %c0_863] : memref<1x64x16x12xf32, #tpu.memory_space<vmem>>, vector<1x1x15x12xf32>
    %585 = vector.shape_cast %584 : vector<1x1x15x12xf32> to vector<15x12xf32>
    %c0_864 = arith.constant 0 : index
    %c50_865 = arith.constant 50 : index
    %c0_866 = arith.constant 0 : index
    %c0_867 = arith.constant 0 : index
    %586 = vector.load %arg1[%c0_864, %c50_865, %c0_866, %c0_867] : memref<1x64x16x12xf32, #tpu.memory_space<vmem>>, vector<1x1x15x12xf32>
    %587 = vector.shape_cast %586 : vector<1x1x15x12xf32> to vector<15x12xf32>
    %c0_868 = arith.constant 0 : index
    %c50_869 = arith.constant 50 : index
    %c1_870 = arith.constant 1 : index
    %c0_871 = arith.constant 0 : index
    %588 = vector.load %arg1[%c0_868, %c50_869, %c1_870, %c0_871] : memref<1x64x16x12xf32, #tpu.memory_space<vmem>>, vector<1x1x15x12xf32>
    %589 = vector.shape_cast %588 : vector<1x1x15x12xf32> to vector<15x12xf32>
    %c0_872 = arith.constant 0 : index
    %c51_873 = arith.constant 51 : index
    %c0_874 = arith.constant 0 : index
    %c0_875 = arith.constant 0 : index
    %590 = vector.load %arg1[%c0_872, %c51_873, %c0_874, %c0_875] : memref<1x64x16x12xf32, #tpu.memory_space<vmem>>, vector<1x1x15x12xf32>
    %591 = vector.shape_cast %590 : vector<1x1x15x12xf32> to vector<15x12xf32>
    %c0_876 = arith.constant 0 : index
    %c51_877 = arith.constant 51 : index
    %c1_878 = arith.constant 1 : index
    %c0_879 = arith.constant 0 : index
    %592 = vector.load %arg1[%c0_876, %c51_877, %c1_878, %c0_879] : memref<1x64x16x12xf32, #tpu.memory_space<vmem>>, vector<1x1x15x12xf32>
    %593 = vector.shape_cast %592 : vector<1x1x15x12xf32> to vector<15x12xf32>
    %c0_880 = arith.constant 0 : index
    %c52 = arith.constant 52 : index
    %c0_881 = arith.constant 0 : index
    %c0_882 = arith.constant 0 : index
    %594 = vector.load %arg1[%c0_880, %c52, %c0_881, %c0_882] : memref<1x64x16x12xf32, #tpu.memory_space<vmem>>, vector<1x1x15x12xf32>
    %595 = vector.shape_cast %594 : vector<1x1x15x12xf32> to vector<15x12xf32>
    %c0_883 = arith.constant 0 : index
    %c52_884 = arith.constant 52 : index
    %c1_885 = arith.constant 1 : index
    %c0_886 = arith.constant 0 : index
    %596 = vector.load %arg1[%c0_883, %c52_884, %c1_885, %c0_886] : memref<1x64x16x12xf32, #tpu.memory_space<vmem>>, vector<1x1x15x12xf32>
    %597 = vector.shape_cast %596 : vector<1x1x15x12xf32> to vector<15x12xf32>
    %c0_887 = arith.constant 0 : index
    %c53 = arith.constant 53 : index
    %c0_888 = arith.constant 0 : index
    %c0_889 = arith.constant 0 : index
    %598 = vector.load %arg1[%c0_887, %c53, %c0_888, %c0_889] : memref<1x64x16x12xf32, #tpu.memory_space<vmem>>, vector<1x1x15x12xf32>
    %599 = vector.shape_cast %598 : vector<1x1x15x12xf32> to vector<15x12xf32>
    %c0_890 = arith.constant 0 : index
    %c53_891 = arith.constant 53 : index
    %c1_892 = arith.constant 1 : index
    %c0_893 = arith.constant 0 : index
    %600 = vector.load %arg1[%c0_890, %c53_891, %c1_892, %c0_893] : memref<1x64x16x12xf32, #tpu.memory_space<vmem>>, vector<1x1x15x12xf32>
    %601 = vector.shape_cast %600 : vector<1x1x15x12xf32> to vector<15x12xf32>
    %c0_894 = arith.constant 0 : index
    %c54 = arith.constant 54 : index
    %c0_895 = arith.constant 0 : index
    %c0_896 = arith.constant 0 : index
    %602 = vector.load %arg1[%c0_894, %c54, %c0_895, %c0_896] : memref<1x64x16x12xf32, #tpu.memory_space<vmem>>, vector<1x1x15x12xf32>
    %603 = vector.shape_cast %602 : vector<1x1x15x12xf32> to vector<15x12xf32>
    %c0_897 = arith.constant 0 : index
    %c54_898 = arith.constant 54 : index
    %c1_899 = arith.constant 1 : index
    %c0_900 = arith.constant 0 : index
    %604 = vector.load %arg1[%c0_897, %c54_898, %c1_899, %c0_900] : memref<1x64x16x12xf32, #tpu.memory_space<vmem>>, vector<1x1x15x12xf32>
    %605 = vector.shape_cast %604 : vector<1x1x15x12xf32> to vector<15x12xf32>
    %c0_901 = arith.constant 0 : index
    %c55 = arith.constant 55 : index
    %c0_902 = arith.constant 0 : index
    %c0_903 = arith.constant 0 : index
    %606 = vector.load %arg1[%c0_901, %c55, %c0_902, %c0_903] : memref<1x64x16x12xf32, #tpu.memory_space<vmem>>, vector<1x1x15x12xf32>
    %607 = vector.shape_cast %606 : vector<1x1x15x12xf32> to vector<15x12xf32>
    %c0_904 = arith.constant 0 : index
    %c55_905 = arith.constant 55 : index
    %c1_906 = arith.constant 1 : index
    %c0_907 = arith.constant 0 : index
    %608 = vector.load %arg1[%c0_904, %c55_905, %c1_906, %c0_907] : memref<1x64x16x12xf32, #tpu.memory_space<vmem>>, vector<1x1x15x12xf32>
    %609 = vector.shape_cast %608 : vector<1x1x15x12xf32> to vector<15x12xf32>
    %610 = tpu.concatenate %579, %581, %583, %585, %587, %589, %591, %593, %595, %597, %599, %601, %603, %605, %607, %609 in 1 : vector<15x12xf32>, vector<15x12xf32>, vector<15x12xf32>, vector<15x12xf32>, vector<15x12xf32>, vector<15x12xf32>, vector<15x12xf32>, vector<15x12xf32>, vector<15x12xf32>, vector<15x12xf32>, vector<15x12xf32>, vector<15x12xf32>, vector<15x12xf32>, vector<15x12xf32>, vector<15x12xf32>, vector<15x12xf32> -> vector<15x192xf32>
    %611 = arith.truncf %610 : vector<15x192xf32> to vector<15x192xbf16>
    %c0_908 = arith.constant 0 : index
    %c0_909 = arith.constant 0 : index
    %612 = vector.load %arg3[%c0_908, %c0_909] : memref<192x8xbf16, #tpu.memory_space<vmem>>, vector<192x8xbf16>
    %cst_910 = arith.constant dense<0.000000e+00> : vector<15x8xf32>
    %613 = tpu.matmul %611, %612, %cst_910 {dimension_numbers = #tpu.dot_dimension_numbers<[1], [0], [0], [1], [0, 0, 1, 1], [], []>} : vector<15x192xbf16>, vector<192x8xbf16>, vector<15x8xf32> -> vector<15x8xf32>
    %c0_911 = arith.constant 0 : index
    %c0_912 = arith.constant 0 : index
    %614 = vector.load %arg4[%c0_911, %c0_912] : memref<1x8xf32, #tpu.memory_space<vmem>>, vector<1x8xf32>
    %615 = vector.broadcast %614 : vector<1x8xf32> to vector<15x8xf32>
    %616 = arith.addf %613, %615 : vector<15x8xf32>
    %cst_913 = arith.constant 0.000000e+00 : f32
    %617 = vector.broadcast %cst_913 : f32 to vector<15x8xf32>
    %618 = arith.maximumf %616, %617 : vector<15x8xf32>
    %cst_914 = arith.constant dense<0.000000e+00> : vector<7x8xf32>
    %619 = tpu.matmul %6, %618, %cst_914 {dimension_numbers = #tpu.dot_dimension_numbers<[1], [0], [0], [1], [0, 0, 1, 1], [], []>} : vector<7x15xf32>, vector<15x8xf32>, vector<7x8xf32> -> vector<7x8xf32>
    %cst_915 = arith.constant dense<0.000000e+00> : vector<7x8xf32>
    %620 = tpu.matmul %13, %618, %cst_915 {dimension_numbers = #tpu.dot_dimension_numbers<[1], [0], [0], [1], [0, 0, 1, 1], [], []>} : vector<7x15xf32>, vector<15x8xf32>, vector<7x8xf32> -> vector<7x8xf32>
    %621 = tpu.concatenate %619, %620 in 1 : vector<7x8xf32>, vector<7x8xf32> -> vector<7x16xf32>
    %c12_916 = arith.constant 12 : index
    %c0_917 = arith.constant 0 : index
    %c0_918 = arith.constant 0 : index
    %622 = vector.load %arg10[%c12_916, %c0_917, %c0_918] : memref<15x7x16xf32, #tpu.memory_space<vmem>>, vector<1x7x16xf32>
    %623 = vector.shape_cast %622 : vector<1x7x16xf32> to vector<7x16xf32>
    %624 = vector.shape_cast %621 : vector<7x16xf32> to vector<1x7x16xf32>
    tpu.vector_store %arg10[%c12_916, %c0_917, %c0_918], %624 {strides = array<i32>} : memref<15x7x16xf32, #tpu.memory_space<vmem>>, vector<1x7x16xf32>,
    %c0_919 = arith.constant 0 : index
    %c52_920 = arith.constant 52 : index
    %c0_921 = arith.constant 0 : index
    %c0_922 = arith.constant 0 : index
    %625 = vector.load %arg1[%c0_919, %c52_920, %c0_921, %c0_922] : memref<1x64x16x12xf32, #tpu.memory_space<vmem>>, vector<1x1x15x12xf32>
    %626 = vector.shape_cast %625 : vector<1x1x15x12xf32> to vector<15x12xf32>
    %c0_923 = arith.constant 0 : index
    %c52_924 = arith.constant 52 : index
    %c1_925 = arith.constant 1 : index
    %c0_926 = arith.constant 0 : index
    %627 = vector.load %arg1[%c0_923, %c52_924, %c1_925, %c0_926] : memref<1x64x16x12xf32, #tpu.memory_space<vmem>>, vector<1x1x15x12xf32>
    %628 = vector.shape_cast %627 : vector<1x1x15x12xf32> to vector<15x12xf32>
    %c0_927 = arith.constant 0 : index
    %c53_928 = arith.constant 53 : index
    %c0_929 = arith.constant 0 : index
    %c0_930 = arith.constant 0 : index
    %629 = vector.load %arg1[%c0_927, %c53_928, %c0_929, %c0_930] : memref<1x64x16x12xf32, #tpu.memory_space<vmem>>, vector<1x1x15x12xf32>
    %630 = vector.shape_cast %629 : vector<1x1x15x12xf32> to vector<15x12xf32>
    %c0_931 = arith.constant 0 : index
    %c53_932 = arith.constant 53 : index
    %c1_933 = arith.constant 1 : index
    %c0_934 = arith.constant 0 : index
    %631 = vector.load %arg1[%c0_931, %c53_932, %c1_933, %c0_934] : memref<1x64x16x12xf32, #tpu.memory_space<vmem>>, vector<1x1x15x12xf32>
    %632 = vector.shape_cast %631 : vector<1x1x15x12xf32> to vector<15x12xf32>
    %c0_935 = arith.constant 0 : index
    %c54_936 = arith.constant 54 : index
    %c0_937 = arith.constant 0 : index
    %c0_938 = arith.constant 0 : index
    %633 = vector.load %arg1[%c0_935, %c54_936, %c0_937, %c0_938] : memref<1x64x16x12xf32, #tpu.memory_space<vmem>>, vector<1x1x15x12xf32>
    %634 = vector.shape_cast %633 : vector<1x1x15x12xf32> to vector<15x12xf32>
    %c0_939 = arith.constant 0 : index
    %c54_940 = arith.constant 54 : index
    %c1_941 = arith.constant 1 : index
    %c0_942 = arith.constant 0 : index
    %635 = vector.load %arg1[%c0_939, %c54_940, %c1_941, %c0_942] : memref<1x64x16x12xf32, #tpu.memory_space<vmem>>, vector<1x1x15x12xf32>
    %636 = vector.shape_cast %635 : vector<1x1x15x12xf32> to vector<15x12xf32>
    %c0_943 = arith.constant 0 : index
    %c55_944 = arith.constant 55 : index
    %c0_945 = arith.constant 0 : index
    %c0_946 = arith.constant 0 : index
    %637 = vector.load %arg1[%c0_943, %c55_944, %c0_945, %c0_946] : memref<1x64x16x12xf32, #tpu.memory_space<vmem>>, vector<1x1x15x12xf32>
    %638 = vector.shape_cast %637 : vector<1x1x15x12xf32> to vector<15x12xf32>
    %c0_947 = arith.constant 0 : index
    %c55_948 = arith.constant 55 : index
    %c1_949 = arith.constant 1 : index
    %c0_950 = arith.constant 0 : index
    %639 = vector.load %arg1[%c0_947, %c55_948, %c1_949, %c0_950] : memref<1x64x16x12xf32, #tpu.memory_space<vmem>>, vector<1x1x15x12xf32>
    %640 = vector.shape_cast %639 : vector<1x1x15x12xf32> to vector<15x12xf32>
    %c0_951 = arith.constant 0 : index
    %c56 = arith.constant 56 : index
    %c0_952 = arith.constant 0 : index
    %c0_953 = arith.constant 0 : index
    %641 = vector.load %arg1[%c0_951, %c56, %c0_952, %c0_953] : memref<1x64x16x12xf32, #tpu.memory_space<vmem>>, vector<1x1x15x12xf32>
    %642 = vector.shape_cast %641 : vector<1x1x15x12xf32> to vector<15x12xf32>
    %c0_954 = arith.constant 0 : index
    %c56_955 = arith.constant 56 : index
    %c1_956 = arith.constant 1 : index
    %c0_957 = arith.constant 0 : index
    %643 = vector.load %arg1[%c0_954, %c56_955, %c1_956, %c0_957] : memref<1x64x16x12xf32, #tpu.memory_space<vmem>>, vector<1x1x15x12xf32>
    %644 = vector.shape_cast %643 : vector<1x1x15x12xf32> to vector<15x12xf32>
    %c0_958 = arith.constant 0 : index
    %c57 = arith.constant 57 : index
    %c0_959 = arith.constant 0 : index
    %c0_960 = arith.constant 0 : index
    %645 = vector.load %arg1[%c0_958, %c57, %c0_959, %c0_960] : memref<1x64x16x12xf32, #tpu.memory_space<vmem>>, vector<1x1x15x12xf32>
    %646 = vector.shape_cast %645 : vector<1x1x15x12xf32> to vector<15x12xf32>
    %c0_961 = arith.constant 0 : index
    %c57_962 = arith.constant 57 : index
    %c1_963 = arith.constant 1 : index
    %c0_964 = arith.constant 0 : index
    %647 = vector.load %arg1[%c0_961, %c57_962, %c1_963, %c0_964] : memref<1x64x16x12xf32, #tpu.memory_space<vmem>>, vector<1x1x15x12xf32>
    %648 = vector.shape_cast %647 : vector<1x1x15x12xf32> to vector<15x12xf32>
    %c0_965 = arith.constant 0 : index
    %c58 = arith.constant 58 : index
    %c0_966 = arith.constant 0 : index
    %c0_967 = arith.constant 0 : index
    %649 = vector.load %arg1[%c0_965, %c58, %c0_966, %c0_967] : memref<1x64x16x12xf32, #tpu.memory_space<vmem>>, vector<1x1x15x12xf32>
    %650 = vector.shape_cast %649 : vector<1x1x15x12xf32> to vector<15x12xf32>
    %c0_968 = arith.constant 0 : index
    %c58_969 = arith.constant 58 : index
    %c1_970 = arith.constant 1 : index
    %c0_971 = arith.constant 0 : index
    %651 = vector.load %arg1[%c0_968, %c58_969, %c1_970, %c0_971] : memref<1x64x16x12xf32, #tpu.memory_space<vmem>>, vector<1x1x15x12xf32>
    %652 = vector.shape_cast %651 : vector<1x1x15x12xf32> to vector<15x12xf32>
    %c0_972 = arith.constant 0 : index
    %c59 = arith.constant 59 : index
    %c0_973 = arith.constant 0 : index
    %c0_974 = arith.constant 0 : index
    %653 = vector.load %arg1[%c0_972, %c59, %c0_973, %c0_974] : memref<1x64x16x12xf32, #tpu.memory_space<vmem>>, vector<1x1x15x12xf32>
    %654 = vector.shape_cast %653 : vector<1x1x15x12xf32> to vector<15x12xf32>
    %c0_975 = arith.constant 0 : index
    %c59_976 = arith.constant 59 : index
    %c1_977 = arith.constant 1 : index
    %c0_978 = arith.constant 0 : index
    %655 = vector.load %arg1[%c0_975, %c59_976, %c1_977, %c0_978] : memref<1x64x16x12xf32, #tpu.memory_space<vmem>>, vector<1x1x15x12xf32>
    %656 = vector.shape_cast %655 : vector<1x1x15x12xf32> to vector<15x12xf32>
    %657 = tpu.concatenate %626, %628, %630, %632, %634, %636, %638, %640, %642, %644, %646, %648, %650, %652, %654, %656 in 1 : vector<15x12xf32>, vector<15x12xf32>, vector<15x12xf32>, vector<15x12xf32>, vector<15x12xf32>, vector<15x12xf32>, vector<15x12xf32>, vector<15x12xf32>, vector<15x12xf32>, vector<15x12xf32>, vector<15x12xf32>, vector<15x12xf32>, vector<15x12xf32>, vector<15x12xf32>, vector<15x12xf32>, vector<15x12xf32> -> vector<15x192xf32>
    %658 = arith.truncf %657 : vector<15x192xf32> to vector<15x192xbf16>
    %c0_979 = arith.constant 0 : index
    %c0_980 = arith.constant 0 : index
    %659 = vector.load %arg3[%c0_979, %c0_980] : memref<192x8xbf16, #tpu.memory_space<vmem>>, vector<192x8xbf16>
    %cst_981 = arith.constant dense<0.000000e+00> : vector<15x8xf32>
    %660 = tpu.matmul %658, %659, %cst_981 {dimension_numbers = #tpu.dot_dimension_numbers<[1], [0], [0], [1], [0, 0, 1, 1], [], []>} : vector<15x192xbf16>, vector<192x8xbf16>, vector<15x8xf32> -> vector<15x8xf32>
    %c0_982 = arith.constant 0 : index
    %c0_983 = arith.constant 0 : index
    %661 = vector.load %arg4[%c0_982, %c0_983] : memref<1x8xf32, #tpu.memory_space<vmem>>, vector<1x8xf32>
    %662 = vector.broadcast %661 : vector<1x8xf32> to vector<15x8xf32>
    %663 = arith.addf %660, %662 : vector<15x8xf32>
    %cst_984 = arith.constant 0.000000e+00 : f32
    %664 = vector.broadcast %cst_984 : f32 to vector<15x8xf32>
    %665 = arith.maximumf %663, %664 : vector<15x8xf32>
    %cst_985 = arith.constant dense<0.000000e+00> : vector<7x8xf32>
    %666 = tpu.matmul %6, %665, %cst_985 {dimension_numbers = #tpu.dot_dimension_numbers<[1], [0], [0], [1], [0, 0, 1, 1], [], []>} : vector<7x15xf32>, vector<15x8xf32>, vector<7x8xf32> -> vector<7x8xf32>
    %cst_986 = arith.constant dense<0.000000e+00> : vector<7x8xf32>
    %667 = tpu.matmul %13, %665, %cst_986 {dimension_numbers = #tpu.dot_dimension_numbers<[1], [0], [0], [1], [0, 0, 1, 1], [], []>} : vector<7x15xf32>, vector<15x8xf32>, vector<7x8xf32> -> vector<7x8xf32>
    %668 = tpu.concatenate %666, %667 in 1 : vector<7x8xf32>, vector<7x8xf32> -> vector<7x16xf32>
    %c13_987 = arith.constant 13 : index
    %c0_988 = arith.constant 0 : index
    %c0_989 = arith.constant 0 : index
    %669 = vector.load %arg10[%c13_987, %c0_988, %c0_989] : memref<15x7x16xf32, #tpu.memory_space<vmem>>, vector<1x7x16xf32>
    %670 = vector.shape_cast %669 : vector<1x7x16xf32> to vector<7x16xf32>
    %671 = vector.shape_cast %668 : vector<7x16xf32> to vector<1x7x16xf32>
    tpu.vector_store %arg10[%c13_987, %c0_988, %c0_989], %671 {strides = array<i32>} : memref<15x7x16xf32, #tpu.memory_space<vmem>>, vector<1x7x16xf32>,
    %c0_990 = arith.constant 0 : index
    %c56_991 = arith.constant 56 : index
    %c0_992 = arith.constant 0 : index
    %c0_993 = arith.constant 0 : index
    %672 = vector.load %arg1[%c0_990, %c56_991, %c0_992, %c0_993] : memref<1x64x16x12xf32, #tpu.memory_space<vmem>>, vector<1x1x15x12xf32>
    %673 = vector.shape_cast %672 : vector<1x1x15x12xf32> to vector<15x12xf32>
    %c0_994 = arith.constant 0 : index
    %c56_995 = arith.constant 56 : index
    %c1_996 = arith.constant 1 : index
    %c0_997 = arith.constant 0 : index
    %674 = vector.load %arg1[%c0_994, %c56_995, %c1_996, %c0_997] : memref<1x64x16x12xf32, #tpu.memory_space<vmem>>, vector<1x1x15x12xf32>
    %675 = vector.shape_cast %674 : vector<1x1x15x12xf32> to vector<15x12xf32>
    %c0_998 = arith.constant 0 : index
    %c57_999 = arith.constant 57 : index
    %c0_1000 = arith.constant 0 : index
    %c0_1001 = arith.constant 0 : index
    %676 = vector.load %arg1[%c0_998, %c57_999, %c0_1000, %c0_1001] : memref<1x64x16x12xf32, #tpu.memory_space<vmem>>, vector<1x1x15x12xf32>
    %677 = vector.shape_cast %676 : vector<1x1x15x12xf32> to vector<15x12xf32>
    %c0_1002 = arith.constant 0 : index
    %c57_1003 = arith.constant 57 : index
    %c1_1004 = arith.constant 1 : index
    %c0_1005 = arith.constant 0 : index
    %678 = vector.load %arg1[%c0_1002, %c57_1003, %c1_1004, %c0_1005] : memref<1x64x16x12xf32, #tpu.memory_space<vmem>>, vector<1x1x15x12xf32>
    %679 = vector.shape_cast %678 : vector<1x1x15x12xf32> to vector<15x12xf32>
    %c0_1006 = arith.constant 0 : index
    %c58_1007 = arith.constant 58 : index
    %c0_1008 = arith.constant 0 : index
    %c0_1009 = arith.constant 0 : index
    %680 = vector.load %arg1[%c0_1006, %c58_1007, %c0_1008, %c0_1009] : memref<1x64x16x12xf32, #tpu.memory_space<vmem>>, vector<1x1x15x12xf32>
    %681 = vector.shape_cast %680 : vector<1x1x15x12xf32> to vector<15x12xf32>
    %c0_1010 = arith.constant 0 : index
    %c58_1011 = arith.constant 58 : index
    %c1_1012 = arith.constant 1 : index
    %c0_1013 = arith.constant 0 : index
    %682 = vector.load %arg1[%c0_1010, %c58_1011, %c1_1012, %c0_1013] : memref<1x64x16x12xf32, #tpu.memory_space<vmem>>, vector<1x1x15x12xf32>
    %683 = vector.shape_cast %682 : vector<1x1x15x12xf32> to vector<15x12xf32>
    %c0_1014 = arith.constant 0 : index
    %c59_1015 = arith.constant 59 : index
    %c0_1016 = arith.constant 0 : index
    %c0_1017 = arith.constant 0 : index
    %684 = vector.load %arg1[%c0_1014, %c59_1015, %c0_1016, %c0_1017] : memref<1x64x16x12xf32, #tpu.memory_space<vmem>>, vector<1x1x15x12xf32>
    %685 = vector.shape_cast %684 : vector<1x1x15x12xf32> to vector<15x12xf32>
    %c0_1018 = arith.constant 0 : index
    %c59_1019 = arith.constant 59 : index
    %c1_1020 = arith.constant 1 : index
    %c0_1021 = arith.constant 0 : index
    %686 = vector.load %arg1[%c0_1018, %c59_1019, %c1_1020, %c0_1021] : memref<1x64x16x12xf32, #tpu.memory_space<vmem>>, vector<1x1x15x12xf32>
    %687 = vector.shape_cast %686 : vector<1x1x15x12xf32> to vector<15x12xf32>
    %c0_1022 = arith.constant 0 : index
    %c60 = arith.constant 60 : index
    %c0_1023 = arith.constant 0 : index
    %c0_1024 = arith.constant 0 : index
    %688 = vector.load %arg1[%c0_1022, %c60, %c0_1023, %c0_1024] : memref<1x64x16x12xf32, #tpu.memory_space<vmem>>, vector<1x1x15x12xf32>
    %689 = vector.shape_cast %688 : vector<1x1x15x12xf32> to vector<15x12xf32>
    %c0_1025 = arith.constant 0 : index
    %c60_1026 = arith.constant 60 : index
    %c1_1027 = arith.constant 1 : index
    %c0_1028 = arith.constant 0 : index
    %690 = vector.load %arg1[%c0_1025, %c60_1026, %c1_1027, %c0_1028] : memref<1x64x16x12xf32, #tpu.memory_space<vmem>>, vector<1x1x15x12xf32>
    %691 = vector.shape_cast %690 : vector<1x1x15x12xf32> to vector<15x12xf32>
    %c0_1029 = arith.constant 0 : index
    %c61 = arith.constant 61 : index
    %c0_1030 = arith.constant 0 : index
    %c0_1031 = arith.constant 0 : index
    %692 = vector.load %arg1[%c0_1029, %c61, %c0_1030, %c0_1031] : memref<1x64x16x12xf32, #tpu.memory_space<vmem>>, vector<1x1x15x12xf32>
    %693 = vector.shape_cast %692 : vector<1x1x15x12xf32> to vector<15x12xf32>
    %c0_1032 = arith.constant 0 : index
    %c61_1033 = arith.constant 61 : index
    %c1_1034 = arith.constant 1 : index
    %c0_1035 = arith.constant 0 : index
    %694 = vector.load %arg1[%c0_1032, %c61_1033, %c1_1034, %c0_1035] : memref<1x64x16x12xf32, #tpu.memory_space<vmem>>, vector<1x1x15x12xf32>
    %695 = vector.shape_cast %694 : vector<1x1x15x12xf32> to vector<15x12xf32>
    %c0_1036 = arith.constant 0 : index
    %c62 = arith.constant 62 : index
    %c0_1037 = arith.constant 0 : index
    %c0_1038 = arith.constant 0 : index
    %696 = vector.load %arg1[%c0_1036, %c62, %c0_1037, %c0_1038] : memref<1x64x16x12xf32, #tpu.memory_space<vmem>>, vector<1x1x15x12xf32>
    %697 = vector.shape_cast %696 : vector<1x1x15x12xf32> to vector<15x12xf32>
    %c0_1039 = arith.constant 0 : index
    %c62_1040 = arith.constant 62 : index
    %c1_1041 = arith.constant 1 : index
    %c0_1042 = arith.constant 0 : index
    %698 = vector.load %arg1[%c0_1039, %c62_1040, %c1_1041, %c0_1042] : memref<1x64x16x12xf32, #tpu.memory_space<vmem>>, vector<1x1x15x12xf32>
    %699 = vector.shape_cast %698 : vector<1x1x15x12xf32> to vector<15x12xf32>
    %c0_1043 = arith.constant 0 : index
    %c63 = arith.constant 63 : index
    %c0_1044 = arith.constant 0 : index
    %c0_1045 = arith.constant 0 : index
    %700 = vector.load %arg1[%c0_1043, %c63, %c0_1044, %c0_1045] : memref<1x64x16x12xf32, #tpu.memory_space<vmem>>, vector<1x1x15x12xf32>
    %701 = vector.shape_cast %700 : vector<1x1x15x12xf32> to vector<15x12xf32>
    %c0_1046 = arith.constant 0 : index
    %c63_1047 = arith.constant 63 : index
    %c1_1048 = arith.constant 1 : index
    %c0_1049 = arith.constant 0 : index
    %702 = vector.load %arg1[%c0_1046, %c63_1047, %c1_1048, %c0_1049] : memref<1x64x16x12xf32, #tpu.memory_space<vmem>>, vector<1x1x15x12xf32>
    %703 = vector.shape_cast %702 : vector<1x1x15x12xf32> to vector<15x12xf32>
    %704 = tpu.concatenate %673, %675, %677, %679, %681, %683, %685, %687, %689, %691, %693, %695, %697, %699, %701, %703 in 1 : vector<15x12xf32>, vector<15x12xf32>, vector<15x12xf32>, vector<15x12xf32>, vector<15x12xf32>, vector<15x12xf32>, vector<15x12xf32>, vector<15x12xf32>, vector<15x12xf32>, vector<15x12xf32>, vector<15x12xf32>, vector<15x12xf32>, vector<15x12xf32>, vector<15x12xf32>, vector<15x12xf32>, vector<15x12xf32> -> vector<15x192xf32>
    %705 = arith.truncf %704 : vector<15x192xf32> to vector<15x192xbf16>
    %c0_1050 = arith.constant 0 : index
    %c0_1051 = arith.constant 0 : index
    %706 = vector.load %arg3[%c0_1050, %c0_1051] : memref<192x8xbf16, #tpu.memory_space<vmem>>, vector<192x8xbf16>
    %cst_1052 = arith.constant dense<0.000000e+00> : vector<15x8xf32>
    %707 = tpu.matmul %705, %706, %cst_1052 {dimension_numbers = #tpu.dot_dimension_numbers<[1], [0], [0], [1], [0, 0, 1, 1], [], []>} : vector<15x192xbf16>, vector<192x8xbf16>, vector<15x8xf32> -> vector<15x8xf32>
    %c0_1053 = arith.constant 0 : index
    %c0_1054 = arith.constant 0 : index
    %708 = vector.load %arg4[%c0_1053, %c0_1054] : memref<1x8xf32, #tpu.memory_space<vmem>>, vector<1x8xf32>
    %709 = vector.broadcast %708 : vector<1x8xf32> to vector<15x8xf32>
    %710 = arith.addf %707, %709 : vector<15x8xf32>
    %cst_1055 = arith.constant 0.000000e+00 : f32
    %711 = vector.broadcast %cst_1055 : f32 to vector<15x8xf32>
    %712 = arith.maximumf %710, %711 : vector<15x8xf32>
    %cst_1056 = arith.constant dense<0.000000e+00> : vector<7x8xf32>
    %713 = tpu.matmul %6, %712, %cst_1056 {dimension_numbers = #tpu.dot_dimension_numbers<[1], [0], [0], [1], [0, 0, 1, 1], [], []>} : vector<7x15xf32>, vector<15x8xf32>, vector<7x8xf32> -> vector<7x8xf32>
    %cst_1057 = arith.constant dense<0.000000e+00> : vector<7x8xf32>
    %714 = tpu.matmul %13, %712, %cst_1057 {dimension_numbers = #tpu.dot_dimension_numbers<[1], [0], [0], [1], [0, 0, 1, 1], [], []>} : vector<7x15xf32>, vector<15x8xf32>, vector<7x8xf32> -> vector<7x8xf32>
    %715 = tpu.concatenate %713, %714 in 1 : vector<7x8xf32>, vector<7x8xf32> -> vector<7x16xf32>
    %c14_1058 = arith.constant 14 : index
    %c0_1059 = arith.constant 0 : index
    %c0_1060 = arith.constant 0 : index
    %716 = vector.load %arg10[%c14_1058, %c0_1059, %c0_1060] : memref<15x7x16xf32, #tpu.memory_space<vmem>>, vector<1x7x16xf32>
    %717 = vector.shape_cast %716 : vector<1x7x16xf32> to vector<7x16xf32>
    %718 = vector.shape_cast %715 : vector<7x16xf32> to vector<1x7x16xf32>
    tpu.vector_store %arg10[%c14_1058, %c0_1059, %c0_1060], %718 {strides = array<i32>} : memref<15x7x16xf32, #tpu.memory_space<vmem>>, vector<1x7x16xf32>,
    %c0_1061 = arith.constant 0 : index
    %c0_1062 = arith.constant 0 : index
    %c0_1063 = arith.constant 0 : index
    %719 = vector.load %arg10[%c0_1061, %c0_1062, %c0_1063] : memref<15x7x16xf32, #tpu.memory_space<vmem>>, vector<1x6x16xf32>
    %720 = vector.shape_cast %719 : vector<1x6x16xf32> to vector<6x16xf32>
    %c0_1064 = arith.constant 0 : index
    %c1_1065 = arith.constant 1 : index
    %c0_1066 = arith.constant 0 : index
    %721 = vector.load %arg10[%c0_1064, %c1_1065, %c0_1066] : memref<15x7x16xf32, #tpu.memory_space<vmem>>, vector<1x6x16xf32>
    %722 = vector.shape_cast %721 : vector<1x6x16xf32> to vector<6x16xf32>
    %c1_1067 = arith.constant 1 : index
    %c0_1068 = arith.constant 0 : index
    %c0_1069 = arith.constant 0 : index
    %723 = vector.load %arg10[%c1_1067, %c0_1068, %c0_1069] : memref<15x7x16xf32, #tpu.memory_space<vmem>>, vector<1x6x16xf32>
    %724 = vector.shape_cast %723 : vector<1x6x16xf32> to vector<6x16xf32>
    %c1_1070 = arith.constant 1 : index
    %c1_1071 = arith.constant 1 : index
    %c0_1072 = arith.constant 0 : index
    %725 = vector.load %arg10[%c1_1070, %c1_1071, %c0_1072] : memref<15x7x16xf32, #tpu.memory_space<vmem>>, vector<1x6x16xf32>
    %726 = vector.shape_cast %725 : vector<1x6x16xf32> to vector<6x16xf32>
    %c2_1073 = arith.constant 2 : index
    %c0_1074 = arith.constant 0 : index
    %c0_1075 = arith.constant 0 : index
    %727 = vector.load %arg10[%c2_1073, %c0_1074, %c0_1075] : memref<15x7x16xf32, #tpu.memory_space<vmem>>, vector<1x6x16xf32>
    %728 = vector.shape_cast %727 : vector<1x6x16xf32> to vector<6x16xf32>
    %c2_1076 = arith.constant 2 : index
    %c1_1077 = arith.constant 1 : index
    %c0_1078 = arith.constant 0 : index
    %729 = vector.load %arg10[%c2_1076, %c1_1077, %c0_1078] : memref<15x7x16xf32, #tpu.memory_space<vmem>>, vector<1x6x16xf32>
    %730 = vector.shape_cast %729 : vector<1x6x16xf32> to vector<6x16xf32>
    %c3_1079 = arith.constant 3 : index
    %c0_1080 = arith.constant 0 : index
    %c0_1081 = arith.constant 0 : index
    %731 = vector.load %arg10[%c3_1079, %c0_1080, %c0_1081] : memref<15x7x16xf32, #tpu.memory_space<vmem>>, vector<1x6x16xf32>
    %732 = vector.shape_cast %731 : vector<1x6x16xf32> to vector<6x16xf32>
    %c3_1082 = arith.constant 3 : index
    %c1_1083 = arith.constant 1 : index
    %c0_1084 = arith.constant 0 : index
    %733 = vector.load %arg10[%c3_1082, %c1_1083, %c0_1084] : memref<15x7x16xf32, #tpu.memory_space<vmem>>, vector<1x6x16xf32>
    %734 = vector.shape_cast %733 : vector<1x6x16xf32> to vector<6x16xf32>
    %735 = tpu.concatenate %720, %722, %724, %726, %728, %730, %732, %734 in 1 : vector<6x16xf32>, vector<6x16xf32>, vector<6x16xf32>, vector<6x16xf32>, vector<6x16xf32>, vector<6x16xf32>, vector<6x16xf32>, vector<6x16xf32> -> vector<6x128xf32>
    %736 = arith.truncf %735 : vector<6x128xf32> to vector<6x128xbf16>
    %c0_1085 = arith.constant 0 : index
    %c0_1086 = arith.constant 0 : index
    %737 = vector.load %arg5[%c0_1085, %c0_1086] : memref<128x16xbf16, #tpu.memory_space<vmem>>, vector<128x16xbf16>
    %cst_1087 = arith.constant dense<0.000000e+00> : vector<6x16xf32>
    %738 = tpu.matmul %736, %737, %cst_1087 {dimension_numbers = #tpu.dot_dimension_numbers<[1], [0], [0], [1], [0, 0, 1, 1], [], []>} : vector<6x128xbf16>, vector<128x16xbf16>, vector<6x16xf32> -> vector<6x16xf32>
    %c0_1088 = arith.constant 0 : index
    %c0_1089 = arith.constant 0 : index
    %739 = vector.load %arg6[%c0_1088, %c0_1089] : memref<1x16xf32, #tpu.memory_space<vmem>>, vector<1x16xf32>
    %740 = vector.broadcast %739 : vector<1x16xf32> to vector<6x16xf32>
    %741 = arith.addf %738, %740 : vector<6x16xf32>
    %cst_1090 = arith.constant 0.000000e+00 : f32
    %742 = vector.broadcast %cst_1090 : f32 to vector<6x16xf32>
    %743 = arith.maximumf %741, %742 : vector<6x16xf32>
    %c0_1091 = arith.constant 0 : index
    %c0_1092 = arith.constant 0 : index
    %c0_1093 = arith.constant 0 : index
    %744 = vector.load %arg11[%c0_1091, %c0_1092, %c0_1093] : memref<6x6x16xf32, #tpu.memory_space<vmem>>, vector<1x6x16xf32>
    %745 = vector.shape_cast %744 : vector<1x6x16xf32> to vector<6x16xf32>
    %746 = vector.shape_cast %743 : vector<6x16xf32> to vector<1x6x16xf32>
    tpu.vector_store %arg11[%c0_1091, %c0_1092, %c0_1093], %746 {strides = array<i32>} : memref<6x6x16xf32, #tpu.memory_space<vmem>>, vector<1x6x16xf32>,
    %c2_1094 = arith.constant 2 : index
    %c0_1095 = arith.constant 0 : index
    %c0_1096 = arith.constant 0 : index
    %747 = vector.load %arg10[%c2_1094, %c0_1095, %c0_1096] : memref<15x7x16xf32, #tpu.memory_space<vmem>>, vector<1x6x16xf32>
    %748 = vector.shape_cast %747 : vector<1x6x16xf32> to vector<6x16xf32>
    %c2_1097 = arith.constant 2 : index
    %c1_1098 = arith.constant 1 : index
    %c0_1099 = arith.constant 0 : index
    %749 = vector.load %arg10[%c2_1097, %c1_1098, %c0_1099] : memref<15x7x16xf32, #tpu.memory_space<vmem>>, vector<1x6x16xf32>
    %750 = vector.shape_cast %749 : vector<1x6x16xf32> to vector<6x16xf32>
    %c3_1100 = arith.constant 3 : index
    %c0_1101 = arith.constant 0 : index
    %c0_1102 = arith.constant 0 : index
    %751 = vector.load %arg10[%c3_1100, %c0_1101, %c0_1102] : memref<15x7x16xf32, #tpu.memory_space<vmem>>, vector<1x6x16xf32>
    %752 = vector.shape_cast %751 : vector<1x6x16xf32> to vector<6x16xf32>
    %c3_1103 = arith.constant 3 : index
    %c1_1104 = arith.constant 1 : index
    %c0_1105 = arith.constant 0 : index
    %753 = vector.load %arg10[%c3_1103, %c1_1104, %c0_1105] : memref<15x7x16xf32, #tpu.memory_space<vmem>>, vector<1x6x16xf32>
    %754 = vector.shape_cast %753 : vector<1x6x16xf32> to vector<6x16xf32>
    %c4_1106 = arith.constant 4 : index
    %c0_1107 = arith.constant 0 : index
    %c0_1108 = arith.constant 0 : index
    %755 = vector.load %arg10[%c4_1106, %c0_1107, %c0_1108] : memref<15x7x16xf32, #tpu.memory_space<vmem>>, vector<1x6x16xf32>
    %756 = vector.shape_cast %755 : vector<1x6x16xf32> to vector<6x16xf32>
    %c4_1109 = arith.constant 4 : index
    %c1_1110 = arith.constant 1 : index
    %c0_1111 = arith.constant 0 : index
    %757 = vector.load %arg10[%c4_1109, %c1_1110, %c0_1111] : memref<15x7x16xf32, #tpu.memory_space<vmem>>, vector<1x6x16xf32>
    %758 = vector.shape_cast %757 : vector<1x6x16xf32> to vector<6x16xf32>
    %c5_1112 = arith.constant 5 : index
    %c0_1113 = arith.constant 0 : index
    %c0_1114 = arith.constant 0 : index
    %759 = vector.load %arg10[%c5_1112, %c0_1113, %c0_1114] : memref<15x7x16xf32, #tpu.memory_space<vmem>>, vector<1x6x16xf32>
    %760 = vector.shape_cast %759 : vector<1x6x16xf32> to vector<6x16xf32>
    %c5_1115 = arith.constant 5 : index
    %c1_1116 = arith.constant 1 : index
    %c0_1117 = arith.constant 0 : index
    %761 = vector.load %arg10[%c5_1115, %c1_1116, %c0_1117] : memref<15x7x16xf32, #tpu.memory_space<vmem>>, vector<1x6x16xf32>
    %762 = vector.shape_cast %761 : vector<1x6x16xf32> to vector<6x16xf32>
    %763 = tpu.concatenate %748, %750, %752, %754, %756, %758, %760, %762 in 1 : vector<6x16xf32>, vector<6x16xf32>, vector<6x16xf32>, vector<6x16xf32>, vector<6x16xf32>, vector<6x16xf32>, vector<6x16xf32>, vector<6x16xf32> -> vector<6x128xf32>
    %764 = arith.truncf %763 : vector<6x128xf32> to vector<6x128xbf16>
    %c0_1118 = arith.constant 0 : index
    %c0_1119 = arith.constant 0 : index
    %765 = vector.load %arg5[%c0_1118, %c0_1119] : memref<128x16xbf16, #tpu.memory_space<vmem>>, vector<128x16xbf16>
    %cst_1120 = arith.constant dense<0.000000e+00> : vector<6x16xf32>
    %766 = tpu.matmul %764, %765, %cst_1120 {dimension_numbers = #tpu.dot_dimension_numbers<[1], [0], [0], [1], [0, 0, 1, 1], [], []>} : vector<6x128xbf16>, vector<128x16xbf16>, vector<6x16xf32> -> vector<6x16xf32>
    %c0_1121 = arith.constant 0 : index
    %c0_1122 = arith.constant 0 : index
    %767 = vector.load %arg6[%c0_1121, %c0_1122] : memref<1x16xf32, #tpu.memory_space<vmem>>, vector<1x16xf32>
    %768 = vector.broadcast %767 : vector<1x16xf32> to vector<6x16xf32>
    %769 = arith.addf %766, %768 : vector<6x16xf32>
    %cst_1123 = arith.constant 0.000000e+00 : f32
    %770 = vector.broadcast %cst_1123 : f32 to vector<6x16xf32>
    %771 = arith.maximumf %769, %770 : vector<6x16xf32>
    %c1_1124 = arith.constant 1 : index
    %c0_1125 = arith.constant 0 : index
    %c0_1126 = arith.constant 0 : index
    %772 = vector.load %arg11[%c1_1124, %c0_1125, %c0_1126] : memref<6x6x16xf32, #tpu.memory_space<vmem>>, vector<1x6x16xf32>
    %773 = vector.shape_cast %772 : vector<1x6x16xf32> to vector<6x16xf32>
    %774 = vector.shape_cast %771 : vector<6x16xf32> to vector<1x6x16xf32>
    tpu.vector_store %arg11[%c1_1124, %c0_1125, %c0_1126], %774 {strides = array<i32>} : memref<6x6x16xf32, #tpu.memory_space<vmem>>, vector<1x6x16xf32>,
    %c4_1127 = arith.constant 4 : index
    %c0_1128 = arith.constant 0 : index
    %c0_1129 = arith.constant 0 : index
    %775 = vector.load %arg10[%c4_1127, %c0_1128, %c0_1129] : memref<15x7x16xf32, #tpu.memory_space<vmem>>, vector<1x6x16xf32>
    %776 = vector.shape_cast %775 : vector<1x6x16xf32> to vector<6x16xf32>
    %c4_1130 = arith.constant 4 : index
    %c1_1131 = arith.constant 1 : index
    %c0_1132 = arith.constant 0 : index
    %777 = vector.load %arg10[%c4_1130, %c1_1131, %c0_1132] : memref<15x7x16xf32, #tpu.memory_space<vmem>>, vector<1x6x16xf32>
    %778 = vector.shape_cast %777 : vector<1x6x16xf32> to vector<6x16xf32>
    %c5_1133 = arith.constant 5 : index
    %c0_1134 = arith.constant 0 : index
    %c0_1135 = arith.constant 0 : index
    %779 = vector.load %arg10[%c5_1133, %c0_1134, %c0_1135] : memref<15x7x16xf32, #tpu.memory_space<vmem>>, vector<1x6x16xf32>
    %780 = vector.shape_cast %779 : vector<1x6x16xf32> to vector<6x16xf32>
    %c5_1136 = arith.constant 5 : index
    %c1_1137 = arith.constant 1 : index
    %c0_1138 = arith.constant 0 : index
    %781 = vector.load %arg10[%c5_1136, %c1_1137, %c0_1138] : memref<15x7x16xf32, #tpu.memory_space<vmem>>, vector<1x6x16xf32>
    %782 = vector.shape_cast %781 : vector<1x6x16xf32> to vector<6x16xf32>
    %c6_1139 = arith.constant 6 : index
    %c0_1140 = arith.constant 0 : index
    %c0_1141 = arith.constant 0 : index
    %783 = vector.load %arg10[%c6_1139, %c0_1140, %c0_1141] : memref<15x7x16xf32, #tpu.memory_space<vmem>>, vector<1x6x16xf32>
    %784 = vector.shape_cast %783 : vector<1x6x16xf32> to vector<6x16xf32>
    %c6_1142 = arith.constant 6 : index
    %c1_1143 = arith.constant 1 : index
    %c0_1144 = arith.constant 0 : index
    %785 = vector.load %arg10[%c6_1142, %c1_1143, %c0_1144] : memref<15x7x16xf32, #tpu.memory_space<vmem>>, vector<1x6x16xf32>
    %786 = vector.shape_cast %785 : vector<1x6x16xf32> to vector<6x16xf32>
    %c7_1145 = arith.constant 7 : index
    %c0_1146 = arith.constant 0 : index
    %c0_1147 = arith.constant 0 : index
    %787 = vector.load %arg10[%c7_1145, %c0_1146, %c0_1147] : memref<15x7x16xf32, #tpu.memory_space<vmem>>, vector<1x6x16xf32>
    %788 = vector.shape_cast %787 : vector<1x6x16xf32> to vector<6x16xf32>
    %c7_1148 = arith.constant 7 : index
    %c1_1149 = arith.constant 1 : index
    %c0_1150 = arith.constant 0 : index
    %789 = vector.load %arg10[%c7_1148, %c1_1149, %c0_1150] : memref<15x7x16xf32, #tpu.memory_space<vmem>>, vector<1x6x16xf32>
    %790 = vector.shape_cast %789 : vector<1x6x16xf32> to vector<6x16xf32>
    %791 = tpu.concatenate %776, %778, %780, %782, %784, %786, %788, %790 in 1 : vector<6x16xf32>, vector<6x16xf32>, vector<6x16xf32>, vector<6x16xf32>, vector<6x16xf32>, vector<6x16xf32>, vector<6x16xf32>, vector<6x16xf32> -> vector<6x128xf32>
    %792 = arith.truncf %791 : vector<6x128xf32> to vector<6x128xbf16>
    %c0_1151 = arith.constant 0 : index
    %c0_1152 = arith.constant 0 : index
    %793 = vector.load %arg5[%c0_1151, %c0_1152] : memref<128x16xbf16, #tpu.memory_space<vmem>>, vector<128x16xbf16>
    %cst_1153 = arith.constant dense<0.000000e+00> : vector<6x16xf32>
    %794 = tpu.matmul %792, %793, %cst_1153 {dimension_numbers = #tpu.dot_dimension_numbers<[1], [0], [0], [1], [0, 0, 1, 1], [], []>} : vector<6x128xbf16>, vector<128x16xbf16>, vector<6x16xf32> -> vector<6x16xf32>
    %c0_1154 = arith.constant 0 : index
    %c0_1155 = arith.constant 0 : index
    %795 = vector.load %arg6[%c0_1154, %c0_1155] : memref<1x16xf32, #tpu.memory_space<vmem>>, vector<1x16xf32>
    %796 = vector.broadcast %795 : vector<1x16xf32> to vector<6x16xf32>
    %797 = arith.addf %794, %796 : vector<6x16xf32>
    %cst_1156 = arith.constant 0.000000e+00 : f32
    %798 = vector.broadcast %cst_1156 : f32 to vector<6x16xf32>
    %799 = arith.maximumf %797, %798 : vector<6x16xf32>
    %c2_1157 = arith.constant 2 : index
    %c0_1158 = arith.constant 0 : index
    %c0_1159 = arith.constant 0 : index
    %800 = vector.load %arg11[%c2_1157, %c0_1158, %c0_1159] : memref<6x6x16xf32, #tpu.memory_space<vmem>>, vector<1x6x16xf32>
    %801 = vector.shape_cast %800 : vector<1x6x16xf32> to vector<6x16xf32>
    %802 = vector.shape_cast %799 : vector<6x16xf32> to vector<1x6x16xf32>
    tpu.vector_store %arg11[%c2_1157, %c0_1158, %c0_1159], %802 {strides = array<i32>} : memref<6x6x16xf32, #tpu.memory_space<vmem>>, vector<1x6x16xf32>,
    %c6_1160 = arith.constant 6 : index
    %c0_1161 = arith.constant 0 : index
    %c0_1162 = arith.constant 0 : index
    %803 = vector.load %arg10[%c6_1160, %c0_1161, %c0_1162] : memref<15x7x16xf32, #tpu.memory_space<vmem>>, vector<1x6x16xf32>
    %804 = vector.shape_cast %803 : vector<1x6x16xf32> to vector<6x16xf32>
    %c6_1163 = arith.constant 6 : index
    %c1_1164 = arith.constant 1 : index
    %c0_1165 = arith.constant 0 : index
    %805 = vector.load %arg10[%c6_1163, %c1_1164, %c0_1165] : memref<15x7x16xf32, #tpu.memory_space<vmem>>, vector<1x6x16xf32>
    %806 = vector.shape_cast %805 : vector<1x6x16xf32> to vector<6x16xf32>
    %c7_1166 = arith.constant 7 : index
    %c0_1167 = arith.constant 0 : index
    %c0_1168 = arith.constant 0 : index
    %807 = vector.load %arg10[%c7_1166, %c0_1167, %c0_1168] : memref<15x7x16xf32, #tpu.memory_space<vmem>>, vector<1x6x16xf32>
    %808 = vector.shape_cast %807 : vector<1x6x16xf32> to vector<6x16xf32>
    %c7_1169 = arith.constant 7 : index
    %c1_1170 = arith.constant 1 : index
    %c0_1171 = arith.constant 0 : index
    %809 = vector.load %arg10[%c7_1169, %c1_1170, %c0_1171] : memref<15x7x16xf32, #tpu.memory_space<vmem>>, vector<1x6x16xf32>
    %810 = vector.shape_cast %809 : vector<1x6x16xf32> to vector<6x16xf32>
    %c8_1172 = arith.constant 8 : index
    %c0_1173 = arith.constant 0 : index
    %c0_1174 = arith.constant 0 : index
    %811 = vector.load %arg10[%c8_1172, %c0_1173, %c0_1174] : memref<15x7x16xf32, #tpu.memory_space<vmem>>, vector<1x6x16xf32>
    %812 = vector.shape_cast %811 : vector<1x6x16xf32> to vector<6x16xf32>
    %c8_1175 = arith.constant 8 : index
    %c1_1176 = arith.constant 1 : index
    %c0_1177 = arith.constant 0 : index
    %813 = vector.load %arg10[%c8_1175, %c1_1176, %c0_1177] : memref<15x7x16xf32, #tpu.memory_space<vmem>>, vector<1x6x16xf32>
    %814 = vector.shape_cast %813 : vector<1x6x16xf32> to vector<6x16xf32>
    %c9_1178 = arith.constant 9 : index
    %c0_1179 = arith.constant 0 : index
    %c0_1180 = arith.constant 0 : index
    %815 = vector.load %arg10[%c9_1178, %c0_1179, %c0_1180] : memref<15x7x16xf32, #tpu.memory_space<vmem>>, vector<1x6x16xf32>
    %816 = vector.shape_cast %815 : vector<1x6x16xf32> to vector<6x16xf32>
    %c9_1181 = arith.constant 9 : index
    %c1_1182 = arith.constant 1 : index
    %c0_1183 = arith.constant 0 : index
    %817 = vector.load %arg10[%c9_1181, %c1_1182, %c0_1183] : memref<15x7x16xf32, #tpu.memory_space<vmem>>, vector<1x6x16xf32>
    %818 = vector.shape_cast %817 : vector<1x6x16xf32> to vector<6x16xf32>
    %819 = tpu.concatenate %804, %806, %808, %810, %812, %814, %816, %818 in 1 : vector<6x16xf32>, vector<6x16xf32>, vector<6x16xf32>, vector<6x16xf32>, vector<6x16xf32>, vector<6x16xf32>, vector<6x16xf32>, vector<6x16xf32> -> vector<6x128xf32>
    %820 = arith.truncf %819 : vector<6x128xf32> to vector<6x128xbf16>
    %c0_1184 = arith.constant 0 : index
    %c0_1185 = arith.constant 0 : index
    %821 = vector.load %arg5[%c0_1184, %c0_1185] : memref<128x16xbf16, #tpu.memory_space<vmem>>, vector<128x16xbf16>
    %cst_1186 = arith.constant dense<0.000000e+00> : vector<6x16xf32>
    %822 = tpu.matmul %820, %821, %cst_1186 {dimension_numbers = #tpu.dot_dimension_numbers<[1], [0], [0], [1], [0, 0, 1, 1], [], []>} : vector<6x128xbf16>, vector<128x16xbf16>, vector<6x16xf32> -> vector<6x16xf32>
    %c0_1187 = arith.constant 0 : index
    %c0_1188 = arith.constant 0 : index
    %823 = vector.load %arg6[%c0_1187, %c0_1188] : memref<1x16xf32, #tpu.memory_space<vmem>>, vector<1x16xf32>
    %824 = vector.broadcast %823 : vector<1x16xf32> to vector<6x16xf32>
    %825 = arith.addf %822, %824 : vector<6x16xf32>
    %cst_1189 = arith.constant 0.000000e+00 : f32
    %826 = vector.broadcast %cst_1189 : f32 to vector<6x16xf32>
    %827 = arith.maximumf %825, %826 : vector<6x16xf32>
    %c3_1190 = arith.constant 3 : index
    %c0_1191 = arith.constant 0 : index
    %c0_1192 = arith.constant 0 : index
    %828 = vector.load %arg11[%c3_1190, %c0_1191, %c0_1192] : memref<6x6x16xf32, #tpu.memory_space<vmem>>, vector<1x6x16xf32>
    %829 = vector.shape_cast %828 : vector<1x6x16xf32> to vector<6x16xf32>
    %830 = vector.shape_cast %827 : vector<6x16xf32> to vector<1x6x16xf32>
    tpu.vector_store %arg11[%c3_1190, %c0_1191, %c0_1192], %830 {strides = array<i32>} : memref<6x6x16xf32, #tpu.memory_space<vmem>>, vector<1x6x16xf32>,
    %c8_1193 = arith.constant 8 : index
    %c0_1194 = arith.constant 0 : index
    %c0_1195 = arith.constant 0 : index
    %831 = vector.load %arg10[%c8_1193, %c0_1194, %c0_1195] : memref<15x7x16xf32, #tpu.memory_space<vmem>>, vector<1x6x16xf32>
    %832 = vector.shape_cast %831 : vector<1x6x16xf32> to vector<6x16xf32>
    %c8_1196 = arith.constant 8 : index
    %c1_1197 = arith.constant 1 : index
    %c0_1198 = arith.constant 0 : index
    %833 = vector.load %arg10[%c8_1196, %c1_1197, %c0_1198] : memref<15x7x16xf32, #tpu.memory_space<vmem>>, vector<1x6x16xf32>
    %834 = vector.shape_cast %833 : vector<1x6x16xf32> to vector<6x16xf32>
    %c9_1199 = arith.constant 9 : index
    %c0_1200 = arith.constant 0 : index
    %c0_1201 = arith.constant 0 : index
    %835 = vector.load %arg10[%c9_1199, %c0_1200, %c0_1201] : memref<15x7x16xf32, #tpu.memory_space<vmem>>, vector<1x6x16xf32>
    %836 = vector.shape_cast %835 : vector<1x6x16xf32> to vector<6x16xf32>
    %c9_1202 = arith.constant 9 : index
    %c1_1203 = arith.constant 1 : index
    %c0_1204 = arith.constant 0 : index
    %837 = vector.load %arg10[%c9_1202, %c1_1203, %c0_1204] : memref<15x7x16xf32, #tpu.memory_space<vmem>>, vector<1x6x16xf32>
    %838 = vector.shape_cast %837 : vector<1x6x16xf32> to vector<6x16xf32>
    %c10_1205 = arith.constant 10 : index
    %c0_1206 = arith.constant 0 : index
    %c0_1207 = arith.constant 0 : index
    %839 = vector.load %arg10[%c10_1205, %c0_1206, %c0_1207] : memref<15x7x16xf32, #tpu.memory_space<vmem>>, vector<1x6x16xf32>
    %840 = vector.shape_cast %839 : vector<1x6x16xf32> to vector<6x16xf32>
    %c10_1208 = arith.constant 10 : index
    %c1_1209 = arith.constant 1 : index
    %c0_1210 = arith.constant 0 : index
    %841 = vector.load %arg10[%c10_1208, %c1_1209, %c0_1210] : memref<15x7x16xf32, #tpu.memory_space<vmem>>, vector<1x6x16xf32>
    %842 = vector.shape_cast %841 : vector<1x6x16xf32> to vector<6x16xf32>
    %c11_1211 = arith.constant 11 : index
    %c0_1212 = arith.constant 0 : index
    %c0_1213 = arith.constant 0 : index
    %843 = vector.load %arg10[%c11_1211, %c0_1212, %c0_1213] : memref<15x7x16xf32, #tpu.memory_space<vmem>>, vector<1x6x16xf32>
    %844 = vector.shape_cast %843 : vector<1x6x16xf32> to vector<6x16xf32>
    %c11_1214 = arith.constant 11 : index
    %c1_1215 = arith.constant 1 : index
    %c0_1216 = arith.constant 0 : index
    %845 = vector.load %arg10[%c11_1214, %c1_1215, %c0_1216] : memref<15x7x16xf32, #tpu.memory_space<vmem>>, vector<1x6x16xf32>
    %846 = vector.shape_cast %845 : vector<1x6x16xf32> to vector<6x16xf32>
    %847 = tpu.concatenate %832, %834, %836, %838, %840, %842, %844, %846 in 1 : vector<6x16xf32>, vector<6x16xf32>, vector<6x16xf32>, vector<6x16xf32>, vector<6x16xf32>, vector<6x16xf32>, vector<6x16xf32>, vector<6x16xf32> -> vector<6x128xf32>
    %848 = arith.truncf %847 : vector<6x128xf32> to vector<6x128xbf16>
    %c0_1217 = arith.constant 0 : index
    %c0_1218 = arith.constant 0 : index
    %849 = vector.load %arg5[%c0_1217, %c0_1218] : memref<128x16xbf16, #tpu.memory_space<vmem>>, vector<128x16xbf16>
    %cst_1219 = arith.constant dense<0.000000e+00> : vector<6x16xf32>
    %850 = tpu.matmul %848, %849, %cst_1219 {dimension_numbers = #tpu.dot_dimension_numbers<[1], [0], [0], [1], [0, 0, 1, 1], [], []>} : vector<6x128xbf16>, vector<128x16xbf16>, vector<6x16xf32> -> vector<6x16xf32>
    %c0_1220 = arith.constant 0 : index
    %c0_1221 = arith.constant 0 : index
    %851 = vector.load %arg6[%c0_1220, %c0_1221] : memref<1x16xf32, #tpu.memory_space<vmem>>, vector<1x16xf32>
    %852 = vector.broadcast %851 : vector<1x16xf32> to vector<6x16xf32>
    %853 = arith.addf %850, %852 : vector<6x16xf32>
    %cst_1222 = arith.constant 0.000000e+00 : f32
    %854 = vector.broadcast %cst_1222 : f32 to vector<6x16xf32>
    %855 = arith.maximumf %853, %854 : vector<6x16xf32>
    %c4_1223 = arith.constant 4 : index
    %c0_1224 = arith.constant 0 : index
    %c0_1225 = arith.constant 0 : index
    %856 = vector.load %arg11[%c4_1223, %c0_1224, %c0_1225] : memref<6x6x16xf32, #tpu.memory_space<vmem>>, vector<1x6x16xf32>
    %857 = vector.shape_cast %856 : vector<1x6x16xf32> to vector<6x16xf32>
    %858 = vector.shape_cast %855 : vector<6x16xf32> to vector<1x6x16xf32>
    tpu.vector_store %arg11[%c4_1223, %c0_1224, %c0_1225], %858 {strides = array<i32>} : memref<6x6x16xf32, #tpu.memory_space<vmem>>, vector<1x6x16xf32>,
    %c10_1226 = arith.constant 10 : index
    %c0_1227 = arith.constant 0 : index
    %c0_1228 = arith.constant 0 : index
    %859 = vector.load %arg10[%c10_1226, %c0_1227, %c0_1228] : memref<15x7x16xf32, #tpu.memory_space<vmem>>, vector<1x6x16xf32>
    %860 = vector.shape_cast %859 : vector<1x6x16xf32> to vector<6x16xf32>
    %c10_1229 = arith.constant 10 : index
    %c1_1230 = arith.constant 1 : index
    %c0_1231 = arith.constant 0 : index
    %861 = vector.load %arg10[%c10_1229, %c1_1230, %c0_1231] : memref<15x7x16xf32, #tpu.memory_space<vmem>>, vector<1x6x16xf32>
    %862 = vector.shape_cast %861 : vector<1x6x16xf32> to vector<6x16xf32>
    %c11_1232 = arith.constant 11 : index
    %c0_1233 = arith.constant 0 : index
    %c0_1234 = arith.constant 0 : index
    %863 = vector.load %arg10[%c11_1232, %c0_1233, %c0_1234] : memref<15x7x16xf32, #tpu.memory_space<vmem>>, vector<1x6x16xf32>
    %864 = vector.shape_cast %863 : vector<1x6x16xf32> to vector<6x16xf32>
    %c11_1235 = arith.constant 11 : index
    %c1_1236 = arith.constant 1 : index
    %c0_1237 = arith.constant 0 : index
    %865 = vector.load %arg10[%c11_1235, %c1_1236, %c0_1237] : memref<15x7x16xf32, #tpu.memory_space<vmem>>, vector<1x6x16xf32>
    %866 = vector.shape_cast %865 : vector<1x6x16xf32> to vector<6x16xf32>
    %c12_1238 = arith.constant 12 : index
    %c0_1239 = arith.constant 0 : index
    %c0_1240 = arith.constant 0 : index
    %867 = vector.load %arg10[%c12_1238, %c0_1239, %c0_1240] : memref<15x7x16xf32, #tpu.memory_space<vmem>>, vector<1x6x16xf32>
    %868 = vector.shape_cast %867 : vector<1x6x16xf32> to vector<6x16xf32>
    %c12_1241 = arith.constant 12 : index
    %c1_1242 = arith.constant 1 : index
    %c0_1243 = arith.constant 0 : index
    %869 = vector.load %arg10[%c12_1241, %c1_1242, %c0_1243] : memref<15x7x16xf32, #tpu.memory_space<vmem>>, vector<1x6x16xf32>
    %870 = vector.shape_cast %869 : vector<1x6x16xf32> to vector<6x16xf32>
    %c13_1244 = arith.constant 13 : index
    %c0_1245 = arith.constant 0 : index
    %c0_1246 = arith.constant 0 : index
    %871 = vector.load %arg10[%c13_1244, %c0_1245, %c0_1246] : memref<15x7x16xf32, #tpu.memory_space<vmem>>, vector<1x6x16xf32>
    %872 = vector.shape_cast %871 : vector<1x6x16xf32> to vector<6x16xf32>
    %c13_1247 = arith.constant 13 : index
    %c1_1248 = arith.constant 1 : index
    %c0_1249 = arith.constant 0 : index
    %873 = vector.load %arg10[%c13_1247, %c1_1248, %c0_1249] : memref<15x7x16xf32, #tpu.memory_space<vmem>>, vector<1x6x16xf32>
    %874 = vector.shape_cast %873 : vector<1x6x16xf32> to vector<6x16xf32>
    %875 = tpu.concatenate %860, %862, %864, %866, %868, %870, %872, %874 in 1 : vector<6x16xf32>, vector<6x16xf32>, vector<6x16xf32>, vector<6x16xf32>, vector<6x16xf32>, vector<6x16xf32>, vector<6x16xf32>, vector<6x16xf32> -> vector<6x128xf32>
    %876 = arith.truncf %875 : vector<6x128xf32> to vector<6x128xbf16>
    %c0_1250 = arith.constant 0 : index
    %c0_1251 = arith.constant 0 : index
    %877 = vector.load %arg5[%c0_1250, %c0_1251] : memref<128x16xbf16, #tpu.memory_space<vmem>>, vector<128x16xbf16>
    %cst_1252 = arith.constant dense<0.000000e+00> : vector<6x16xf32>
    %878 = tpu.matmul %876, %877, %cst_1252 {dimension_numbers = #tpu.dot_dimension_numbers<[1], [0], [0], [1], [0, 0, 1, 1], [], []>} : vector<6x128xbf16>, vector<128x16xbf16>, vector<6x16xf32> -> vector<6x16xf32>
    %c0_1253 = arith.constant 0 : index
    %c0_1254 = arith.constant 0 : index
    %879 = vector.load %arg6[%c0_1253, %c0_1254] : memref<1x16xf32, #tpu.memory_space<vmem>>, vector<1x16xf32>
    %880 = vector.broadcast %879 : vector<1x16xf32> to vector<6x16xf32>
    %881 = arith.addf %878, %880 : vector<6x16xf32>
    %cst_1255 = arith.constant 0.000000e+00 : f32
    %882 = vector.broadcast %cst_1255 : f32 to vector<6x16xf32>
    %883 = arith.maximumf %881, %882 : vector<6x16xf32>
    %c5_1256 = arith.constant 5 : index
    %c0_1257 = arith.constant 0 : index
    %c0_1258 = arith.constant 0 : index
    %884 = vector.load %arg11[%c5_1256, %c0_1257, %c0_1258] : memref<6x6x16xf32, #tpu.memory_space<vmem>>, vector<1x6x16xf32>
    %885 = vector.shape_cast %884 : vector<1x6x16xf32> to vector<6x16xf32>
    %886 = vector.shape_cast %883 : vector<6x16xf32> to vector<1x6x16xf32>
    tpu.vector_store %arg11[%c5_1256, %c0_1257, %c0_1258], %886 {strides = array<i32>} : memref<6x6x16xf32, #tpu.memory_space<vmem>>, vector<1x6x16xf32>,
    %c0_1259 = arith.constant 0 : index
    %c0_1260 = arith.constant 0 : index
    %c0_1261 = arith.constant 0 : index
    %887 = vector.load %arg11[%c0_1259, %c0_1260, %c0_1261] : memref<6x6x16xf32, #tpu.memory_space<vmem>>, vector<1x4x16xf32>
    %888 = vector.shape_cast %887 : vector<1x4x16xf32> to vector<4x16xf32>
    %c0_1262 = arith.constant 0 : index
    %c1_1263 = arith.constant 1 : index
    %c0_1264 = arith.constant 0 : index
    %889 = vector.load %arg11[%c0_1262, %c1_1263, %c0_1264] : memref<6x6x16xf32, #tpu.memory_space<vmem>>, vector<1x4x16xf32>
    %890 = vector.shape_cast %889 : vector<1x4x16xf32> to vector<4x16xf32>
    %c0_1265 = arith.constant 0 : index
    %c2_1266 = arith.constant 2 : index
    %c0_1267 = arith.constant 0 : index
    %891 = vector.load %arg11[%c0_1265, %c2_1266, %c0_1267] : memref<6x6x16xf32, #tpu.memory_space<vmem>>, vector<1x4x16xf32>
    %892 = vector.shape_cast %891 : vector<1x4x16xf32> to vector<4x16xf32>
    %c1_1268 = arith.constant 1 : index
    %c0_1269 = arith.constant 0 : index
    %c0_1270 = arith.constant 0 : index
    %893 = vector.load %arg11[%c1_1268, %c0_1269, %c0_1270] : memref<6x6x16xf32, #tpu.memory_space<vmem>>, vector<1x4x16xf32>
    %894 = vector.shape_cast %893 : vector<1x4x16xf32> to vector<4x16xf32>
    %c1_1271 = arith.constant 1 : index
    %c1_1272 = arith.constant 1 : index
    %c0_1273 = arith.constant 0 : index
    %895 = vector.load %arg11[%c1_1271, %c1_1272, %c0_1273] : memref<6x6x16xf32, #tpu.memory_space<vmem>>, vector<1x4x16xf32>
    %896 = vector.shape_cast %895 : vector<1x4x16xf32> to vector<4x16xf32>
    %c1_1274 = arith.constant 1 : index
    %c2_1275 = arith.constant 2 : index
    %c0_1276 = arith.constant 0 : index
    %897 = vector.load %arg11[%c1_1274, %c2_1275, %c0_1276] : memref<6x6x16xf32, #tpu.memory_space<vmem>>, vector<1x4x16xf32>
    %898 = vector.shape_cast %897 : vector<1x4x16xf32> to vector<4x16xf32>
    %c2_1277 = arith.constant 2 : index
    %c0_1278 = arith.constant 0 : index
    %c0_1279 = arith.constant 0 : index
    %899 = vector.load %arg11[%c2_1277, %c0_1278, %c0_1279] : memref<6x6x16xf32, #tpu.memory_space<vmem>>, vector<1x4x16xf32>
    %900 = vector.shape_cast %899 : vector<1x4x16xf32> to vector<4x16xf32>
    %c2_1280 = arith.constant 2 : index
    %c1_1281 = arith.constant 1 : index
    %c0_1282 = arith.constant 0 : index
    %901 = vector.load %arg11[%c2_1280, %c1_1281, %c0_1282] : memref<6x6x16xf32, #tpu.memory_space<vmem>>, vector<1x4x16xf32>
    %902 = vector.shape_cast %901 : vector<1x4x16xf32> to vector<4x16xf32>
    %c2_1283 = arith.constant 2 : index
    %c2_1284 = arith.constant 2 : index
    %c0_1285 = arith.constant 0 : index
    %903 = vector.load %arg11[%c2_1283, %c2_1284, %c0_1285] : memref<6x6x16xf32, #tpu.memory_space<vmem>>, vector<1x4x16xf32>
    %904 = vector.shape_cast %903 : vector<1x4x16xf32> to vector<4x16xf32>
    %905 = tpu.concatenate %888, %890, %892, %894, %896, %898, %900, %902, %904 in 1 : vector<4x16xf32>, vector<4x16xf32>, vector<4x16xf32>, vector<4x16xf32>, vector<4x16xf32>, vector<4x16xf32>, vector<4x16xf32>, vector<4x16xf32>, vector<4x16xf32> -> vector<4x144xf32>
    %906 = arith.truncf %905 : vector<4x144xf32> to vector<4x144xbf16>
    %c0_1286 = arith.constant 0 : index
    %c0_1287 = arith.constant 0 : index
    %907 = vector.load %arg7[%c0_1286, %c0_1287] : memref<144x16xbf16, #tpu.memory_space<vmem>>, vector<144x16xbf16>
    %cst_1288 = arith.constant dense<0.000000e+00> : vector<4x16xf32>
    %908 = tpu.matmul %906, %907, %cst_1288 {dimension_numbers = #tpu.dot_dimension_numbers<[1], [0], [0], [1], [0, 0, 1, 1], [], []>} : vector<4x144xbf16>, vector<144x16xbf16>, vector<4x16xf32> -> vector<4x16xf32>
    %c0_1289 = arith.constant 0 : index
    %c0_1290 = arith.constant 0 : index
    %909 = vector.load %arg8[%c0_1289, %c0_1290] : memref<1x16xf32, #tpu.memory_space<vmem>>, vector<1x16xf32>
    %910 = vector.broadcast %909 : vector<1x16xf32> to vector<4x16xf32>
    %911 = arith.addf %908, %910 : vector<4x16xf32>
    %cst_1291 = arith.constant 0.000000e+00 : f32
    %912 = vector.broadcast %cst_1291 : f32 to vector<4x16xf32>
    %913 = arith.maximumf %911, %912 : vector<4x16xf32>
    %c0_1292 = arith.constant 0 : index
    %c0_1293 = arith.constant 0 : index
    %914 = vector.load %arg12[%c0_1292, %c0_1293] : memref<16x16xf32, #tpu.memory_space<vmem>>, vector<4x16xf32>
    tpu.vector_store %arg12[%c0_1292, %c0_1293], %913 {strides = array<i32>} : memref<16x16xf32, #tpu.memory_space<vmem>>, vector<4x16xf32>,
    %c1_1294 = arith.constant 1 : index
    %c0_1295 = arith.constant 0 : index
    %c0_1296 = arith.constant 0 : index
    %915 = vector.load %arg11[%c1_1294, %c0_1295, %c0_1296] : memref<6x6x16xf32, #tpu.memory_space<vmem>>, vector<1x4x16xf32>
    %916 = vector.shape_cast %915 : vector<1x4x16xf32> to vector<4x16xf32>
    %c1_1297 = arith.constant 1 : index
    %c1_1298 = arith.constant 1 : index
    %c0_1299 = arith.constant 0 : index
    %917 = vector.load %arg11[%c1_1297, %c1_1298, %c0_1299] : memref<6x6x16xf32, #tpu.memory_space<vmem>>, vector<1x4x16xf32>
    %918 = vector.shape_cast %917 : vector<1x4x16xf32> to vector<4x16xf32>
    %c1_1300 = arith.constant 1 : index
    %c2_1301 = arith.constant 2 : index
    %c0_1302 = arith.constant 0 : index
    %919 = vector.load %arg11[%c1_1300, %c2_1301, %c0_1302] : memref<6x6x16xf32, #tpu.memory_space<vmem>>, vector<1x4x16xf32>
    %920 = vector.shape_cast %919 : vector<1x4x16xf32> to vector<4x16xf32>
    %c2_1303 = arith.constant 2 : index
    %c0_1304 = arith.constant 0 : index
    %c0_1305 = arith.constant 0 : index
    %921 = vector.load %arg11[%c2_1303, %c0_1304, %c0_1305] : memref<6x6x16xf32, #tpu.memory_space<vmem>>, vector<1x4x16xf32>
    %922 = vector.shape_cast %921 : vector<1x4x16xf32> to vector<4x16xf32>
    %c2_1306 = arith.constant 2 : index
    %c1_1307 = arith.constant 1 : index
    %c0_1308 = arith.constant 0 : index
    %923 = vector.load %arg11[%c2_1306, %c1_1307, %c0_1308] : memref<6x6x16xf32, #tpu.memory_space<vmem>>, vector<1x4x16xf32>
    %924 = vector.shape_cast %923 : vector<1x4x16xf32> to vector<4x16xf32>
    %c2_1309 = arith.constant 2 : index
    %c2_1310 = arith.constant 2 : index
    %c0_1311 = arith.constant 0 : index
    %925 = vector.load %arg11[%c2_1309, %c2_1310, %c0_1311] : memref<6x6x16xf32, #tpu.memory_space<vmem>>, vector<1x4x16xf32>
    %926 = vector.shape_cast %925 : vector<1x4x16xf32> to vector<4x16xf32>
    %c3_1312 = arith.constant 3 : index
    %c0_1313 = arith.constant 0 : index
    %c0_1314 = arith.constant 0 : index
    %927 = vector.load %arg11[%c3_1312, %c0_1313, %c0_1314] : memref<6x6x16xf32, #tpu.memory_space<vmem>>, vector<1x4x16xf32>
    %928 = vector.shape_cast %927 : vector<1x4x16xf32> to vector<4x16xf32>
    %c3_1315 = arith.constant 3 : index
    %c1_1316 = arith.constant 1 : index
    %c0_1317 = arith.constant 0 : index
    %929 = vector.load %arg11[%c3_1315, %c1_1316, %c0_1317] : memref<6x6x16xf32, #tpu.memory_space<vmem>>, vector<1x4x16xf32>
    %930 = vector.shape_cast %929 : vector<1x4x16xf32> to vector<4x16xf32>
    %c3_1318 = arith.constant 3 : index
    %c2_1319 = arith.constant 2 : index
    %c0_1320 = arith.constant 0 : index
    %931 = vector.load %arg11[%c3_1318, %c2_1319, %c0_1320] : memref<6x6x16xf32, #tpu.memory_space<vmem>>, vector<1x4x16xf32>
    %932 = vector.shape_cast %931 : vector<1x4x16xf32> to vector<4x16xf32>
    %933 = tpu.concatenate %916, %918, %920, %922, %924, %926, %928, %930, %932 in 1 : vector<4x16xf32>, vector<4x16xf32>, vector<4x16xf32>, vector<4x16xf32>, vector<4x16xf32>, vector<4x16xf32>, vector<4x16xf32>, vector<4x16xf32>, vector<4x16xf32> -> vector<4x144xf32>
    %934 = arith.truncf %933 : vector<4x144xf32> to vector<4x144xbf16>
    %c0_1321 = arith.constant 0 : index
    %c0_1322 = arith.constant 0 : index
    %935 = vector.load %arg7[%c0_1321, %c0_1322] : memref<144x16xbf16, #tpu.memory_space<vmem>>, vector<144x16xbf16>
    %cst_1323 = arith.constant dense<0.000000e+00> : vector<4x16xf32>
    %936 = tpu.matmul %934, %935, %cst_1323 {dimension_numbers = #tpu.dot_dimension_numbers<[1], [0], [0], [1], [0, 0, 1, 1], [], []>} : vector<4x144xbf16>, vector<144x16xbf16>, vector<4x16xf32> -> vector<4x16xf32>
    %c0_1324 = arith.constant 0 : index
    %c0_1325 = arith.constant 0 : index
    %937 = vector.load %arg8[%c0_1324, %c0_1325] : memref<1x16xf32, #tpu.memory_space<vmem>>, vector<1x16xf32>
    %938 = vector.broadcast %937 : vector<1x16xf32> to vector<4x16xf32>
    %939 = arith.addf %936, %938 : vector<4x16xf32>
    %cst_1326 = arith.constant 0.000000e+00 : f32
    %940 = vector.broadcast %cst_1326 : f32 to vector<4x16xf32>
    %941 = arith.maximumf %939, %940 : vector<4x16xf32>
    %c4_1327 = arith.constant 4 : index
    %c0_1328 = arith.constant 0 : index
    %942 = vector.load %arg12[%c4_1327, %c0_1328] : memref<16x16xf32, #tpu.memory_space<vmem>>, vector<4x16xf32>
    tpu.vector_store %arg12[%c4_1327, %c0_1328], %941 {strides = array<i32>} : memref<16x16xf32, #tpu.memory_space<vmem>>, vector<4x16xf32>,
    %c2_1329 = arith.constant 2 : index
    %c0_1330 = arith.constant 0 : index
    %c0_1331 = arith.constant 0 : index
    %943 = vector.load %arg11[%c2_1329, %c0_1330, %c0_1331] : memref<6x6x16xf32, #tpu.memory_space<vmem>>, vector<1x4x16xf32>
    %944 = vector.shape_cast %943 : vector<1x4x16xf32> to vector<4x16xf32>
    %c2_1332 = arith.constant 2 : index
    %c1_1333 = arith.constant 1 : index
    %c0_1334 = arith.constant 0 : index
    %945 = vector.load %arg11[%c2_1332, %c1_1333, %c0_1334] : memref<6x6x16xf32, #tpu.memory_space<vmem>>, vector<1x4x16xf32>
    %946 = vector.shape_cast %945 : vector<1x4x16xf32> to vector<4x16xf32>
    %c2_1335 = arith.constant 2 : index
    %c2_1336 = arith.constant 2 : index
    %c0_1337 = arith.constant 0 : index
    %947 = vector.load %arg11[%c2_1335, %c2_1336, %c0_1337] : memref<6x6x16xf32, #tpu.memory_space<vmem>>, vector<1x4x16xf32>
    %948 = vector.shape_cast %947 : vector<1x4x16xf32> to vector<4x16xf32>
    %c3_1338 = arith.constant 3 : index
    %c0_1339 = arith.constant 0 : index
    %c0_1340 = arith.constant 0 : index
    %949 = vector.load %arg11[%c3_1338, %c0_1339, %c0_1340] : memref<6x6x16xf32, #tpu.memory_space<vmem>>, vector<1x4x16xf32>
    %950 = vector.shape_cast %949 : vector<1x4x16xf32> to vector<4x16xf32>
    %c3_1341 = arith.constant 3 : index
    %c1_1342 = arith.constant 1 : index
    %c0_1343 = arith.constant 0 : index
    %951 = vector.load %arg11[%c3_1341, %c1_1342, %c0_1343] : memref<6x6x16xf32, #tpu.memory_space<vmem>>, vector<1x4x16xf32>
    %952 = vector.shape_cast %951 : vector<1x4x16xf32> to vector<4x16xf32>
    %c3_1344 = arith.constant 3 : index
    %c2_1345 = arith.constant 2 : index
    %c0_1346 = arith.constant 0 : index
    %953 = vector.load %arg11[%c3_1344, %c2_1345, %c0_1346] : memref<6x6x16xf32, #tpu.memory_space<vmem>>, vector<1x4x16xf32>
    %954 = vector.shape_cast %953 : vector<1x4x16xf32> to vector<4x16xf32>
    %c4_1347 = arith.constant 4 : index
    %c0_1348 = arith.constant 0 : index
    %c0_1349 = arith.constant 0 : index
    %955 = vector.load %arg11[%c4_1347, %c0_1348, %c0_1349] : memref<6x6x16xf32, #tpu.memory_space<vmem>>, vector<1x4x16xf32>
    %956 = vector.shape_cast %955 : vector<1x4x16xf32> to vector<4x16xf32>
    %c4_1350 = arith.constant 4 : index
    %c1_1351 = arith.constant 1 : index
    %c0_1352 = arith.constant 0 : index
    %957 = vector.load %arg11[%c4_1350, %c1_1351, %c0_1352] : memref<6x6x16xf32, #tpu.memory_space<vmem>>, vector<1x4x16xf32>
    %958 = vector.shape_cast %957 : vector<1x4x16xf32> to vector<4x16xf32>
    %c4_1353 = arith.constant 4 : index
    %c2_1354 = arith.constant 2 : index
    %c0_1355 = arith.constant 0 : index
    %959 = vector.load %arg11[%c4_1353, %c2_1354, %c0_1355] : memref<6x6x16xf32, #tpu.memory_space<vmem>>, vector<1x4x16xf32>
    %960 = vector.shape_cast %959 : vector<1x4x16xf32> to vector<4x16xf32>
    %961 = tpu.concatenate %944, %946, %948, %950, %952, %954, %956, %958, %960 in 1 : vector<4x16xf32>, vector<4x16xf32>, vector<4x16xf32>, vector<4x16xf32>, vector<4x16xf32>, vector<4x16xf32>, vector<4x16xf32>, vector<4x16xf32>, vector<4x16xf32> -> vector<4x144xf32>
    %962 = arith.truncf %961 : vector<4x144xf32> to vector<4x144xbf16>
    %c0_1356 = arith.constant 0 : index
    %c0_1357 = arith.constant 0 : index
    %963 = vector.load %arg7[%c0_1356, %c0_1357] : memref<144x16xbf16, #tpu.memory_space<vmem>>, vector<144x16xbf16>
    %cst_1358 = arith.constant dense<0.000000e+00> : vector<4x16xf32>
    %964 = tpu.matmul %962, %963, %cst_1358 {dimension_numbers = #tpu.dot_dimension_numbers<[1], [0], [0], [1], [0, 0, 1, 1], [], []>} : vector<4x144xbf16>, vector<144x16xbf16>, vector<4x16xf32> -> vector<4x16xf32>
    %c0_1359 = arith.constant 0 : index
    %c0_1360 = arith.constant 0 : index
    %965 = vector.load %arg8[%c0_1359, %c0_1360] : memref<1x16xf32, #tpu.memory_space<vmem>>, vector<1x16xf32>
    %966 = vector.broadcast %965 : vector<1x16xf32> to vector<4x16xf32>
    %967 = arith.addf %964, %966 : vector<4x16xf32>
    %cst_1361 = arith.constant 0.000000e+00 : f32
    %968 = vector.broadcast %cst_1361 : f32 to vector<4x16xf32>
    %969 = arith.maximumf %967, %968 : vector<4x16xf32>
    %c8_1362 = arith.constant 8 : index
    %c0_1363 = arith.constant 0 : index
    %970 = vector.load %arg12[%c8_1362, %c0_1363] : memref<16x16xf32, #tpu.memory_space<vmem>>, vector<4x16xf32>
    tpu.vector_store %arg12[%c8_1362, %c0_1363], %969 {strides = array<i32>} : memref<16x16xf32, #tpu.memory_space<vmem>>, vector<4x16xf32>,
    %c3_1364 = arith.constant 3 : index
    %c0_1365 = arith.constant 0 : index
    %c0_1366 = arith.constant 0 : index
    %971 = vector.load %arg11[%c3_1364, %c0_1365, %c0_1366] : memref<6x6x16xf32, #tpu.memory_space<vmem>>, vector<1x4x16xf32>
    %972 = vector.shape_cast %971 : vector<1x4x16xf32> to vector<4x16xf32>
    %c3_1367 = arith.constant 3 : index
    %c1_1368 = arith.constant 1 : index
    %c0_1369 = arith.constant 0 : index
    %973 = vector.load %arg11[%c3_1367, %c1_1368, %c0_1369] : memref<6x6x16xf32, #tpu.memory_space<vmem>>, vector<1x4x16xf32>
    %974 = vector.shape_cast %973 : vector<1x4x16xf32> to vector<4x16xf32>
    %c3_1370 = arith.constant 3 : index
    %c2_1371 = arith.constant 2 : index
    %c0_1372 = arith.constant 0 : index
    %975 = vector.load %arg11[%c3_1370, %c2_1371, %c0_1372] : memref<6x6x16xf32, #tpu.memory_space<vmem>>, vector<1x4x16xf32>
    %976 = vector.shape_cast %975 : vector<1x4x16xf32> to vector<4x16xf32>
    %c4_1373 = arith.constant 4 : index
    %c0_1374 = arith.constant 0 : index
    %c0_1375 = arith.constant 0 : index
    %977 = vector.load %arg11[%c4_1373, %c0_1374, %c0_1375] : memref<6x6x16xf32, #tpu.memory_space<vmem>>, vector<1x4x16xf32>
    %978 = vector.shape_cast %977 : vector<1x4x16xf32> to vector<4x16xf32>
    %c4_1376 = arith.constant 4 : index
    %c1_1377 = arith.constant 1 : index
    %c0_1378 = arith.constant 0 : index
    %979 = vector.load %arg11[%c4_1376, %c1_1377, %c0_1378] : memref<6x6x16xf32, #tpu.memory_space<vmem>>, vector<1x4x16xf32>
    %980 = vector.shape_cast %979 : vector<1x4x16xf32> to vector<4x16xf32>
    %c4_1379 = arith.constant 4 : index
    %c2_1380 = arith.constant 2 : index
    %c0_1381 = arith.constant 0 : index
    %981 = vector.load %arg11[%c4_1379, %c2_1380, %c0_1381] : memref<6x6x16xf32, #tpu.memory_space<vmem>>, vector<1x4x16xf32>
    %982 = vector.shape_cast %981 : vector<1x4x16xf32> to vector<4x16xf32>
    %c5_1382 = arith.constant 5 : index
    %c0_1383 = arith.constant 0 : index
    %c0_1384 = arith.constant 0 : index
    %983 = vector.load %arg11[%c5_1382, %c0_1383, %c0_1384] : memref<6x6x16xf32, #tpu.memory_space<vmem>>, vector<1x4x16xf32>
    %984 = vector.shape_cast %983 : vector<1x4x16xf32> to vector<4x16xf32>
    %c5_1385 = arith.constant 5 : index
    %c1_1386 = arith.constant 1 : index
    %c0_1387 = arith.constant 0 : index
    %985 = vector.load %arg11[%c5_1385, %c1_1386, %c0_1387] : memref<6x6x16xf32, #tpu.memory_space<vmem>>, vector<1x4x16xf32>
    %986 = vector.shape_cast %985 : vector<1x4x16xf32> to vector<4x16xf32>
    %c5_1388 = arith.constant 5 : index
    %c2_1389 = arith.constant 2 : index
    %c0_1390 = arith.constant 0 : index
    %987 = vector.load %arg11[%c5_1388, %c2_1389, %c0_1390] : memref<6x6x16xf32, #tpu.memory_space<vmem>>, vector<1x4x16xf32>
    %988 = vector.shape_cast %987 : vector<1x4x16xf32> to vector<4x16xf32>
    %989 = tpu.concatenate %972, %974, %976, %978, %980, %982, %984, %986, %988 in 1 : vector<4x16xf32>, vector<4x16xf32>, vector<4x16xf32>, vector<4x16xf32>, vector<4x16xf32>, vector<4x16xf32>, vector<4x16xf32>, vector<4x16xf32>, vector<4x16xf32> -> vector<4x144xf32>
    %990 = arith.truncf %989 : vector<4x144xf32> to vector<4x144xbf16>
    %c0_1391 = arith.constant 0 : index
    %c0_1392 = arith.constant 0 : index
    %991 = vector.load %arg7[%c0_1391, %c0_1392] : memref<144x16xbf16, #tpu.memory_space<vmem>>, vector<144x16xbf16>
    %cst_1393 = arith.constant dense<0.000000e+00> : vector<4x16xf32>
    %992 = tpu.matmul %990, %991, %cst_1393 {dimension_numbers = #tpu.dot_dimension_numbers<[1], [0], [0], [1], [0, 0, 1, 1], [], []>} : vector<4x144xbf16>, vector<144x16xbf16>, vector<4x16xf32> -> vector<4x16xf32>
    %c0_1394 = arith.constant 0 : index
    %c0_1395 = arith.constant 0 : index
    %993 = vector.load %arg8[%c0_1394, %c0_1395] : memref<1x16xf32, #tpu.memory_space<vmem>>, vector<1x16xf32>
    %994 = vector.broadcast %993 : vector<1x16xf32> to vector<4x16xf32>
    %995 = arith.addf %992, %994 : vector<4x16xf32>
    %cst_1396 = arith.constant 0.000000e+00 : f32
    %996 = vector.broadcast %cst_1396 : f32 to vector<4x16xf32>
    %997 = arith.maximumf %995, %996 : vector<4x16xf32>
    %c12_1397 = arith.constant 12 : index
    %c0_1398 = arith.constant 0 : index
    %998 = vector.load %arg12[%c12_1397, %c0_1398] : memref<16x16xf32, #tpu.memory_space<vmem>>, vector<4x16xf32>
    tpu.vector_store %arg12[%c12_1397, %c0_1398], %997 {strides = array<i32>} : memref<16x16xf32, #tpu.memory_space<vmem>>, vector<4x16xf32>,
    %c0_1399 = arith.constant 0 : index
    %c0_1400 = arith.constant 0 : index
    %999 = vector.load %arg12[%c0_1399, %c0_1400] : memref<16x16xf32, #tpu.memory_space<vmem>>, vector<16x16xf32>
    %cst_1401 = arith.constant dense<0xFF800000> : vector<16xf32>
    %1000 = vector.multi_reduction <maximumf>, %999, %cst_1401 [0] : vector<16x16xf32> to vector<16xf32>
    %1001 = vector.shape_cast %1000 : vector<16xf32> to vector<1x16xf32>
    %1002 = vector.broadcast %1001 : vector<1x16xf32> to vector<16x16xf32>
    %1003 = arith.subf %999, %1002 : vector<16x16xf32>
    %1004 = math.exp %1003 : vector<16x16xf32>
    %cst_1402 = arith.constant dense<0.000000e+00> : vector<16xf32>
    %1005 = vector.multi_reduction <add>, %1004, %cst_1402 [0] : vector<16x16xf32> to vector<16xf32>
    %1006 = vector.shape_cast %1005 : vector<16xf32> to vector<1x16xf32>
    %1007 = tpu.reciprocal %1006 {approx = true} : vector<1x16xf32> -> vector<1x16xf32>
    %1008 = vector.broadcast %1007 : vector<1x16xf32> to vector<16x16xf32>
    %1009 = arith.mulf %1004, %1008 : vector<16x16xf32>
    %c0_1403 = arith.constant 0 : index
    %c0_1404 = arith.constant 0 : index
    %1010 = vector.load %arg2[%c0_1403, %c0_1404] : memref<2x16xf32, #tpu.memory_space<vmem>>, vector<2x16xf32>
    %cst_1405 = arith.constant dense<0.000000e+00> : vector<2x16xf32>
    %1011 = tpu.matmul %1010, %1009, %cst_1405 {dimension_numbers = #tpu.dot_dimension_numbers<[1], [0], [0], [1], [0, 0, 1, 1], [], []>} : vector<2x16xf32>, vector<16x16xf32>, vector<2x16xf32> -> vector<2x16xf32>
    %1012 = vector.extract_strided_slice %1011 {offsets = [0, 0], sizes = [1, 16], strides = [1, 1]} : vector<2x16xf32> to vector<1x16xf32>
    %1013 = vector.extract_strided_slice %1011 {offsets = [1, 0], sizes = [1, 16], strides = [1, 1]} : vector<2x16xf32> to vector<1x16xf32>
    %1014 = tpu.iota {dimensions = array<i32: 0>} : vector<16x32xi32>
    %1015 = tpu.iota {dimensions = array<i32: 1>} : vector<16x32xi32>
    %c2_i32_1406 = arith.constant 2 : i32
    %1016 = vector.broadcast %c2_i32_1406 : i32 to vector<16x32xi32>
    %1017 = arith.muli %1016, %1014 : vector<16x32xi32>
    %1018 = arith.cmpi eq, %1015, %1017 : vector<16x32xi32>
    %1019 = arith.extui %1018 : vector<16x32xi1> to vector<16x32xi32>
    %1020 = arith.sitofp %1019 : vector<16x32xi32> to vector<16x32xf32>
    %c2_i32_1407 = arith.constant 2 : i32
    %1021 = vector.broadcast %c2_i32_1407 : i32 to vector<16x32xi32>
    %1022 = arith.muli %1021, %1014 : vector<16x32xi32>
    %c1_i32_1408 = arith.constant 1 : i32
    %1023 = vector.broadcast %c1_i32_1408 : i32 to vector<16x32xi32>
    %1024 = arith.addi %1022, %1023 : vector<16x32xi32>
    %1025 = arith.cmpi eq, %1015, %1024 : vector<16x32xi32>
    %1026 = arith.extui %1025 : vector<16x32xi1> to vector<16x32xi32>
    %1027 = arith.sitofp %1026 : vector<16x32xi32> to vector<16x32xf32>
    %cst_1409 = arith.constant dense<0.000000e+00> : vector<1x32xf32>
    %1028 = tpu.matmul %1012, %1020, %cst_1409 {dimension_numbers = #tpu.dot_dimension_numbers<[1], [0], [0], [1], [0, 0, 1, 1], [], []>} : vector<1x16xf32>, vector<16x32xf32>, vector<1x32xf32> -> vector<1x32xf32>
    %cst_1410 = arith.constant dense<0.000000e+00> : vector<1x32xf32>
    %1029 = tpu.matmul %1013, %1027, %cst_1410 {dimension_numbers = #tpu.dot_dimension_numbers<[1], [0], [0], [1], [0, 0, 1, 1], [], []>} : vector<1x16xf32>, vector<16x32xf32>, vector<1x32xf32> -> vector<1x32xf32>
    %1030 = arith.addf %1028, %1029 : vector<1x32xf32>
    %c0_1411 = arith.constant 0 : index
    %c0_1412 = arith.constant 0 : index
    %c0_1413 = arith.constant 0 : index
    %1031 = vector.load %arg9[%c0_1411, %c0_1412, %c0_1413] : memref<1x1x32xf32, #tpu.memory_space<vmem>>, vector<1x1x32xf32>
    %1032 = vector.shape_cast %1031 : vector<1x1x32xf32> to vector<1x32xf32>
    %1033 = vector.shape_cast %1030 : vector<1x32xf32> to vector<1x1x32xf32>
    tpu.vector_store %arg9[%c0_1411, %c0_1412, %c0_1413], %1033 {strides = array<i32>} : memref<1x1x32xf32, #tpu.memory_space<vmem>>, vector<1x1x32xf32>,
    return
  }
  func.func @transform_0(%arg0: i32) -> (i32, i32, i32, i32) {
    %c0_i32 = arith.constant 0 : i32
    %c0_i32_0 = arith.constant 0 : i32
    %c0_i32_1 = arith.constant 0 : i32
    %c0_i32_2 = arith.constant 0 : i32
    return %arg0, %c0_i32, %c0_i32_0, %c0_i32_1 : i32, i32, i32, i32
  }
  func.func @transform_1(%arg0: i32) -> (i32, i32) {
    %c0_i32 = arith.constant 0 : i32
    %c0_i32_0 = arith.constant 0 : i32
    %c0_i32_1 = arith.constant 0 : i32
    return %c0_i32, %c0_i32_0 : i32, i32
  }
  func.func @transform_2(%arg0: i32) -> (i32, i32) {
    %c0_i32 = arith.constant 0 : i32
    %c0_i32_0 = arith.constant 0 : i32
    %c0_i32_1 = arith.constant 0 : i32
    return %c0_i32, %c0_i32_0 : i32, i32
  }
  func.func @transform_3(%arg0: i32) -> (i32, i32) {
    %c0_i32 = arith.constant 0 : i32
    %c0_i32_0 = arith.constant 0 : i32
    %c0_i32_1 = arith.constant 0 : i32
    return %c0_i32, %c0_i32_0 : i32, i32
  }
  func.func @transform_4(%arg0: i32) -> (i32, i32) {
    %c0_i32 = arith.constant 0 : i32
    %c0_i32_0 = arith.constant 0 : i32
    %c0_i32_1 = arith.constant 0 : i32
    return %c0_i32, %c0_i32_0 : i32, i32
  }
  func.func @transform_5(%arg0: i32) -> (i32, i32) {
    %c0_i32 = arith.constant 0 : i32
    %c0_i32_0 = arith.constant 0 : i32
    %c0_i32_1 = arith.constant 0 : i32
    return %c0_i32, %c0_i32_0 : i32, i32
  }
  func.func @transform_6(%arg0: i32) -> (i32, i32) {
    %c0_i32 = arith.constant 0 : i32
    %c0_i32_0 = arith.constant 0 : i32
    %c0_i32_1 = arith.constant 0 : i32
    return %c0_i32, %c0_i32_0 : i32, i32
  }
  func.func @transform_7(%arg0: i32) -> (i32, i32) {
    %c0_i32 = arith.constant 0 : i32
    %c0_i32_0 = arith.constant 0 : i32
    %c0_i32_1 = arith.constant 0 : i32
    return %c0_i32, %c0_i32_0 : i32, i32
  }
  func.func @transform_8(%arg0: i32) -> (i32, i32, i32) {
    %c0_i32 = arith.constant 0 : i32
    %c0_i32_0 = arith.constant 0 : i32
    %c0_i32_1 = arith.constant 0 : i32
    return %arg0, %c0_i32, %c0_i32_0 : i32, i32, i32
  }
}

</mosaic_0001>

<llo_original>
// kernel: visual_motion_prior_forward.1
$region0: #{visual_motion_prior_forward.1}
  #allocation0 [shape = 'u32[]', space=smem, size = 0x4, offset = 0x4, fixed_abs, tag = 'smem constant byte address 0x4 - core index']
  #allocation1 [shape = 'u32[72,128]{1,0:T(1,128)}', space=vmem, size = 0x9000, scoped, tag = 'internal scratch']
  #allocation2 [shape = 'f32[15,7,16]{2,1,0:T(8,128)}', space=vmem, size = 0xf000, scoped, tag = 'scratch operand']
  #allocation3 [shape = 'f32[6,6,16]{2,1,0:T(8,128)}', space=vmem, size = 0x6000, scoped, tag = 'scratch operand']
  #allocation4 [shape = 'f32[16,16]{1,0:T(8,128)}', space=vmem, size = 0x2000, scoped, tag = 'scratch operand']
  %s0 = inlined_call_operand.vmem [shape: f32[4,64,16,12], index: 0, kind: input, shape index: {}]
  %s1 = inlined_call_operand.vmem [shape: f32[2,16], index: 1, kind: input, shape index: {}]
  %s2 = inlined_call_operand.vmem [shape: bf16[192,8], index: 2, kind: input, shape index: {}]
  %s3 = inlined_call_operand.vmem [shape: f32[1,8], index: 3, kind: input, shape index: {}]
  %s4 = inlined_call_operand.vmem [shape: bf16[128,16], index: 4, kind: input, shape index: {}]
  %s5 = inlined_call_operand.vmem [shape: f32[1,16], index: 5, kind: input, shape index: {}]
  %s6 = inlined_call_operand.vmem [shape: bf16[144,16], index: 6, kind: input, shape index: {}]
  %s7 = inlined_call_operand.vmem [shape: f32[1,16], index: 7, kind: input, shape index: {}]
  %s8 = inlined_call_operand.vmem [shape: f32[4,1,32], index: 8, kind: output, shape index: {}]
  %s9 = sld [smem:[#allocation0]]
  $region65: #{visual_motion_prior_forward.1} parent=0
    _
  %s11 = ssub.s32 1, %s9
  %s12 = scalar_select 0, %s11, %s9
  loop: start=0, step=1, limit=6
  $region2: #{visual_motion_prior_forward.1} parent=0 // loop_pre_header
    _
  $region3: #{visual_motion_prior_forward.1} parent=0 // loop_header
    %s14 = sphi 0, %s18
    %p15 = scmp.ge.s32.totalorder %s14, 6
    %s24 = sphi 0, %s26
    %s27 = sphi 0, %s24
    %s28 = sphi 0, %s27
    %s44 = sphi 0, %s28
    %s48 = sphi 0, %s48
    %s50 = sphi 0, %s48
    %s51 = sphi 0, %s50
    %s65 = sphi 0, %s51
    %s69 = sphi 0, %s69
    %s71 = sphi 0, %s69
    %s72 = sphi 0, %s71
    %s86 = sphi 0, %s72
    %s90 = sphi 0, %s90
    %s92 = sphi 0, %s90
    %s93 = sphi 0, %s92
    %s107 = sphi 0, %s93
    %s111 = sphi 0, %s111
    %s113 = sphi 0, %s111
    %s114 = sphi 0, %s113
    %s128 = sphi 0, %s114
    %s132 = sphi 0, %s132
    %s134 = sphi 0, %s132
    %s135 = sphi 0, %s134
    %s149 = sphi 0, %s135
    %s153 = sphi 0, %s153
    %s155 = sphi 0, %s153
    %s156 = sphi 0, %s155
    %s170 = sphi 0, %s156
    %s174 = sphi 0, %s174
    %s176 = sphi 0, %s174
    %s177 = sphi 0, %s176
    %s191 = sphi 0, %s177
    %s197 = sphi 0, %s199
    %s200 = sphi 0, %s197
    %s201 = sphi 0, %s200
    %s217 = sphi 0, %s201
  $region4: #{visual_motion_prior_forward.1} parent=0 // loop_header_branch
    %17 = sbr.rel (%p15) target = $region8
  $region5: #{visual_motion_prior_forward.1} parent=0 // loop_body
    %s19 = ssub.s32 %s14, 1
    %s20 = ssub.s32 %s14, 2
    %s21 = sadd.s32 %s14, 1
    %s22 = ssub.s32 %s14, %s21
    %p23 = scmp.eq.s32.totalorder %s22, 0
    %s25 = sadd.s32 %s24, 1
    %s26 = scalar_select %p23, %s24, %s25
    %p29 = pneg %p23
    %p30 = scmp.eq.s32.totalorder %s14, 3
    %p31 = por %p29, %p30
    %p32 = scmp.ne.s32.totalorder %s24, %s27
    %p33 = scmp.eq.s32.totalorder %s14, 0
    %p34 = por %p32, %p33
    %p35 = scmp.ne.s32.totalorder %s24, %s27
    %p36 = scmp.eq.s32.totalorder %s19, 3
    %p37 = por %p35, %p36
    %p38 = scmp.ne.s32.totalorder %s27, %s28
    %p39 = scmp.eq.s32.totalorder %s19, 0
    %p40 = por %p38, %p39
    %p41 = scmp.ne.s32.totalorder %s27, %s28
    %p42 = scmp.eq.s32.totalorder %s20, 3
    %p43 = por %p41, %p42
    %p45 = scmp.ne.s32.totalorder %s28, %s44
    %p46 = scmp.eq.s32.totalorder %s20, 0
    %p47 = por %p45, %p46
    %s49 = sadd.s32 %s48, 1
    %p52 = scmp.eq.s32.totalorder %s14, 3
    %p53 = scmp.ne.s32.totalorder %s48, %s50
    %p54 = scmp.eq.s32.totalorder %s14, 0
    %p55 = por %p53, %p54
    %p56 = scmp.ne.s32.totalorder %s48, %s50
    %p57 = scmp.eq.s32.totalorder %s19, 3
    %p58 = por %p56, %p57
    %p59 = scmp.ne.s32.totalorder %s50, %s51
    %p60 = scmp.eq.s32.totalorder %s19, 0
    %p61 = por %p59, %p60
    %p62 = scmp.ne.s32.totalorder %s50, %s51
    %p63 = scmp.eq.s32.totalorder %s20, 3
    %p64 = por %p62, %p63
    %p66 = scmp.ne.s32.totalorder %s51, %s65
    %p67 = scmp.eq.s32.totalorder %s20, 0
    %p68 = por %p66, %p67
    %s70 = sadd.s32 %s69, 1
    %p73 = scmp.eq.s32.totalorder %s14, 3
    %p74 = scmp.ne.s32.totalorder %s69, %s71
    %p75 = scmp.eq.s32.totalorder %s14, 0
    %p76 = por %p74, %p75
    %p77 = scmp.ne.s32.totalorder %s69, %s71
    %p78 = scmp.eq.s32.totalorder %s19, 3
    %p79 = por %p77, %p78
    %p80 = scmp.ne.s32.totalorder %s71, %s72
    %p81 = scmp.eq.s32.totalorder %s19, 0
    %p82 = por %p80, %p81
    %p83 = scmp.ne.s32.totalorder %s71, %s72
    %p84 = scmp.eq.s32.totalorder %s20, 3
    %p85 = por %p83, %p84
    %p87 = scmp.ne.s32.totalorder %s72, %s86
    %p88 = scmp.eq.s32.totalorder %s20, 0
    %p89 = por %p87, %p88
    %s91 = sadd.s32 %s90, 1
    %p94 = scmp.eq.s32.totalorder %s14, 3
    %p95 = scmp.ne.s32.totalorder %s90, %s92
    %p96 = scmp.eq.s32.totalorder %s14, 0
    %p97 = por %p95, %p96
    %p98 = scmp.ne.s32.totalorder %s90, %s92
    %p99 = scmp.eq.s32.totalorder %s19, 3
    %p100 = por %p98, %p99
    %p101 = scmp.ne.s32.totalorder %s92, %s93
    %p102 = scmp.eq.s32.totalorder %s19, 0
    %p103 = por %p101, %p102
    %p104 = scmp.ne.s32.totalorder %s92, %s93
    %p105 = scmp.eq.s32.totalorder %s20, 3
    %p106 = por %p104, %p105
    %p108 = scmp.ne.s32.totalorder %s93, %s107
    %p109 = scmp.eq.s32.totalorder %s20, 0
    %p110 = por %p108, %p109
    %s112 = sadd.s32 %s111, 1
    %p115 = scmp.eq.s32.totalorder %s14, 3
    %p116 = scmp.ne.s32.totalorder %s111, %s113
    %p117 = scmp.eq.s32.totalorder %s14, 0
    %p118 = por %p116, %p117
    %p119 = scmp.ne.s32.totalorder %s111, %s113
    %p120 = scmp.eq.s32.totalorder %s19, 3
    %p121 = por %p119, %p120
    %p122 = scmp.ne.s32.totalorder %s113, %s114
    %p123 = scmp.eq.s32.totalorder %s19, 0
    %p124 = por %p122, %p123
    %p125 = scmp.ne.s32.totalorder %s113, %s114
    %p126 = scmp.eq.s32.totalorder %s20, 3
    %p127 = por %p125, %p126
    %p129 = scmp.ne.s32.totalorder %s114, %s128
    %p130 = scmp.eq.s32.totalorder %s20, 0
    %p131 = por %p129, %p130
    %s133 = sadd.s32 %s132, 1
    %p136 = scmp.eq.s32.totalorder %s14, 3
    %p137 = scmp.ne.s32.totalorder %s132, %s134
    %p138 = scmp.eq.s32.totalorder %s14, 0
    %p139 = por %p137, %p138
    %p140 = scmp.ne.s32.totalorder %s132, %s134
    %p141 = scmp.eq.s32.totalorder %s19, 3
    %p142 = por %p140, %p141
    %p143 = scmp.ne.s32.totalorder %s134, %s135
    %p144 = scmp.eq.s32.totalorder %s19, 0
    %p145 = por %p143, %p144
    %p146 = scmp.ne.s32.totalorder %s134, %s135
    %p147 = scmp.eq.s32.totalorder %s20, 3
    %p148 = por %p146, %p147
    %p150 = scmp.ne.s32.totalorder %s135, %s149
    %p151 = scmp.eq.s32.totalorder %s20, 0
    %p152 = por %p150, %p151
    %s154 = sadd.s32 %s153, 1
    %p157 = scmp.eq.s32.totalorder %s14, 3
    %p158 = scmp.ne.s32.totalorder %s153, %s155
    %p159 = scmp.eq.s32.totalorder %s14, 0
    %p160 = por %p158, %p159
    %p161 = scmp.ne.s32.totalorder %s153, %s155
    %p162 = scmp.eq.s32.totalorder %s19, 3
    %p163 = por %p161, %p162
    %p164 = scmp.ne.s32.totalorder %s155, %s156
    %p165 = scmp.eq.s32.totalorder %s19, 0
    %p166 = por %p164, %p165
    %p167 = scmp.ne.s32.totalorder %s155, %s156
    %p168 = scmp.eq.s32.totalorder %s20, 3
    %p169 = por %p167, %p168
    %p171 = scmp.ne.s32.totalorder %s156, %s170
    %p172 = scmp.eq.s32.totalorder %s20, 0
    %p173 = por %p171, %p172
    %s175 = sadd.s32 %s174, 1
    %p178 = scmp.eq.s32.totalorder %s14, 3
    %p179 = scmp.ne.s32.totalorder %s174, %s176
    %p180 = scmp.eq.s32.totalorder %s14, 0
    %p181 = por %p179, %p180
    %p182 = scmp.ne.s32.totalorder %s174, %s176
    %p183 = scmp.eq.s32.totalorder %s19, 3
    %p184 = por %p182, %p183
    %p185 = scmp.ne.s32.totalorder %s176, %s177
    %p186 = scmp.eq.s32.totalorder %s19, 0
    %p187 = por %p185, %p186
    %p188 = scmp.ne.s32.totalorder %s176, %s177
    %p189 = scmp.eq.s32.totalorder %s20, 3
    %p190 = por %p188, %p189
    %p192 = scmp.ne.s32.totalorder %s177, %s191
    %p193 = scmp.eq.s32.totalorder %s20, 0
    %p194 = por %p192, %p193
    %s195 = ssub.s32 %s14, %s21
    %p196 = scmp.eq.s32.totalorder %s195, 0
    %s198 = sadd.s32 %s197, 1
    %s199 = scalar_select %p196, %s197, %s198
    %p202 = pneg %p196
    %p203 = scmp.eq.s32.totalorder %s14, 3
    %p204 = por %p202, %p203
    %p205 = scmp.ne.s32.totalorder %s197, %s200
    %p206 = scmp.eq.s32.totalorder %s14, 0
    %p207 = por %p205, %p206
    %p208 = scmp.ne.s32.totalorder %s197, %s200
    %p209 = scmp.eq.s32.totalorder %s19, 3
    %p210 = por %p208, %p209
    %p211 = scmp.ne.s32.totalorder %s200, %s201
    %p212 = scmp.eq.s32.totalorder %s19, 0
    %p213 = por %p211, %p212
    %p214 = scmp.ne.s32.totalorder %s200, %s201
    %p215 = scmp.eq.s32.totalorder %s20, 3
    %p216 = por %p214, %p215
    %p218 = scmp.ne.s32.totalorder %s201, %s217
    %p219 = scmp.eq.s32.totalorder %s20, 0
    %p220 = por %p218, %p219
    %p221 = scmp.le.s32.totalorder 1, %s14
    %p222 = scmp.lt.s32.totalorder %s14, 5
    %p223 = pnand %p221, %p222
    %p224 = pneg %p223
    // Predicated region
    $region9: #{visual_motion_prior_forward.1} parent=5 // pred_check
      _
    $region10: #{visual_motion_prior_forward.1} parent=5 // pred_check_branch
      %226 = sbr.rel (%p223) target = $region12
    $region11: #{visual_motion_prior_forward.1} parent=5 // pred_region
      %s227 = ssub.s32 %s14, 1
      // Predicated region
      $region13: #{visual_motion_prior_forward.1} parent=11 // pred_check
        %p228 = pneg %p61
      $region14: #{visual_motion_prior_forward.1} parent=11 // pred_check_branch
        %230 = sbr.rel (%p228) target = $region16
      $region15: #{visual_motion_prior_forward.1} parent=11 // pred_region
        _
      $region16: #{visual_motion_prior_forward.1} parent=11 // pred_fallthru
        _
      // Predicated region
      $region17: #{visual_motion_prior_forward.1} parent=11 // pred_check
        %p231 = pneg %p82
      $region18: #{visual_motion_prior_forward.1} parent=11 // pred_check_branch
        %233 = sbr.rel (%p231) target = $region20
      $region19: #{visual_motion_prior_forward.1} parent=11 // pred_region
        _
      $region20: #{visual_motion_prior_forward.1} parent=11 // pred_fallthru
        _
      // Predicated region
      $region21: #{visual_motion_prior_forward.1} parent=11 // pred_check
        %p234 = pneg %p103
      $region22: #{visual_motion_prior_forward.1} parent=11 // pred_check_branch
        %236 = sbr.rel (%p234) target = $region24
      $region23: #{visual_motion_prior_forward.1} parent=11 // pred_region
        _
      $region24: #{visual_motion_prior_forward.1} parent=11 // pred_fallthru
        _
      // Predicated region
      $region25: #{visual_motion_prior_forward.1} parent=11 // pred_check
        %p237 = pneg %p124
      $region26: #{visual_motion_prior_forward.1} parent=11 // pred_check_branch
        %239 = sbr.rel (%p237) target = $region28
      $region27: #{visual_motion_prior_forward.1} parent=11 // pred_region
        _
      $region28: #{visual_motion_prior_forward.1} parent=11 // pred_fallthru
        _
      // Predicated region
      $region29: #{visual_motion_prior_forward.1} parent=11 // pred_check
        %p240 = pneg %p145
      $region30: #{visual_motion_prior_forward.1} parent=11 // pred_check_branch
        %242 = sbr.rel (%p240) target = $region32
      $region31: #{visual_motion_prior_forward.1} parent=11 // pred_region
        _
      $region32: #{visual_motion_prior_forward.1} parent=11 // pred_fallthru
        _
      // Predicated region
      $region33: #{visual_motion_prior_forward.1} parent=11 // pred_check
        %p243 = pneg %p166
      $region34: #{visual_motion_prior_forward.1} parent=11 // pred_check_branch
        %245 = sbr.rel (%p243) target = $region36
      $region35: #{visual_motion_prior_forward.1} parent=11 // pred_region
        _
      $region36: #{visual_motion_prior_forward.1} parent=11 // pred_fallthru
        _
      // Predicated region
      $region37: #{visual_motion_prior_forward.1} parent=11 // pred_check
        %p246 = pneg %p187
      $region38: #{visual_motion_prior_forward.1} parent=11 // pred_check_branch
        %248 = sbr.rel (%p246) target = $region40
      $region39: #{visual_motion_prior_forward.1} parent=11 // pred_region
        _
      $region40: #{visual_motion_prior_forward.1} parent=11 // pred_fallthru
        _
    $region12: #{visual_motion_prior_forward.1} parent=5 // pred_fallthru
      _
    %p249 = scmp.lt.s32.totalorder %s14, 4
    // Predicated region
    $region41: #{visual_motion_prior_forward.1} parent=5 // pred_check
      %p250 = pneg %p249
    $region42: #{visual_motion_prior_forward.1} parent=5 // pred_check_branch
      %252 = sbr.rel (%p250) target = $region44
    $region43: #{visual_motion_prior_forward.1} parent=5 // pred_region
      // Predicated region
      $region45: #{visual_motion_prior_forward.1} parent=43 // pred_check
        %p253 = pneg %p34
      $region46: #{visual_motion_prior_forward.1} parent=43 // pred_check_branch
        %255 = sbr.rel (%p253) target = $region48
      $region47: #{visual_motion_prior_forward.1} parent=43 // pred_region
        %p256 = scmp.lt.s32.totalorder %s14, 3
        %s257 = scalar_select %p256, %s14, 3
        %s258 = smul.addr %s257, 128
        %s259 = smul.addr %s258, 8
        %s260 = scalar_lea.vmem %s0, %s259
      $region48: #{visual_motion_prior_forward.1} parent=43 // pred_fallthru
        _
    $region44: #{visual_motion_prior_forward.1} parent=5 // pred_fallthru
      _
    %p261 = scmp.le.s32.totalorder 1, %s14
    %p262 = scmp.lt.s32.totalorder %s14, 5
    %p263 = pnand %p261, %p262
    %p264 = pneg %p263
    // Predicated region
    $region49: #{visual_motion_prior_forward.1} parent=5 // pred_check
      _
    $region50: #{visual_motion_prior_forward.1} parent=5 // pred_check_branch
      %266 = sbr.rel (%p263) target = $region52
    $region51: #{visual_motion_prior_forward.1} parent=5 // pred_region
      %s267 = ssub.s32 %s14, 1
      %p268 = scmp.lt.s32.totalorder %s19, 3
      %s269 = scalar_select %p268, %s19, 3
      %s270 = smul.addr %s269, 128
      %s271 = smul.addr %s270, 8
      %s272 = scalar_lea.vmem %s0, %s271
      %p273 = pneg %p40
      %p274 = pneg %p37
      %p275 = pneg %p61
      %p276 = pneg %p58
      %p277 = pneg %p82
      %p278 = pneg %p79
      %p279 = pneg %p103
      %p280 = pneg %p100
      %p281 = pneg %p124
      %p282 = pneg %p121
      %p283 = pneg %p145
      %p284 = pneg %p142
      %p285 = pneg %p166
      %p286 = pneg %p163
      %p287 = pneg %p187
      %p288 = pneg %p184
      %p289 = pneg %p213
      %p290 = pneg %p210
      %p291 = scmp.lt.s32.totalorder %s19, 3
      %s292 = scalar_select %p291, %s19, 3
      %s293 = scalar_lea.vmem %s8, %s292
      %p294 = scmp.lt.s32.totalorder %s19, 3
      %s295 = scalar_select %p294, %s19, 3
      %s296 = smul.addr %s295, 128
      %s297 = smul.addr %s296, 8
      %s298 = scalar_lea.vmem %s0, %s297
      %p299 = scmp.lt.s32.totalorder %s19, 3
      %s300 = scalar_select %p299, %s19, 3
      %s301 = scalar_lea.vmem %s8, %s300
      %v303 = vlaneseq
      %v304 = vshrl.u32 %v303, 7
      %v305 = vlaneseq
      %v306 = vand.u32 %v305, 127
      %v307 = vmul.u32 %v304, 2
      %vm308 = vcmp.eq.s32.totalorder %v306, %v307
      %v309 = vsel %vm308, 1, 0
      %v310 = vcvt.s32.f32 %v309
      %v311 = vadd.s32 %v307, 1
      %vm312 = vcmp.eq.s32.totalorder %v306, %v311
      %v313 = vsel %vm312, 1, 0
      %v314 = vcvt.s32.f32 %v313
      %v315 = vld [vmem:[%s298] sm:$0xff]
      %v316 = vld [vmem:[%s298 + $0x8] sm:$0x7f]
      %v317 = vld [vmem:[%s298 + $0x1] sm:$0xff]
      %v318 = vld [vmem:[%s298 + $0x9] sm:$0x7f]
      %s319 = scalar_lea.vmem %s298, 16
      %v320 = vld [vmem:[%s319] sm:$0xff]
      %v321 = vld [vmem:[%s319 + $0x8] sm:$0x7f]
      %v322 = vld [vmem:[%s319 + $0x1] sm:$0xff]
      %v323 = vld [vmem:[%s319 + $0x9] sm:$0x7f]
      %s324 = scalar_lea.vmem %s298, 32
      %v325 = vld [vmem:[%s324] sm:$0xff]
      %v326 = vld [vmem:[%s324 + $0x8] sm:$0x7f]
      %v327 = vld [vmem:[%s324 + $0x1] sm:$0xff]
      %v328 = vld [vmem:[%s324 + $0x9] sm:$0x7f]
      %s329 = scalar_lea.vmem %s298, 48
      %v330 = vld [vmem:[%s329] sm:$0xff]
      %v331 = vld [vmem:[%s329 + $0x8] sm:$0x7f]
      %v332 = vld [vmem:[%s329 + $0x1] sm:$0xff]
      %v333 = vld [vmem:[%s329 + $0x9] sm:$0x7f]
      %s334 = scalar_lea.vmem %s298, 64
      %v335 = vld [vmem:[%s334] sm:$0xff]
      %v336 = vld [vmem:[%s334 + $0x8] sm:$0x7f]
      %v337 = vld [vmem:[%s334 + $0x1] sm:$0xff]
      %v338 = vld [vmem:[%s334 + $0x9] sm:$0x7f]
      %s339 = scalar_lea.vmem %s298, 80
      %v340 = vld [vmem:[%s339] sm:$0xff]
      %v341 = vld [vmem:[%s339 + $0x8] sm:$0x7f]
      %v342 = vld [vmem:[%s339 + $0x1] sm:$0xff]
      %v343 = vld [vmem:[%s339 + $0x9] sm:$0x7f]
      %s344 = scalar_lea.vmem %s298, 96
      %v345 = vld [vmem:[%s344] sm:$0xff]
      %v346 = vld [vmem:[%s344 + $0x8] sm:$0x7f]
      %v347 = vld [vmem:[%s344 + $0x1] sm:$0xff]
      %v348 = vld [vmem:[%s344 + $0x9] sm:$0x7f]
      %s349 = scalar_lea.vmem %s298, 112
      %v350 = vld [vmem:[%s349] sm:$0xff]
      %v351 = vld [vmem:[%s349 + $0x8] sm:$0x7f]
      %v352 = vld [vmem:[%s349 + $0x1] sm:$0xff]
      %v353 = vld [vmem:[%s349 + $0x9] sm:$0x7f]
      %356 = vrot.lane.b32.xlu0 %v317, 12
      %v357 = vpop.permute.xlu0 %356
      %358 = vrot.lane.b32.xlu0 %v318, 12
      %v359 = vpop.permute.xlu0 %358
      %364 = vrot.lane.b32.xlu0 %v320, 24
      %v365 = vpop.permute.xlu0 %364
      %366 = vrot.lane.b32.xlu0 %v321, 24
      %v367 = vpop.permute.xlu0 %366
      %372 = vrot.lane.b32.xlu0 %v322, 36
      %v373 = vpop.permute.xlu0 %372
      %374 = vrot.lane.b32.xlu0 %v323, 36
      %v375 = vpop.permute.xlu0 %374
      %380 = vrot.lane.b32.xlu0 %v325, 48
      %v381 = vpop.permute.xlu0 %380
      %382 = vrot.lane.b32.xlu0 %v326, 48
      %v383 = vpop.permute.xlu0 %382
      %388 = vrot.lane.b32.xlu0 %v327, 60
      %v389 = vpop.permute.xlu0 %388
      %390 = vrot.lane.b32.xlu0 %v328, 60
      %v391 = vpop.permute.xlu0 %390
      %396 = vrot.lane.b32.xlu0 %v330, 72
      %v397 = vpop.permute.xlu0 %396
      %398 = vrot.lane.b32.xlu0 %v331, 72
      %v399 = vpop.permute.xlu0 %398
      %404 = vrot.lane.b32.xlu0 %v332, 84
      %v405 = vpop.permute.xlu0 %404
      %406 = vrot.lane.b32.xlu0 %v333, 84
      %v407 = vpop.permute.xlu0 %406
      %412 = vrot.lane.b32.xlu0 %v335, 96
      %v413 = vpop.permute.xlu0 %412
      %414 = vrot.lane.b32.xlu0 %v336, 96
      %v415 = vpop.permute.xlu0 %414
      %420 = vrot.lane.b32.xlu0 %v337, 108
      %v421 = vpop.permute.xlu0 %420
      %422 = vrot.lane.b32.xlu0 %v338, 108
      %v423 = vpop.permute.xlu0 %422
      %428 = vrot.lane.b32.xlu0 %v340, 120
      %v429 = vpop.permute.xlu0 %428
      %430 = vrot.lane.b32.xlu0 %v341, 120
      %v431 = vpop.permute.xlu0 %430
      %436 = vrot.lane.b32.xlu0 %v342, 4
      %v437 = vpop.permute.xlu0 %436
      %438 = vrot.lane.b32.xlu0 %v343, 4
      %v439 = vpop.permute.xlu0 %438
      %444 = vrot.lane.b32.xlu0 %v345, 16
      %v445 = vpop.permute.xlu0 %444
      %446 = vrot.lane.b32.xlu0 %v346, 16
      %v447 = vpop.permute.xlu0 %446
      %452 = vrot.lane.b32.xlu0 %v347, 28
      %v453 = vpop.permute.xlu0 %452
      %454 = vrot.lane.b32.xlu0 %v348, 28
      %v455 = vpop.permute.xlu0 %454
      %460 = vrot.lane.b32.xlu0 %v350, 40
      %v461 = vpop.permute.xlu0 %460
      %462 = vrot.lane.b32.xlu0 %v351, 40
      %v463 = vpop.permute.xlu0 %462
      %468 = vrot.lane.b32.xlu0 %v352, 52
      %v469 = vpop.permute.xlu0 %468
      %470 = vrot.lane.b32.xlu0 %v353, 52
      %v471 = vpop.permute.xlu0 %470
      %vm474 = vcmask 97280
      %v475 = vsel %vm474, %v315, %v357
      %v476 = vsel %vm474, %v316, %v359
      %vm477 = vcmask 195584
      %v478 = vsel %vm477, %v475, %v365
      %v479 = vsel %vm477, %v476, %v367
      %vm480 = vcmask 293888
      %v481 = vsel %vm480, %v478, %v373
      %v482 = vsel %vm480, %v479, %v375
      %vm483 = vcmask 392192
      %v484 = vsel %vm483, %v481, %v381
      %v485 = vsel %vm483, %v482, %v383
      %vm486 = vcmask 490496
      %v487 = vsel %vm486, %v484, %v389
      %v488 = vsel %vm486, %v485, %v391
      %vm489 = vcmask 588800
      %v490 = vsel %vm489, %v487, %v397
      %v491 = vsel %vm489, %v488, %v399
      %vm492 = vcmask 687104
      %v493 = vsel %vm492, %v490, %v405
      %v494 = vsel %vm492, %v491, %v407
      %vm495 = vcmask 785408
      %v496 = vsel %vm495, %v493, %v413
      %v497 = vsel %vm495, %v494, %v415
      %vm498 = vcmask 883712
      %v499 = vsel %vm498, %v496, %v421
      %v500 = vsel %vm498, %v497, %v423
      %vm501 = vcmask 982016
      %v502 = vsel %vm501, %v499, %v429
      %v503 = vsel %vm501, %v500, %v431
      %vm504 = vcmask 31744
      %v505 = vsel %vm504, %v429, %v437
      %v506 = vsel %vm504, %v431, %v439
      %vm507 = vcmask 130048
      %v508 = vsel %vm507, %v505, %v445
      %v509 = vsel %vm507, %v506, %v447
      %vm510 = vcmask 228352
      %v511 = vsel %vm510, %v508, %v453
      %v512 = vsel %vm510, %v509, %v455
      %vm513 = vcmask 326656
      %v514 = vsel %vm513, %v511, %v461
      %v515 = vsel %vm513, %v512, %v463
      %vm516 = vcmask 424960
      %v517 = vsel %vm516, %v514, %v469
      %v518 = vsel %vm516, %v515, %v471
      %v519 = vpack.c.bf16 %v503, %v502
      %v520 = vpack.c.bf16 %v518, %v517
      %v521 = vld [vmem:[%s2] sm:$0xf]
      %v522 = vld [vmem:[%s2 + $0x4] sm:$0xf]
      %v523 = vld [vmem:[%s2 + $0x8] sm:$0xf]
      %v524 = vld [vmem:[%s2 + $0xc] sm:$0xf]
      %v525 = vld [vmem:[%s2 + $0x10] sm:$0xf]
      %v526 = vld [vmem:[%s2 + $0x14] sm:$0xf]
      %v527 = vld [vmem:[%s2 + $0x18] sm:$0xf]
      %v528 = vld [vmem:[%s2 + $0x1c] sm:$0xf]
      %v529 = vld [vmem:[%s2 + $0x20] sm:$0xf]
      %v530 = vld [vmem:[%s2 + $0x24] sm:$0xf]
      %v531 = vld [vmem:[%s2 + $0x28] sm:$0xf]
      %v532 = vld [vmem:[%s2 + $0x2c] sm:$0xf]
      %v533 = vld [vmem:[%s2 + $0x30] sm:$0xf]
      %v534 = vld [vmem:[%s2 + $0x34] sm:$0xf]
      %v535 = vld [vmem:[%s2 + $0x38] sm:$0xf]
      %v536 = vld [vmem:[%s2 + $0x3c] sm:$0xf]
      %v537 = vld [vmem:[%s2 + $0x40] sm:$0xf]
      %v538 = vld [vmem:[%s2 + $0x44] sm:$0xf]
      %v539 = vld [vmem:[%s2 + $0x48] sm:$0xf]
      %v540 = vld [vmem:[%s2 + $0x4c] sm:$0xf]
      %v541 = vld [vmem:[%s2 + $0x50] sm:$0xf]
      %v542 = vld [vmem:[%s2 + $0x54] sm:$0xf]
      %v543 = vld [vmem:[%s2 + $0x58] sm:$0xf]
      %v544 = vld [vmem:[%s2 + $0x5c] sm:$0xf]
      %v545 = vld [vmem:[%s3] sm:$0x1]
      %v547 = vperm.slane %v545, 0
      %v573 = vunpack.c.l.b16 %v521
      %v574 = vunpack.c.l.b16 %v522
      %v575 = vunpack.c.l.b16 %v523
      %v576 = vunpack.c.l.b16 %v524
      %v577 = vunpack.c.l.b16 %v525
      %v578 = vunpack.c.l.b16 %v526
      %v579 = vunpack.c.l.b16 %v527
      %v580 = vunpack.c.l.b16 %v528
      %v581 = vunpack.c.l.b16 %v529
      %v582 = vunpack.c.l.b16 %v530
      %v583 = vunpack.c.l.b16 %v531
      %v584 = vunpack.c.l.b16 %v532
      %v585 = vunpack.c.l.b16 %v533
      %v586 = vunpack.c.l.b16 %v534
      %v587 = vunpack.c.l.b16 %v535
      %v588 = vunpack.c.l.b16 %v536
      %v589 = vunpack.c.l.b16 %v537
      %v590 = vunpack.c.l.b16 %v538
      %v591 = vunpack.c.l.b16 %v539
      %v592 = vunpack.c.l.b16 %v540
      %v593 = vunpack.c.l.b16 %v541
      %v594 = vunpack.c.l.b16 %v542
      %v595 = vunpack.c.l.b16 %v543
      %v596 = vunpack.c.l.b16 %v544
      %v597 = vpack.c.b16 %v574, %v573
      %v598 = vpack.c.b16 %v576, %v575
      %v599 = vpack.c.b16 %v578, %v577
      %v600 = vpack.c.b16 %v580, %v579
      %v601 = vpack.c.b16 %v582, %v581
      %v602 = vpack.c.b16 %v584, %v583
      %v603 = vpack.c.b16 %v586, %v585
      %v604 = vpack.c.b16 %v588, %v587
      %v605 = vpack.c.b16 %v590, %v589
      %v606 = vpack.c.b16 %v592, %v591
      %v607 = vpack.c.b16 %v594, %v593
      %v608 = vpack.c.b16 %v596, %v595
      %vm621 = vcmask 523264
      %v623 = vsel %vm621, %v520, 0
      %625 = vmatpush.bf16.msra.mxu0 %v604
      %626 = vmatpush.bf16.msra.mxu0 %v603
      %627 = vmatpush.bf16.msra.mxu0 %v602
      %628 = vmatpush.bf16.msra.mxu0 %v601
      %629 = vmatpush.bf16.msra.mxu0 %v600
      %630 = vmatpush.bf16.msra.mxu0 %v599
      %631 = vmatpush.bf16.msra.mxu0 %v598
      %632 = vmatpush.bf16.msra.mxu0 %v597
      %633 = vmatmul.bf16.gmra.mxu0 %v519
      %v634 = vpop.f32.mrf.mxu0
      %v635 = vadd.f32 %v547, %v634
      %v636 = vpop.f32.mrf.mxu0
      %v637 = vadd.f32 %v547, %v636
      %638 = vdwg.mxu0
      %639 = vmatpush.bf16.msra.mxu0 0
      %640 = vmatpush.bf16.msra.mxu0 0
      %641 = vmatpush.bf16.msra.mxu0 0
      %642 = vmatpush.bf16.msra.mxu0 0
      %643 = vmatpush.bf16.msra.mxu0 %v608
      %644 = vmatpush.bf16.msra.mxu0 %v607
      %645 = vmatpush.bf16.msra.mxu0 %v606
      %646 = vmatpush.bf16.msra.mxu0 %v605
      %647 = vmatmul.bf16.gmra.mxu0 %v623
      %v648 = vpop.f32.mrf.mxu0
      %v649 = vadd.f32 %v635, %v648
      %v650 = vpop.f32.mrf.mxu0
      %v651 = vadd.f32 %v637, %v650
      %652 = vdwg.mxu0
      %v653 = vmax.f32 %v649, 0.0
      %v654 = vmax.f32 %v651, 0.0
      %vm655 = vcmask 121856
      %v657 = vsel %vm655, %v310, 0
      %vm659 = vcmask 1046528
      %v661 = vsel %vm659, %v654, 0
      %663 = vmatpush.msra.mxu0 0.0
      %664 = vmatpush.msra.mxu0 0.0
      %665 = vmatpush.msra.mxu0 0.0
      %666 = vmatpush.msra.mxu0 0.0
      %667 = vmatpush.msra.mxu0 0.0
      %668 = vmatpush.msra.mxu0 0.0
      %669 = vmatpush.msra.mxu0 0.0
      %670 = vmatpush.msra.mxu0 0.0
      %671 = vmatpush.msra.mxu0 0.0
      %672 = vmatpush.msra.mxu0 0.0
      %673 = vmatpush.msra.mxu0 0.0
      %674 = vmatpush.msra.mxu0 0.0
      %675 = vmatpush.msra.mxu0 0.0
      %676 = vmatpush.msra.mxu0 0.0
      %677 = vmatpush.msra.mxu0 %v661
      %678 = vmatpush.msra.mxu0 %v653
      %679 = vmatmul.f32.gmra.mxu0 %v657
      %v680 = vpop.f32.mrf.mxu0
      %v681 = vadd.f32 0.0, %v680
      %682 = vdwg.mxu0
      %v684 = vsel %vm655, %v314, 0
      %686 = vmatpush.msra.mxu0 0.0
      %687 = vmatpush.msra.mxu0 0.0
      %688 = vmatpush.msra.mxu0 0.0
      %689 = vmatpush.msra.mxu0 0.0
      %690 = vmatpush.msra.mxu0 0.0
      %691 = vmatpush.msra.mxu0 0.0
      %692 = vmatpush.msra.mxu0 0.0
      %693 = vmatpush.msra.mxu0 0.0
      %694 = vmatpush.msra.mxu0 0.0
      %695 = vmatpush.msra.mxu0 0.0
      %696 = vmatpush.msra.mxu0 0.0
      %697 = vmatpush.msra.mxu0 0.0
      %698 = vmatpush.msra.mxu0 0.0
      %699 = vmatpush.msra.mxu0 0.0
      %700 = vmatpush.msra.mxu0 %v661
      %701 = vmatpush.msra.mxu0 %v653
      %702 = vmatmul.f32.gmra.mxu0 %v684
      %v703 = vpop.f32.mrf.mxu0
      %v704 = vadd.f32 0.0, %v703
      %705 = vdwg.mxu0
      %707 = vrot.lane.b32.xlu0 %v704, 8
      %v708 = vpop.permute.xlu0 %707
      %vm710 = vcmask 64512
      %v711 = vsel %vm710, %v681, %v708
      %vm712 = vcmask 129024
      %713 = vst.msk [vmem:[#allocation2] sm:$0x7f] %vm712, %v711
      %v714 = vld [vmem:[%s334] sm:$0xff]
      %v715 = vld [vmem:[%s334 + $0x8] sm:$0x7f]
      %v716 = vld [vmem:[%s334 + $0x1] sm:$0xff]
      %v717 = vld [vmem:[%s334 + $0x9] sm:$0x7f]
      %v718 = vld [vmem:[%s339] sm:$0xff]
      %v719 = vld [vmem:[%s339 + $0x8] sm:$0x7f]
      %v720 = vld [vmem:[%s339 + $0x1] sm:$0xff]
      %v721 = vld [vmem:[%s339 + $0x9] sm:$0x7f]
      %v722 = vld [vmem:[%s344] sm:$0xff]
      %v723 = vld [vmem:[%s344 + $0x8] sm:$0x7f]
      %v724 = vld [vmem:[%s344 + $0x1] sm:$0xff]
      %v725 = vld [vmem:[%s344 + $0x9] sm:$0x7f]
      %v726 = vld [vmem:[%s349] sm:$0xff]
      %v727 = vld [vmem:[%s349 + $0x8] sm:$0x7f]
      %v728 = vld [vmem:[%s349 + $0x1] sm:$0xff]
      %v729 = vld [vmem:[%s349 + $0x9] sm:$0x7f]
      %s730 = scalar_lea.vmem %s298, 128
      %v731 = vld [vmem:[%s730] sm:$0xff]
      %v732 = vld [vmem:[%s730 + $0x8] sm:$0x7f]
      %v733 = vld [vmem:[%s730 + $0x1] sm:$0xff]
      %v734 = vld [vmem:[%s730 + $0x9] sm:$0x7f]
      %s735 = scalar_lea.vmem %s298, 144
      %v736 = vld [vmem:[%s735] sm:$0xff]
      %v737 = vld [vmem:[%s735 + $0x8] sm:$0x7f]
      %v738 = vld [vmem:[%s735 + $0x1] sm:$0xff]
      %v739 = vld [vmem:[%s735 + $0x9] sm:$0x7f]
      %s740 = scalar_lea.vmem %s298, 160
      %v741 = vld [vmem:[%s740] sm:$0xff]
      %v742 = vld [vmem:[%s740 + $0x8] sm:$0x7f]
      %v743 = vld [vmem:[%s740 + $0x1] sm:$0xff]
      %v744 = vld [vmem:[%s740 + $0x9] sm:$0x7f]
      %s745 = scalar_lea.vmem %s298, 176
      %v746 = vld [vmem:[%s745] sm:$0xff]
      %v747 = vld [vmem:[%s745 + $0x8] sm:$0x7f]
      %v748 = vld [vmem:[%s745 + $0x1] sm:$0xff]
      %v749 = vld [vmem:[%s745 + $0x9] sm:$0x7f]
      %752 = vrot.lane.b32.xlu0 %v716, 12
      %v753 = vpop.permute.xlu0 %752
      %754 = vrot.lane.b32.xlu0 %v717, 12
      %v755 = vpop.permute.xlu0 %754
      %760 = vrot.lane.b32.xlu0 %v718, 24
      %v761 = vpop.permute.xlu0 %760
      %762 = vrot.lane.b32.xlu0 %v719, 24
      %v763 = vpop.permute.xlu0 %762
      %768 = vrot.lane.b32.xlu0 %v720, 36
      %v769 = vpop.permute.xlu0 %768
      %770 = vrot.lane.b32.xlu0 %v721, 36
      %v771 = vpop.permute.xlu0 %770
      %776 = vrot.lane.b32.xlu0 %v722, 48
      %v777 = vpop.permute.xlu0 %776
      %778 = vrot.lane.b32.xlu0 %v723, 48
      %v779 = vpop.permute.xlu0 %778
      %784 = vrot.lane.b32.xlu0 %v724, 60
      %v785 = vpop.permute.xlu0 %784
      %786 = vrot.lane.b32.xlu0 %v725, 60
      %v787 = vpop.permute.xlu0 %786
      %792 = vrot.lane.b32.xlu0 %v726, 72
      %v793 = vpop.permute.xlu0 %792
      %794 = vrot.lane.b32.xlu0 %v727, 72
      %v795 = vpop.permute.xlu0 %794
      %800 = vrot.lane.b32.xlu0 %v728, 84
      %v801 = vpop.permute.xlu0 %800
      %802 = vrot.lane.b32.xlu0 %v729, 84
      %v803 = vpop.permute.xlu0 %802
      %808 = vrot.lane.b32.xlu0 %v731, 96
      %v809 = vpop.permute.xlu0 %808
      %810 = vrot.lane.b32.xlu0 %v732, 96
      %v811 = vpop.permute.xlu0 %810
      %816 = vrot.lane.b32.xlu0 %v733, 108
      %v817 = vpop.permute.xlu0 %816
      %818 = vrot.lane.b32.xlu0 %v734, 108
      %v819 = vpop.permute.xlu0 %818
      %824 = vrot.lane.b32.xlu0 %v736, 120
      %v825 = vpop.permute.xlu0 %824
      %826 = vrot.lane.b32.xlu0 %v737, 120
      %v827 = vpop.permute.xlu0 %826
      %832 = vrot.lane.b32.xlu0 %v738, 4
      %v833 = vpop.permute.xlu0 %832
      %834 = vrot.lane.b32.xlu0 %v739, 4
      %v835 = vpop.permute.xlu0 %834
      %840 = vrot.lane.b32.xlu0 %v741, 16
      %v841 = vpop.permute.xlu0 %840
      %842 = vrot.lane.b32.xlu0 %v742, 16
      %v843 = vpop.permute.xlu0 %842
      %848 = vrot.lane.b32.xlu0 %v743, 28
      %v849 = vpop.permute.xlu0 %848
      %850 = vrot.lane.b32.xlu0 %v744, 28
      %v851 = vpop.permute.xlu0 %850
      %856 = vrot.lane.b32.xlu0 %v746, 40
      %v857 = vpop.permute.xlu0 %856
      %858 = vrot.lane.b32.xlu0 %v747, 40
      %v859 = vpop.permute.xlu0 %858
      %864 = vrot.lane.b32.xlu0 %v748, 52
      %v865 = vpop.permute.xlu0 %864
      %866 = vrot.lane.b32.xlu0 %v749, 52
      %v867 = vpop.permute.xlu0 %866
      %v870 = vsel %vm474, %v714, %v753
      %v871 = vsel %vm474, %v715, %v755
      %v872 = vsel %vm477, %v870, %v761
      %v873 = vsel %vm477, %v871, %v763
      %v874 = vsel %vm480, %v872, %v769
      %v875 = vsel %vm480, %v873, %v771
      %v876 = vsel %vm483, %v874, %v777
      %v877 = vsel %vm483, %v875, %v779
      %v878 = vsel %vm486, %v876, %v785
      %v879 = vsel %vm486, %v877, %v787
      %v880 = vsel %vm489, %v878, %v793
      %v881 = vsel %vm489, %v879, %v795
      %v882 = vsel %vm492, %v880, %v801
      %v883 = vsel %vm492, %v881, %v803
      %v884 = vsel %vm495, %v882, %v809
      %v885 = vsel %vm495, %v883, %v811
      %v886 = vsel %vm498, %v884, %v817
      %v887 = vsel %vm498, %v885, %v819
      %v888 = vsel %vm501, %v886, %v825
      %v889 = vsel %vm501, %v887, %v827
      %v890 = vsel %vm504, %v825, %v833
      %v891 = vsel %vm504, %v827, %v835
      %v892 = vsel %vm507, %v890, %v841
      %v893 = vsel %vm507, %v891, %v843
      %v894 = vsel %vm510, %v892, %v849
      %v895 = vsel %vm510, %v893, %v851
      %v896 = vsel %vm513, %v894, %v857
      %v897 = vsel %vm513, %v895, %v859
      %v898 = vsel %vm516, %v896, %v865
      %v899 = vsel %vm516, %v897, %v867
      %v900 = vpack.c.bf16 %v889, %v888
      %v901 = vpack.c.bf16 %v899, %v898
      %v902 = vld [vmem:[%s2] sm:$0xf]
      %v903 = vld [vmem:[%s2 + $0x4] sm:$0xf]
      %v904 = vld [vmem:[%s2 + $0x8] sm:$0xf]
      %v905 = vld [vmem:[%s2 + $0xc] sm:$0xf]
      %v906 = vld [vmem:[%s2 + $0x10] sm:$0xf]
      %v907 = vld [vmem:[%s2 + $0x14] sm:$0xf]
      %v908 = vld [vmem:[%s2 + $0x18] sm:$0xf]
      %v909 = vld [vmem:[%s2 + $0x1c] sm:$0xf]
      %v910 = vld [vmem:[%s2 + $0x20] sm:$0xf]
      %v911 = vld [vmem:[%s2 + $0x24] sm:$0xf]
      %v912 = vld [vmem:[%s2 + $0x28] sm:$0xf]
      %v913 = vld [vmem:[%s2 + $0x2c] sm:$0xf]
      %v914 = vld [vmem:[%s2 + $0x30] sm:$0xf]
      %v915 = vld [vmem:[%s2 + $0x34] sm:$0xf]
      %v916 = vld [vmem:[%s2 + $0x38] sm:$0xf]
      %v917 = vld [vmem:[%s2 + $0x3c] sm:$0xf]
      %v918 = vld [vmem:[%s2 + $0x40] sm:$0xf]
      %v919 = vld [vmem:[%s2 + $0x44] sm:$0xf]
      %v920 = vld [vmem:[%s2 + $0x48] sm:$0xf]
      %v921 = vld [vmem:[%s2 + $0x4c] sm:$0xf]
      %v922 = vld [vmem:[%s2 + $0x50] sm:$0xf]
      %v923 = vld [vmem:[%s2 + $0x54] sm:$0xf]
      %v924 = vld [vmem:[%s2 + $0x58] sm:$0xf]
      %v925 = vld [vmem:[%s2 + $0x5c] sm:$0xf]
      %v926 = vld [vmem:[%s3] sm:$0x1]
      %v928 = vperm.slane %v926, 0
      %v954 = vunpack.c.l.b16 %v902
      %v955 = vunpack.c.l.b16 %v903
      %v956 = vunpack.c.l.b16 %v904
      %v957 = vunpack.c.l.b16 %v905
      %v958 = vunpack.c.l.b16 %v906
      %v959 = vunpack.c.l.b16 %v907
      %v960 = vunpack.c.l.b16 %v908
      %v961 = vunpack.c.l.b16 %v909
      %v962 = vunpack.c.l.b16 %v910
      %v963 = vunpack.c.l.b16 %v911
      %v964 = vunpack.c.l.b16 %v912
      %v965 = vunpack.c.l.b16 %v913
      %v966 = vunpack.c.l.b16 %v914
      %v967 = vunpack.c.l.b16 %v915
      %v968 = vunpack.c.l.b16 %v916
      %v969 = vunpack.c.l.b16 %v917
      %v970 = vunpack.c.l.b16 %v918
      %v971 = vunpack.c.l.b16 %v919
      %v972 = vunpack.c.l.b16 %v920
      %v973 = vunpack.c.l.b16 %v921
      %v974 = vunpack.c.l.b16 %v922
      %v975 = vunpack.c.l.b16 %v923
      %v976 = vunpack.c.l.b16 %v924
      %v977 = vunpack.c.l.b16 %v925
      %v978 = vpack.c.b16 %v955, %v954
      %v979 = vpack.c.b16 %v957, %v956
      %v980 = vpack.c.b16 %v959, %v958
      %v981 = vpack.c.b16 %v961, %v960
      %v982 = vpack.c.b16 %v963, %v962
      %v983 = vpack.c.b16 %v965, %v964
      %v984 = vpack.c.b16 %v967, %v966
      %v985 = vpack.c.b16 %v969, %v968
      %v986 = vpack.c.b16 %v971, %v970
      %v987 = vpack.c.b16 %v973, %v972
      %v988 = vpack.c.b16 %v975, %v974
      %v989 = vpack.c.b16 %v977, %v976
      %v1003 = vsel %vm621, %v901, 0
      %1005 = vmatpush.bf16.msra.mxu0 %v985
      %1006 = vmatpush.bf16.msra.mxu0 %v984
      %1007 = vmatpush.bf16.msra.mxu0 %v983
      %1008 = vmatpush.bf16.msra.mxu0 %v982
      %1009 = vmatpush.bf16.msra.mxu0 %v981
      %1010 = vmatpush.bf16.msra.mxu0 %v980
      %1011 = vmatpush.bf16.msra.mxu0 %v979
      %1012 = vmatpush.bf16.msra.mxu0 %v978
      %1013 = vmatmul.bf16.gmra.mxu0 %v900
      %v1014 = vpop.f32.mrf.mxu0
      %v1015 = vadd.f32 %v928, %v1014
      %v1016 = vpop.f32.mrf.mxu0
      %v1017 = vadd.f32 %v928, %v1016
      %1018 = vdwg.mxu0
      %1019 = vmatpush.bf16.msra.mxu0 0
      %1020 = vmatpush.bf16.msra.mxu0 0
      %1021 = vmatpush.bf16.msra.mxu0 0
      %1022 = vmatpush.bf16.msra.mxu0 0
      %1023 = vmatpush.bf16.msra.mxu0 %v989
      %1024 = vmatpush.bf16.msra.mxu0 %v988
      %1025 = vmatpush.bf16.msra.mxu0 %v987
      %1026 = vmatpush.bf16.msra.mxu0 %v986
      %1027 = vmatmul.bf16.gmra.mxu0 %v1003
      %v1028 = vpop.f32.mrf.mxu0
      %v1029 = vadd.f32 %v1015, %v1028
      %v1030 = vpop.f32.mrf.mxu0
      %v1031 = vadd.f32 %v1017, %v1030
      %1032 = vdwg.mxu0
      %v1033 = vmax.f32 %v1029, 0.0
      %v1034 = vmax.f32 %v1031, 0.0
      %v1036 = vsel %vm659, %v1034, 0
      %1038 = vmatpush.msra.mxu0 0.0
      %1039 = vmatpush.msra.mxu0 0.0
      %1040 = vmatpush.msra.mxu0 0.0
      %1041 = vmatpush.msra.mxu0 0.0
      %1042 = vmatpush.msra.mxu0 0.0
      %1043 = vmatpush.msra.mxu0 0.0
      %1044 = vmatpush.msra.mxu0 0.0
      %1045 = vmatpush.msra.mxu0 0.0
      %1046 = vmatpush.msra.mxu0 0.0
      %1047 = vmatpush.msra.mxu0 0.0
      %1048 = vmatpush.msra.mxu0 0.0
      %1049 = vmatpush.msra.mxu0 0.0
      %1050 = vmatpush.msra.mxu0 0.0
      %1051 = vmatpush.msra.mxu0 0.0
      %1052 = vmatpush.msra.mxu0 %v1036
      %1053 = vmatpush.msra.mxu0 %v1033
      %1054 = vmatmul.f32.gmra.mxu0 %v657
      %v1055 = vpop.f32.mrf.mxu0
      %v1056 = vadd.f32 0.0, %v1055
      %1057 = vdwg.mxu0
      %1058 = vmatpush.msra.mxu0 0.0
      %1059 = vmatpush.msra.mxu0 0.0
      %1060 = vmatpush.msra.mxu0 0.0
      %1061 = vmatpush.msra.mxu0 0.0
      %1062 = vmatpush.msra.mxu0 0.0
      %1063 = vmatpush.msra.mxu0 0.0
      %1064 = vmatpush.msra.mxu0 0.0
      %1065 = vmatpush.msra.mxu0 0.0
      %1066 = vmatpush.msra.mxu0 0.0
      %1067 = vmatpush.msra.mxu0 0.0
      %1068 = vmatpush.msra.mxu0 0.0
      %1069 = vmatpush.msra.mxu0 0.0
      %1070 = vmatpush.msra.mxu0 0.0
      %1071 = vmatpush.msra.mxu0 0.0
      %1072 = vmatpush.msra.mxu0 %v1036
      %1073 = vmatpush.msra.mxu0 %v1033
      %1074 = vmatmul.f32.gmra.mxu0 %v684
      %v1075 = vpop.f32.mrf.mxu0
      %v1076 = vadd.f32 0.0, %v1075
      %1077 = vdwg.mxu0
      %1079 = vrot.lane.b32.xlu0 %v1076, 8
      %v1080 = vpop.permute.xlu0 %1079
      %v1082 = vsel %vm710, %v1056, %v1080
      %s1083 = scalar_lea.vmem [#allocation2], 8
      %1084 = vst.msk [vmem:[%s1083] sm:$0x7f] %vm712, %v1082
      %v1085 = vld [vmem:[%s730] sm:$0xff]
      %v1086 = vld [vmem:[%s730 + $0x8] sm:$0x7f]
      %v1087 = vld [vmem:[%s730 + $0x1] sm:$0xff]
      %v1088 = vld [vmem:[%s730 + $0x9] sm:$0x7f]
      %v1089 = vld [vmem:[%s735] sm:$0xff]
      %v1090 = vld [vmem:[%s735 + $0x8] sm:$0x7f]
      %v1091 = vld [vmem:[%s735 + $0x1] sm:$0xff]
      %v1092 = vld [vmem:[%s735 + $0x9] sm:$0x7f]
      %v1093 = vld [vmem:[%s740] sm:$0xff]
      %v1094 = vld [vmem:[%s740 + $0x8] sm:$0x7f]
      %v1095 = vld [vmem:[%s740 + $0x1] sm:$0xff]
      %v1096 = vld [vmem:[%s740 + $0x9] sm:$0x7f]
      %v1097 = vld [vmem:[%s745] sm:$0xff]
      %v1098 = vld [vmem:[%s745 + $0x8] sm:$0x7f]
      %v1099 = vld [vmem:[%s745 + $0x1] sm:$0xff]
      %v1100 = vld [vmem:[%s745 + $0x9] sm:$0x7f]
      %s1101 = scalar_lea.vmem %s298, 192
      %v1102 = vld [vmem:[%s1101] sm:$0xff]
      %v1103 = vld [vmem:[%s1101 + $0x8] sm:$0x7f]
      %v1104 = vld [vmem:[%s1101 + $0x1] sm:$0xff]
      %v1105 = vld [vmem:[%s1101 + $0x9] sm:$0x7f]
      %s1106 = scalar_lea.vmem %s298, 208
      %v1107 = vld [vmem:[%s1106] sm:$0xff]
      %v1108 = vld [vmem:[%s1106 + $0x8] sm:$0x7f]
      %v1109 = vld [vmem:[%s1106 + $0x1] sm:$0xff]
      %v1110 = vld [vmem:[%s1106 + $0x9] sm:$0x7f]
      %s1111 = scalar_lea.vmem %s298, 224
      %v1112 = vld [vmem:[%s1111] sm:$0xff]
      %v1113 = vld [vmem:[%s1111 + $0x8] sm:$0x7f]
      %v1114 = vld [vmem:[%s1111 + $0x1] sm:$0xff]
      %v1115 = vld [vmem:[%s1111 + $0x9] sm:$0x7f]
      %s1116 = scalar_lea.vmem %s298, 240
      %v1117 = vld [vmem:[%s1116] sm:$0xff]
      %v1118 = vld [vmem:[%s1116 + $0x8] sm:$0x7f]
      %v1119 = vld [vmem:[%s1116 + $0x1] sm:$0xff]
      %v1120 = vld [vmem:[%s1116 + $0x9] sm:$0x7f]
      %1123 = vrot.lane.b32.xlu0 %v1087, 12
      %v1124 = vpop.permute.xlu0 %1123
      %1125 = vrot.lane.b32.xlu0 %v1088, 12
      %v1126 = vpop.permute.xlu0 %1125
      %1131 = vrot.lane.b32.xlu0 %v1089, 24
      %v1132 = vpop.permute.xlu0 %1131
      %1133 = vrot.lane.b32.xlu0 %v1090, 24
      %v1134 = vpop.permute.xlu0 %1133
      %1139 = vrot.lane.b32.xlu0 %v1091, 36
      %v1140 = vpop.permute.xlu0 %1139
      %1141 = vrot.lane.b32.xlu0 %v1092, 36
      %v1142 = vpop.permute.xlu0 %1141
      %1147 = vrot.lane.b32.xlu0 %v1093, 48
      %v1148 = vpop.permute.xlu0 %1147
      %1149 = vrot.lane.b32.xlu0 %v1094, 48
      %v1150 = vpop.permute.xlu0 %1149
      %1155 = vrot.lane.b32.xlu0 %v1095, 60
      %v1156 = vpop.permute.xlu0 %1155
      %1157 = vrot.lane.b32.xlu0 %v1096, 60
      %v1158 = vpop.permute.xlu0 %1157
      %1163 = vrot.lane.b32.xlu0 %v1097, 72
      %v1164 = vpop.permute.xlu0 %1163
      %1165 = vrot.lane.b32.xlu0 %v1098, 72
      %v1166 = vpop.permute.xlu0 %1165
      %1171 = vrot.lane.b32.xlu0 %v1099, 84
      %v1172 = vpop.permute.xlu0 %1171
      %1173 = vrot.lane.b32.xlu0 %v1100, 84
      %v1174 = vpop.permute.xlu0 %1173
      %1179 = vrot.lane.b32.xlu0 %v1102, 96
      %v1180 = vpop.permute.xlu0 %1179
      %1181 = vrot.lane.b32.xlu0 %v1103, 96
      %v1182 = vpop.permute.xlu0 %1181
      %1187 = vrot.lane.b32.xlu0 %v1104, 108
      %v1188 = vpop.permute.xlu0 %1187
      %1189 = vrot.lane.b32.xlu0 %v1105, 108
      %v1190 = vpop.permute.xlu0 %1189
      %1195 = vrot.lane.b32.xlu0 %v1107, 120
      %v1196 = vpop.permute.xlu0 %1195
      %1197 = vrot.lane.b32.xlu0 %v1108, 120
      %v1198 = vpop.permute.xlu0 %1197
      %1203 = vrot.lane.b32.xlu0 %v1109, 4
      %v1204 = vpop.permute.xlu0 %1203
      %1205 = vrot.lane.b32.xlu0 %v1110, 4
      %v1206 = vpop.permute.xlu0 %1205
      %1211 = vrot.lane.b32.xlu0 %v1112, 16
      %v1212 = vpop.permute.xlu0 %1211
      %1213 = vrot.lane.b32.xlu0 %v1113, 16
      %v1214 = vpop.permute.xlu0 %1213
      %1219 = vrot.lane.b32.xlu0 %v1114, 28
      %v1220 = vpop.permute.xlu0 %1219
      %1221 = vrot.lane.b32.xlu0 %v1115, 28
      %v1222 = vpop.permute.xlu0 %1221
      %1227 = vrot.lane.b32.xlu0 %v1117, 40
      %v1228 = vpop.permute.xlu0 %1227
      %1229 = vrot.lane.b32.xlu0 %v1118, 40
      %v1230 = vpop.permute.xlu0 %1229
      %1235 = vrot.lane.b32.xlu0 %v1119, 52
      %v1236 = vpop.permute.xlu0 %1235
      %1237 = vrot.lane.b32.xlu0 %v1120, 52
      %v1238 = vpop.permute.xlu0 %1237
      %v1241 = vsel %vm474, %v1085, %v1124
      %v1242 = vsel %vm474, %v1086, %v1126
      %v1243 = vsel %vm477, %v1241, %v1132
      %v1244 = vsel %vm477, %v1242, %v1134
      %v1245 = vsel %vm480, %v1243, %v1140
      %v1246 = vsel %vm480, %v1244, %v1142
      %v1247 = vsel %vm483, %v1245, %v1148
      %v1248 = vsel %vm483, %v1246, %v1150
      %v1249 = vsel %vm486, %v1247, %v1156
      %v1250 = vsel %vm486, %v1248, %v1158
      %v1251 = vsel %vm489, %v1249, %v1164
      %v1252 = vsel %vm489, %v1250, %v1166
      %v1253 = vsel %vm492, %v1251, %v1172
      %v1254 = vsel %vm492, %v1252, %v1174
      %v1255 = vsel %vm495, %v1253, %v1180
      %v1256 = vsel %vm495, %v1254, %v1182
      %v1257 = vsel %vm498, %v1255, %v1188
      %v1258 = vsel %vm498, %v1256, %v1190
      %v1259 = vsel %vm501, %v1257, %v1196
      %v1260 = vsel %vm501, %v1258, %v1198
      %v1261 = vsel %vm504, %v1196, %v1204
      %v1262 = vsel %vm504, %v1198, %v1206
      %v1263 = vsel %vm507, %v1261, %v1212
      %v1264 = vsel %vm507, %v1262, %v1214
      %v1265 = vsel %vm510, %v1263, %v1220
      %v1266 = vsel %vm510, %v1264, %v1222
      %v1267 = vsel %vm513, %v1265, %v1228
      %v1268 = vsel %vm513, %v1266, %v1230
      %v1269 = vsel %vm516, %v1267, %v1236
      %v1270 = vsel %vm516, %v1268, %v1238
      %v1271 = vpack.c.bf16 %v1260, %v1259
      %v1272 = vpack.c.bf16 %v1270, %v1269
      %v1273 = vld [vmem:[%s2] sm:$0xf]
      %v1274 = vld [vmem:[%s2 + $0x4] sm:$0xf]
      %v1275 = vld [vmem:[%s2 + $0x8] sm:$0xf]
      %v1276 = vld [vmem:[%s2 + $0xc] sm:$0xf]
      %v1277 = vld [vmem:[%s2 + $0x10] sm:$0xf]
      %v1278 = vld [vmem:[%s2 + $0x14] sm:$0xf]
      %v1279 = vld [vmem:[%s2 + $0x18] sm:$0xf]
      %v1280 = vld [vmem:[%s2 + $0x1c] sm:$0xf]
      %v1281 = vld [vmem:[%s2 + $0x20] sm:$0xf]
      %v1282 = vld [vmem:[%s2 + $0x24] sm:$0xf]
      %v1283 = vld [vmem:[%s2 + $0x28] sm:$0xf]
      %v1284 = vld [vmem:[%s2 + $0x2c] sm:$0xf]
      %v1285 = vld [vmem:[%s2 + $0x30] sm:$0xf]
      %v1286 = vld [vmem:[%s2 + $0x34] sm:$0xf]
      %v1287 = vld [vmem:[%s2 + $0x38] sm:$0xf]
      %v1288 = vld [vmem:[%s2 + $0x3c] sm:$0xf]
      %v1289 = vld [vmem:[%s2 + $0x40] sm:$0xf]
      %v1290 = vld [vmem:[%s2 + $0x44] sm:$0xf]
      %v1291 = vld [vmem:[%s2 + $0x48] sm:$0xf]
      %v1292 = vld [vmem:[%s2 + $0x4c] sm:$0xf]
      %v1293 = vld [vmem:[%s2 + $0x50] sm:$0xf]
      %v1294 = vld [vmem:[%s2 + $0x54] sm:$0xf]
      %v1295 = vld [vmem:[%s2 + $0x58] sm:$0xf]
      %v1296 = vld [vmem:[%s2 + $0x5c] sm:$0xf]
      %v1297 = vld [vmem:[%s3] sm:$0x1]
      %v1299 = vperm.slane %v1297, 0
      %v1325 = vunpack.c.l.b16 %v1273
      %v1326 = vunpack.c.l.b16 %v1274
      %v1327 = vunpack.c.l.b16 %v1275
      %v1328 = vunpack.c.l.b16 %v1276
      %v1329 = vunpack.c.l.b16 %v1277
      %v1330 = vunpack.c.l.b16 %v1278
      %v1331 = vunpack.c.l.b16 %v1279
      %v1332 = vunpack.c.l.b16 %v1280
      %v1333 = vunpack.c.l.b16 %v1281
      %v1334 = vunpack.c.l.b16 %v1282
      %v1335 = vunpack.c.l.b16 %v1283
      %v1336 = vunpack.c.l.b16 %v1284
      %v1337 = vunpack.c.l.b16 %v1285
      %v1338 = vunpack.c.l.b16 %v1286
      %v1339 = vunpack.c.l.b16 %v1287
      %v1340 = vunpack.c.l.b16 %v1288
      %v1341 = vunpack.c.l.b16 %v1289
      %v1342 = vunpack.c.l.b16 %v1290
      %v1343 = vunpack.c.l.b16 %v1291
      %v1344 = vunpack.c.l.b16 %v1292
      %v1345 = vunpack.c.l.b16 %v1293
      %v1346 = vunpack.c.l.b16 %v1294
      %v1347 = vunpack.c.l.b16 %v1295
      %v1348 = vunpack.c.l.b16 %v1296
      %v1349 = vpack.c.b16 %v1326, %v1325
      %v1350 = vpack.c.b16 %v1328, %v1327
      %v1351 = vpack.c.b16 %v1330, %v1329
      %v1352 = vpack.c.b16 %v1332, %v1331
      %v1353 = vpack.c.b16 %v1334, %v1333
      %v1354 = vpack.c.b16 %v1336, %v1335
      %v1355 = vpack.c.b16 %v1338, %v1337
      %v1356 = vpack.c.b16 %v1340, %v1339
      %v1357 = vpack.c.b16 %v1342, %v1341
      %v1358 = vpack.c.b16 %v1344, %v1343
      %v1359 = vpack.c.b16 %v1346, %v1345
      %v1360 = vpack.c.b16 %v1348, %v1347
      %v1374 = vsel %vm621, %v1272, 0
      %1376 = vmatpush.bf16.msra.mxu0 %v1356
      %1377 = vmatpush.bf16.msra.mxu0 %v1355
      %1378 = vmatpush.bf16.msra.mxu0 %v1354
      %1379 = vmatpush.bf16.msra.mxu0 %v1353
      %1380 = vmatpush.bf16.msra.mxu0 %v1352
      %1381 = vmatpush.bf16.msra.mxu0 %v1351
      %1382 = vmatpush.bf16.msra.mxu0 %v1350
      %1383 = vmatpush.bf16.msra.mxu0 %v1349
      %1384 = vmatmul.bf16.gmra.mxu0 %v1271
      %v1385 = vpop.f32.mrf.mxu0
      %v1386 = vadd.f32 %v1299, %v1385
      %v1387 = vpop.f32.mrf.mxu0
      %v1388 = vadd.f32 %v1299, %v1387
      %1389 = vdwg.mxu0
      %1390 = vmatpush.bf16.msra.mxu0 0
      %1391 = vmatpush.bf16.msra.mxu0 0
      %1392 = vmatpush.bf16.msra.mxu0 0
      %1393 = vmatpush.bf16.msra.mxu0 0
      %1394 = vmatpush.bf16.msra.mxu0 %v1360
      %1395 = vmatpush.bf16.msra.mxu0 %v1359
      %1396 = vmatpush.bf16.msra.mxu0 %v1358
      %1397 = vmatpush.bf16.msra.mxu0 %v1357
      %1398 = vmatmul.bf16.gmra.mxu0 %v1374
      %v1399 = vpop.f32.mrf.mxu0
      %v1400 = vadd.f32 %v1386, %v1399
      %v1401 = vpop.f32.mrf.mxu0
      %v1402 = vadd.f32 %v1388, %v1401
      %1403 = vdwg.mxu0
      %v1404 = vmax.f32 %v1400, 0.0
      %v1405 = vmax.f32 %v1402, 0.0
      %v1407 = vsel %vm659, %v1405, 0
      %1409 = vmatpush.msra.mxu0 0.0
      %1410 = vmatpush.msra.mxu0 0.0
      %1411 = vmatpush.msra.mxu0 0.0
      %1412 = vmatpush.msra.mxu0 0.0
      %1413 = vmatpush.msra.mxu0 0.0
      %1414 = vmatpush.msra.mxu0 0.0
      %1415 = vmatpush.msra.mxu0 0.0
      %1416 = vmatpush.msra.mxu0 0.0
      %1417 = vmatpush.msra.mxu0 0.0
      %1418 = vmatpush.msra.mxu0 0.0
      %1419 = vmatpush.msra.mxu0 0.0
      %1420 = vmatpush.msra.mxu0 0.0
      %1421 = vmatpush.msra.mxu0 0.0
      %1422 = vmatpush.msra.mxu0 0.0
      %1423 = vmatpush.msra.mxu0 %v1407
      %1424 = vmatpush.msra.mxu0 %v1404
      %1425 = vmatmul.f32.gmra.mxu0 %v657
      %v1426 = vpop.f32.mrf.mxu0
      %v1427 = vadd.f32 0.0, %v1426
      %1428 = vdwg.mxu0
      %1429 = vmatpush.msra.mxu0 0.0
      %1430 = vmatpush.msra.mxu0 0.0
      %1431 = vmatpush.msra.mxu0 0.0
      %1432 = vmatpush.msra.mxu0 0.0
      %1433 = vmatpush.msra.mxu0 0.0
      %1434 = vmatpush.msra.mxu0 0.0
      %1435 = vmatpush.msra.mxu0 0.0
      %1436 = vmatpush.msra.mxu0 0.0
      %1437 = vmatpush.msra.mxu0 0.0
      %1438 = vmatpush.msra.mxu0 0.0
      %1439 = vmatpush.msra.mxu0 0.0
      %1440 = vmatpush.msra.mxu0 0.0
      %1441 = vmatpush.msra.mxu0 0.0
      %1442 = vmatpush.msra.mxu0 0.0
      %1443 = vmatpush.msra.mxu0 %v1407
      %1444 = vmatpush.msra.mxu0 %v1404
      %1445 = vmatmul.f32.gmra.mxu0 %v684
      %v1446 = vpop.f32.mrf.mxu0
      %v1447 = vadd.f32 0.0, %v1446
      %1448 = vdwg.mxu0
      %1450 = vrot.lane.b32.xlu0 %v1447, 8
      %v1451 = vpop.permute.xlu0 %1450
      %v1453 = vsel %vm710, %v1427, %v1451
      %s1454 = scalar_lea.vmem [#allocation2], 16
      %1455 = vst.msk [vmem:[%s1454] sm:$0x7f] %vm712, %v1453
      %v1456 = vld [vmem:[%s1101] sm:$0xff]
      %v1457 = vld [vmem:[%s1101 + $0x8] sm:$0x7f]
      %v1458 = vld [vmem:[%s1101 + $0x1] sm:$0xff]
      %v1459 = vld [vmem:[%s1101 + $0x9] sm:$0x7f]
      %v1460 = vld [vmem:[%s1106] sm:$0xff]
      %v1461 = vld [vmem:[%s1106 + $0x8] sm:$0x7f]
      %v1462 = vld [vmem:[%s1106 + $0x1] sm:$0xff]
      %v1463 = vld [vmem:[%s1106 + $0x9] sm:$0x7f]
      %v1464 = vld [vmem:[%s1111] sm:$0xff]
      %v1465 = vld [vmem:[%s1111 + $0x8] sm:$0x7f]
      %v1466 = vld [vmem:[%s1111 + $0x1] sm:$0xff]
      %v1467 = vld [vmem:[%s1111 + $0x9] sm:$0x7f]
      %v1468 = vld [vmem:[%s1116] sm:$0xff]
      %v1469 = vld [vmem:[%s1116 + $0x8] sm:$0x7f]
      %v1470 = vld [vmem:[%s1116 + $0x1] sm:$0xff]
      %v1471 = vld [vmem:[%s1116 + $0x9] sm:$0x7f]
      %s1472 = scalar_lea.vmem %s298, 256
      %v1473 = vld [vmem:[%s1472] sm:$0xff]
      %v1474 = vld [vmem:[%s1472 + $0x8] sm:$0x7f]
      %v1475 = vld [vmem:[%s1472 + $0x1] sm:$0xff]
      %v1476 = vld [vmem:[%s1472 + $0x9] sm:$0x7f]
      %s1477 = scalar_lea.vmem %s298, 272
      %v1478 = vld [vmem:[%s1477] sm:$0xff]
      %v1479 = vld [vmem:[%s1477 + $0x8] sm:$0x7f]
      %v1480 = vld [vmem:[%s1477 + $0x1] sm:$0xff]
      %v1481 = vld [vmem:[%s1477 + $0x9] sm:$0x7f]
      %s1482 = scalar_lea.vmem %s298, 288
      %v1483 = vld [vmem:[%s1482] sm:$0xff]
      %v1484 = vld [vmem:[%s1482 + $0x8] sm:$0x7f]
      %v1485 = vld [vmem:[%s1482 + $0x1] sm:$0xff]
      %v1486 = vld [vmem:[%s1482 + $0x9] sm:$0x7f]
      %s1487 = scalar_lea.vmem %s298, 304
      %v1488 = vld [vmem:[%s1487] sm:$0xff]
      %v1489 = vld [vmem:[%s1487 + $0x8] sm:$0x7f]
      %v1490 = vld [vmem:[%s1487 + $0x1] sm:$0xff]
      %v1491 = vld [vmem:[%s1487 + $0x9] sm:$0x7f]
      %1494 = vrot.lane.b32.xlu0 %v1458, 12
      %v1495 = vpop.permute.xlu0 %1494
      %1496 = vrot.lane.b32.xlu0 %v1459, 12
      %v1497 = vpop.permute.xlu0 %1496
      %1502 = vrot.lane.b32.xlu0 %v1460, 24
      %v1503 = vpop.permute.xlu0 %1502
      %1504 = vrot.lane.b32.xlu0 %v1461, 24
      %v1505 = vpop.permute.xlu0 %1504
      %1510 = vrot.lane.b32.xlu0 %v1462, 36
      %v1511 = vpop.permute.xlu0 %1510
      %1512 = vrot.lane.b32.xlu0 %v1463, 36
      %v1513 = vpop.permute.xlu0 %1512
      %1518 = vrot.lane.b32.xlu0 %v1464, 48
      %v1519 = vpop.permute.xlu0 %1518
      %1520 = vrot.lane.b32.xlu0 %v1465, 48
      %v1521 = vpop.permute.xlu0 %1520
      %1526 = vrot.lane.b32.xlu0 %v1466, 60
      %v1527 = vpop.permute.xlu0 %1526
      %1528 = vrot.lane.b32.xlu0 %v1467, 60
      %v1529 = vpop.permute.xlu0 %1528
      %1534 = vrot.lane.b32.xlu0 %v1468, 72
      %v1535 = vpop.permute.xlu0 %1534
      %1536 = vrot.lane.b32.xlu0 %v1469, 72
      %v1537 = vpop.permute.xlu0 %1536
      %1542 = vrot.lane.b32.xlu0 %v1470, 84
      %v1543 = vpop.permute.xlu0 %1542
      %1544 = vrot.lane.b32.xlu0 %v1471, 84
      %v1545 = vpop.permute.xlu0 %1544
      %1550 = vrot.lane.b32.xlu0 %v1473, 96
      %v1551 = vpop.permute.xlu0 %1550
      %1552 = vrot.lane.b32.xlu0 %v1474, 96
      %v1553 = vpop.permute.xlu0 %1552
      %1558 = vrot.lane.b32.xlu0 %v1475, 108
      %v1559 = vpop.permute.xlu0 %1558
      %1560 = vrot.lane.b32.xlu0 %v1476, 108
      %v1561 = vpop.permute.xlu0 %1560
      %1566 = vrot.lane.b32.xlu0 %v1478, 120
      %v1567 = vpop.permute.xlu0 %1566
      %1568 = vrot.lane.b32.xlu0 %v1479, 120
      %v1569 = vpop.permute.xlu0 %1568
      %1574 = vrot.lane.b32.xlu0 %v1480, 4
      %v1575 = vpop.permute.xlu0 %1574
      %1576 = vrot.lane.b32.xlu0 %v1481, 4
      %v1577 = vpop.permute.xlu0 %1576
      %1582 = vrot.lane.b32.xlu0 %v1483, 16
      %v1583 = vpop.permute.xlu0 %1582
      %1584 = vrot.lane.b32.xlu0 %v1484, 16
      %v1585 = vpop.permute.xlu0 %1584
      %1590 = vrot.lane.b32.xlu0 %v1485, 28
      %v1591 = vpop.permute.xlu0 %1590
      %1592 = vrot.lane.b32.xlu0 %v1486, 28
      %v1593 = vpop.permute.xlu0 %1592
      %1598 = vrot.lane.b32.xlu0 %v1488, 40
      %v1599 = vpop.permute.xlu0 %1598
      %1600 = vrot.lane.b32.xlu0 %v1489, 40
      %v1601 = vpop.permute.xlu0 %1600
      %1606 = vrot.lane.b32.xlu0 %v1490, 52
      %v1607 = vpop.permute.xlu0 %1606
      %1608 = vrot.lane.b32.xlu0 %v1491, 52
      %v1609 = vpop.permute.xlu0 %1608
      %v1612 = vsel %vm474, %v1456, %v1495
      %v1613 = vsel %vm474, %v1457, %v1497
      %v1614 = vsel %vm477, %v1612, %v1503
      %v1615 = vsel %vm477, %v1613, %v1505
      %v1616 = vsel %vm480, %v1614, %v1511
      %v1617 = vsel %vm480, %v1615, %v1513
      %v1618 = vsel %vm483, %v1616, %v1519
      %v1619 = vsel %vm483, %v1617, %v1521
      %v1620 = vsel %vm486, %v1618, %v1527
      %v1621 = vsel %vm486, %v1619, %v1529
      %v1622 = vsel %vm489, %v1620, %v1535
      %v1623 = vsel %vm489, %v1621, %v1537
      %v1624 = vsel %vm492, %v1622, %v1543
      %v1625 = vsel %vm492, %v1623, %v1545
      %v1626 = vsel %vm495, %v1624, %v1551
      %v1627 = vsel %vm495, %v1625, %v1553
      %v1628 = vsel %vm498, %v1626, %v1559
      %v1629 = vsel %vm498, %v1627, %v1561
      %v1630 = vsel %vm501, %v1628, %v1567
      %v1631 = vsel %vm501, %v1629, %v1569
      %v1632 = vsel %vm504, %v1567, %v1575
      %v1633 = vsel %vm504, %v1569, %v1577
      %v1634 = vsel %vm507, %v1632, %v1583
      %v1635 = vsel %vm507, %v1633, %v1585
      %v1636 = vsel %vm510, %v1634, %v1591
      %v1637 = vsel %vm510, %v1635, %v1593
      %v1638 = vsel %vm513, %v1636, %v1599
      %v1639 = vsel %vm513, %v1637, %v1601
      %v1640 = vsel %vm516, %v1638, %v1607
      %v1641 = vsel %vm516, %v1639, %v1609
      %v1642 = vpack.c.bf16 %v1631, %v1630
      %v1643 = vpack.c.bf16 %v1641, %v1640
      %v1644 = vld [vmem:[%s2] sm:$0xf]
      %v1645 = vld [vmem:[%s2 + $0x4] sm:$0xf]
      %v1646 = vld [vmem:[%s2 + $0x8] sm:$0xf]
      %v1647 = vld [vmem:[%s2 + $0xc] sm:$0xf]
      %v1648 = vld [vmem:[%s2 + $0x10] sm:$0xf]
      %v1649 = vld [vmem:[%s2 + $0x14] sm:$0xf]
      %v1650 = vld [vmem:[%s2 + $0x18] sm:$0xf]
      %v1651 = vld [vmem:[%s2 + $0x1c] sm:$0xf]
      %v1652 = vld [vmem:[%s2 + $0x20] sm:$0xf]
      %v1653 = vld [vmem:[%s2 + $0x24] sm:$0xf]
      %v1654 = vld [vmem:[%s2 + $0x28] sm:$0xf]
      %v1655 = vld [vmem:[%s2 + $0x2c] sm:$0xf]
      %v1656 = vld [vmem:[%s2 + $0x30] sm:$0xf]
      %v1657 = vld [vmem:[%s2 + $0x34] sm:$0xf]
      %v1658 = vld [vmem:[%s2 + $0x38] sm:$0xf]
      %v1659 = vld [vmem:[%s2 + $0x3c] sm:$0xf]
      %v1660 = vld [vmem:[%s2 + $0x40] sm:$0xf]
      %v1661 = vld [vmem:[%s2 + $0x44] sm:$0xf]
      %v1662 = vld [vmem:[%s2 + $0x48] sm:$0xf]
      %v1663 = vld [vmem:[%s2 + $0x4c] sm:$0xf]
      %v1664 = vld [vmem:[%s2 + $0x50] sm:$0xf]
      %v1665 = vld [vmem:[%s2 + $0x54] sm:$0xf]
      %v1666 = vld [vmem:[%s2 + $0x58] sm:$0xf]
      %v1667 = vld [vmem:[%s2 + $0x5c] sm:$0xf]
      %v1668 = vld [vmem:[%s3] sm:$0x1]
      %v1670 = vperm.slane %v1668, 0
      %v1696 = vunpack.c.l.b16 %v1644
      %v1697 = vunpack.c.l.b16 %v1645
      %v1698 = vunpack.c.l.b16 %v1646
      %v1699 = vunpack.c.l.b16 %v1647
      %v1700 = vunpack.c.l.b16 %v1648
      %v1701 = vunpack.c.l.b16 %v1649
      %v1702 = vunpack.c.l.b16 %v1650
      %v1703 = vunpack.c.l.b16 %v1651
      %v1704 = vunpack.c.l.b16 %v1652
      %v1705 = vunpack.c.l.b16 %v1653
      %v1706 = vunpack.c.l.b16 %v1654
      %v1707 = vunpack.c.l.b16 %v1655
      %v1708 = vunpack.c.l.b16 %v1656
      %v1709 = vunpack.c.l.b16 %v1657
      %v1710 = vunpack.c.l.b16 %v1658
      %v1711 = vunpack.c.l.b16 %v1659
      %v1712 = vunpack.c.l.b16 %v1660
      %v1713 = vunpack.c.l.b16 %v1661
      %v1714 = vunpack.c.l.b16 %v1662
      %v1715 = vunpack.c.l.b16 %v1663
      %v1716 = vunpack.c.l.b16 %v1664
      %v1717 = vunpack.c.l.b16 %v1665
      %v1718 = vunpack.c.l.b16 %v1666
      %v1719 = vunpack.c.l.b16 %v1667
      %v1720 = vpack.c.b16 %v1697, %v1696
      %v1721 = vpack.c.b16 %v1699, %v1698
      %v1722 = vpack.c.b16 %v1701, %v1700
      %v1723 = vpack.c.b16 %v1703, %v1702
      %v1724 = vpack.c.b16 %v1705, %v1704
      %v1725 = vpack.c.b16 %v1707, %v1706
      %v1726 = vpack.c.b16 %v1709, %v1708
      %v1727 = vpack.c.b16 %v1711, %v1710
      %v1728 = vpack.c.b16 %v1713, %v1712
      %v1729 = vpack.c.b16 %v1715, %v1714
      %v1730 = vpack.c.b16 %v1717, %v1716
      %v1731 = vpack.c.b16 %v1719, %v1718
      %v1745 = vsel %vm621, %v1643, 0
      %1747 = vmatpush.bf16.msra.mxu0 %v1727
      %1748 = vmatpush.bf16.msra.mxu0 %v1726
      %1749 = vmatpush.bf16.msra.mxu0 %v1725
      %1750 = vmatpush.bf16.msra.mxu0 %v1724
      %1751 = vmatpush.bf16.msra.mxu0 %v1723
      %1752 = vmatpush.bf16.msra.mxu0 %v1722
      %1753 = vmatpush.bf16.msra.mxu0 %v1721
      %1754 = vmatpush.bf16.msra.mxu0 %v1720
      %1755 = vmatmul.bf16.gmra.mxu0 %v1642
      %v1756 = vpop.f32.mrf.mxu0
      %v1757 = vadd.f32 %v1670, %v1756
      %v1758 = vpop.f32.mrf.mxu0
      %v1759 = vadd.f32 %v1670, %v1758
      %1760 = vdwg.mxu0
      %1761 = vmatpush.bf16.msra.mxu0 0
      %1762 = vmatpush.bf16.msra.mxu0 0
      %1763 = vmatpush.bf16.msra.mxu0 0
      %1764 = vmatpush.bf16.msra.mxu0 0
      %1765 = vmatpush.bf16.msra.mxu0 %v1731
      %1766 = vmatpush.bf16.msra.mxu0 %v1730
      %1767 = vmatpush.bf16.msra.mxu0 %v1729
      %1768 = vmatpush.bf16.msra.mxu0 %v1728
      %1769 = vmatmul.bf16.gmra.mxu0 %v1745
      %v1770 = vpop.f32.mrf.mxu0
      %v1771 = vadd.f32 %v1757, %v1770
      %v1772 = vpop.f32.mrf.mxu0
      %v1773 = vadd.f32 %v1759, %v1772
      %1774 = vdwg.mxu0
      %v1775 = vmax.f32 %v1771, 0.0
      %v1776 = vmax.f32 %v1773, 0.0
      %v1778 = vsel %vm659, %v1776, 0
      %1780 = vmatpush.msra.mxu0 0.0
      %1781 = vmatpush.msra.mxu0 0.0
      %1782 = vmatpush.msra.mxu0 0.0
      %1783 = vmatpush.msra.mxu0 0.0
      %1784 = vmatpush.msra.mxu0 0.0
      %1785 = vmatpush.msra.mxu0 0.0
      %1786 = vmatpush.msra.mxu0 0.0
      %1787 = vmatpush.msra.mxu0 0.0
      %1788 = vmatpush.msra.mxu0 0.0
      %1789 = vmatpush.msra.mxu0 0.0
      %1790 = vmatpush.msra.mxu0 0.0
      %1791 = vmatpush.msra.mxu0 0.0
      %1792 = vmatpush.msra.mxu0 0.0
      %1793 = vmatpush.msra.mxu0 0.0
      %1794 = vmatpush.msra.mxu0 %v1778
      %1795 = vmatpush.msra.mxu0 %v1775
      %1796 = vmatmul.f32.gmra.mxu0 %v657
      %v1797 = vpop.f32.mrf.mxu0
      %v1798 = vadd.f32 0.0, %v1797
      %1799 = vdwg.mxu0
      %1800 = vmatpush.msra.mxu0 0.0
      %1801 = vmatpush.msra.mxu0 0.0
      %1802 = vmatpush.msra.mxu0 0.0
      %1803 = vmatpush.msra.mxu0 0.0
      %1804 = vmatpush.msra.mxu0 0.0
      %1805 = vmatpush.msra.mxu0 0.0
      %1806 = vmatpush.msra.mxu0 0.0
      %1807 = vmatpush.msra.mxu0 0.0
      %1808 = vmatpush.msra.mxu0 0.0
      %1809 = vmatpush.msra.mxu0 0.0
      %1810 = vmatpush.msra.mxu0 0.0
      %1811 = vmatpush.msra.mxu0 0.0
      %1812 = vmatpush.msra.mxu0 0.0
      %1813 = vmatpush.msra.mxu0 0.0
      %1814 = vmatpush.msra.mxu0 %v1778
      %1815 = vmatpush.msra.mxu0 %v1775
      %1816 = vmatmul.f32.gmra.mxu0 %v684
      %v1817 = vpop.f32.mrf.mxu0
      %v1818 = vadd.f32 0.0, %v1817
      %1819 = vdwg.mxu0
      %1821 = vrot.lane.b32.xlu0 %v1818, 8
      %v1822 = vpop.permute.xlu0 %1821
      %v1824 = vsel %vm710, %v1798, %v1822
      %s1825 = scalar_lea.vmem [#allocation2], 24
      %1826 = vst.msk [vmem:[%s1825] sm:$0x7f] %vm712, %v1824
      %v1827 = vld [vmem:[%s1472] sm:$0xff]
      %v1828 = vld [vmem:[%s1472 + $0x8] sm:$0x7f]
      %v1829 = vld [vmem:[%s1472 + $0x1] sm:$0xff]
      %v1830 = vld [vmem:[%s1472 + $0x9] sm:$0x7f]
      %v1831 = vld [vmem:[%s1477] sm:$0xff]
      %v1832 = vld [vmem:[%s1477 + $0x8] sm:$0x7f]
      %v1833 = vld [vmem:[%s1477 + $0x1] sm:$0xff]
      %v1834 = vld [vmem:[%s1477 + $0x9] sm:$0x7f]
      %v1835 = vld [vmem:[%s1482] sm:$0xff]
      %v1836 = vld [vmem:[%s1482 + $0x8] sm:$0x7f]
      %v1837 = vld [vmem:[%s1482 + $0x1] sm:$0xff]
      %v1838 = vld [vmem:[%s1482 + $0x9] sm:$0x7f]
      %v1839 = vld [vmem:[%s1487] sm:$0xff]
      %v1840 = vld [vmem:[%s1487 + $0x8] sm:$0x7f]
      %v1841 = vld [vmem:[%s1487 + $0x1] sm:$0xff]
      %v1842 = vld [vmem:[%s1487 + $0x9] sm:$0x7f]
      %s1843 = scalar_lea.vmem %s298, 320
      %v1844 = vld [vmem:[%s1843] sm:$0xff]
      %v1845 = vld [vmem:[%s1843 + $0x8] sm:$0x7f]
      %v1846 = vld [vmem:[%s1843 + $0x1] sm:$0xff]
      %v1847 = vld [vmem:[%s1843 + $0x9] sm:$0x7f]
      %s1848 = scalar_lea.vmem %s298, 336
      %v1849 = vld [vmem:[%s1848] sm:$0xff]
      %v1850 = vld [vmem:[%s1848 + $0x8] sm:$0x7f]
      %v1851 = vld [vmem:[%s1848 + $0x1] sm:$0xff]
      %v1852 = vld [vmem:[%s1848 + $0x9] sm:$0x7f]
      %s1853 = scalar_lea.vmem %s298, 352
      %v1854 = vld [vmem:[%s1853] sm:$0xff]
      %v1855 = vld [vmem:[%s1853 + $0x8] sm:$0x7f]
      %v1856 = vld [vmem:[%s1853 + $0x1] sm:$0xff]
      %v1857 = vld [vmem:[%s1853 + $0x9] sm:$0x7f]
      %s1858 = scalar_lea.vmem %s298, 368
      %v1859 = vld [vmem:[%s1858] sm:$0xff]
      %v1860 = vld [vmem:[%s1858 + $0x8] sm:$0x7f]
      %v1861 = vld [vmem:[%s1858 + $0x1] sm:$0xff]
      %v1862 = vld [vmem:[%s1858 + $0x9] sm:$0x7f]
      %1865 = vrot.lane.b32.xlu0 %v1829, 12
      %v1866 = vpop.permute.xlu0 %1865
      %1867 = vrot.lane.b32.xlu0 %v1830, 12
      %v1868 = vpop.permute.xlu0 %1867
      %1873 = vrot.lane.b32.xlu0 %v1831, 24
      %v1874 = vpop.permute.xlu0 %1873
      %1875 = vrot.lane.b32.xlu0 %v1832, 24
      %v1876 = vpop.permute.xlu0 %1875
      %1881 = vrot.lane.b32.xlu0 %v1833, 36
      %v1882 = vpop.permute.xlu0 %1881
      %1883 = vrot.lane.b32.xlu0 %v1834, 36
      %v1884 = vpop.permute.xlu0 %1883
      %1889 = vrot.lane.b32.xlu0 %v1835, 48
      %v1890 = vpop.permute.xlu0 %1889
      %1891 = vrot.lane.b32.xlu0 %v1836, 48
      %v1892 = vpop.permute.xlu0 %1891
      %1897 = vrot.lane.b32.xlu0 %v1837, 60
      %v1898 = vpop.permute.xlu0 %1897
      %1899 = vrot.lane.b32.xlu0 %v1838, 60
      %v1900 = vpop.permute.xlu0 %1899
      %1905 = vrot.lane.b32.xlu0 %v1839, 72
      %v1906 = vpop.permute.xlu0 %1905
      %1907 = vrot.lane.b32.xlu0 %v1840, 72
      %v1908 = vpop.permute.xlu0 %1907
      %1913 = vrot.lane.b32.xlu0 %v1841, 84
      %v1914 = vpop.permute.xlu0 %1913
      %1915 = vrot.lane.b32.xlu0 %v1842, 84
      %v1916 = vpop.permute.xlu0 %1915
      %1921 = vrot.lane.b32.xlu0 %v1844, 96
      %v1922 = vpop.permute.xlu0 %1921
      %1923 = vrot.lane.b32.xlu0 %v1845, 96
      %v1924 = vpop.permute.xlu0 %1923
      %1929 = vrot.lane.b32.xlu0 %v1846, 108
      %v1930 = vpop.permute.xlu0 %1929
      %1931 = vrot.lane.b32.xlu0 %v1847, 108
      %v1932 = vpop.permute.xlu0 %1931
      %1937 = vrot.lane.b32.xlu0 %v1849, 120
      %v1938 = vpop.permute.xlu0 %1937
      %1939 = vrot.lane.b32.xlu0 %v1850, 120
      %v1940 = vpop.permute.xlu0 %1939
      %1945 = vrot.lane.b32.xlu0 %v1851, 4
      %v1946 = vpop.permute.xlu0 %1945
      %1947 = vrot.lane.b32.xlu0 %v1852, 4
      %v1948 = vpop.permute.xlu0 %1947
      %1953 = vrot.lane.b32.xlu0 %v1854, 16
      %v1954 = vpop.permute.xlu0 %1953
      %1955 = vrot.lane.b32.xlu0 %v1855, 16
      %v1956 = vpop.permute.xlu0 %1955
      %1961 = vrot.lane.b32.xlu0 %v1856, 28
      %v1962 = vpop.permute.xlu0 %1961
      %1963 = vrot.lane.b32.xlu0 %v1857, 28
      %v1964 = vpop.permute.xlu0 %1963
      %1969 = vrot.lane.b32.xlu0 %v1859, 40
      %v1970 = vpop.permute.xlu0 %1969
      %1971 = vrot.lane.b32.xlu0 %v1860, 40
      %v1972 = vpop.permute.xlu0 %1971
      %1977 = vrot.lane.b32.xlu0 %v1861, 52
      %v1978 = vpop.permute.xlu0 %1977
      %1979 = vrot.lane.b32.xlu0 %v1862, 52
      %v1980 = vpop.permute.xlu0 %1979
      %v1983 = vsel %vm474, %v1827, %v1866
      %v1984 = vsel %vm474, %v1828, %v1868
      %v1985 = vsel %vm477, %v1983, %v1874
      %v1986 = vsel %vm477, %v1984, %v1876
      %v1987 = vsel %vm480, %v1985, %v1882
      %v1988 = vsel %vm480, %v1986, %v1884
      %v1989 = vsel %vm483, %v1987, %v1890
      %v1990 = vsel %vm483, %v1988, %v1892
      %v1991 = vsel %vm486, %v1989, %v1898
      %v1992 = vsel %vm486, %v1990, %v1900
      %v1993 = vsel %vm489, %v1991, %v1906
      %v1994 = vsel %vm489, %v1992, %v1908
      %v1995 = vsel %vm492, %v1993, %v1914
      %v1996 = vsel %vm492, %v1994, %v1916
      %v1997 = vsel %vm495, %v1995, %v1922
      %v1998 = vsel %vm495, %v1996, %v1924
      %v1999 = vsel %vm498, %v1997, %v1930
      %v2000 = vsel %vm498, %v1998, %v1932
      %v2001 = vsel %vm501, %v1999, %v1938
      %v2002 = vsel %vm501, %v2000, %v1940
      %v2003 = vsel %vm504, %v1938, %v1946
      %v2004 = vsel %vm504, %v1940, %v1948
      %v2005 = vsel %vm507, %v2003, %v1954
      %v2006 = vsel %vm507, %v2004, %v1956
      %v2007 = vsel %vm510, %v2005, %v1962
      %v2008 = vsel %vm510, %v2006, %v1964
      %v2009 = vsel %vm513, %v2007, %v1970
      %v2010 = vsel %vm513, %v2008, %v1972
      %v2011 = vsel %vm516, %v2009, %v1978
      %v2012 = vsel %vm516, %v2010, %v1980
      %v2013 = vpack.c.bf16 %v2002, %v2001
      %v2014 = vpack.c.bf16 %v2012, %v2011
      %v2015 = vld [vmem:[%s2] sm:$0xf]
      %v2016 = vld [vmem:[%s2 + $0x4] sm:$0xf]
      %v2017 = vld [vmem:[%s2 + $0x8] sm:$0xf]
      %v2018 = vld [vmem:[%s2 + $0xc] sm:$0xf]
      %v2019 = vld [vmem:[%s2 + $0x10] sm:$0xf]
      %v2020 = vld [vmem:[%s2 + $0x14] sm:$0xf]
      %v2021 = vld [vmem:[%s2 + $0x18] sm:$0xf]
      %v2022 = vld [vmem:[%s2 + $0x1c] sm:$0xf]
      %v2023 = vld [vmem:[%s2 + $0x20] sm:$0xf]
      %v2024 = vld [vmem:[%s2 + $0x24] sm:$0xf]
      %v2025 = vld [vmem:[%s2 + $0x28] sm:$0xf]
      %v2026 = vld [vmem:[%s2 + $0x2c] sm:$0xf]
      %v2027 = vld [vmem:[%s2 + $0x30] sm:$0xf]
      %v2028 = vld [vmem:[%s2 + $0x34] sm:$0xf]
      %v2029 = vld [vmem:[%s2 + $0x38] sm:$0xf]
      %v2030 = vld [vmem:[%s2 + $0x3c] sm:$0xf]
      %v2031 = vld [vmem:[%s2 + $0x40] sm:$0xf]
      %v2032 = vld [vmem:[%s2 + $0x44] sm:$0xf]
      %v2033 = vld [vmem:[%s2 + $0x48] sm:$0xf]
      %v2034 = vld [vmem:[%s2 + $0x4c] sm:$0xf]
      %v2035 = vld [vmem:[%s2 + $0x50] sm:$0xf]
      %v2036 = vld [vmem:[%s2 + $0x54] sm:$0xf]
      %v2037 = vld [vmem:[%s2 + $0x58] sm:$0xf]
      %v2038 = vld [vmem:[%s2 + $0x5c] sm:$0xf]
      %v2039 = vld [vmem:[%s3] sm:$0x1]
      %v2041 = vperm.slane %v2039, 0
      %v2067 = vunpack.c.l.b16 %v2015
      %v2068 = vunpack.c.l.b16 %v2016
      %v2069 = vunpack.c.l.b16 %v2017
      %v2070 = vunpack.c.l.b16 %v2018
      %v2071 = vunpack.c.l.b16 %v2019
      %v2072 = vunpack.c.l.b16 %v2020
      %v2073 = vunpack.c.l.b16 %v2021
      %v2074 = vunpack.c.l.b16 %v2022
      %v2075 = vunpack.c.l.b16 %v2023
      %v2076 = vunpack.c.l.b16 %v2024
      %v2077 = vunpack.c.l.b16 %v2025
      %v2078 = vunpack.c.l.b16 %v2026
      %v2079 = vunpack.c.l.b16 %v2027
      %v2080 = vunpack.c.l.b16 %v2028
      %v2081 = vunpack.c.l.b16 %v2029
      %v2082 = vunpack.c.l.b16 %v2030
      %v2083 = vunpack.c.l.b16 %v2031
      %v2084 = vunpack.c.l.b16 %v2032
      %v2085 = vunpack.c.l.b16 %v2033
      %v2086 = vunpack.c.l.b16 %v2034
      %v2087 = vunpack.c.l.b16 %v2035
      %v2088 = vunpack.c.l.b16 %v2036
      %v2089 = vunpack.c.l.b16 %v2037
      %v2090 = vunpack.c.l.b16 %v2038
      %v2091 = vpack.c.b16 %v2068, %v2067
      %v2092 = vpack.c.b16 %v2070, %v2069
      %v2093 = vpack.c.b16 %v2072, %v2071
      %v2094 = vpack.c.b16 %v2074, %v2073
      %v2095 = vpack.c.b16 %v2076, %v2075
      %v2096 = vpack.c.b16 %v2078, %v2077
      %v2097 = vpack.c.b16 %v2080, %v2079
      %v2098 = vpack.c.b16 %v2082, %v2081
      %v2099 = vpack.c.b16 %v2084, %v2083
      %v2100 = vpack.c.b16 %v2086, %v2085
      %v2101 = vpack.c.b16 %v2088, %v2087
      %v2102 = vpack.c.b16 %v2090, %v2089
      %v2116 = vsel %vm621, %v2014, 0
      %2118 = vmatpush.bf16.msra.mxu0 %v2098
      %2119 = vmatpush.bf16.msra.mxu0 %v2097
      %2120 = vmatpush.bf16.msra.mxu0 %v2096
      %2121 = vmatpush.bf16.msra.mxu0 %v2095
      %2122 = vmatpush.bf16.msra.mxu0 %v2094
      %2123 = vmatpush.bf16.msra.mxu0 %v2093
      %2124 = vmatpush.bf16.msra.mxu0 %v2092
      %2125 = vmatpush.bf16.msra.mxu0 %v2091
      %2126 = vmatmul.bf16.gmra.mxu0 %v2013
      %v2127 = vpop.f32.mrf.mxu0
      %v2128 = vadd.f32 %v2041, %v2127
      %v2129 = vpop.f32.mrf.mxu0
      %v2130 = vadd.f32 %v2041, %v2129
      %2131 = vdwg.mxu0
      %2132 = vmatpush.bf16.msra.mxu0 0
      %2133 = vmatpush.bf16.msra.mxu0 0
      %2134 = vmatpush.bf16.msra.mxu0 0
      %2135 = vmatpush.bf16.msra.mxu0 0
      %2136 = vmatpush.bf16.msra.mxu0 %v2102
      %2137 = vmatpush.bf16.msra.mxu0 %v2101
      %2138 = vmatpush.bf16.msra.mxu0 %v2100
      %2139 = vmatpush.bf16.msra.mxu0 %v2099
      %2140 = vmatmul.bf16.gmra.mxu0 %v2116
      %v2141 = vpop.f32.mrf.mxu0
      %v2142 = vadd.f32 %v2128, %v2141
      %v2143 = vpop.f32.mrf.mxu0
      %v2144 = vadd.f32 %v2130, %v2143
      %2145 = vdwg.mxu0
      %v2146 = vmax.f32 %v2142, 0.0
      %v2147 = vmax.f32 %v2144, 0.0
      %v2149 = vsel %vm659, %v2147, 0
      %2151 = vmatpush.msra.mxu0 0.0
      %2152 = vmatpush.msra.mxu0 0.0
      %2153 = vmatpush.msra.mxu0 0.0
      %2154 = vmatpush.msra.mxu0 0.0
      %2155 = vmatpush.msra.mxu0 0.0
      %2156 = vmatpush.msra.mxu0 0.0
      %2157 = vmatpush.msra.mxu0 0.0
      %2158 = vmatpush.msra.mxu0 0.0
      %2159 = vmatpush.msra.mxu0 0.0
      %2160 = vmatpush.msra.mxu0 0.0
      %2161 = vmatpush.msra.mxu0 0.0
      %2162 = vmatpush.msra.mxu0 0.0
      %2163 = vmatpush.msra.mxu0 0.0
      %2164 = vmatpush.msra.mxu0 0.0
      %2165 = vmatpush.msra.mxu0 %v2149
      %2166 = vmatpush.msra.mxu0 %v2146
      %2167 = vmatmul.f32.gmra.mxu0 %v657
      %v2168 = vpop.f32.mrf.mxu0
      %v2169 = vadd.f32 0.0, %v2168
      %2170 = vdwg.mxu0
      %2171 = vmatpush.msra.mxu0 0.0
      %2172 = vmatpush.msra.mxu0 0.0
      %2173 = vmatpush.msra.mxu0 0.0
      %2174 = vmatpush.msra.mxu0 0.0
      %2175 = vmatpush.msra.mxu0 0.0
      %2176 = vmatpush.msra.mxu0 0.0
      %2177 = vmatpush.msra.mxu0 0.0
      %2178 = vmatpush.msra.mxu0 0.0
      %2179 = vmatpush.msra.mxu0 0.0
      %2180 = vmatpush.msra.mxu0 0.0
      %2181 = vmatpush.msra.mxu0 0.0
      %2182 = vmatpush.msra.mxu0 0.0
      %2183 = vmatpush.msra.mxu0 0.0
      %2184 = vmatpush.msra.mxu0 0.0
      %2185 = vmatpush.msra.mxu0 %v2149
      %2186 = vmatpush.msra.mxu0 %v2146
      %2187 = vmatmul.f32.gmra.mxu0 %v684
      %v2188 = vpop.f32.mrf.mxu0
      %v2189 = vadd.f32 0.0, %v2188
      %2190 = vdwg.mxu0
      %2192 = vrot.lane.b32.xlu0 %v2189, 8
      %v2193 = vpop.permute.xlu0 %2192
      %v2195 = vsel %vm710, %v2169, %v2193
      %s2196 = scalar_lea.vmem [#allocation2], 32
      %2197 = vst.msk [vmem:[%s2196] sm:$0x7f] %vm712, %v2195
      %v2198 = vld [vmem:[%s1843] sm:$0xff]
      %v2199 = vld [vmem:[%s1843 + $0x8] sm:$0x7f]
      %v2200 = vld [vmem:[%s1843 + $0x1] sm:$0xff]
      %v2201 = vld [vmem:[%s1843 + $0x9] sm:$0x7f]
      %v2202 = vld [vmem:[%s1848] sm:$0xff]
      %v2203 = vld [vmem:[%s1848 + $0x8] sm:$0x7f]
      %v2204 = vld [vmem:[%s1848 + $0x1] sm:$0xff]
      %v2205 = vld [vmem:[%s1848 + $0x9] sm:$0x7f]
      %v2206 = vld [vmem:[%s1853] sm:$0xff]
      %v2207 = vld [vmem:[%s1853 + $0x8] sm:$0x7f]
      %v2208 = vld [vmem:[%s1853 + $0x1] sm:$0xff]
      %v2209 = vld [vmem:[%s1853 + $0x9] sm:$0x7f]
      %v2210 = vld [vmem:[%s1858] sm:$0xff]
      %v2211 = vld [vmem:[%s1858 + $0x8] sm:$0x7f]
      %v2212 = vld [vmem:[%s1858 + $0x1] sm:$0xff]
      %v2213 = vld [vmem:[%s1858 + $0x9] sm:$0x7f]
      %s2214 = scalar_lea.vmem %s298, 384
      %v2215 = vld [vmem:[%s2214] sm:$0xff]
      %v2216 = vld [vmem:[%s2214 + $0x8] sm:$0x7f]
      %v2217 = vld [vmem:[%s2214 + $0x1] sm:$0xff]
      %v2218 = vld [vmem:[%s2214 + $0x9] sm:$0x7f]
      %s2219 = scalar_lea.vmem %s298, 400
      %v2220 = vld [vmem:[%s2219] sm:$0xff]
      %v2221 = vld [vmem:[%s2219 + $0x8] sm:$0x7f]
      %v2222 = vld [vmem:[%s2219 + $0x1] sm:$0xff]
      %v2223 = vld [vmem:[%s2219 + $0x9] sm:$0x7f]
      %s2224 = scalar_lea.vmem %s298, 416
      %v2225 = vld [vmem:[%s2224] sm:$0xff]
      %v2226 = vld [vmem:[%s2224 + $0x8] sm:$0x7f]
      %v2227 = vld [vmem:[%s2224 + $0x1] sm:$0xff]
      %v2228 = vld [vmem:[%s2224 + $0x9] sm:$0x7f]
      %s2229 = scalar_lea.vmem %s298, 432
      %v2230 = vld [vmem:[%s2229] sm:$0xff]
      %v2231 = vld [vmem:[%s2229 + $0x8] sm:$0x7f]
      %v2232 = vld [vmem:[%s2229 + $0x1] sm:$0xff]
      %v2233 = vld [vmem:[%s2229 + $0x9] sm:$0x7f]
      %2236 = vrot.lane.b32.xlu0 %v2200, 12
      %v2237 = vpop.permute.xlu0 %2236
      %2238 = vrot.lane.b32.xlu0 %v2201, 12
      %v2239 = vpop.permute.xlu0 %2238
      %2244 = vrot.lane.b32.xlu0 %v2202, 24
      %v2245 = vpop.permute.xlu0 %2244
      %2246 = vrot.lane.b32.xlu0 %v2203, 24
      %v2247 = vpop.permute.xlu0 %2246
      %2252 = vrot.lane.b32.xlu0 %v2204, 36
      %v2253 = vpop.permute.xlu0 %2252
      %2254 = vrot.lane.b32.xlu0 %v2205, 36
      %v2255 = vpop.permute.xlu0 %2254
      %2260 = vrot.lane.b32.xlu0 %v2206, 48
      %v2261 = vpop.permute.xlu0 %2260
      %2262 = vrot.lane.b32.xlu0 %v2207, 48
      %v2263 = vpop.permute.xlu0 %2262
      %2268 = vrot.lane.b32.xlu0 %v2208, 60
      %v2269 = vpop.permute.xlu0 %2268
      %2270 = vrot.lane.b32.xlu0 %v2209, 60
      %v2271 = vpop.permute.xlu0 %2270
      %2276 = vrot.lane.b32.xlu0 %v2210, 72
      %v2277 = vpop.permute.xlu0 %2276
      %2278 = vrot.lane.b32.xlu0 %v2211, 72
      %v2279 = vpop.permute.xlu0 %2278
      %2284 = vrot.lane.b32.xlu0 %v2212, 84
      %v2285 = vpop.permute.xlu0 %2284
      %2286 = vrot.lane.b32.xlu0 %v2213, 84
      %v2287 = vpop.permute.xlu0 %2286
      %2292 = vrot.lane.b32.xlu0 %v2215, 96
      %v2293 = vpop.permute.xlu0 %2292
      %2294 = vrot.lane.b32.xlu0 %v2216, 96
      %v2295 = vpop.permute.xlu0 %2294
      %2300 = vrot.lane.b32.xlu0 %v2217, 108
      %v2301 = vpop.permute.xlu0 %2300
      %2302 = vrot.lane.b32.xlu0 %v2218, 108
      %v2303 = vpop.permute.xlu0 %2302
      %2308 = vrot.lane.b32.xlu0 %v2220, 120
      %v2309 = vpop.permute.xlu0 %2308
      %2310 = vrot.lane.b32.xlu0 %v2221, 120
      %v2311 = vpop.permute.xlu0 %2310
      %2316 = vrot.lane.b32.xlu0 %v2222, 4
      %v2317 = vpop.permute.xlu0 %2316
      %2318 = vrot.lane.b32.xlu0 %v2223, 4
      %v2319 = vpop.permute.xlu0 %2318
      %2324 = vrot.lane.b32.xlu0 %v2225, 16
      %v2325 = vpop.permute.xlu0 %2324
      %2326 = vrot.lane.b32.xlu0 %v2226, 16
      %v2327 = vpop.permute.xlu0 %2326
      %2332 = vrot.lane.b32.xlu0 %v2227, 28
      %v2333 = vpop.permute.xlu0 %2332
      %2334 = vrot.lane.b32.xlu0 %v2228, 28
      %v2335 = vpop.permute.xlu0 %2334
      %2340 = vrot.lane.b32.xlu0 %v2230, 40
      %v2341 = vpop.permute.xlu0 %2340
      %2342 = vrot.lane.b32.xlu0 %v2231, 40
      %v2343 = vpop.permute.xlu0 %2342
      %2348 = vrot.lane.b32.xlu0 %v2232, 52
      %v2349 = vpop.permute.xlu0 %2348
      %2350 = vrot.lane.b32.xlu0 %v2233, 52
      %v2351 = vpop.permute.xlu0 %2350
      %v2354 = vsel %vm474, %v2198, %v2237
      %v2355 = vsel %vm474, %v2199, %v2239
      %v2356 = vsel %vm477, %v2354, %v2245
      %v2357 = vsel %vm477, %v2355, %v2247
      %v2358 = vsel %vm480, %v2356, %v2253
      %v2359 = vsel %vm480, %v2357, %v2255
      %v2360 = vsel %vm483, %v2358, %v2261
      %v2361 = vsel %vm483, %v2359, %v2263
      %v2362 = vsel %vm486, %v2360, %v2269
      %v2363 = vsel %vm486, %v2361, %v2271
      %v2364 = vsel %vm489, %v2362, %v2277
      %v2365 = vsel %vm489, %v2363, %v2279
      %v2366 = vsel %vm492, %v2364, %v2285
      %v2367 = vsel %vm492, %v2365, %v2287
      %v2368 = vsel %vm495, %v2366, %v2293
      %v2369 = vsel %vm495, %v2367, %v2295
      %v2370 = vsel %vm498, %v2368, %v2301
      %v2371 = vsel %vm498, %v2369, %v2303
      %v2372 = vsel %vm501, %v2370, %v2309
      %v2373 = vsel %vm501, %v2371, %v2311
      %v2374 = vsel %vm504, %v2309, %v2317
      %v2375 = vsel %vm504, %v2311, %v2319
      %v2376 = vsel %vm507, %v2374, %v2325
      %v2377 = vsel %vm507, %v2375, %v2327
      %v2378 = vsel %vm510, %v2376, %v2333
      %v2379 = vsel %vm510, %v2377, %v2335
      %v2380 = vsel %vm513, %v2378, %v2341
      %v2381 = vsel %vm513, %v2379, %v2343
      %v2382 = vsel %vm516, %v2380, %v2349
      %v2383 = vsel %vm516, %v2381, %v2351
      %v2384 = vpack.c.bf16 %v2373, %v2372
      %v2385 = vpack.c.bf16 %v2383, %v2382
      %v2386 = vld [vmem:[%s2] sm:$0xf]
      %v2387 = vld [vmem:[%s2 + $0x4] sm:$0xf]
      %v2388 = vld [vmem:[%s2 + $0x8] sm:$0xf]
      %v2389 = vld [vmem:[%s2 + $0xc] sm:$0xf]
      %v2390 = vld [vmem:[%s2 + $0x10] sm:$0xf]
      %v2391 = vld [vmem:[%s2 + $0x14] sm:$0xf]
      %v2392 = vld [vmem:[%s2 + $0x18] sm:$0xf]
      %v2393 = vld [vmem:[%s2 + $0x1c] sm:$0xf]
      %v2394 = vld [vmem:[%s2 + $0x20] sm:$0xf]
      %v2395 = vld [vmem:[%s2 + $0x24] sm:$0xf]
      %v2396 = vld [vmem:[%s2 + $0x28] sm:$0xf]
      %v2397 = vld [vmem:[%s2 + $0x2c] sm:$0xf]
      %v2398 = vld [vmem:[%s2 + $0x30] sm:$0xf]
      %v2399 = vld [vmem:[%s2 + $0x34] sm:$0xf]
      %v2400 = vld [vmem:[%s2 + $0x38] sm:$0xf]
      %v2401 = vld [vmem:[%s2 + $0x3c] sm:$0xf]
      %v2402 = vld [vmem:[%s2 + $0x40] sm:$0xf]
      %v2403 = vld [vmem:[%s2 + $0x44] sm:$0xf]
      %v2404 = vld [vmem:[%s2 + $0x48] sm:$0xf]
      %v2405 = vld [vmem:[%s2 + $0x4c] sm:$0xf]
      %v2406 = vld [vmem:[%s2 + $0x50] sm:$0xf]
      %v2407 = vld [vmem:[%s2 + $0x54] sm:$0xf]
      %v2408 = vld [vmem:[%s2 + $0x58] sm:$0xf]
      %v2409 = vld [vmem:[%s2 + $0x5c] sm:$0xf]
      %v2410 = vld [vmem:[%s3] sm:$0x1]
      %v2412 = vperm.slane %v2410, 0
      %v2438 = vunpack.c.l.b16 %v2386
      %v2439 = vunpack.c.l.b16 %v2387
      %v2440 = vunpack.c.l.b16 %v2388
      %v2441 = vunpack.c.l.b16 %v2389
      %v2442 = vunpack.c.l.b16 %v2390
      %v2443 = vunpack.c.l.b16 %v2391
      %v2444 = vunpack.c.l.b16 %v2392
      %v2445 = vunpack.c.l.b16 %v2393
      %v2446 = vunpack.c.l.b16 %v2394
      %v2447 = vunpack.c.l.b16 %v2395
      %v2448 = vunpack.c.l.b16 %v2396
      %v2449 = vunpack.c.l.b16 %v2397
      %v2450 = vunpack.c.l.b16 %v2398
      %v2451 = vunpack.c.l.b16 %v2399
      %v2452 = vunpack.c.l.b16 %v2400
      %v2453 = vunpack.c.l.b16 %v2401
      %v2454 = vunpack.c.l.b16 %v2402
      %v2455 = vunpack.c.l.b16 %v2403
      %v2456 = vunpack.c.l.b16 %v2404
      %v2457 = vunpack.c.l.b16 %v2405
      %v2458 = vunpack.c.l.b16 %v2406
      %v2459 = vunpack.c.l.b16 %v2407
      %v2460 = vunpack.c.l.b16 %v2408
      %v2461 = vunpack.c.l.b16 %v2409
      %v2462 = vpack.c.b16 %v2439, %v2438
      %v2463 = vpack.c.b16 %v2441, %v2440
      %v2464 = vpack.c.b16 %v2443, %v2442
      %v2465 = vpack.c.b16 %v2445, %v2444
      %v2466 = vpack.c.b16 %v2447, %v2446
      %v2467 = vpack.c.b16 %v2449, %v2448
      %v2468 = vpack.c.b16 %v2451, %v2450
      %v2469 = vpack.c.b16 %v2453, %v2452
      %v2470 = vpack.c.b16 %v2455, %v2454
      %v2471 = vpack.c.b16 %v2457, %v2456
      %v2472 = vpack.c.b16 %v2459, %v2458
      %v2473 = vpack.c.b16 %v2461, %v2460
      %v2487 = vsel %vm621, %v2385, 0
      %2489 = vmatpush.bf16.msra.mxu0 %v2469
      %2490 = vmatpush.bf16.msra.mxu0 %v2468
      %2491 = vmatpush.bf16.msra.mxu0 %v2467
      %2492 = vmatpush.bf16.msra.mxu0 %v2466
      %2493 = vmatpush.bf16.msra.mxu0 %v2465
      %2494 = vmatpush.bf16.msra.mxu0 %v2464
      %2495 = vmatpush.bf16.msra.mxu0 %v2463
      %2496 = vmatpush.bf16.msra.mxu0 %v2462
      %2497 = vmatmul.bf16.gmra.mxu0 %v2384
      %v2498 = vpop.f32.mrf.mxu0
      %v2499 = vadd.f32 %v2412, %v2498
      %v2500 = vpop.f32.mrf.mxu0
      %v2501 = vadd.f32 %v2412, %v2500
      %2502 = vdwg.mxu0
      %2503 = vmatpush.bf16.msra.mxu0 0
      %2504 = vmatpush.bf16.msra.mxu0 0
      %2505 = vmatpush.bf16.msra.mxu0 0
      %2506 = vmatpush.bf16.msra.mxu0 0
      %2507 = vmatpush.bf16.msra.mxu0 %v2473
      %2508 = vmatpush.bf16.msra.mxu0 %v2472
      %2509 = vmatpush.bf16.msra.mxu0 %v2471
      %2510 = vmatpush.bf16.msra.mxu0 %v2470
      %2511 = vmatmul.bf16.gmra.mxu0 %v2487
      %v2512 = vpop.f32.mrf.mxu0
      %v2513 = vadd.f32 %v2499, %v2512
      %v2514 = vpop.f32.mrf.mxu0
      %v2515 = vadd.f32 %v2501, %v2514
      %2516 = vdwg.mxu0
      %v2517 = vmax.f32 %v2513, 0.0
      %v2518 = vmax.f32 %v2515, 0.0
      %v2520 = vsel %vm659, %v2518, 0
      %2522 = vmatpush.msra.mxu0 0.0
      %2523 = vmatpush.msra.mxu0 0.0
      %2524 = vmatpush.msra.mxu0 0.0
      %2525 = vmatpush.msra.mxu0 0.0
      %2526 = vmatpush.msra.mxu0 0.0
      %2527 = vmatpush.msra.mxu0 0.0
      %2528 = vmatpush.msra.mxu0 0.0
      %2529 = vmatpush.msra.mxu0 0.0
      %2530 = vmatpush.msra.mxu0 0.0
      %2531 = vmatpush.msra.mxu0 0.0
      %2532 = vmatpush.msra.mxu0 0.0
      %2533 = vmatpush.msra.mxu0 0.0
      %2534 = vmatpush.msra.mxu0 0.0
      %2535 = vmatpush.msra.mxu0 0.0
      %2536 = vmatpush.msra.mxu0 %v2520
      %2537 = vmatpush.msra.mxu0 %v2517
      %2538 = vmatmul.f32.gmra.mxu0 %v657
      %v2539 = vpop.f32.mrf.mxu0
      %v2540 = vadd.f32 0.0, %v2539
      %2541 = vdwg.mxu0
      %2542 = vmatpush.msra.mxu0 0.0
      %2543 = vmatpush.msra.mxu0 0.0
      %2544 = vmatpush.msra.mxu0 0.0
      %2545 = vmatpush.msra.mxu0 0.0
      %2546 = vmatpush.msra.mxu0 0.0
      %2547 = vmatpush.msra.mxu0 0.0
      %2548 = vmatpush.msra.mxu0 0.0
      %2549 = vmatpush.msra.mxu0 0.0
      %2550 = vmatpush.msra.mxu0 0.0
      %2551 = vmatpush.msra.mxu0 0.0
      %2552 = vmatpush.msra.mxu0 0.0
      %2553 = vmatpush.msra.mxu0 0.0
      %2554 = vmatpush.msra.mxu0 0.0
      %2555 = vmatpush.msra.mxu0 0.0
      %2556 = vmatpush.msra.mxu0 %v2520
      %2557 = vmatpush.msra.mxu0 %v2517
      %2558 = vmatmul.f32.gmra.mxu0 %v684
      %v2559 = vpop.f32.mrf.mxu0
      %v2560 = vadd.f32 0.0, %v2559
      %2561 = vdwg.mxu0
      %2563 = vrot.lane.b32.xlu0 %v2560, 8
      %v2564 = vpop.permute.xlu0 %2563
      %v2566 = vsel %vm710, %v2540, %v2564
      %s2567 = scalar_lea.vmem [#allocation2], 40
      %2568 = vst.msk [vmem:[%s2567] sm:$0x7f] %vm712, %v2566
      %v2569 = vld [vmem:[%s2214] sm:$0xff]
      %v2570 = vld [vmem:[%s2214 + $0x8] sm:$0x7f]
      %v2571 = vld [vmem:[%s2214 + $0x1] sm:$0xff]
      %v2572 = vld [vmem:[%s2214 + $0x9] sm:$0x7f]
      %v2573 = vld [vmem:[%s2219] sm:$0xff]
      %v2574 = vld [vmem:[%s2219 + $0x8] sm:$0x7f]
      %v2575 = vld [vmem:[%s2219 + $0x1] sm:$0xff]
      %v2576 = vld [vmem:[%s2219 + $0x9] sm:$0x7f]
      %v2577 = vld [vmem:[%s2224] sm:$0xff]
      %v2578 = vld [vmem:[%s2224 + $0x8] sm:$0x7f]
      %v2579 = vld [vmem:[%s2224 + $0x1] sm:$0xff]
      %v2580 = vld [vmem:[%s2224 + $0x9] sm:$0x7f]
      %v2581 = vld [vmem:[%s2229] sm:$0xff]
      %v2582 = vld [vmem:[%s2229 + $0x8] sm:$0x7f]
      %v2583 = vld [vmem:[%s2229 + $0x1] sm:$0xff]
      %v2584 = vld [vmem:[%s2229 + $0x9] sm:$0x7f]
      %s2585 = scalar_lea.vmem %s298, 448
      %v2586 = vld [vmem:[%s2585] sm:$0xff]
      %v2587 = vld [vmem:[%s2585 + $0x8] sm:$0x7f]
      %v2588 = vld [vmem:[%s2585 + $0x1] sm:$0xff]
      %v2589 = vld [vmem:[%s2585 + $0x9] sm:$0x7f]
      %s2590 = scalar_lea.vmem %s298, 464
      %v2591 = vld [vmem:[%s2590] sm:$0xff]
      %v2592 = vld [vmem:[%s2590 + $0x8] sm:$0x7f]
      %v2593 = vld [vmem:[%s2590 + $0x1] sm:$0xff]
      %v2594 = vld [vmem:[%s2590 + $0x9] sm:$0x7f]
      %s2595 = scalar_lea.vmem %s298, 480
      %v2596 = vld [vmem:[%s2595] sm:$0xff]
      %v2597 = vld [vmem:[%s2595 + $0x8] sm:$0x7f]
      %v2598 = vld [vmem:[%s2595 + $0x1] sm:$0xff]
      %v2599 = vld [vmem:[%s2595 + $0x9] sm:$0x7f]
      %s2600 = scalar_lea.vmem %s298, 496
      %v2601 = vld [vmem:[%s2600] sm:$0xff]
      %v2602 = vld [vmem:[%s2600 + $0x8] sm:$0x7f]
      %v2603 = vld [vmem:[%s2600 + $0x1] sm:$0xff]
      %v2604 = vld [vmem:[%s2600 + $0x9] sm:$0x7f]
      %2607 = vrot.lane.b32.xlu0 %v2571, 12
      %v2608 = vpop.permute.xlu0 %2607
      %2609 = vrot.lane.b32.xlu0 %v2572, 12
      %v2610 = vpop.permute.xlu0 %2609
      %2615 = vrot.lane.b32.xlu0 %v2573, 24
      %v2616 = vpop.permute.xlu0 %2615
      %2617 = vrot.lane.b32.xlu0 %v2574, 24
      %v2618 = vpop.permute.xlu0 %2617
      %2623 = vrot.lane.b32.xlu0 %v2575, 36
      %v2624 = vpop.permute.xlu0 %2623
      %2625 = vrot.lane.b32.xlu0 %v2576, 36
      %v2626 = vpop.permute.xlu0 %2625
      %2631 = vrot.lane.b32.xlu0 %v2577, 48
      %v2632 = vpop.permute.xlu0 %2631
      %2633 = vrot.lane.b32.xlu0 %v2578, 48
      %v2634 = vpop.permute.xlu0 %2633
      %2639 = vrot.lane.b32.xlu0 %v2579, 60
      %v2640 = vpop.permute.xlu0 %2639
      %2641 = vrot.lane.b32.xlu0 %v2580, 60
      %v2642 = vpop.permute.xlu0 %2641
      %2647 = vrot.lane.b32.xlu0 %v2581, 72
      %v2648 = vpop.permute.xlu0 %2647
      %2649 = vrot.lane.b32.xlu0 %v2582, 72
      %v2650 = vpop.permute.xlu0 %2649
      %2655 = vrot.lane.b32.xlu0 %v2583, 84
      %v2656 = vpop.permute.xlu0 %2655
      %2657 = vrot.lane.b32.xlu0 %v2584, 84
      %v2658 = vpop.permute.xlu0 %2657
      %2663 = vrot.lane.b32.xlu0 %v2586, 96
      %v2664 = vpop.permute.xlu0 %2663
      %2665 = vrot.lane.b32.xlu0 %v2587, 96
      %v2666 = vpop.permute.xlu0 %2665
      %2671 = vrot.lane.b32.xlu0 %v2588, 108
      %v2672 = vpop.permute.xlu0 %2671
      %2673 = vrot.lane.b32.xlu0 %v2589, 108
      %v2674 = vpop.permute.xlu0 %2673
      %2679 = vrot.lane.b32.xlu0 %v2591, 120
      %v2680 = vpop.permute.xlu0 %2679
      %2681 = vrot.lane.b32.xlu0 %v2592, 120
      %v2682 = vpop.permute.xlu0 %2681
      %2687 = vrot.lane.b32.xlu0 %v2593, 4
      %v2688 = vpop.permute.xlu0 %2687
      %2689 = vrot.lane.b32.xlu0 %v2594, 4
      %v2690 = vpop.permute.xlu0 %2689
      %2695 = vrot.lane.b32.xlu0 %v2596, 16
      %v2696 = vpop.permute.xlu0 %2695
      %2697 = vrot.lane.b32.xlu0 %v2597, 16
      %v2698 = vpop.permute.xlu0 %2697
      %2703 = vrot.lane.b32.xlu0 %v2598, 28
      %v2704 = vpop.permute.xlu0 %2703
      %2705 = vrot.lane.b32.xlu0 %v2599, 28
      %v2706 = vpop.permute.xlu0 %2705
      %2711 = vrot.lane.b32.xlu0 %v2601, 40
      %v2712 = vpop.permute.xlu0 %2711
      %2713 = vrot.lane.b32.xlu0 %v2602, 40
      %v2714 = vpop.permute.xlu0 %2713
      %2719 = vrot.lane.b32.xlu0 %v2603, 52
      %v2720 = vpop.permute.xlu0 %2719
      %2721 = vrot.lane.b32.xlu0 %v2604, 52
      %v2722 = vpop.permute.xlu0 %2721
      %v2725 = vsel %vm474, %v2569, %v2608
      %v2726 = vsel %vm474, %v2570, %v2610
      %v2727 = vsel %vm477, %v2725, %v2616
      %v2728 = vsel %vm477, %v2726, %v2618
      %v2729 = vsel %vm480, %v2727, %v2624
      %v2730 = vsel %vm480, %v2728, %v2626
      %v2731 = vsel %vm483, %v2729, %v2632
      %v2732 = vsel %vm483, %v2730, %v2634
      %v2733 = vsel %vm486, %v2731, %v2640
      %v2734 = vsel %vm486, %v2732, %v2642
      %v2735 = vsel %vm489, %v2733, %v2648
      %v2736 = vsel %vm489, %v2734, %v2650
      %v2737 = vsel %vm492, %v2735, %v2656
      %v2738 = vsel %vm492, %v2736, %v2658
      %v2739 = vsel %vm495, %v2737, %v2664
      %v2740 = vsel %vm495, %v2738, %v2666
      %v2741 = vsel %vm498, %v2739, %v2672
      %v2742 = vsel %vm498, %v2740, %v2674
      %v2743 = vsel %vm501, %v2741, %v2680
      %v2744 = vsel %vm501, %v2742, %v2682
      %v2745 = vsel %vm504, %v2680, %v2688
      %v2746 = vsel %vm504, %v2682, %v2690
      %v2747 = vsel %vm507, %v2745, %v2696
      %v2748 = vsel %vm507, %v2746, %v2698
      %v2749 = vsel %vm510, %v2747, %v2704
      %v2750 = vsel %vm510, %v2748, %v2706
      %v2751 = vsel %vm513, %v2749, %v2712
      %v2752 = vsel %vm513, %v2750, %v2714
      %v2753 = vsel %vm516, %v2751, %v2720
      %v2754 = vsel %vm516, %v2752, %v2722
      %v2755 = vpack.c.bf16 %v2744, %v2743
      %v2756 = vpack.c.bf16 %v2754, %v2753
      %v2757 = vld [vmem:[%s2] sm:$0xf]
      %v2758 = vld [vmem:[%s2 + $0x4] sm:$0xf]
      %v2759 = vld [vmem:[%s2 + $0x8] sm:$0xf]
      %v2760 = vld [vmem:[%s2 + $0xc] sm:$0xf]
      %v2761 = vld [vmem:[%s2 + $0x10] sm:$0xf]
      %v2762 = vld [vmem:[%s2 + $0x14] sm:$0xf]
      %v2763 = vld [vmem:[%s2 + $0x18] sm:$0xf]
      %v2764 = vld [vmem:[%s2 + $0x1c] sm:$0xf]
      %v2765 = vld [vmem:[%s2 + $0x20] sm:$0xf]
      %v2766 = vld [vmem:[%s2 + $0x24] sm:$0xf]
      %v2767 = vld [vmem:[%s2 + $0x28] sm:$0xf]
      %v2768 = vld [vmem:[%s2 + $0x2c] sm:$0xf]
      %v2769 = vld [vmem:[%s2 + $0x30] sm:$0xf]
      %v2770 = vld [vmem:[%s2 + $0x34] sm:$0xf]
      %v2771 = vld [vmem:[%s2 + $0x38] sm:$0xf]
      %v2772 = vld [vmem:[%s2 + $0x3c] sm:$0xf]
      %v2773 = vld [vmem:[%s2 + $0x40] sm:$0xf]
      %v2774 = vld [vmem:[%s2 + $0x44] sm:$0xf]
      %v2775 = vld [vmem:[%s2 + $0x48] sm:$0xf]
      %v2776 = vld [vmem:[%s2 + $0x4c] sm:$0xf]
      %v2777 = vld [vmem:[%s2 + $0x50] sm:$0xf]
      %v2778 = vld [vmem:[%s2 + $0x54] sm:$0xf]
      %v2779 = vld [vmem:[%s2 + $0x58] sm:$0xf]
      %v2780 = vld [vmem:[%s2 + $0x5c] sm:$0xf]
      %v2781 = vld [vmem:[%s3] sm:$0x1]
      %v2783 = vperm.slane %v2781, 0
      %v2809 = vunpack.c.l.b16 %v2757
      %v2810 = vunpack.c.l.b16 %v2758
      %v2811 = vunpack.c.l.b16 %v2759
      %v2812 = vunpack.c.l.b16 %v2760
      %v2813 = vunpack.c.l.b16 %v2761
      %v2814 = vunpack.c.l.b16 %v2762
      %v2815 = vunpack.c.l.b16 %v2763
      %v2816 = vunpack.c.l.b16 %v2764
      %v2817 = vunpack.c.l.b16 %v2765
      %v2818 = vunpack.c.l.b16 %v2766
      %v2819 = vunpack.c.l.b16 %v2767
      %v2820 = vunpack.c.l.b16 %v2768
      %v2821 = vunpack.c.l.b16 %v2769
      %v2822 = vunpack.c.l.b16 %v2770
      %v2823 = vunpack.c.l.b16 %v2771
      %v2824 = vunpack.c.l.b16 %v2772
      %v2825 = vunpack.c.l.b16 %v2773
      %v2826 = vunpack.c.l.b16 %v2774
      %v2827 = vunpack.c.l.b16 %v2775
      %v2828 = vunpack.c.l.b16 %v2776
      %v2829 = vunpack.c.l.b16 %v2777
      %v2830 = vunpack.c.l.b16 %v2778
      %v2831 = vunpack.c.l.b16 %v2779
      %v2832 = vunpack.c.l.b16 %v2780
      %v2833 = vpack.c.b16 %v2810, %v2809
      %v2834 = vpack.c.b16 %v2812, %v2811
      %v2835 = vpack.c.b16 %v2814, %v2813
      %v2836 = vpack.c.b16 %v2816, %v2815
      %v2837 = vpack.c.b16 %v2818, %v2817
      %v2838 = vpack.c.b16 %v2820, %v2819
      %v2839 = vpack.c.b16 %v2822, %v2821
      %v2840 = vpack.c.b16 %v2824, %v2823
      %v2841 = vpack.c.b16 %v2826, %v2825
      %v2842 = vpack.c.b16 %v2828, %v2827
      %v2843 = vpack.c.b16 %v2830, %v2829
      %v2844 = vpack.c.b16 %v2832, %v2831
      %v2858 = vsel %vm621, %v2756, 0
      %2860 = vmatpush.bf16.msra.mxu0 %v2840
      %2861 = vmatpush.bf16.msra.mxu0 %v2839
      %2862 = vmatpush.bf16.msra.mxu0 %v2838
      %2863 = vmatpush.bf16.msra.mxu0 %v2837
      %2864 = vmatpush.bf16.msra.mxu0 %v2836
      %2865 = vmatpush.bf16.msra.mxu0 %v2835
      %2866 = vmatpush.bf16.msra.mxu0 %v2834
      %2867 = vmatpush.bf16.msra.mxu0 %v2833
      %2868 = vmatmul.bf16.gmra.mxu0 %v2755
      %v2869 = vpop.f32.mrf.mxu0
      %v2870 = vadd.f32 %v2783, %v2869
      %v2871 = vpop.f32.mrf.mxu0
      %v2872 = vadd.f32 %v2783, %v2871
      %2873 = vdwg.mxu0
      %2874 = vmatpush.bf16.msra.mxu0 0
      %2875 = vmatpush.bf16.msra.mxu0 0
      %2876 = vmatpush.bf16.msra.mxu0 0
      %2877 = vmatpush.bf16.msra.mxu0 0
      %2878 = vmatpush.bf16.msra.mxu0 %v2844
      %2879 = vmatpush.bf16.msra.mxu0 %v2843
      %2880 = vmatpush.bf16.msra.mxu0 %v2842
      %2881 = vmatpush.bf16.msra.mxu0 %v2841
      %2882 = vmatmul.bf16.gmra.mxu0 %v2858
      %v2883 = vpop.f32.mrf.mxu0
      %v2884 = vadd.f32 %v2870, %v2883
      %v2885 = vpop.f32.mrf.mxu0
      %v2886 = vadd.f32 %v2872, %v2885
      %2887 = vdwg.mxu0
      %v2888 = vmax.f32 %v2884, 0.0
      %v2889 = vmax.f32 %v2886, 0.0
      %v2891 = vsel %vm659, %v2889, 0
      %2893 = vmatpush.msra.mxu0 0.0
      %2894 = vmatpush.msra.mxu0 0.0
      %2895 = vmatpush.msra.mxu0 0.0
      %2896 = vmatpush.msra.mxu0 0.0
      %2897 = vmatpush.msra.mxu0 0.0
      %2898 = vmatpush.msra.mxu0 0.0
      %2899 = vmatpush.msra.mxu0 0.0
      %2900 = vmatpush.msra.mxu0 0.0
      %2901 = vmatpush.msra.mxu0 0.0
      %2902 = vmatpush.msra.mxu0 0.0
      %2903 = vmatpush.msra.mxu0 0.0
      %2904 = vmatpush.msra.mxu0 0.0
      %2905 = vmatpush.msra.mxu0 0.0
      %2906 = vmatpush.msra.mxu0 0.0
      %2907 = vmatpush.msra.mxu0 %v2891
      %2908 = vmatpush.msra.mxu0 %v2888
      %2909 = vmatmul.f32.gmra.mxu0 %v657
      %v2910 = vpop.f32.mrf.mxu0
      %v2911 = vadd.f32 0.0, %v2910
      %2912 = vdwg.mxu0
      %2913 = vmatpush.msra.mxu0 0.0
      %2914 = vmatpush.msra.mxu0 0.0
      %2915 = vmatpush.msra.mxu0 0.0
      %2916 = vmatpush.msra.mxu0 0.0
      %2917 = vmatpush.msra.mxu0 0.0
      %2918 = vmatpush.msra.mxu0 0.0
      %2919 = vmatpush.msra.mxu0 0.0
      %2920 = vmatpush.msra.mxu0 0.0
      %2921 = vmatpush.msra.mxu0 0.0
      %2922 = vmatpush.msra.mxu0 0.0
      %2923 = vmatpush.msra.mxu0 0.0
      %2924 = vmatpush.msra.mxu0 0.0
      %2925 = vmatpush.msra.mxu0 0.0
      %2926 = vmatpush.msra.mxu0 0.0
      %2927 = vmatpush.msra.mxu0 %v2891
      %2928 = vmatpush.msra.mxu0 %v2888
      %2929 = vmatmul.f32.gmra.mxu0 %v684
      %v2930 = vpop.f32.mrf.mxu0
      %v2931 = vadd.f32 0.0, %v2930
      %2932 = vdwg.mxu0
      %2934 = vrot.lane.b32.xlu0 %v2931, 8
      %v2935 = vpop.permute.xlu0 %2934
      %v2937 = vsel %vm710, %v2911, %v2935
      %s2938 = scalar_lea.vmem [#allocation2], 48
      %2939 = vst.msk [vmem:[%s2938] sm:$0x7f] %vm712, %v2937
      %v2940 = vld [vmem:[%s2585] sm:$0xff]
      %v2941 = vld [vmem:[%s2585 + $0x8] sm:$0x7f]
      %v2942 = vld [vmem:[%s2585 + $0x1] sm:$0xff]
      %v2943 = vld [vmem:[%s2585 + $0x9] sm:$0x7f]
      %v2944 = vld [vmem:[%s2590] sm:$0xff]
      %v2945 = vld [vmem:[%s2590 + $0x8] sm:$0x7f]
      %v2946 = vld [vmem:[%s2590 + $0x1] sm:$0xff]
      %v2947 = vld [vmem:[%s2590 + $0x9] sm:$0x7f]
      %v2948 = vld [vmem:[%s2595] sm:$0xff]
      %v2949 = vld [vmem:[%s2595 + $0x8] sm:$0x7f]
      %v2950 = vld [vmem:[%s2595 + $0x1] sm:$0xff]
      %v2951 = vld [vmem:[%s2595 + $0x9] sm:$0x7f]
      %v2952 = vld [vmem:[%s2600] sm:$0xff]
      %v2953 = vld [vmem:[%s2600 + $0x8] sm:$0x7f]
      %v2954 = vld [vmem:[%s2600 + $0x1] sm:$0xff]
      %v2955 = vld [vmem:[%s2600 + $0x9] sm:$0x7f]
      %s2956 = scalar_lea.vmem %s298, 512
      %v2957 = vld [vmem:[%s2956] sm:$0xff]
      %v2958 = vld [vmem:[%s2956 + $0x8] sm:$0x7f]
      %v2959 = vld [vmem:[%s2956 + $0x1] sm:$0xff]
      %v2960 = vld [vmem:[%s2956 + $0x9] sm:$0x7f]
      %s2961 = scalar_lea.vmem %s298, 528
      %v2962 = vld [vmem:[%s2961] sm:$0xff]
      %v2963 = vld [vmem:[%s2961 + $0x8] sm:$0x7f]
      %v2964 = vld [vmem:[%s2961 + $0x1] sm:$0xff]
      %v2965 = vld [vmem:[%s2961 + $0x9] sm:$0x7f]
      %s2966 = scalar_lea.vmem %s298, 544
      %v2967 = vld [vmem:[%s2966] sm:$0xff]
      %v2968 = vld [vmem:[%s2966 + $0x8] sm:$0x7f]
      %v2969 = vld [vmem:[%s2966 + $0x1] sm:$0xff]
      %v2970 = vld [vmem:[%s2966 + $0x9] sm:$0x7f]
      %s2971 = scalar_lea.vmem %s298, 560
      %v2972 = vld [vmem:[%s2971] sm:$0xff]
      %v2973 = vld [vmem:[%s2971 + $0x8] sm:$0x7f]
      %v2974 = vld [vmem:[%s2971 + $0x1] sm:$0xff]
      %v2975 = vld [vmem:[%s2971 + $0x9] sm:$0x7f]
      %2978 = vrot.lane.b32.xlu0 %v2942, 12
      %v2979 = vpop.permute.xlu0 %2978
      %2980 = vrot.lane.b32.xlu0 %v2943, 12
      %v2981 = vpop.permute.xlu0 %2980
      %2986 = vrot.lane.b32.xlu0 %v2944, 24
      %v2987 = vpop.permute.xlu0 %2986
      %2988 = vrot.lane.b32.xlu0 %v2945, 24
      %v2989 = vpop.permute.xlu0 %2988
      %2994 = vrot.lane.b32.xlu0 %v2946, 36
      %v2995 = vpop.permute.xlu0 %2994
      %2996 = vrot.lane.b32.xlu0 %v2947, 36
      %v2997 = vpop.permute.xlu0 %2996
      %3002 = vrot.lane.b32.xlu0 %v2948, 48
      %v3003 = vpop.permute.xlu0 %3002
      %3004 = vrot.lane.b32.xlu0 %v2949, 48
      %v3005 = vpop.permute.xlu0 %3004
      %3010 = vrot.lane.b32.xlu0 %v2950, 60
      %v3011 = vpop.permute.xlu0 %3010
      %3012 = vrot.lane.b32.xlu0 %v2951, 60
      %v3013 = vpop.permute.xlu0 %3012
      %3018 = vrot.lane.b32.xlu0 %v2952, 72
      %v3019 = vpop.permute.xlu0 %3018
      %3020 = vrot.lane.b32.xlu0 %v2953, 72
      %v3021 = vpop.permute.xlu0 %3020
      %3026 = vrot.lane.b32.xlu0 %v2954, 84
      %v3027 = vpop.permute.xlu0 %3026
      %3028 = vrot.lane.b32.xlu0 %v2955, 84
      %v3029 = vpop.permute.xlu0 %3028
      %3034 = vrot.lane.b32.xlu0 %v2957, 96
      %v3035 = vpop.permute.xlu0 %3034
      %3036 = vrot.lane.b32.xlu0 %v2958, 96
      %v3037 = vpop.permute.xlu0 %3036
      %3042 = vrot.lane.b32.xlu0 %v2959, 108
      %v3043 = vpop.permute.xlu0 %3042
      %3044 = vrot.lane.b32.xlu0 %v2960, 108
      %v3045 = vpop.permute.xlu0 %3044
      %3050 = vrot.lane.b32.xlu0 %v2962, 120
      %v3051 = vpop.permute.xlu0 %3050
      %3052 = vrot.lane.b32.xlu0 %v2963, 120
      %v3053 = vpop.permute.xlu0 %3052
      %3058 = vrot.lane.b32.xlu0 %v2964, 4
      %v3059 = vpop.permute.xlu0 %3058
      %3060 = vrot.lane.b32.xlu0 %v2965, 4
      %v3061 = vpop.permute.xlu0 %3060
      %3066 = vrot.lane.b32.xlu0 %v2967, 16
      %v3067 = vpop.permute.xlu0 %3066
      %3068 = vrot.lane.b32.xlu0 %v2968, 16
      %v3069 = vpop.permute.xlu0 %3068
      %3074 = vrot.lane.b32.xlu0 %v2969, 28
      %v3075 = vpop.permute.xlu0 %3074
      %3076 = vrot.lane.b32.xlu0 %v2970, 28
      %v3077 = vpop.permute.xlu0 %3076
      %3082 = vrot.lane.b32.xlu0 %v2972, 40
      %v3083 = vpop.permute.xlu0 %3082
      %3084 = vrot.lane.b32.xlu0 %v2973, 40
      %v3085 = vpop.permute.xlu0 %3084
      %3090 = vrot.lane.b32.xlu0 %v2974, 52
      %v3091 = vpop.permute.xlu0 %3090
      %3092 = vrot.lane.b32.xlu0 %v2975, 52
      %v3093 = vpop.permute.xlu0 %3092
      %v3096 = vsel %vm474, %v2940, %v2979
      %v3097 = vsel %vm474, %v2941, %v2981
      %v3098 = vsel %vm477, %v3096, %v2987
      %v3099 = vsel %vm477, %v3097, %v2989
      %v3100 = vsel %vm480, %v3098, %v2995
      %v3101 = vsel %vm480, %v3099, %v2997
      %v3102 = vsel %vm483, %v3100, %v3003
      %v3103 = vsel %vm483, %v3101, %v3005
      %v3104 = vsel %vm486, %v3102, %v3011
      %v3105 = vsel %vm486, %v3103, %v3013
      %v3106 = vsel %vm489, %v3104, %v3019
      %v3107 = vsel %vm489, %v3105, %v3021
      %v3108 = vsel %vm492, %v3106, %v3027
      %v3109 = vsel %vm492, %v3107, %v3029
      %v3110 = vsel %vm495, %v3108, %v3035
      %v3111 = vsel %vm495, %v3109, %v3037
      %v3112 = vsel %vm498, %v3110, %v3043
      %v3113 = vsel %vm498, %v3111, %v3045
      %v3114 = vsel %vm501, %v3112, %v3051
      %v3115 = vsel %vm501, %v3113, %v3053
      %v3116 = vsel %vm504, %v3051, %v3059
      %v3117 = vsel %vm504, %v3053, %v3061
      %v3118 = vsel %vm507, %v3116, %v3067
      %v3119 = vsel %vm507, %v3117, %v3069
      %v3120 = vsel %vm510, %v3118, %v3075
      %v3121 = vsel %vm510, %v3119, %v3077
      %v3122 = vsel %vm513, %v3120, %v3083
      %v3123 = vsel %vm513, %v3121, %v3085
      %v3124 = vsel %vm516, %v3122, %v3091
      %v3125 = vsel %vm516, %v3123, %v3093
      %v3126 = vpack.c.bf16 %v3115, %v3114
      %v3127 = vpack.c.bf16 %v3125, %v3124
      %v3128 = vld [vmem:[%s2] sm:$0xf]
      %v3129 = vld [vmem:[%s2 + $0x4] sm:$0xf]
      %v3130 = vld [vmem:[%s2 + $0x8] sm:$0xf]
      %v3131 = vld [vmem:[%s2 + $0xc] sm:$0xf]
      %v3132 = vld [vmem:[%s2 + $0x10] sm:$0xf]
      %v3133 = vld [vmem:[%s2 + $0x14] sm:$0xf]
      %v3134 = vld [vmem:[%s2 + $0x18] sm:$0xf]
      %v3135 = vld [vmem:[%s2 + $0x1c] sm:$0xf]
      %v3136 = vld [vmem:[%s2 + $0x20] sm:$0xf]
      %v3137 = vld [vmem:[%s2 + $0x24] sm:$0xf]
      %v3138 = vld [vmem:[%s2 + $0x28] sm:$0xf]
      %v3139 = vld [vmem:[%s2 + $0x2c] sm:$0xf]
      %v3140 = vld [vmem:[%s2 + $0x30] sm:$0xf]
      %v3141 = vld [vmem:[%s2 + $0x34] sm:$0xf]
      %v3142 = vld [vmem:[%s2 + $0x38] sm:$0xf]
      %v3143 = vld [vmem:[%s2 + $0x3c] sm:$0xf]
      %v3144 = vld [vmem:[%s2 + $0x40] sm:$0xf]
      %v3145 = vld [vmem:[%s2 + $0x44] sm:$0xf]
      %v3146 = vld [vmem:[%s2 + $0x48] sm:$0xf]
      %v3147 = vld [vmem:[%s2 + $0x4c] sm:$0xf]
      %v3148 = vld [vmem:[%s2 + $0x50] sm:$0xf]
      %v3149 = vld [vmem:[%s2 + $0x54] sm:$0xf]
      %v3150 = vld [vmem:[%s2 + $0x58] sm:$0xf]
      %v3151 = vld [vmem:[%s2 + $0x5c] sm:$0xf]
      %v3152 = vld [vmem:[%s3] sm:$0x1]
      %v3154 = vperm.slane %v3152, 0
      %v3180 = vunpack.c.l.b16 %v3128
      %v3181 = vunpack.c.l.b16 %v3129
      %v3182 = vunpack.c.l.b16 %v3130
      %v3183 = vunpack.c.l.b16 %v3131
      %v3184 = vunpack.c.l.b16 %v3132
      %v3185 = vunpack.c.l.b16 %v3133
      %v3186 = vunpack.c.l.b16 %v3134
      %v3187 = vunpack.c.l.b16 %v3135
      %v3188 = vunpack.c.l.b16 %v3136
      %v3189 = vunpack.c.l.b16 %v3137
      %v3190 = vunpack.c.l.b16 %v3138
      %v3191 = vunpack.c.l.b16 %v3139
      %v3192 = vunpack.c.l.b16 %v3140
      %v3193 = vunpack.c.l.b16 %v3141
      %v3194 = vunpack.c.l.b16 %v3142
      %v3195 = vunpack.c.l.b16 %v3143
      %v3196 = vunpack.c.l.b16 %v3144
      %v3197 = vunpack.c.l.b16 %v3145
      %v3198 = vunpack.c.l.b16 %v3146
      %v3199 = vunpack.c.l.b16 %v3147
      %v3200 = vunpack.c.l.b16 %v3148
      %v3201 = vunpack.c.l.b16 %v3149
      %v3202 = vunpack.c.l.b16 %v3150
      %v3203 = vunpack.c.l.b16 %v3151
      %v3204 = vpack.c.b16 %v3181, %v3180
      %v3205 = vpack.c.b16 %v3183, %v3182
      %v3206 = vpack.c.b16 %v3185, %v3184
      %v3207 = vpack.c.b16 %v3187, %v3186
      %v3208 = vpack.c.b16 %v3189, %v3188
      %v3209 = vpack.c.b16 %v3191, %v3190
      %v3210 = vpack.c.b16 %v3193, %v3192
      %v3211 = vpack.c.b16 %v3195, %v3194
      %v3212 = vpack.c.b16 %v3197, %v3196
      %v3213 = vpack.c.b16 %v3199, %v3198
      %v3214 = vpack.c.b16 %v3201, %v3200
      %v3215 = vpack.c.b16 %v3203, %v3202
      %v3229 = vsel %vm621, %v3127, 0
      %3231 = vmatpush.bf16.msra.mxu0 %v3211
      %3232 = vmatpush.bf16.msra.mxu0 %v3210
      %3233 = vmatpush.bf16.msra.mxu0 %v3209
      %3234 = vmatpush.bf16.msra.mxu0 %v3208
      %3235 = vmatpush.bf16.msra.mxu0 %v3207
      %3236 = vmatpush.bf16.msra.mxu0 %v3206
      %3237 = vmatpush.bf16.msra.mxu0 %v3205
      %3238 = vmatpush.bf16.msra.mxu0 %v3204
      %3239 = vmatmul.bf16.gmra.mxu0 %v3126
      %v3240 = vpop.f32.mrf.mxu0
      %v3241 = vadd.f32 %v3154, %v3240
      %v3242 = vpop.f32.mrf.mxu0
      %v3243 = vadd.f32 %v3154, %v3242
      %3244 = vdwg.mxu0
      %3245 = vmatpush.bf16.msra.mxu0 0
      %3246 = vmatpush.bf16.msra.mxu0 0
      %3247 = vmatpush.bf16.msra.mxu0 0
      %3248 = vmatpush.bf16.msra.mxu0 0
      %3249 = vmatpush.bf16.msra.mxu0 %v3215
      %3250 = vmatpush.bf16.msra.mxu0 %v3214
      %3251 = vmatpush.bf16.msra.mxu0 %v3213
      %3252 = vmatpush.bf16.msra.mxu0 %v3212
      %3253 = vmatmul.bf16.gmra.mxu0 %v3229
      %v3254 = vpop.f32.mrf.mxu0
      %v3255 = vadd.f32 %v3241, %v3254
      %v3256 = vpop.f32.mrf.mxu0
      %v3257 = vadd.f32 %v3243, %v3256
      %3258 = vdwg.mxu0
      %v3259 = vmax.f32 %v3255, 0.0
      %v3260 = vmax.f32 %v3257, 0.0
      %v3262 = vsel %vm659, %v3260, 0
      %3264 = vmatpush.msra.mxu0 0.0
      %3265 = vmatpush.msra.mxu0 0.0
      %3266 = vmatpush.msra.mxu0 0.0
      %3267 = vmatpush.msra.mxu0 0.0
      %3268 = vmatpush.msra.mxu0 0.0
      %3269 = vmatpush.msra.mxu0 0.0
      %3270 = vmatpush.msra.mxu0 0.0
      %3271 = vmatpush.msra.mxu0 0.0
      %3272 = vmatpush.msra.mxu0 0.0
      %3273 = vmatpush.msra.mxu0 0.0
      %3274 = vmatpush.msra.mxu0 0.0
      %3275 = vmatpush.msra.mxu0 0.0
      %3276 = vmatpush.msra.mxu0 0.0
      %3277 = vmatpush.msra.mxu0 0.0
      %3278 = vmatpush.msra.mxu0 %v3262
      %3279 = vmatpush.msra.mxu0 %v3259
      %3280 = vmatmul.f32.gmra.mxu0 %v657
      %v3281 = vpop.f32.mrf.mxu0
      %v3282 = vadd.f32 0.0, %v3281
      %3283 = vdwg.mxu0
      %3284 = vmatpush.msra.mxu0 0.0
      %3285 = vmatpush.msra.mxu0 0.0
      %3286 = vmatpush.msra.mxu0 0.0
      %3287 = vmatpush.msra.mxu0 0.0
      %3288 = vmatpush.msra.mxu0 0.0
      %3289 = vmatpush.msra.mxu0 0.0
      %3290 = vmatpush.msra.mxu0 0.0
      %3291 = vmatpush.msra.mxu0 0.0
      %3292 = vmatpush.msra.mxu0 0.0
      %3293 = vmatpush.msra.mxu0 0.0
      %3294 = vmatpush.msra.mxu0 0.0
      %3295 = vmatpush.msra.mxu0 0.0
      %3296 = vmatpush.msra.mxu0 0.0
      %3297 = vmatpush.msra.mxu0 0.0
      %3298 = vmatpush.msra.mxu0 %v3262
      %3299 = vmatpush.msra.mxu0 %v3259
      %3300 = vmatmul.f32.gmra.mxu0 %v684
      %v3301 = vpop.f32.mrf.mxu0
      %v3302 = vadd.f32 0.0, %v3301
      %3303 = vdwg.mxu0
      %3305 = vrot.lane.b32.xlu0 %v3302, 8
      %v3306 = vpop.permute.xlu0 %3305
      %v3308 = vsel %vm710, %v3282, %v3306
      %s3309 = scalar_lea.vmem [#allocation2], 56
      %3310 = vst.msk [vmem:[%s3309] sm:$0x7f] %vm712, %v3308
      %v3311 = vld [vmem:[%s2956] sm:$0xff]
      %v3312 = vld [vmem:[%s2956 + $0x8] sm:$0x7f]
      %v3313 = vld [vmem:[%s2956 + $0x1] sm:$0xff]
      %v3314 = vld [vmem:[%s2956 + $0x9] sm:$0x7f]
      %v3315 = vld [vmem:[%s2961] sm:$0xff]
      %v3316 = vld [vmem:[%s2961 + $0x8] sm:$0x7f]
      %v3317 = vld [vmem:[%s2961 + $0x1] sm:$0xff]
      %v3318 = vld [vmem:[%s2961 + $0x9] sm:$0x7f]
      %v3319 = vld [vmem:[%s2966] sm:$0xff]
      %v3320 = vld [vmem:[%s2966 + $0x8] sm:$0x7f]
      %v3321 = vld [vmem:[%s2966 + $0x1] sm:$0xff]
      %v3322 = vld [vmem:[%s2966 + $0x9] sm:$0x7f]
      %v3323 = vld [vmem:[%s2971] sm:$0xff]
      %v3324 = vld [vmem:[%s2971 + $0x8] sm:$0x7f]
      %v3325 = vld [vmem:[%s2971 + $0x1] sm:$0xff]
      %v3326 = vld [vmem:[%s2971 + $0x9] sm:$0x7f]
      %s3327 = scalar_lea.vmem %s298, 576
      %v3328 = vld [vmem:[%s3327] sm:$0xff]
      %v3329 = vld [vmem:[%s3327 + $0x8] sm:$0x7f]
      %v3330 = vld [vmem:[%s3327 + $0x1] sm:$0xff]
      %v3331 = vld [vmem:[%s3327 + $0x9] sm:$0x7f]
      %s3332 = scalar_lea.vmem %s298, 592
      %v3333 = vld [vmem:[%s3332] sm:$0xff]
      %v3334 = vld [vmem:[%s3332 + $0x8] sm:$0x7f]
      %v3335 = vld [vmem:[%s3332 + $0x1] sm:$0xff]
      %v3336 = vld [vmem:[%s3332 + $0x9] sm:$0x7f]
      %s3337 = scalar_lea.vmem %s298, 608
      %v3338 = vld [vmem:[%s3337] sm:$0xff]
      %v3339 = vld [vmem:[%s3337 + $0x8] sm:$0x7f]
      %v3340 = vld [vmem:[%s3337 + $0x1] sm:$0xff]
      %v3341 = vld [vmem:[%s3337 + $0x9] sm:$0x7f]
      %s3342 = scalar_lea.vmem %s298, 624
      %v3343 = vld [vmem:[%s3342] sm:$0xff]
      %v3344 = vld [vmem:[%s3342 + $0x8] sm:$0x7f]
      %v3345 = vld [vmem:[%s3342 + $0x1] sm:$0xff]
      %v3346 = vld [vmem:[%s3342 + $0x9] sm:$0x7f]
      %3349 = vrot.lane.b32.xlu0 %v3313, 12
      %v3350 = vpop.permute.xlu0 %3349
      %3351 = vrot.lane.b32.xlu0 %v3314, 12
      %v3352 = vpop.permute.xlu0 %3351
      %3357 = vrot.lane.b32.xlu0 %v3315, 24
      %v3358 = vpop.permute.xlu0 %3357
      %3359 = vrot.lane.b32.xlu0 %v3316, 24
      %v3360 = vpop.permute.xlu0 %3359
      %3365 = vrot.lane.b32.xlu0 %v3317, 36
      %v3366 = vpop.permute.xlu0 %3365
      %3367 = vrot.lane.b32.xlu0 %v3318, 36
      %v3368 = vpop.permute.xlu0 %3367
      %3373 = vrot.lane.b32.xlu0 %v3319, 48
      %v3374 = vpop.permute.xlu0 %3373
      %3375 = vrot.lane.b32.xlu0 %v3320, 48
      %v3376 = vpop.permute.xlu0 %3375
      %3381 = vrot.lane.b32.xlu0 %v3321, 60
      %v3382 = vpop.permute.xlu0 %3381
      %3383 = vrot.lane.b32.xlu0 %v3322, 60
      %v3384 = vpop.permute.xlu0 %3383
      %3389 = vrot.lane.b32.xlu0 %v3323, 72
      %v3390 = vpop.permute.xlu0 %3389
      %3391 = vrot.lane.b32.xlu0 %v3324, 72
      %v3392 = vpop.permute.xlu0 %3391
      %3397 = vrot.lane.b32.xlu0 %v3325, 84
      %v3398 = vpop.permute.xlu0 %3397
      %3399 = vrot.lane.b32.xlu0 %v3326, 84
      %v3400 = vpop.permute.xlu0 %3399
      %3405 = vrot.lane.b32.xlu0 %v3328, 96
      %v3406 = vpop.permute.xlu0 %3405
      %3407 = vrot.lane.b32.xlu0 %v3329, 96
      %v3408 = vpop.permute.xlu0 %3407
      %3413 = vrot.lane.b32.xlu0 %v3330, 108
      %v3414 = vpop.permute.xlu0 %3413
      %3415 = vrot.lane.b32.xlu0 %v3331, 108
      %v3416 = vpop.permute.xlu0 %3415
      %3421 = vrot.lane.b32.xlu0 %v3333, 120
      %v3422 = vpop.permute.xlu0 %3421
      %3423 = vrot.lane.b32.xlu0 %v3334, 120
      %v3424 = vpop.permute.xlu0 %3423
      %3429 = vrot.lane.b32.xlu0 %v3335, 4
      %v3430 = vpop.permute.xlu0 %3429
      %3431 = vrot.lane.b32.xlu0 %v3336, 4
      %v3432 = vpop.permute.xlu0 %3431
      %3437 = vrot.lane.b32.xlu0 %v3338, 16
      %v3438 = vpop.permute.xlu0 %3437
      %3439 = vrot.lane.b32.xlu0 %v3339, 16
      %v3440 = vpop.permute.xlu0 %3439
      %3445 = vrot.lane.b32.xlu0 %v3340, 28
      %v3446 = vpop.permute.xlu0 %3445
      %3447 = vrot.lane.b32.xlu0 %v3341, 28
      %v3448 = vpop.permute.xlu0 %3447
      %3453 = vrot.lane.b32.xlu0 %v3343, 40
      %v3454 = vpop.permute.xlu0 %3453
      %3455 = vrot.lane.b32.xlu0 %v3344, 40
      %v3456 = vpop.permute.xlu0 %3455
      %3461 = vrot.lane.b32.xlu0 %v3345, 52
      %v3462 = vpop.permute.xlu0 %3461
      %3463 = vrot.lane.b32.xlu0 %v3346, 52
      %v3464 = vpop.permute.xlu0 %3463
      %v3467 = vsel %vm474, %v3311, %v3350
      %v3468 = vsel %vm474, %v3312, %v3352
      %v3469 = vsel %vm477, %v3467, %v3358
      %v3470 = vsel %vm477, %v3468, %v3360
      %v3471 = vsel %vm480, %v3469, %v3366
      %v3472 = vsel %vm480, %v3470, %v3368
      %v3473 = vsel %vm483, %v3471, %v3374
      %v3474 = vsel %vm483, %v3472, %v3376
      %v3475 = vsel %vm486, %v3473, %v3382
      %v3476 = vsel %vm486, %v3474, %v3384
      %v3477 = vsel %vm489, %v3475, %v3390
      %v3478 = vsel %vm489, %v3476, %v3392
      %v3479 = vsel %vm492, %v3477, %v3398
      %v3480 = vsel %vm492, %v3478, %v3400
      %v3481 = vsel %vm495, %v3479, %v3406
      %v3482 = vsel %vm495, %v3480, %v3408
      %v3483 = vsel %vm498, %v3481, %v3414
      %v3484 = vsel %vm498, %v3482, %v3416
      %v3485 = vsel %vm501, %v3483, %v3422
      %v3486 = vsel %vm501, %v3484, %v3424
      %v3487 = vsel %vm504, %v3422, %v3430
      %v3488 = vsel %vm504, %v3424, %v3432
      %v3489 = vsel %vm507, %v3487, %v3438
      %v3490 = vsel %vm507, %v3488, %v3440
      %v3491 = vsel %vm510, %v3489, %v3446
      %v3492 = vsel %vm510, %v3490, %v3448
      %v3493 = vsel %vm513, %v3491, %v3454
      %v3494 = vsel %vm513, %v3492, %v3456
      %v3495 = vsel %vm516, %v3493, %v3462
      %v3496 = vsel %vm516, %v3494, %v3464
      %v3497 = vpack.c.bf16 %v3486, %v3485
      %v3498 = vpack.c.bf16 %v3496, %v3495
      %v3499 = vld [vmem:[%s2] sm:$0xf]
      %v3500 = vld [vmem:[%s2 + $0x4] sm:$0xf]
      %v3501 = vld [vmem:[%s2 + $0x8] sm:$0xf]
      %v3502 = vld [vmem:[%s2 + $0xc] sm:$0xf]
      %v3503 = vld [vmem:[%s2 + $0x10] sm:$0xf]
      %v3504 = vld [vmem:[%s2 + $0x14] sm:$0xf]
      %v3505 = vld [vmem:[%s2 + $0x18] sm:$0xf]
      %v3506 = vld [vmem:[%s2 + $0x1c] sm:$0xf]
      %v3507 = vld [vmem:[%s2 + $0x20] sm:$0xf]
      %v3508 = vld [vmem:[%s2 + $0x24] sm:$0xf]
      %v3509 = vld [vmem:[%s2 + $0x28] sm:$0xf]
      %v3510 = vld [vmem:[%s2 + $0x2c] sm:$0xf]
      %v3511 = vld [vmem:[%s2 + $0x30] sm:$0xf]
      %v3512 = vld [vmem:[%s2 + $0x34] sm:$0xf]
      %v3513 = vld [vmem:[%s2 + $0x38] sm:$0xf]
      %v3514 = vld [vmem:[%s2 + $0x3c] sm:$0xf]
      %v3515 = vld [vmem:[%s2 + $0x40] sm:$0xf]
      %v3516 = vld [vmem:[%s2 + $0x44] sm:$0xf]
      %v3517 = vld [vmem:[%s2 + $0x48] sm:$0xf]
      %v3518 = vld [vmem:[%s2 + $0x4c] sm:$0xf]
      %v3519 = vld [vmem:[%s2 + $0x50] sm:$0xf]
      %v3520 = vld [vmem:[%s2 + $0x54] sm:$0xf]
      %v3521 = vld [vmem:[%s2 + $0x58] sm:$0xf]
      %v3522 = vld [vmem:[%s2 + $0x5c] sm:$0xf]
      %v3523 = vld [vmem:[%s3] sm:$0x1]
      %v3525 = vperm.slane %v3523, 0
      %v3551 = vunpack.c.l.b16 %v3499
      %v3552 = vunpack.c.l.b16 %v3500
      %v3553 = vunpack.c.l.b16 %v3501
      %v3554 = vunpack.c.l.b16 %v3502
      %v3555 = vunpack.c.l.b16 %v3503
      %v3556 = vunpack.c.l.b16 %v3504
      %v3557 = vunpack.c.l.b16 %v3505
      %v3558 = vunpack.c.l.b16 %v3506
      %v3559 = vunpack.c.l.b16 %v3507
      %v3560 = vunpack.c.l.b16 %v3508
      %v3561 = vunpack.c.l.b16 %v3509
      %v3562 = vunpack.c.l.b16 %v3510
      %v3563 = vunpack.c.l.b16 %v3511
      %v3564 = vunpack.c.l.b16 %v3512
      %v3565 = vunpack.c.l.b16 %v3513
      %v3566 = vunpack.c.l.b16 %v3514
      %v3567 = vunpack.c.l.b16 %v3515
      %v3568 = vunpack.c.l.b16 %v3516
      %v3569 = vunpack.c.l.b16 %v3517
      %v3570 = vunpack.c.l.b16 %v3518
      %v3571 = vunpack.c.l.b16 %v3519
      %v3572 = vunpack.c.l.b16 %v3520
      %v3573 = vunpack.c.l.b16 %v3521
      %v3574 = vunpack.c.l.b16 %v3522
      %v3575 = vpack.c.b16 %v3552, %v3551
      %v3576 = vpack.c.b16 %v3554, %v3553
      %v3577 = vpack.c.b16 %v3556, %v3555
      %v3578 = vpack.c.b16 %v3558, %v3557
      %v3579 = vpack.c.b16 %v3560, %v3559
      %v3580 = vpack.c.b16 %v3562, %v3561
      %v3581 = vpack.c.b16 %v3564, %v3563
      %v3582 = vpack.c.b16 %v3566, %v3565
      %v3583 = vpack.c.b16 %v3568, %v3567
      %v3584 = vpack.c.b16 %v3570, %v3569
      %v3585 = vpack.c.b16 %v3572, %v3571
      %v3586 = vpack.c.b16 %v3574, %v3573
      %v3600 = vsel %vm621, %v3498, 0
      %3602 = vmatpush.bf16.msra.mxu0 %v3582
      %3603 = vmatpush.bf16.msra.mxu0 %v3581
      %3604 = vmatpush.bf16.msra.mxu0 %v3580
      %3605 = vmatpush.bf16.msra.mxu0 %v3579
      %3606 = vmatpush.bf16.msra.mxu0 %v3578
      %3607 = vmatpush.bf16.msra.mxu0 %v3577
      %3608 = vmatpush.bf16.msra.mxu0 %v3576
      %3609 = vmatpush.bf16.msra.mxu0 %v3575
      %3610 = vmatmul.bf16.gmra.mxu0 %v3497
      %v3611 = vpop.f32.mrf.mxu0
      %v3612 = vadd.f32 %v3525, %v3611
      %v3613 = vpop.f32.mrf.mxu0
      %v3614 = vadd.f32 %v3525, %v3613
      %3615 = vdwg.mxu0
      %3616 = vmatpush.bf16.msra.mxu0 0
      %3617 = vmatpush.bf16.msra.mxu0 0
      %3618 = vmatpush.bf16.msra.mxu0 0
      %3619 = vmatpush.bf16.msra.mxu0 0
      %3620 = vmatpush.bf16.msra.mxu0 %v3586
      %3621 = vmatpush.bf16.msra.mxu0 %v3585
      %3622 = vmatpush.bf16.msra.mxu0 %v3584
      %3623 = vmatpush.bf16.msra.mxu0 %v3583
      %3624 = vmatmul.bf16.gmra.mxu0 %v3600
      %v3625 = vpop.f32.mrf.mxu0
      %v3626 = vadd.f32 %v3612, %v3625
      %v3627 = vpop.f32.mrf.mxu0
      %v3628 = vadd.f32 %v3614, %v3627
      %3629 = vdwg.mxu0
      %v3630 = vmax.f32 %v3626, 0.0
      %v3631 = vmax.f32 %v3628, 0.0
      %v3633 = vsel %vm659, %v3631, 0
      %3635 = vmatpush.msra.mxu0 0.0
      %3636 = vmatpush.msra.mxu0 0.0
      %3637 = vmatpush.msra.mxu0 0.0
      %3638 = vmatpush.msra.mxu0 0.0
      %3639 = vmatpush.msra.mxu0 0.0
      %3640 = vmatpush.msra.mxu0 0.0
      %3641 = vmatpush.msra.mxu0 0.0
      %3642 = vmatpush.msra.mxu0 0.0
      %3643 = vmatpush.msra.mxu0 0.0
      %3644 = vmatpush.msra.mxu0 0.0
      %3645 = vmatpush.msra.mxu0 0.0
      %3646 = vmatpush.msra.mxu0 0.0
      %3647 = vmatpush.msra.mxu0 0.0
      %3648 = vmatpush.msra.mxu0 0.0
      %3649 = vmatpush.msra.mxu0 %v3633
      %3650 = vmatpush.msra.mxu0 %v3630
      %3651 = vmatmul.f32.gmra.mxu0 %v657
      %v3652 = vpop.f32.mrf.mxu0
      %v3653 = vadd.f32 0.0, %v3652
      %3654 = vdwg.mxu0
      %3655 = vmatpush.msra.mxu0 0.0
      %3656 = vmatpush.msra.mxu0 0.0
      %3657 = vmatpush.msra.mxu0 0.0
      %3658 = vmatpush.msra.mxu0 0.0
      %3659 = vmatpush.msra.mxu0 0.0
      %3660 = vmatpush.msra.mxu0 0.0
      %3661 = vmatpush.msra.mxu0 0.0
      %3662 = vmatpush.msra.mxu0 0.0
      %3663 = vmatpush.msra.mxu0 0.0
      %3664 = vmatpush.msra.mxu0 0.0
      %3665 = vmatpush.msra.mxu0 0.0
      %3666 = vmatpush.msra.mxu0 0.0
      %3667 = vmatpush.msra.mxu0 0.0
      %3668 = vmatpush.msra.mxu0 0.0
      %3669 = vmatpush.msra.mxu0 %v3633
      %3670 = vmatpush.msra.mxu0 %v3630
      %3671 = vmatmul.f32.gmra.mxu0 %v684
      %v3672 = vpop.f32.mrf.mxu0
      %v3673 = vadd.f32 0.0, %v3672
      %3674 = vdwg.mxu0
      %3676 = vrot.lane.b32.xlu0 %v3673, 8
      %v3677 = vpop.permute.xlu0 %3676
      %v3679 = vsel %vm710, %v3653, %v3677
      %s3680 = scalar_lea.vmem [#allocation2], 64
      %3681 = vst.msk [vmem:[%s3680] sm:$0x7f] %vm712, %v3679
      %v3682 = vld [vmem:[%s3327] sm:$0xff]
      %v3683 = vld [vmem:[%s3327 + $0x8] sm:$0x7f]
      %v3684 = vld [vmem:[%s3327 + $0x1] sm:$0xff]
      %v3685 = vld [vmem:[%s3327 + $0x9] sm:$0x7f]
      %v3686 = vld [vmem:[%s3332] sm:$0xff]
      %v3687 = vld [vmem:[%s3332 + $0x8] sm:$0x7f]
      %v3688 = vld [vmem:[%s3332 + $0x1] sm:$0xff]
      %v3689 = vld [vmem:[%s3332 + $0x9] sm:$0x7f]
      %v3690 = vld [vmem:[%s3337] sm:$0xff]
      %v3691 = vld [vmem:[%s3337 + $0x8] sm:$0x7f]
      %v3692 = vld [vmem:[%s3337 + $0x1] sm:$0xff]
      %v3693 = vld [vmem:[%s3337 + $0x9] sm:$0x7f]
      %v3694 = vld [vmem:[%s3342] sm:$0xff]
      %v3695 = vld [vmem:[%s3342 + $0x8] sm:$0x7f]
      %v3696 = vld [vmem:[%s3342 + $0x1] sm:$0xff]
      %v3697 = vld [vmem:[%s3342 + $0x9] sm:$0x7f]
      %s3698 = scalar_lea.vmem %s298, 640
      %v3699 = vld [vmem:[%s3698] sm:$0xff]
      %v3700 = vld [vmem:[%s3698 + $0x8] sm:$0x7f]
      %v3701 = vld [vmem:[%s3698 + $0x1] sm:$0xff]
      %v3702 = vld [vmem:[%s3698 + $0x9] sm:$0x7f]
      %s3703 = scalar_lea.vmem %s298, 656
      %v3704 = vld [vmem:[%s3703] sm:$0xff]
      %v3705 = vld [vmem:[%s3703 + $0x8] sm:$0x7f]
      %v3706 = vld [vmem:[%s3703 + $0x1] sm:$0xff]
      %v3707 = vld [vmem:[%s3703 + $0x9] sm:$0x7f]
      %s3708 = scalar_lea.vmem %s298, 672
      %v3709 = vld [vmem:[%s3708] sm:$0xff]
      %v3710 = vld [vmem:[%s3708 + $0x8] sm:$0x7f]
      %v3711 = vld [vmem:[%s3708 + $0x1] sm:$0xff]
      %v3712 = vld [vmem:[%s3708 + $0x9] sm:$0x7f]
      %s3713 = scalar_lea.vmem %s298, 688
      %v3714 = vld [vmem:[%s3713] sm:$0xff]
      %v3715 = vld [vmem:[%s3713 + $0x8] sm:$0x7f]
      %v3716 = vld [vmem:[%s3713 + $0x1] sm:$0xff]
      %v3717 = vld [vmem:[%s3713 + $0x9] sm:$0x7f]
      %3720 = vrot.lane.b32.xlu0 %v3684, 12
      %v3721 = vpop.permute.xlu0 %3720
      %3722 = vrot.lane.b32.xlu0 %v3685, 12
      %v3723 = vpop.permute.xlu0 %3722
      %3728 = vrot.lane.b32.xlu0 %v3686, 24
      %v3729 = vpop.permute.xlu0 %3728
      %3730 = vrot.lane.b32.xlu0 %v3687, 24
      %v3731 = vpop.permute.xlu0 %3730
      %3736 = vrot.lane.b32.xlu0 %v3688, 36
      %v3737 = vpop.permute.xlu0 %3736
      %3738 = vrot.lane.b32.xlu0 %v3689, 36
      %v3739 = vpop.permute.xlu0 %3738
      %3744 = vrot.lane.b32.xlu0 %v3690, 48
      %v3745 = vpop.permute.xlu0 %3744
      %3746 = vrot.lane.b32.xlu0 %v3691, 48
      %v3747 = vpop.permute.xlu0 %3746
      %3752 = vrot.lane.b32.xlu0 %v3692, 60
      %v3753 = vpop.permute.xlu0 %3752
      %3754 = vrot.lane.b32.xlu0 %v3693, 60
      %v3755 = vpop.permute.xlu0 %3754
      %3760 = vrot.lane.b32.xlu0 %v3694, 72
      %v3761 = vpop.permute.xlu0 %3760
      %3762 = vrot.lane.b32.xlu0 %v3695, 72
      %v3763 = vpop.permute.xlu0 %3762
      %3768 = vrot.lane.b32.xlu0 %v3696, 84
      %v3769 = vpop.permute.xlu0 %3768
      %3770 = vrot.lane.b32.xlu0 %v3697, 84
      %v3771 = vpop.permute.xlu0 %3770
      %3776 = vrot.lane.b32.xlu0 %v3699, 96
      %v3777 = vpop.permute.xlu0 %3776
      %3778 = vrot.lane.b32.xlu0 %v3700, 96
      %v3779 = vpop.permute.xlu0 %3778
      %3784 = vrot.lane.b32.xlu0 %v3701, 108
      %v3785 = vpop.permute.xlu0 %3784
      %3786 = vrot.lane.b32.xlu0 %v3702, 108
      %v3787 = vpop.permute.xlu0 %3786
      %3792 = vrot.lane.b32.xlu0 %v3704, 120
      %v3793 = vpop.permute.xlu0 %3792
      %3794 = vrot.lane.b32.xlu0 %v3705, 120
      %v3795 = vpop.permute.xlu0 %3794
      %3800 = vrot.lane.b32.xlu0 %v3706, 4
      %v3801 = vpop.permute.xlu0 %3800
      %3802 = vrot.lane.b32.xlu0 %v3707, 4
      %v3803 = vpop.permute.xlu0 %3802
      %3808 = vrot.lane.b32.xlu0 %v3709, 16
      %v3809 = vpop.permute.xlu0 %3808
      %3810 = vrot.lane.b32.xlu0 %v3710, 16
      %v3811 = vpop.permute.xlu0 %3810
      %3816 = vrot.lane.b32.xlu0 %v3711, 28
      %v3817 = vpop.permute.xlu0 %3816
      %3818 = vrot.lane.b32.xlu0 %v3712, 28
      %v3819 = vpop.permute.xlu0 %3818
      %3824 = vrot.lane.b32.xlu0 %v3714, 40
      %v3825 = vpop.permute.xlu0 %3824
      %3826 = vrot.lane.b32.xlu0 %v3715, 40
      %v3827 = vpop.permute.xlu0 %3826
      %3832 = vrot.lane.b32.xlu0 %v3716, 52
      %v3833 = vpop.permute.xlu0 %3832
      %3834 = vrot.lane.b32.xlu0 %v3717, 52
      %v3835 = vpop.permute.xlu0 %3834
      %v3838 = vsel %vm474, %v3682, %v3721
      %v3839 = vsel %vm474, %v3683, %v3723
      %v3840 = vsel %vm477, %v3838, %v3729
      %v3841 = vsel %vm477, %v3839, %v3731
      %v3842 = vsel %vm480, %v3840, %v3737
      %v3843 = vsel %vm480, %v3841, %v3739
      %v3844 = vsel %vm483, %v3842, %v3745
      %v3845 = vsel %vm483, %v3843, %v3747
      %v3846 = vsel %vm486, %v3844, %v3753
      %v3847 = vsel %vm486, %v3845, %v3755
      %v3848 = vsel %vm489, %v3846, %v3761
      %v3849 = vsel %vm489, %v3847, %v3763
      %v3850 = vsel %vm492, %v3848, %v3769
      %v3851 = vsel %vm492, %v3849, %v3771
      %v3852 = vsel %vm495, %v3850, %v3777
      %v3853 = vsel %vm495, %v3851, %v3779
      %v3854 = vsel %vm498, %v3852, %v3785
      %v3855 = vsel %vm498, %v3853, %v3787
      %v3856 = vsel %vm501, %v3854, %v3793
      %v3857 = vsel %vm501, %v3855, %v3795
      %v3858 = vsel %vm504, %v3793, %v3801
      %v3859 = vsel %vm504, %v3795, %v3803
      %v3860 = vsel %vm507, %v3858, %v3809
      %v3861 = vsel %vm507, %v3859, %v3811
      %v3862 = vsel %vm510, %v3860, %v3817
      %v3863 = vsel %vm510, %v3861, %v3819
      %v3864 = vsel %vm513, %v3862, %v3825
      %v3865 = vsel %vm513, %v3863, %v3827
      %v3866 = vsel %vm516, %v3864, %v3833
      %v3867 = vsel %vm516, %v3865, %v3835
      %v3868 = vpack.c.bf16 %v3857, %v3856
      %v3869 = vpack.c.bf16 %v3867, %v3866
      %v3870 = vld [vmem:[%s2] sm:$0xf]
      %v3871 = vld [vmem:[%s2 + $0x4] sm:$0xf]
      %v3872 = vld [vmem:[%s2 + $0x8] sm:$0xf]
      %v3873 = vld [vmem:[%s2 + $0xc] sm:$0xf]
      %v3874 = vld [vmem:[%s2 + $0x10] sm:$0xf]
      %v3875 = vld [vmem:[%s2 + $0x14] sm:$0xf]
      %v3876 = vld [vmem:[%s2 + $0x18] sm:$0xf]
      %v3877 = vld [vmem:[%s2 + $0x1c] sm:$0xf]
      %v3878 = vld [vmem:[%s2 + $0x20] sm:$0xf]
      %v3879 = vld [vmem:[%s2 + $0x24] sm:$0xf]
      %v3880 = vld [vmem:[%s2 + $0x28] sm:$0xf]
      %v3881 = vld [vmem:[%s2 + $0x2c] sm:$0xf]
      %v3882 = vld [vmem:[%s2 + $0x30] sm:$0xf]
      %v3883 = vld [vmem:[%s2 + $0x34] sm:$0xf]
      %v3884 = vld [vmem:[%s2 + $0x38] sm:$0xf]
      %v3885 = vld [vmem:[%s2 + $0x3c] sm:$0xf]
      %v3886 = vld [vmem:[%s2 + $0x40] sm:$0xf]
      %v3887 = vld [vmem:[%s2 + $0x44] sm:$0xf]
      %v3888 = vld [vmem:[%s2 + $0x48] sm:$0xf]
      %v3889 = vld [vmem:[%s2 + $0x4c] sm:$0xf]
      %v3890 = vld [vmem:[%s2 + $0x50] sm:$0xf]
      %v3891 = vld [vmem:[%s2 + $0x54] sm:$0xf]
      %v3892 = vld [vmem:[%s2 + $0x58] sm:$0xf]
      %v3893 = vld [vmem:[%s2 + $0x5c] sm:$0xf]
      %v3894 = vld [vmem:[%s3] sm:$0x1]
      %v3896 = vperm.slane %v3894, 0
      %v3922 = vunpack.c.l.b16 %v3870
      %v3923 = vunpack.c.l.b16 %v3871
      %v3924 = vunpack.c.l.b16 %v3872
      %v3925 = vunpack.c.l.b16 %v3873
      %v3926 = vunpack.c.l.b16 %v3874
      %v3927 = vunpack.c.l.b16 %v3875
      %v3928 = vunpack.c.l.b16 %v3876
      %v3929 = vunpack.c.l.b16 %v3877
      %v3930 = vunpack.c.l.b16 %v3878
      %v3931 = vunpack.c.l.b16 %v3879
      %v3932 = vunpack.c.l.b16 %v3880
      %v3933 = vunpack.c.l.b16 %v3881
      %v3934 = vunpack.c.l.b16 %v3882
      %v3935 = vunpack.c.l.b16 %v3883
      %v3936 = vunpack.c.l.b16 %v3884
      %v3937 = vunpack.c.l.b16 %v3885
      %v3938 = vunpack.c.l.b16 %v3886
      %v3939 = vunpack.c.l.b16 %v3887
      %v3940 = vunpack.c.l.b16 %v3888
      %v3941 = vunpack.c.l.b16 %v3889
      %v3942 = vunpack.c.l.b16 %v3890
      %v3943 = vunpack.c.l.b16 %v3891
      %v3944 = vunpack.c.l.b16 %v3892
      %v3945 = vunpack.c.l.b16 %v3893
      %v3946 = vpack.c.b16 %v3923, %v3922
      %v3947 = vpack.c.b16 %v3925, %v3924
      %v3948 = vpack.c.b16 %v3927, %v3926
      %v3949 = vpack.c.b16 %v3929, %v3928
      %v3950 = vpack.c.b16 %v3931, %v3930
      %v3951 = vpack.c.b16 %v3933, %v3932
      %v3952 = vpack.c.b16 %v3935, %v3934
      %v3953 = vpack.c.b16 %v3937, %v3936
      %v3954 = vpack.c.b16 %v3939, %v3938
      %v3955 = vpack.c.b16 %v3941, %v3940
      %v3956 = vpack.c.b16 %v3943, %v3942
      %v3957 = vpack.c.b16 %v3945, %v3944
      %v3971 = vsel %vm621, %v3869, 0
      %3973 = vmatpush.bf16.msra.mxu0 %v3953
      %3974 = vmatpush.bf16.msra.mxu0 %v3952
      %3975 = vmatpush.bf16.msra.mxu0 %v3951
      %3976 = vmatpush.bf16.msra.mxu0 %v3950
      %3977 = vmatpush.bf16.msra.mxu0 %v3949
      %3978 = vmatpush.bf16.msra.mxu0 %v3948
      %3979 = vmatpush.bf16.msra.mxu0 %v3947
      %3980 = vmatpush.bf16.msra.mxu0 %v3946
      %3981 = vmatmul.bf16.gmra.mxu0 %v3868
      %v3982 = vpop.f32.mrf.mxu0
      %v3983 = vadd.f32 %v3896, %v3982
      %v3984 = vpop.f32.mrf.mxu0
      %v3985 = vadd.f32 %v3896, %v3984
      %3986 = vdwg.mxu0
      %3987 = vmatpush.bf16.msra.mxu0 0
      %3988 = vmatpush.bf16.msra.mxu0 0
      %3989 = vmatpush.bf16.msra.mxu0 0
      %3990 = vmatpush.bf16.msra.mxu0 0
      %3991 = vmatpush.bf16.msra.mxu0 %v3957
      %3992 = vmatpush.bf16.msra.mxu0 %v3956
      %3993 = vmatpush.bf16.msra.mxu0 %v3955
      %3994 = vmatpush.bf16.msra.mxu0 %v3954
      %3995 = vmatmul.bf16.gmra.mxu0 %v3971
      %v3996 = vpop.f32.mrf.mxu0
      %v3997 = vadd.f32 %v3983, %v3996
      %v3998 = vpop.f32.mrf.mxu0
      %v3999 = vadd.f32 %v3985, %v3998
      %4000 = vdwg.mxu0
      %v4001 = vmax.f32 %v3997, 0.0
      %v4002 = vmax.f32 %v3999, 0.0
      %v4004 = vsel %vm659, %v4002, 0
      %4006 = vmatpush.msra.mxu0 0.0
      %4007 = vmatpush.msra.mxu0 0.0
      %4008 = vmatpush.msra.mxu0 0.0
      %4009 = vmatpush.msra.mxu0 0.0
      %4010 = vmatpush.msra.mxu0 0.0
      %4011 = vmatpush.msra.mxu0 0.0
      %4012 = vmatpush.msra.mxu0 0.0
      %4013 = vmatpush.msra.mxu0 0.0
      %4014 = vmatpush.msra.mxu0 0.0
      %4015 = vmatpush.msra.mxu0 0.0
      %4016 = vmatpush.msra.mxu0 0.0
      %4017 = vmatpush.msra.mxu0 0.0
      %4018 = vmatpush.msra.mxu0 0.0
      %4019 = vmatpush.msra.mxu0 0.0
      %4020 = vmatpush.msra.mxu0 %v4004
      %4021 = vmatpush.msra.mxu0 %v4001
      %4022 = vmatmul.f32.gmra.mxu0 %v657
      %v4023 = vpop.f32.mrf.mxu0
      %v4024 = vadd.f32 0.0, %v4023
      %4025 = vdwg.mxu0
      %4026 = vmatpush.msra.mxu0 0.0
      %4027 = vmatpush.msra.mxu0 0.0
      %4028 = vmatpush.msra.mxu0 0.0
      %4029 = vmatpush.msra.mxu0 0.0
      %4030 = vmatpush.msra.mxu0 0.0
      %4031 = vmatpush.msra.mxu0 0.0
      %4032 = vmatpush.msra.mxu0 0.0
      %4033 = vmatpush.msra.mxu0 0.0
      %4034 = vmatpush.msra.mxu0 0.0
      %4035 = vmatpush.msra.mxu0 0.0
      %4036 = vmatpush.msra.mxu0 0.0
      %4037 = vmatpush.msra.mxu0 0.0
      %4038 = vmatpush.msra.mxu0 0.0
      %4039 = vmatpush.msra.mxu0 0.0
      %4040 = vmatpush.msra.mxu0 %v4004
      %4041 = vmatpush.msra.mxu0 %v4001
      %4042 = vmatmul.f32.gmra.mxu0 %v684
      %v4043 = vpop.f32.mrf.mxu0
      %v4044 = vadd.f32 0.0, %v4043
      %4045 = vdwg.mxu0
      %4047 = vrot.lane.b32.xlu0 %v4044, 8
      %v4048 = vpop.permute.xlu0 %4047
      %v4050 = vsel %vm710, %v4024, %v4048
      %s4051 = scalar_lea.vmem [#allocation2], 72
      %4052 = vst.msk [vmem:[%s4051] sm:$0x7f] %vm712, %v4050
      %v4053 = vld [vmem:[%s3698] sm:$0xff]
      %v4054 = vld [vmem:[%s3698 + $0x8] sm:$0x7f]
      %v4055 = vld [vmem:[%s3698 + $0x1] sm:$0xff]
      %v4056 = vld [vmem:[%s3698 + $0x9] sm:$0x7f]
      %v4057 = vld [vmem:[%s3703] sm:$0xff]
      %v4058 = vld [vmem:[%s3703 + $0x8] sm:$0x7f]
      %v4059 = vld [vmem:[%s3703 + $0x1] sm:$0xff]
      %v4060 = vld [vmem:[%s3703 + $0x9] sm:$0x7f]
      %v4061 = vld [vmem:[%s3708] sm:$0xff]
      %v4062 = vld [vmem:[%s3708 + $0x8] sm:$0x7f]
      %v4063 = vld [vmem:[%s3708 + $0x1] sm:$0xff]
      %v4064 = vld [vmem:[%s3708 + $0x9] sm:$0x7f]
      %v4065 = vld [vmem:[%s3713] sm:$0xff]
      %v4066 = vld [vmem:[%s3713 + $0x8] sm:$0x7f]
      %v4067 = vld [vmem:[%s3713 + $0x1] sm:$0xff]
      %v4068 = vld [vmem:[%s3713 + $0x9] sm:$0x7f]
      %s4069 = scalar_lea.vmem %s298, 704
      %v4070 = vld [vmem:[%s4069] sm:$0xff]
      %v4071 = vld [vmem:[%s4069 + $0x8] sm:$0x7f]
      %v4072 = vld [vmem:[%s4069 + $0x1] sm:$0xff]
      %v4073 = vld [vmem:[%s4069 + $0x9] sm:$0x7f]
      %s4074 = scalar_lea.vmem %s298, 720
      %v4075 = vld [vmem:[%s4074] sm:$0xff]
      %v4076 = vld [vmem:[%s4074 + $0x8] sm:$0x7f]
      %v4077 = vld [vmem:[%s4074 + $0x1] sm:$0xff]
      %v4078 = vld [vmem:[%s4074 + $0x9] sm:$0x7f]
      %s4079 = scalar_lea.vmem %s298, 736
      %v4080 = vld [vmem:[%s4079] sm:$0xff]
      %v4081 = vld [vmem:[%s4079 + $0x8] sm:$0x7f]
      %v4082 = vld [vmem:[%s4079 + $0x1] sm:$0xff]
      %v4083 = vld [vmem:[%s4079 + $0x9] sm:$0x7f]
      %s4084 = scalar_lea.vmem %s298, 752
      %v4085 = vld [vmem:[%s4084] sm:$0xff]
      %v4086 = vld [vmem:[%s4084 + $0x8] sm:$0x7f]
      %v4087 = vld [vmem:[%s4084 + $0x1] sm:$0xff]
      %v4088 = vld [vmem:[%s4084 + $0x9] sm:$0x7f]
      %4091 = vrot.lane.b32.xlu0 %v4055, 12
      %v4092 = vpop.permute.xlu0 %4091
      %4093 = vrot.lane.b32.xlu0 %v4056, 12
      %v4094 = vpop.permute.xlu0 %4093
      %4099 = vrot.lane.b32.xlu0 %v4057, 24
      %v4100 = vpop.permute.xlu0 %4099
      %4101 = vrot.lane.b32.xlu0 %v4058, 24
      %v4102 = vpop.permute.xlu0 %4101
      %4107 = vrot.lane.b32.xlu0 %v4059, 36
      %v4108 = vpop.permute.xlu0 %4107
      %4109 = vrot.lane.b32.xlu0 %v4060, 36
      %v4110 = vpop.permute.xlu0 %4109
      %4115 = vrot.lane.b32.xlu0 %v4061, 48
      %v4116 = vpop.permute.xlu0 %4115
      %4117 = vrot.lane.b32.xlu0 %v4062, 48
      %v4118 = vpop.permute.xlu0 %4117
      %4123 = vrot.lane.b32.xlu0 %v4063, 60
      %v4124 = vpop.permute.xlu0 %4123
      %4125 = vrot.lane.b32.xlu0 %v4064, 60
      %v4126 = vpop.permute.xlu0 %4125
      %4131 = vrot.lane.b32.xlu0 %v4065, 72
      %v4132 = vpop.permute.xlu0 %4131
      %4133 = vrot.lane.b32.xlu0 %v4066, 72
      %v4134 = vpop.permute.xlu0 %4133
      %4139 = vrot.lane.b32.xlu0 %v4067, 84
      %v4140 = vpop.permute.xlu0 %4139
      %4141 = vrot.lane.b32.xlu0 %v4068, 84
      %v4142 = vpop.permute.xlu0 %4141
      %4147 = vrot.lane.b32.xlu0 %v4070, 96
      %v4148 = vpop.permute.xlu0 %4147
      %4149 = vrot.lane.b32.xlu0 %v4071, 96
      %v4150 = vpop.permute.xlu0 %4149
      %4155 = vrot.lane.b32.xlu0 %v4072, 108
      %v4156 = vpop.permute.xlu0 %4155
      %4157 = vrot.lane.b32.xlu0 %v4073, 108
      %v4158 = vpop.permute.xlu0 %4157
      %4163 = vrot.lane.b32.xlu0 %v4075, 120
      %v4164 = vpop.permute.xlu0 %4163
      %4165 = vrot.lane.b32.xlu0 %v4076, 120
      %v4166 = vpop.permute.xlu0 %4165
      %4171 = vrot.lane.b32.xlu0 %v4077, 4
      %v4172 = vpop.permute.xlu0 %4171
      %4173 = vrot.lane.b32.xlu0 %v4078, 4
      %v4174 = vpop.permute.xlu0 %4173
      %4179 = vrot.lane.b32.xlu0 %v4080, 16
      %v4180 = vpop.permute.xlu0 %4179
      %4181 = vrot.lane.b32.xlu0 %v4081, 16
      %v4182 = vpop.permute.xlu0 %4181
      %4187 = vrot.lane.b32.xlu0 %v4082, 28
      %v4188 = vpop.permute.xlu0 %4187
      %4189 = vrot.lane.b32.xlu0 %v4083, 28
      %v4190 = vpop.permute.xlu0 %4189
      %4195 = vrot.lane.b32.xlu0 %v4085, 40
      %v4196 = vpop.permute.xlu0 %4195
      %4197 = vrot.lane.b32.xlu0 %v4086, 40
      %v4198 = vpop.permute.xlu0 %4197
      %4203 = vrot.lane.b32.xlu0 %v4087, 52
      %v4204 = vpop.permute.xlu0 %4203
      %4205 = vrot.lane.b32.xlu0 %v4088, 52
      %v4206 = vpop.permute.xlu0 %4205
      %v4209 = vsel %vm474, %v4053, %v4092
      %v4210 = vsel %vm474, %v4054, %v4094
      %v4211 = vsel %vm477, %v4209, %v4100
      %v4212 = vsel %vm477, %v4210, %v4102
      %v4213 = vsel %vm480, %v4211, %v4108
      %v4214 = vsel %vm480, %v4212, %v4110
      %v4215 = vsel %vm483, %v4213, %v4116
      %v4216 = vsel %vm483, %v4214, %v4118
      %v4217 = vsel %vm486, %v4215, %v4124
      %v4218 = vsel %vm486, %v4216, %v4126
      %v4219 = vsel %vm489, %v4217, %v4132
      %v4220 = vsel %vm489, %v4218, %v4134
      %v4221 = vsel %vm492, %v4219, %v4140
      %v4222 = vsel %vm492, %v4220, %v4142
      %v4223 = vsel %vm495, %v4221, %v4148
      %v4224 = vsel %vm495, %v4222, %v4150
      %v4225 = vsel %vm498, %v4223, %v4156
      %v4226 = vsel %vm498, %v4224, %v4158
      %v4227 = vsel %vm501, %v4225, %v4164
      %v4228 = vsel %vm501, %v4226, %v4166
      %v4229 = vsel %vm504, %v4164, %v4172
      %v4230 = vsel %vm504, %v4166, %v4174
      %v4231 = vsel %vm507, %v4229, %v4180
      %v4232 = vsel %vm507, %v4230, %v4182
      %v4233 = vsel %vm510, %v4231, %v4188
      %v4234 = vsel %vm510, %v4232, %v4190
      %v4235 = vsel %vm513, %v4233, %v4196
      %v4236 = vsel %vm513, %v4234, %v4198
      %v4237 = vsel %vm516, %v4235, %v4204
      %v4238 = vsel %vm516, %v4236, %v4206
      %v4239 = vpack.c.bf16 %v4228, %v4227
      %v4240 = vpack.c.bf16 %v4238, %v4237
      %v4241 = vld [vmem:[%s2] sm:$0xf]
      %v4242 = vld [vmem:[%s2 + $0x4] sm:$0xf]
      %v4243 = vld [vmem:[%s2 + $0x8] sm:$0xf]
      %v4244 = vld [vmem:[%s2 + $0xc] sm:$0xf]
      %v4245 = vld [vmem:[%s2 + $0x10] sm:$0xf]
      %v4246 = vld [vmem:[%s2 + $0x14] sm:$0xf]
      %v4247 = vld [vmem:[%s2 + $0x18] sm:$0xf]
      %v4248 = vld [vmem:[%s2 + $0x1c] sm:$0xf]
      %v4249 = vld [vmem:[%s2 + $0x20] sm:$0xf]
      %v4250 = vld [vmem:[%s2 + $0x24] sm:$0xf]
      %v4251 = vld [vmem:[%s2 + $0x28] sm:$0xf]
      %v4252 = vld [vmem:[%s2 + $0x2c] sm:$0xf]
      %v4253 = vld [vmem:[%s2 + $0x30] sm:$0xf]
      %v4254 = vld [vmem:[%s2 + $0x34] sm:$0xf]
      %v4255 = vld [vmem:[%s2 + $0x38] sm:$0xf]
      %v4256 = vld [vmem:[%s2 + $0x3c] sm:$0xf]
      %v4257 = vld [vmem:[%s2 + $0x40] sm:$0xf]
      %v4258 = vld [vmem:[%s2 + $0x44] sm:$0xf]
      %v4259 = vld [vmem:[%s2 + $0x48] sm:$0xf]
      %v4260 = vld [vmem:[%s2 + $0x4c] sm:$0xf]
      %v4261 = vld [vmem:[%s2 + $0x50] sm:$0xf]
      %v4262 = vld [vmem:[%s2 + $0x54] sm:$0xf]
      %v4263 = vld [vmem:[%s2 + $0x58] sm:$0xf]
      %v4264 = vld [vmem:[%s2 + $0x5c] sm:$0xf]
      %v4265 = vld [vmem:[%s3] sm:$0x1]
      %v4267 = vperm.slane %v4265, 0
      %v4293 = vunpack.c.l.b16 %v4241
      %v4294 = vunpack.c.l.b16 %v4242
      %v4295 = vunpack.c.l.b16 %v4243
      %v4296 = vunpack.c.l.b16 %v4244
      %v4297 = vunpack.c.l.b16 %v4245
      %v4298 = vunpack.c.l.b16 %v4246
      %v4299 = vunpack.c.l.b16 %v4247
      %v4300 = vunpack.c.l.b16 %v4248
      %v4301 = vunpack.c.l.b16 %v4249
      %v4302 = vunpack.c.l.b16 %v4250
      %v4303 = vunpack.c.l.b16 %v4251
      %v4304 = vunpack.c.l.b16 %v4252
      %v4305 = vunpack.c.l.b16 %v4253
      %v4306 = vunpack.c.l.b16 %v4254
      %v4307 = vunpack.c.l.b16 %v4255
      %v4308 = vunpack.c.l.b16 %v4256
      %v4309 = vunpack.c.l.b16 %v4257
      %v4310 = vunpack.c.l.b16 %v4258
      %v4311 = vunpack.c.l.b16 %v4259
      %v4312 = vunpack.c.l.b16 %v4260
      %v4313 = vunpack.c.l.b16 %v4261
      %v4314 = vunpack.c.l.b16 %v4262
      %v4315 = vunpack.c.l.b16 %v4263
      %v4316 = vunpack.c.l.b16 %v4264
      %v4317 = vpack.c.b16 %v4294, %v4293
      %v4318 = vpack.c.b16 %v4296, %v4295
      %v4319 = vpack.c.b16 %v4298, %v4297
      %v4320 = vpack.c.b16 %v4300, %v4299
      %v4321 = vpack.c.b16 %v4302, %v4301
      %v4322 = vpack.c.b16 %v4304, %v4303
      %v4323 = vpack.c.b16 %v4306, %v4305
      %v4324 = vpack.c.b16 %v4308, %v4307
      %v4325 = vpack.c.b16 %v4310, %v4309
      %v4326 = vpack.c.b16 %v4312, %v4311
      %v4327 = vpack.c.b16 %v4314, %v4313
      %v4328 = vpack.c.b16 %v4316, %v4315
      %v4342 = vsel %vm621, %v4240, 0
      %4344 = vmatpush.bf16.msra.mxu0 %v4324
      %4345 = vmatpush.bf16.msra.mxu0 %v4323
      %4346 = vmatpush.bf16.msra.mxu0 %v4322
      %4347 = vmatpush.bf16.msra.mxu0 %v4321
      %4348 = vmatpush.bf16.msra.mxu0 %v4320
      %4349 = vmatpush.bf16.msra.mxu0 %v4319
      %4350 = vmatpush.bf16.msra.mxu0 %v4318
      %4351 = vmatpush.bf16.msra.mxu0 %v4317
      %4352 = vmatmul.bf16.gmra.mxu0 %v4239
      %v4353 = vpop.f32.mrf.mxu0
      %v4354 = vadd.f32 %v4267, %v4353
      %v4355 = vpop.f32.mrf.mxu0
      %v4356 = vadd.f32 %v4267, %v4355
      %4357 = vdwg.mxu0
      %4358 = vmatpush.bf16.msra.mxu0 0
      %4359 = vmatpush.bf16.msra.mxu0 0
      %4360 = vmatpush.bf16.msra.mxu0 0
      %4361 = vmatpush.bf16.msra.mxu0 0
      %4362 = vmatpush.bf16.msra.mxu0 %v4328
      %4363 = vmatpush.bf16.msra.mxu0 %v4327
      %4364 = vmatpush.bf16.msra.mxu0 %v4326
      %4365 = vmatpush.bf16.msra.mxu0 %v4325
      %4366 = vmatmul.bf16.gmra.mxu0 %v4342
      %v4367 = vpop.f32.mrf.mxu0
      %v4368 = vadd.f32 %v4354, %v4367
      %v4369 = vpop.f32.mrf.mxu0
      %v4370 = vadd.f32 %v4356, %v4369
      %4371 = vdwg.mxu0
      %v4372 = vmax.f32 %v4368, 0.0
      %v4373 = vmax.f32 %v4370, 0.0
      %v4375 = vsel %vm659, %v4373, 0
      %4377 = vmatpush.msra.mxu0 0.0
      %4378 = vmatpush.msra.mxu0 0.0
      %4379 = vmatpush.msra.mxu0 0.0
      %4380 = vmatpush.msra.mxu0 0.0
      %4381 = vmatpush.msra.mxu0 0.0
      %4382 = vmatpush.msra.mxu0 0.0
      %4383 = vmatpush.msra.mxu0 0.0
      %4384 = vmatpush.msra.mxu0 0.0
      %4385 = vmatpush.msra.mxu0 0.0
      %4386 = vmatpush.msra.mxu0 0.0
      %4387 = vmatpush.msra.mxu0 0.0
      %4388 = vmatpush.msra.mxu0 0.0
      %4389 = vmatpush.msra.mxu0 0.0
      %4390 = vmatpush.msra.mxu0 0.0
      %4391 = vmatpush.msra.mxu0 %v4375
      %4392 = vmatpush.msra.mxu0 %v4372
      %4393 = vmatmul.f32.gmra.mxu0 %v657
      %v4394 = vpop.f32.mrf.mxu0
      %v4395 = vadd.f32 0.0, %v4394
      %4396 = vdwg.mxu0
      %4397 = vmatpush.msra.mxu0 0.0
      %4398 = vmatpush.msra.mxu0 0.0
      %4399 = vmatpush.msra.mxu0 0.0
      %4400 = vmatpush.msra.mxu0 0.0
      %4401 = vmatpush.msra.mxu0 0.0
      %4402 = vmatpush.msra.mxu0 0.0
      %4403 = vmatpush.msra.mxu0 0.0
      %4404 = vmatpush.msra.mxu0 0.0
      %4405 = vmatpush.msra.mxu0 0.0
      %4406 = vmatpush.msra.mxu0 0.0
      %4407 = vmatpush.msra.mxu0 0.0
      %4408 = vmatpush.msra.mxu0 0.0
      %4409 = vmatpush.msra.mxu0 0.0
      %4410 = vmatpush.msra.mxu0 0.0
      %4411 = vmatpush.msra.mxu0 %v4375
      %4412 = vmatpush.msra.mxu0 %v4372
      %4413 = vmatmul.f32.gmra.mxu0 %v684
      %v4414 = vpop.f32.mrf.mxu0
      %v4415 = vadd.f32 0.0, %v4414
      %4416 = vdwg.mxu0
      %4418 = vrot.lane.b32.xlu0 %v4415, 8
      %v4419 = vpop.permute.xlu0 %4418
      %v4421 = vsel %vm710, %v4395, %v4419
      %s4422 = scalar_lea.vmem [#allocation2], 80
      %4423 = vst.msk [vmem:[%s4422] sm:$0x7f] %vm712, %v4421
      %v4424 = vld [vmem:[%s4069] sm:$0xff]
      %v4425 = vld [vmem:[%s4069 + $0x8] sm:$0x7f]
      %v4426 = vld [vmem:[%s4069 + $0x1] sm:$0xff]
      %v4427 = vld [vmem:[%s4069 + $0x9] sm:$0x7f]
      %v4428 = vld [vmem:[%s4074] sm:$0xff]
      %v4429 = vld [vmem:[%s4074 + $0x8] sm:$0x7f]
      %v4430 = vld [vmem:[%s4074 + $0x1] sm:$0xff]
      %v4431 = vld [vmem:[%s4074 + $0x9] sm:$0x7f]
      %v4432 = vld [vmem:[%s4079] sm:$0xff]
      %v4433 = vld [vmem:[%s4079 + $0x8] sm:$0x7f]
      %v4434 = vld [vmem:[%s4079 + $0x1] sm:$0xff]
      %v4435 = vld [vmem:[%s4079 + $0x9] sm:$0x7f]
      %v4436 = vld [vmem:[%s4084] sm:$0xff]
      %v4437 = vld [vmem:[%s4084 + $0x8] sm:$0x7f]
      %v4438 = vld [vmem:[%s4084 + $0x1] sm:$0xff]
      %v4439 = vld [vmem:[%s4084 + $0x9] sm:$0x7f]
      %s4440 = scalar_lea.vmem %s298, 768
      %v4441 = vld [vmem:[%s4440] sm:$0xff]
      %v4442 = vld [vmem:[%s4440 + $0x8] sm:$0x7f]
      %v4443 = vld [vmem:[%s4440 + $0x1] sm:$0xff]
      %v4444 = vld [vmem:[%s4440 + $0x9] sm:$0x7f]
      %s4445 = scalar_lea.vmem %s298, 784
      %v4446 = vld [vmem:[%s4445] sm:$0xff]
      %v4447 = vld [vmem:[%s4445 + $0x8] sm:$0x7f]
      %v4448 = vld [vmem:[%s4445 + $0x1] sm:$0xff]
      %v4449 = vld [vmem:[%s4445 + $0x9] sm:$0x7f]
      %s4450 = scalar_lea.vmem %s298, 800
      %v4451 = vld [vmem:[%s4450] sm:$0xff]
      %v4452 = vld [vmem:[%s4450 + $0x8] sm:$0x7f]
      %v4453 = vld [vmem:[%s4450 + $0x1] sm:$0xff]
      %v4454 = vld [vmem:[%s4450 + $0x9] sm:$0x7f]
      %s4455 = scalar_lea.vmem %s298, 816
      %v4456 = vld [vmem:[%s4455] sm:$0xff]
      %v4457 = vld [vmem:[%s4455 + $0x8] sm:$0x7f]
      %v4458 = vld [vmem:[%s4455 + $0x1] sm:$0xff]
      %v4459 = vld [vmem:[%s4455 + $0x9] sm:$0x7f]
      %4462 = vrot.lane.b32.xlu0 %v4426, 12
      %v4463 = vpop.permute.xlu0 %4462
      %4464 = vrot.lane.b32.xlu0 %v4427, 12
      %v4465 = vpop.permute.xlu0 %4464
      %4470 = vrot.lane.b32.xlu0 %v4428, 24
      %v4471 = vpop.permute.xlu0 %4470
      %4472 = vrot.lane.b32.xlu0 %v4429, 24
      %v4473 = vpop.permute.xlu0 %4472
      %4478 = vrot.lane.b32.xlu0 %v4430, 36
      %v4479 = vpop.permute.xlu0 %4478
      %4480 = vrot.lane.b32.xlu0 %v4431, 36
      %v4481 = vpop.permute.xlu0 %4480
      %4486 = vrot.lane.b32.xlu0 %v4432, 48
      %v4487 = vpop.permute.xlu0 %4486
      %4488 = vrot.lane.b32.xlu0 %v4433, 48
      %v4489 = vpop.permute.xlu0 %4488
      %4494 = vrot.lane.b32.xlu0 %v4434, 60
      %v4495 = vpop.permute.xlu0 %4494
      %4496 = vrot.lane.b32.xlu0 %v4435, 60
      %v4497 = vpop.permute.xlu0 %4496
      %4502 = vrot.lane.b32.xlu0 %v4436, 72
      %v4503 = vpop.permute.xlu0 %4502
      %4504 = vrot.lane.b32.xlu0 %v4437, 72
      %v4505 = vpop.permute.xlu0 %4504
      %4510 = vrot.lane.b32.xlu0 %v4438, 84
      %v4511 = vpop.permute.xlu0 %4510
      %4512 = vrot.lane.b32.xlu0 %v4439, 84
      %v4513 = vpop.permute.xlu0 %4512
      %4518 = vrot.lane.b32.xlu0 %v4441, 96
      %v4519 = vpop.permute.xlu0 %4518
      %4520 = vrot.lane.b32.xlu0 %v4442, 96
      %v4521 = vpop.permute.xlu0 %4520
      %4526 = vrot.lane.b32.xlu0 %v4443, 108
      %v4527 = vpop.permute.xlu0 %4526
      %4528 = vrot.lane.b32.xlu0 %v4444, 108
      %v4529 = vpop.permute.xlu0 %4528
      %4534 = vrot.lane.b32.xlu0 %v4446, 120
      %v4535 = vpop.permute.xlu0 %4534
      %4536 = vrot.lane.b32.xlu0 %v4447, 120
      %v4537 = vpop.permute.xlu0 %4536
      %4542 = vrot.lane.b32.xlu0 %v4448, 4
      %v4543 = vpop.permute.xlu0 %4542
      %4544 = vrot.lane.b32.xlu0 %v4449, 4
      %v4545 = vpop.permute.xlu0 %4544
      %4550 = vrot.lane.b32.xlu0 %v4451, 16
      %v4551 = vpop.permute.xlu0 %4550
      %4552 = vrot.lane.b32.xlu0 %v4452, 16
      %v4553 = vpop.permute.xlu0 %4552
      %4558 = vrot.lane.b32.xlu0 %v4453, 28
      %v4559 = vpop.permute.xlu0 %4558
      %4560 = vrot.lane.b32.xlu0 %v4454, 28
      %v4561 = vpop.permute.xlu0 %4560
      %4566 = vrot.lane.b32.xlu0 %v4456, 40
      %v4567 = vpop.permute.xlu0 %4566
      %4568 = vrot.lane.b32.xlu0 %v4457, 40
      %v4569 = vpop.permute.xlu0 %4568
      %4574 = vrot.lane.b32.xlu0 %v4458, 52
      %v4575 = vpop.permute.xlu0 %4574
      %4576 = vrot.lane.b32.xlu0 %v4459, 52
      %v4577 = vpop.permute.xlu0 %4576
      %v4580 = vsel %vm474, %v4424, %v4463
      %v4581 = vsel %vm474, %v4425, %v4465
      %v4582 = vsel %vm477, %v4580, %v4471
      %v4583 = vsel %vm477, %v4581, %v4473
      %v4584 = vsel %vm480, %v4582, %v4479
      %v4585 = vsel %vm480, %v4583, %v4481
      %v4586 = vsel %vm483, %v4584, %v4487
      %v4587 = vsel %vm483, %v4585, %v4489
      %v4588 = vsel %vm486, %v4586, %v4495
      %v4589 = vsel %vm486, %v4587, %v4497
      %v4590 = vsel %vm489, %v4588, %v4503
      %v4591 = vsel %vm489, %v4589, %v4505
      %v4592 = vsel %vm492, %v4590, %v4511
      %v4593 = vsel %vm492, %v4591, %v4513
      %v4594 = vsel %vm495, %v4592, %v4519
      %v4595 = vsel %vm495, %v4593, %v4521
      %v4596 = vsel %vm498, %v4594, %v4527
      %v4597 = vsel %vm498, %v4595, %v4529
      %v4598 = vsel %vm501, %v4596, %v4535
      %v4599 = vsel %vm501, %v4597, %v4537
      %v4600 = vsel %vm504, %v4535, %v4543
      %v4601 = vsel %vm504, %v4537, %v4545
      %v4602 = vsel %vm507, %v4600, %v4551
      %v4603 = vsel %vm507, %v4601, %v4553
      %v4604 = vsel %vm510, %v4602, %v4559
      %v4605 = vsel %vm510, %v4603, %v4561
      %v4606 = vsel %vm513, %v4604, %v4567
      %v4607 = vsel %vm513, %v4605, %v4569
      %v4608 = vsel %vm516, %v4606, %v4575
      %v4609 = vsel %vm516, %v4607, %v4577
      %v4610 = vpack.c.bf16 %v4599, %v4598
      %v4611 = vpack.c.bf16 %v4609, %v4608
      %v4612 = vld [vmem:[%s2] sm:$0xf]
      %v4613 = vld [vmem:[%s2 + $0x4] sm:$0xf]
      %v4614 = vld [vmem:[%s2 + $0x8] sm:$0xf]
      %v4615 = vld [vmem:[%s2 + $0xc] sm:$0xf]
      %v4616 = vld [vmem:[%s2 + $0x10] sm:$0xf]
      %v4617 = vld [vmem:[%s2 + $0x14] sm:$0xf]
      %v4618 = vld [vmem:[%s2 + $0x18] sm:$0xf]
      %v4619 = vld [vmem:[%s2 + $0x1c] sm:$0xf]
      %v4620 = vld [vmem:[%s2 + $0x20] sm:$0xf]
      %v4621 = vld [vmem:[%s2 + $0x24] sm:$0xf]
      %v4622 = vld [vmem:[%s2 + $0x28] sm:$0xf]
      %v4623 = vld [vmem:[%s2 + $0x2c] sm:$0xf]
      %v4624 = vld [vmem:[%s2 + $0x30] sm:$0xf]
      %v4625 = vld [vmem:[%s2 + $0x34] sm:$0xf]
      %v4626 = vld [vmem:[%s2 + $0x38] sm:$0xf]
      %v4627 = vld [vmem:[%s2 + $0x3c] sm:$0xf]
      %v4628 = vld [vmem:[%s2 + $0x40] sm:$0xf]
      %v4629 = vld [vmem:[%s2 + $0x44] sm:$0xf]
      %v4630 = vld [vmem:[%s2 + $0x48] sm:$0xf]
      %v4631 = vld [vmem:[%s2 + $0x4c] sm:$0xf]
      %v4632 = vld [vmem:[%s2 + $0x50] sm:$0xf]
      %v4633 = vld [vmem:[%s2 + $0x54] sm:$0xf]
      %v4634 = vld [vmem:[%s2 + $0x58] sm:$0xf]
      %v4635 = vld [vmem:[%s2 + $0x5c] sm:$0xf]
      %v4636 = vld [vmem:[%s3] sm:$0x1]
      %v4638 = vperm.slane %v4636, 0
      %v4664 = vunpack.c.l.b16 %v4612
      %v4665 = vunpack.c.l.b16 %v4613
      %v4666 = vunpack.c.l.b16 %v4614
      %v4667 = vunpack.c.l.b16 %v4615
      %v4668 = vunpack.c.l.b16 %v4616
      %v4669 = vunpack.c.l.b16 %v4617
      %v4670 = vunpack.c.l.b16 %v4618
      %v4671 = vunpack.c.l.b16 %v4619
      %v4672 = vunpack.c.l.b16 %v4620
      %v4673 = vunpack.c.l.b16 %v4621
      %v4674 = vunpack.c.l.b16 %v4622
      %v4675 = vunpack.c.l.b16 %v4623
      %v4676 = vunpack.c.l.b16 %v4624
      %v4677 = vunpack.c.l.b16 %v4625
      %v4678 = vunpack.c.l.b16 %v4626
      %v4679 = vunpack.c.l.b16 %v4627
      %v4680 = vunpack.c.l.b16 %v4628
      %v4681 = vunpack.c.l.b16 %v4629
      %v4682 = vunpack.c.l.b16 %v4630
      %v4683 = vunpack.c.l.b16 %v4631
      %v4684 = vunpack.c.l.b16 %v4632
      %v4685 = vunpack.c.l.b16 %v4633
      %v4686 = vunpack.c.l.b16 %v4634
      %v4687 = vunpack.c.l.b16 %v4635
      %v4688 = vpack.c.b16 %v4665, %v4664
      %v4689 = vpack.c.b16 %v4667, %v4666
      %v4690 = vpack.c.b16 %v4669, %v4668
      %v4691 = vpack.c.b16 %v4671, %v4670
      %v4692 = vpack.c.b16 %v4673, %v4672
      %v4693 = vpack.c.b16 %v4675, %v4674
      %v4694 = vpack.c.b16 %v4677, %v4676
      %v4695 = vpack.c.b16 %v4679, %v4678
      %v4696 = vpack.c.b16 %v4681, %v4680
      %v4697 = vpack.c.b16 %v4683, %v4682
      %v4698 = vpack.c.b16 %v4685, %v4684
      %v4699 = vpack.c.b16 %v4687, %v4686
      %v4713 = vsel %vm621, %v4611, 0
      %4715 = vmatpush.bf16.msra.mxu0 %v4695
      %4716 = vmatpush.bf16.msra.mxu0 %v4694
      %4717 = vmatpush.bf16.msra.mxu0 %v4693
      %4718 = vmatpush.bf16.msra.mxu0 %v4692
      %4719 = vmatpush.bf16.msra.mxu0 %v4691
      %4720 = vmatpush.bf16.msra.mxu0 %v4690
      %4721 = vmatpush.bf16.msra.mxu0 %v4689
      %4722 = vmatpush.bf16.msra.mxu0 %v4688
      %4723 = vmatmul.bf16.gmra.mxu0 %v4610
      %v4724 = vpop.f32.mrf.mxu0
      %v4725 = vadd.f32 %v4638, %v4724
      %v4726 = vpop.f32.mrf.mxu0
      %v4727 = vadd.f32 %v4638, %v4726
      %4728 = vdwg.mxu0
      %4729 = vmatpush.bf16.msra.mxu0 0
      %4730 = vmatpush.bf16.msra.mxu0 0
      %4731 = vmatpush.bf16.msra.mxu0 0
      %4732 = vmatpush.bf16.msra.mxu0 0
      %4733 = vmatpush.bf16.msra.mxu0 %v4699
      %4734 = vmatpush.bf16.msra.mxu0 %v4698
      %4735 = vmatpush.bf16.msra.mxu0 %v4697
      %4736 = vmatpush.bf16.msra.mxu0 %v4696
      %4737 = vmatmul.bf16.gmra.mxu0 %v4713
      %v4738 = vpop.f32.mrf.mxu0
      %v4739 = vadd.f32 %v4725, %v4738
      %v4740 = vpop.f32.mrf.mxu0
      %v4741 = vadd.f32 %v4727, %v4740
      %4742 = vdwg.mxu0
      %v4743 = vmax.f32 %v4739, 0.0
      %v4744 = vmax.f32 %v4741, 0.0
      %v4746 = vsel %vm659, %v4744, 0
      %4748 = vmatpush.msra.mxu0 0.0
      %4749 = vmatpush.msra.mxu0 0.0
      %4750 = vmatpush.msra.mxu0 0.0
      %4751 = vmatpush.msra.mxu0 0.0
      %4752 = vmatpush.msra.mxu0 0.0
      %4753 = vmatpush.msra.mxu0 0.0
      %4754 = vmatpush.msra.mxu0 0.0
      %4755 = vmatpush.msra.mxu0 0.0
      %4756 = vmatpush.msra.mxu0 0.0
      %4757 = vmatpush.msra.mxu0 0.0
      %4758 = vmatpush.msra.mxu0 0.0
      %4759 = vmatpush.msra.mxu0 0.0
      %4760 = vmatpush.msra.mxu0 0.0
      %4761 = vmatpush.msra.mxu0 0.0
      %4762 = vmatpush.msra.mxu0 %v4746
      %4763 = vmatpush.msra.mxu0 %v4743
      %4764 = vmatmul.f32.gmra.mxu0 %v657
      %v4765 = vpop.f32.mrf.mxu0
      %v4766 = vadd.f32 0.0, %v4765
      %4767 = vdwg.mxu0
      %4768 = vmatpush.msra.mxu0 0.0
      %4769 = vmatpush.msra.mxu0 0.0
      %4770 = vmatpush.msra.mxu0 0.0
      %4771 = vmatpush.msra.mxu0 0.0
      %4772 = vmatpush.msra.mxu0 0.0
      %4773 = vmatpush.msra.mxu0 0.0
      %4774 = vmatpush.msra.mxu0 0.0
      %4775 = vmatpush.msra.mxu0 0.0
      %4776 = vmatpush.msra.mxu0 0.0
      %4777 = vmatpush.msra.mxu0 0.0
      %4778 = vmatpush.msra.mxu0 0.0
      %4779 = vmatpush.msra.mxu0 0.0
      %4780 = vmatpush.msra.mxu0 0.0
      %4781 = vmatpush.msra.mxu0 0.0
      %4782 = vmatpush.msra.mxu0 %v4746
      %4783 = vmatpush.msra.mxu0 %v4743
      %4784 = vmatmul.f32.gmra.mxu0 %v684
      %v4785 = vpop.f32.mrf.mxu0
      %v4786 = vadd.f32 0.0, %v4785
      %4787 = vdwg.mxu0
      %4789 = vrot.lane.b32.xlu0 %v4786, 8
      %v4790 = vpop.permute.xlu0 %4789
      %v4792 = vsel %vm710, %v4766, %v4790
      %s4793 = scalar_lea.vmem [#allocation2], 88
      %4794 = vst.msk [vmem:[%s4793] sm:$0x7f] %vm712, %v4792
      %v4795 = vld [vmem:[%s4440] sm:$0xff]
      %v4796 = vld [vmem:[%s4440 + $0x8] sm:$0x7f]
      %v4797 = vld [vmem:[%s4440 + $0x1] sm:$0xff]
      %v4798 = vld [vmem:[%s4440 + $0x9] sm:$0x7f]
      %v4799 = vld [vmem:[%s4445] sm:$0xff]
      %v4800 = vld [vmem:[%s4445 + $0x8] sm:$0x7f]
      %v4801 = vld [vmem:[%s4445 + $0x1] sm:$0xff]
      %v4802 = vld [vmem:[%s4445 + $0x9] sm:$0x7f]
      %v4803 = vld [vmem:[%s4450] sm:$0xff]
      %v4804 = vld [vmem:[%s4450 + $0x8] sm:$0x7f]
      %v4805 = vld [vmem:[%s4450 + $0x1] sm:$0xff]
      %v4806 = vld [vmem:[%s4450 + $0x9] sm:$0x7f]
      %v4807 = vld [vmem:[%s4455] sm:$0xff]
      %v4808 = vld [vmem:[%s4455 + $0x8] sm:$0x7f]
      %v4809 = vld [vmem:[%s4455 + $0x1] sm:$0xff]
      %v4810 = vld [vmem:[%s4455 + $0x9] sm:$0x7f]
      %s4811 = scalar_lea.vmem %s298, 832
      %v4812 = vld [vmem:[%s4811] sm:$0xff]
      %v4813 = vld [vmem:[%s4811 + $0x8] sm:$0x7f]
      %v4814 = vld [vmem:[%s4811 + $0x1] sm:$0xff]
      %v4815 = vld [vmem:[%s4811 + $0x9] sm:$0x7f]
      %s4816 = scalar_lea.vmem %s298, 848
      %v4817 = vld [vmem:[%s4816] sm:$0xff]
      %v4818 = vld [vmem:[%s4816 + $0x8] sm:$0x7f]
      %v4819 = vld [vmem:[%s4816 + $0x1] sm:$0xff]
      %v4820 = vld [vmem:[%s4816 + $0x9] sm:$0x7f]
      %s4821 = scalar_lea.vmem %s298, 864
      %v4822 = vld [vmem:[%s4821] sm:$0xff]
      %v4823 = vld [vmem:[%s4821 + $0x8] sm:$0x7f]
      %v4824 = vld [vmem:[%s4821 + $0x1] sm:$0xff]
      %v4825 = vld [vmem:[%s4821 + $0x9] sm:$0x7f]
      %s4826 = scalar_lea.vmem %s298, 880
      %v4827 = vld [vmem:[%s4826] sm:$0xff]
      %v4828 = vld [vmem:[%s4826 + $0x8] sm:$0x7f]
      %v4829 = vld [vmem:[%s4826 + $0x1] sm:$0xff]
      %v4830 = vld [vmem:[%s4826 + $0x9] sm:$0x7f]
      %4833 = vrot.lane.b32.xlu0 %v4797, 12
      %v4834 = vpop.permute.xlu0 %4833
      %4835 = vrot.lane.b32.xlu0 %v4798, 12
      %v4836 = vpop.permute.xlu0 %4835
      %4841 = vrot.lane.b32.xlu0 %v4799, 24
      %v4842 = vpop.permute.xlu0 %4841
      %4843 = vrot.lane.b32.xlu0 %v4800, 24
      %v4844 = vpop.permute.xlu0 %4843
      %4849 = vrot.lane.b32.xlu0 %v4801, 36
      %v4850 = vpop.permute.xlu0 %4849
      %4851 = vrot.lane.b32.xlu0 %v4802, 36
      %v4852 = vpop.permute.xlu0 %4851
      %4857 = vrot.lane.b32.xlu0 %v4803, 48
      %v4858 = vpop.permute.xlu0 %4857
      %4859 = vrot.lane.b32.xlu0 %v4804, 48
      %v4860 = vpop.permute.xlu0 %4859
      %4865 = vrot.lane.b32.xlu0 %v4805, 60
      %v4866 = vpop.permute.xlu0 %4865
      %4867 = vrot.lane.b32.xlu0 %v4806, 60
      %v4868 = vpop.permute.xlu0 %4867
      %4873 = vrot.lane.b32.xlu0 %v4807, 72
      %v4874 = vpop.permute.xlu0 %4873
      %4875 = vrot.lane.b32.xlu0 %v4808, 72
      %v4876 = vpop.permute.xlu0 %4875
      %4881 = vrot.lane.b32.xlu0 %v4809, 84
      %v4882 = vpop.permute.xlu0 %4881
      %4883 = vrot.lane.b32.xlu0 %v4810, 84
      %v4884 = vpop.permute.xlu0 %4883
      %4889 = vrot.lane.b32.xlu0 %v4812, 96
      %v4890 = vpop.permute.xlu0 %4889
      %4891 = vrot.lane.b32.xlu0 %v4813, 96
      %v4892 = vpop.permute.xlu0 %4891
      %4897 = vrot.lane.b32.xlu0 %v4814, 108
      %v4898 = vpop.permute.xlu0 %4897
      %4899 = vrot.lane.b32.xlu0 %v4815, 108
      %v4900 = vpop.permute.xlu0 %4899
      %4905 = vrot.lane.b32.xlu0 %v4817, 120
      %v4906 = vpop.permute.xlu0 %4905
      %4907 = vrot.lane.b32.xlu0 %v4818, 120
      %v4908 = vpop.permute.xlu0 %4907
      %4913 = vrot.lane.b32.xlu0 %v4819, 4
      %v4914 = vpop.permute.xlu0 %4913
      %4915 = vrot.lane.b32.xlu0 %v4820, 4
      %v4916 = vpop.permute.xlu0 %4915
      %4921 = vrot.lane.b32.xlu0 %v4822, 16
      %v4922 = vpop.permute.xlu0 %4921
      %4923 = vrot.lane.b32.xlu0 %v4823, 16
      %v4924 = vpop.permute.xlu0 %4923
      %4929 = vrot.lane.b32.xlu0 %v4824, 28
      %v4930 = vpop.permute.xlu0 %4929
      %4931 = vrot.lane.b32.xlu0 %v4825, 28
      %v4932 = vpop.permute.xlu0 %4931
      %4937 = vrot.lane.b32.xlu0 %v4827, 40
      %v4938 = vpop.permute.xlu0 %4937
      %4939 = vrot.lane.b32.xlu0 %v4828, 40
      %v4940 = vpop.permute.xlu0 %4939
      %4945 = vrot.lane.b32.xlu0 %v4829, 52
      %v4946 = vpop.permute.xlu0 %4945
      %4947 = vrot.lane.b32.xlu0 %v4830, 52
      %v4948 = vpop.permute.xlu0 %4947
      %v4951 = vsel %vm474, %v4795, %v4834
      %v4952 = vsel %vm474, %v4796, %v4836
      %v4953 = vsel %vm477, %v4951, %v4842
      %v4954 = vsel %vm477, %v4952, %v4844
      %v4955 = vsel %vm480, %v4953, %v4850
      %v4956 = vsel %vm480, %v4954, %v4852
      %v4957 = vsel %vm483, %v4955, %v4858
      %v4958 = vsel %vm483, %v4956, %v4860
      %v4959 = vsel %vm486, %v4957, %v4866
      %v4960 = vsel %vm486, %v4958, %v4868
      %v4961 = vsel %vm489, %v4959, %v4874
      %v4962 = vsel %vm489, %v4960, %v4876
      %v4963 = vsel %vm492, %v4961, %v4882
      %v4964 = vsel %vm492, %v4962, %v4884
      %v4965 = vsel %vm495, %v4963, %v4890
      %v4966 = vsel %vm495, %v4964, %v4892
      %v4967 = vsel %vm498, %v4965, %v4898
      %v4968 = vsel %vm498, %v4966, %v4900
      %v4969 = vsel %vm501, %v4967, %v4906
      %v4970 = vsel %vm501, %v4968, %v4908
      %v4971 = vsel %vm504, %v4906, %v4914
      %v4972 = vsel %vm504, %v4908, %v4916
      %v4973 = vsel %vm507, %v4971, %v4922
      %v4974 = vsel %vm507, %v4972, %v4924
      %v4975 = vsel %vm510, %v4973, %v4930
      %v4976 = vsel %vm510, %v4974, %v4932
      %v4977 = vsel %vm513, %v4975, %v4938
      %v4978 = vsel %vm513, %v4976, %v4940
      %v4979 = vsel %vm516, %v4977, %v4946
      %v4980 = vsel %vm516, %v4978, %v4948
      %v4981 = vpack.c.bf16 %v4970, %v4969
      %v4982 = vpack.c.bf16 %v4980, %v4979
      %v4983 = vld [vmem:[%s2] sm:$0xf]
      %v4984 = vld [vmem:[%s2 + $0x4] sm:$0xf]
      %v4985 = vld [vmem:[%s2 + $0x8] sm:$0xf]
      %v4986 = vld [vmem:[%s2 + $0xc] sm:$0xf]
      %v4987 = vld [vmem:[%s2 + $0x10] sm:$0xf]
      %v4988 = vld [vmem:[%s2 + $0x14] sm:$0xf]
      %v4989 = vld [vmem:[%s2 + $0x18] sm:$0xf]
      %v4990 = vld [vmem:[%s2 + $0x1c] sm:$0xf]
      %v4991 = vld [vmem:[%s2 + $0x20] sm:$0xf]
      %v4992 = vld [vmem:[%s2 + $0x24] sm:$0xf]
      %v4993 = vld [vmem:[%s2 + $0x28] sm:$0xf]
      %v4994 = vld [vmem:[%s2 + $0x2c] sm:$0xf]
      %v4995 = vld [vmem:[%s2 + $0x30] sm:$0xf]
      %v4996 = vld [vmem:[%s2 + $0x34] sm:$0xf]
      %v4997 = vld [vmem:[%s2 + $0x38] sm:$0xf]
      %v4998 = vld [vmem:[%s2 + $0x3c] sm:$0xf]
      %v4999 = vld [vmem:[%s2 + $0x40] sm:$0xf]
      %v5000 = vld [vmem:[%s2 + $0x44] sm:$0xf]
      %v5001 = vld [vmem:[%s2 + $0x48] sm:$0xf]
      %v5002 = vld [vmem:[%s2 + $0x4c] sm:$0xf]
      %v5003 = vld [vmem:[%s2 + $0x50] sm:$0xf]
      %v5004 = vld [vmem:[%s2 + $0x54] sm:$0xf]
      %v5005 = vld [vmem:[%s2 + $0x58] sm:$0xf]
      %v5006 = vld [vmem:[%s2 + $0x5c] sm:$0xf]
      %v5007 = vld [vmem:[%s3] sm:$0x1]
      %v5009 = vperm.slane %v5007, 0
      %v5035 = vunpack.c.l.b16 %v4983
      %v5036 = vunpack.c.l.b16 %v4984
      %v5037 = vunpack.c.l.b16 %v4985
      %v5038 = vunpack.c.l.b16 %v4986
      %v5039 = vunpack.c.l.b16 %v4987
      %v5040 = vunpack.c.l.b16 %v4988
      %v5041 = vunpack.c.l.b16 %v4989
      %v5042 = vunpack.c.l.b16 %v4990
      %v5043 = vunpack.c.l.b16 %v4991
      %v5044 = vunpack.c.l.b16 %v4992
      %v5045 = vunpack.c.l.b16 %v4993
      %v5046 = vunpack.c.l.b16 %v4994
      %v5047 = vunpack.c.l.b16 %v4995
      %v5048 = vunpack.c.l.b16 %v4996
      %v5049 = vunpack.c.l.b16 %v4997
      %v5050 = vunpack.c.l.b16 %v4998
      %v5051 = vunpack.c.l.b16 %v4999
      %v5052 = vunpack.c.l.b16 %v5000
      %v5053 = vunpack.c.l.b16 %v5001
      %v5054 = vunpack.c.l.b16 %v5002
      %v5055 = vunpack.c.l.b16 %v5003
      %v5056 = vunpack.c.l.b16 %v5004
      %v5057 = vunpack.c.l.b16 %v5005
      %v5058 = vunpack.c.l.b16 %v5006
      %v5059 = vpack.c.b16 %v5036, %v5035
      %v5060 = vpack.c.b16 %v5038, %v5037
      %v5061 = vpack.c.b16 %v5040, %v5039
      %v5062 = vpack.c.b16 %v5042, %v5041
      %v5063 = vpack.c.b16 %v5044, %v5043
      %v5064 = vpack.c.b16 %v5046, %v5045
      %v5065 = vpack.c.b16 %v5048, %v5047
      %v5066 = vpack.c.b16 %v5050, %v5049
      %v5067 = vpack.c.b16 %v5052, %v5051
      %v5068 = vpack.c.b16 %v5054, %v5053
      %v5069 = vpack.c.b16 %v5056, %v5055
      %v5070 = vpack.c.b16 %v5058, %v5057
      %v5084 = vsel %vm621, %v4982, 0
      %5086 = vmatpush.bf16.msra.mxu0 %v5066
      %5087 = vmatpush.bf16.msra.mxu0 %v5065
      %5088 = vmatpush.bf16.msra.mxu0 %v5064
      %5089 = vmatpush.bf16.msra.mxu0 %v5063
      %5090 = vmatpush.bf16.msra.mxu0 %v5062
      %5091 = vmatpush.bf16.msra.mxu0 %v5061
      %5092 = vmatpush.bf16.msra.mxu0 %v5060
      %5093 = vmatpush.bf16.msra.mxu0 %v5059
      %5094 = vmatmul.bf16.gmra.mxu0 %v4981
      %v5095 = vpop.f32.mrf.mxu0
      %v5096 = vadd.f32 %v5009, %v5095
      %v5097 = vpop.f32.mrf.mxu0
      %v5098 = vadd.f32 %v5009, %v5097
      %5099 = vdwg.mxu0
      %5100 = vmatpush.bf16.msra.mxu0 0
      %5101 = vmatpush.bf16.msra.mxu0 0
      %5102 = vmatpush.bf16.msra.mxu0 0
      %5103 = vmatpush.bf16.msra.mxu0 0
      %5104 = vmatpush.bf16.msra.mxu0 %v5070
      %5105 = vmatpush.bf16.msra.mxu0 %v5069
      %5106 = vmatpush.bf16.msra.mxu0 %v5068
      %5107 = vmatpush.bf16.msra.mxu0 %v5067
      %5108 = vmatmul.bf16.gmra.mxu0 %v5084
      %v5109 = vpop.f32.mrf.mxu0
      %v5110 = vadd.f32 %v5096, %v5109
      %v5111 = vpop.f32.mrf.mxu0
      %v5112 = vadd.f32 %v5098, %v5111
      %5113 = vdwg.mxu0
      %v5114 = vmax.f32 %v5110, 0.0
      %v5115 = vmax.f32 %v5112, 0.0
      %v5117 = vsel %vm659, %v5115, 0
      %5119 = vmatpush.msra.mxu0 0.0
      %5120 = vmatpush.msra.mxu0 0.0
      %5121 = vmatpush.msra.mxu0 0.0
      %5122 = vmatpush.msra.mxu0 0.0
      %5123 = vmatpush.msra.mxu0 0.0
      %5124 = vmatpush.msra.mxu0 0.0
      %5125 = vmatpush.msra.mxu0 0.0
      %5126 = vmatpush.msra.mxu0 0.0
      %5127 = vmatpush.msra.mxu0 0.0
      %5128 = vmatpush.msra.mxu0 0.0
      %5129 = vmatpush.msra.mxu0 0.0
      %5130 = vmatpush.msra.mxu0 0.0
      %5131 = vmatpush.msra.mxu0 0.0
      %5132 = vmatpush.msra.mxu0 0.0
      %5133 = vmatpush.msra.mxu0 %v5117
      %5134 = vmatpush.msra.mxu0 %v5114
      %5135 = vmatmul.f32.gmra.mxu0 %v657
      %v5136 = vpop.f32.mrf.mxu0
      %v5137 = vadd.f32 0.0, %v5136
      %5138 = vdwg.mxu0
      %5139 = vmatpush.msra.mxu0 0.0
      %5140 = vmatpush.msra.mxu0 0.0
      %5141 = vmatpush.msra.mxu0 0.0
      %5142 = vmatpush.msra.mxu0 0.0
      %5143 = vmatpush.msra.mxu0 0.0
      %5144 = vmatpush.msra.mxu0 0.0
      %5145 = vmatpush.msra.mxu0 0.0
      %5146 = vmatpush.msra.mxu0 0.0
      %5147 = vmatpush.msra.mxu0 0.0
      %5148 = vmatpush.msra.mxu0 0.0
      %5149 = vmatpush.msra.mxu0 0.0
      %5150 = vmatpush.msra.mxu0 0.0
      %5151 = vmatpush.msra.mxu0 0.0
      %5152 = vmatpush.msra.mxu0 0.0
      %5153 = vmatpush.msra.mxu0 %v5117
      %5154 = vmatpush.msra.mxu0 %v5114
      %5155 = vmatmul.f32.gmra.mxu0 %v684
      %v5156 = vpop.f32.mrf.mxu0
      %v5157 = vadd.f32 0.0, %v5156
      %5158 = vdwg.mxu0
      %5160 = vrot.lane.b32.xlu0 %v5157, 8
      %v5161 = vpop.permute.xlu0 %5160
      %v5163 = vsel %vm710, %v5137, %v5161
      %s5164 = scalar_lea.vmem [#allocation2], 96
      %5165 = vst.msk [vmem:[%s5164] sm:$0x7f] %vm712, %v5163
      %v5166 = vld [vmem:[%s4811] sm:$0xff]
      %v5167 = vld [vmem:[%s4811 + $0x8] sm:$0x7f]
      %v5168 = vld [vmem:[%s4811 + $0x1] sm:$0xff]
      %v5169 = vld [vmem:[%s4811 + $0x9] sm:$0x7f]
      %v5170 = vld [vmem:[%s4816] sm:$0xff]
      %v5171 = vld [vmem:[%s4816 + $0x8] sm:$0x7f]
      %v5172 = vld [vmem:[%s4816 + $0x1] sm:$0xff]
      %v5173 = vld [vmem:[%s4816 + $0x9] sm:$0x7f]
      %v5174 = vld [vmem:[%s4821] sm:$0xff]
      %v5175 = vld [vmem:[%s4821 + $0x8] sm:$0x7f]
      %v5176 = vld [vmem:[%s4821 + $0x1] sm:$0xff]
      %v5177 = vld [vmem:[%s4821 + $0x9] sm:$0x7f]
      %v5178 = vld [vmem:[%s4826] sm:$0xff]
      %v5179 = vld [vmem:[%s4826 + $0x8] sm:$0x7f]
      %v5180 = vld [vmem:[%s4826 + $0x1] sm:$0xff]
      %v5181 = vld [vmem:[%s4826 + $0x9] sm:$0x7f]
      %s5182 = scalar_lea.vmem %s298, 896
      %v5183 = vld [vmem:[%s5182] sm:$0xff]
      %v5184 = vld [vmem:[%s5182 + $0x8] sm:$0x7f]
      %v5185 = vld [vmem:[%s5182 + $0x1] sm:$0xff]
      %v5186 = vld [vmem:[%s5182 + $0x9] sm:$0x7f]
      %s5187 = scalar_lea.vmem %s298, 912
      %v5188 = vld [vmem:[%s5187] sm:$0xff]
      %v5189 = vld [vmem:[%s5187 + $0x8] sm:$0x7f]
      %v5190 = vld [vmem:[%s5187 + $0x1] sm:$0xff]
      %v5191 = vld [vmem:[%s5187 + $0x9] sm:$0x7f]
      %s5192 = scalar_lea.vmem %s298, 928
      %v5193 = vld [vmem:[%s5192] sm:$0xff]
      %v5194 = vld [vmem:[%s5192 + $0x8] sm:$0x7f]
      %v5195 = vld [vmem:[%s5192 + $0x1] sm:$0xff]
      %v5196 = vld [vmem:[%s5192 + $0x9] sm:$0x7f]
      %s5197 = scalar_lea.vmem %s298, 944
      %v5198 = vld [vmem:[%s5197] sm:$0xff]
      %v5199 = vld [vmem:[%s5197 + $0x8] sm:$0x7f]
      %v5200 = vld [vmem:[%s5197 + $0x1] sm:$0xff]
      %v5201 = vld [vmem:[%s5197 + $0x9] sm:$0x7f]
      %5204 = vrot.lane.b32.xlu0 %v5168, 12
      %v5205 = vpop.permute.xlu0 %5204
      %5206 = vrot.lane.b32.xlu0 %v5169, 12
      %v5207 = vpop.permute.xlu0 %5206
      %5212 = vrot.lane.b32.xlu0 %v5170, 24
      %v5213 = vpop.permute.xlu0 %5212
      %5214 = vrot.lane.b32.xlu0 %v5171, 24
      %v5215 = vpop.permute.xlu0 %5214
      %5220 = vrot.lane.b32.xlu0 %v5172, 36
      %v5221 = vpop.permute.xlu0 %5220
      %5222 = vrot.lane.b32.xlu0 %v5173, 36
      %v5223 = vpop.permute.xlu0 %5222
      %5228 = vrot.lane.b32.xlu0 %v5174, 48
      %v5229 = vpop.permute.xlu0 %5228
      %5230 = vrot.lane.b32.xlu0 %v5175, 48
      %v5231 = vpop.permute.xlu0 %5230
      %5236 = vrot.lane.b32.xlu0 %v5176, 60
      %v5237 = vpop.permute.xlu0 %5236
      %5238 = vrot.lane.b32.xlu0 %v5177, 60
      %v5239 = vpop.permute.xlu0 %5238
      %5244 = vrot.lane.b32.xlu0 %v5178, 72
      %v5245 = vpop.permute.xlu0 %5244
      %5246 = vrot.lane.b32.xlu0 %v5179, 72
      %v5247 = vpop.permute.xlu0 %5246
      %5252 = vrot.lane.b32.xlu0 %v5180, 84
      %v5253 = vpop.permute.xlu0 %5252
      %5254 = vrot.lane.b32.xlu0 %v5181, 84
      %v5255 = vpop.permute.xlu0 %5254
      %5260 = vrot.lane.b32.xlu0 %v5183, 96
      %v5261 = vpop.permute.xlu0 %5260
      %5262 = vrot.lane.b32.xlu0 %v5184, 96
      %v5263 = vpop.permute.xlu0 %5262
      %5268 = vrot.lane.b32.xlu0 %v5185, 108
      %v5269 = vpop.permute.xlu0 %5268
      %5270 = vrot.lane.b32.xlu0 %v5186, 108
      %v5271 = vpop.permute.xlu0 %5270
      %5276 = vrot.lane.b32.xlu0 %v5188, 120
      %v5277 = vpop.permute.xlu0 %5276
      %5278 = vrot.lane.b32.xlu0 %v5189, 120
      %v5279 = vpop.permute.xlu0 %5278
      %5284 = vrot.lane.b32.xlu0 %v5190, 4
      %v5285 = vpop.permute.xlu0 %5284
      %5286 = vrot.lane.b32.xlu0 %v5191, 4
      %v5287 = vpop.permute.xlu0 %5286
      %5292 = vrot.lane.b32.xlu0 %v5193, 16
      %v5293 = vpop.permute.xlu0 %5292
      %5294 = vrot.lane.b32.xlu0 %v5194, 16
      %v5295 = vpop.permute.xlu0 %5294
      %5300 = vrot.lane.b32.xlu0 %v5195, 28
      %v5301 = vpop.permute.xlu0 %5300
      %5302 = vrot.lane.b32.xlu0 %v5196, 28
      %v5303 = vpop.permute.xlu0 %5302
      %5308 = vrot.lane.b32.xlu0 %v5198, 40
      %v5309 = vpop.permute.xlu0 %5308
      %5310 = vrot.lane.b32.xlu0 %v5199, 40
      %v5311 = vpop.permute.xlu0 %5310
      %5316 = vrot.lane.b32.xlu0 %v5200, 52
      %v5317 = vpop.permute.xlu0 %5316
      %5318 = vrot.lane.b32.xlu0 %v5201, 52
      %v5319 = vpop.permute.xlu0 %5318
      %v5322 = vsel %vm474, %v5166, %v5205
      %v5323 = vsel %vm474, %v5167, %v5207
      %v5324 = vsel %vm477, %v5322, %v5213
      %v5325 = vsel %vm477, %v5323, %v5215
      %v5326 = vsel %vm480, %v5324, %v5221
      %v5327 = vsel %vm480, %v5325, %v5223
      %v5328 = vsel %vm483, %v5326, %v5229
      %v5329 = vsel %vm483, %v5327, %v5231
      %v5330 = vsel %vm486, %v5328, %v5237
      %v5331 = vsel %vm486, %v5329, %v5239
      %v5332 = vsel %vm489, %v5330, %v5245
      %v5333 = vsel %vm489, %v5331, %v5247
      %v5334 = vsel %vm492, %v5332, %v5253
      %v5335 = vsel %vm492, %v5333, %v5255
      %v5336 = vsel %vm495, %v5334, %v5261
      %v5337 = vsel %vm495, %v5335, %v5263
      %v5338 = vsel %vm498, %v5336, %v5269
      %v5339 = vsel %vm498, %v5337, %v5271
      %v5340 = vsel %vm501, %v5338, %v5277
      %v5341 = vsel %vm501, %v5339, %v5279
      %v5342 = vsel %vm504, %v5277, %v5285
      %v5343 = vsel %vm504, %v5279, %v5287
      %v5344 = vsel %vm507, %v5342, %v5293
      %v5345 = vsel %vm507, %v5343, %v5295
      %v5346 = vsel %vm510, %v5344, %v5301
      %v5347 = vsel %vm510, %v5345, %v5303
      %v5348 = vsel %vm513, %v5346, %v5309
      %v5349 = vsel %vm513, %v5347, %v5311
      %v5350 = vsel %vm516, %v5348, %v5317
      %v5351 = vsel %vm516, %v5349, %v5319
      %v5352 = vpack.c.bf16 %v5341, %v5340
      %v5353 = vpack.c.bf16 %v5351, %v5350
      %v5354 = vld [vmem:[%s2] sm:$0xf]
      %v5355 = vld [vmem:[%s2 + $0x4] sm:$0xf]
      %v5356 = vld [vmem:[%s2 + $0x8] sm:$0xf]
      %v5357 = vld [vmem:[%s2 + $0xc] sm:$0xf]
      %v5358 = vld [vmem:[%s2 + $0x10] sm:$0xf]
      %v5359 = vld [vmem:[%s2 + $0x14] sm:$0xf]
      %v5360 = vld [vmem:[%s2 + $0x18] sm:$0xf]
      %v5361 = vld [vmem:[%s2 + $0x1c] sm:$0xf]
      %v5362 = vld [vmem:[%s2 + $0x20] sm:$0xf]
      %v5363 = vld [vmem:[%s2 + $0x24] sm:$0xf]
      %v5364 = vld [vmem:[%s2 + $0x28] sm:$0xf]
      %v5365 = vld [vmem:[%s2 + $0x2c] sm:$0xf]
      %v5366 = vld [vmem:[%s2 + $0x30] sm:$0xf]
      %v5367 = vld [vmem:[%s2 + $0x34] sm:$0xf]
      %v5368 = vld [vmem:[%s2 + $0x38] sm:$0xf]
      %v5369 = vld [vmem:[%s2 + $0x3c] sm:$0xf]
      %v5370 = vld [vmem:[%s2 + $0x40] sm:$0xf]
      %v5371 = vld [vmem:[%s2 + $0x44] sm:$0xf]
      %v5372 = vld [vmem:[%s2 + $0x48] sm:$0xf]
      %v5373 = vld [vmem:[%s2 + $0x4c] sm:$0xf]
      %v5374 = vld [vmem:[%s2 + $0x50] sm:$0xf]
      %v5375 = vld [vmem:[%s2 + $0x54] sm:$0xf]
      %v5376 = vld [vmem:[%s2 + $0x58] sm:$0xf]
      %v5377 = vld [vmem:[%s2 + $0x5c] sm:$0xf]
      %v5378 = vld [vmem:[%s3] sm:$0x1]
      %v5380 = vperm.slane %v5378, 0
      %v5406 = vunpack.c.l.b16 %v5354
      %v5407 = vunpack.c.l.b16 %v5355
      %v5408 = vunpack.c.l.b16 %v5356
      %v5409 = vunpack.c.l.b16 %v5357
      %v5410 = vunpack.c.l.b16 %v5358
      %v5411 = vunpack.c.l.b16 %v5359
      %v5412 = vunpack.c.l.b16 %v5360
      %v5413 = vunpack.c.l.b16 %v5361
      %v5414 = vunpack.c.l.b16 %v5362
      %v5415 = vunpack.c.l.b16 %v5363
      %v5416 = vunpack.c.l.b16 %v5364
      %v5417 = vunpack.c.l.b16 %v5365
      %v5418 = vunpack.c.l.b16 %v5366
      %v5419 = vunpack.c.l.b16 %v5367
      %v5420 = vunpack.c.l.b16 %v5368
      %v5421 = vunpack.c.l.b16 %v5369
      %v5422 = vunpack.c.l.b16 %v5370
      %v5423 = vunpack.c.l.b16 %v5371
      %v5424 = vunpack.c.l.b16 %v5372
      %v5425 = vunpack.c.l.b16 %v5373
      %v5426 = vunpack.c.l.b16 %v5374
      %v5427 = vunpack.c.l.b16 %v5375
      %v5428 = vunpack.c.l.b16 %v5376
      %v5429 = vunpack.c.l.b16 %v5377
      %v5430 = vpack.c.b16 %v5407, %v5406
      %v5431 = vpack.c.b16 %v5409, %v5408
      %v5432 = vpack.c.b16 %v5411, %v5410
      %v5433 = vpack.c.b16 %v5413, %v5412
      %v5434 = vpack.c.b16 %v5415, %v5414
      %v5435 = vpack.c.b16 %v5417, %v5416
      %v5436 = vpack.c.b16 %v5419, %v5418
      %v5437 = vpack.c.b16 %v5421, %v5420
      %v5438 = vpack.c.b16 %v5423, %v5422
      %v5439 = vpack.c.b16 %v5425, %v5424
      %v5440 = vpack.c.b16 %v5427, %v5426
      %v5441 = vpack.c.b16 %v5429, %v5428
      %v5455 = vsel %vm621, %v5353, 0
      %5457 = vmatpush.bf16.msra.mxu0 %v5437
      %5458 = vmatpush.bf16.msra.mxu0 %v5436
      %5459 = vmatpush.bf16.msra.mxu0 %v5435
      %5460 = vmatpush.bf16.msra.mxu0 %v5434
      %5461 = vmatpush.bf16.msra.mxu0 %v5433
      %5462 = vmatpush.bf16.msra.mxu0 %v5432
      %5463 = vmatpush.bf16.msra.mxu0 %v5431
      %5464 = vmatpush.bf16.msra.mxu0 %v5430
      %5465 = vmatmul.bf16.gmra.mxu0 %v5352
      %v5466 = vpop.f32.mrf.mxu0
      %v5467 = vadd.f32 %v5380, %v5466
      %v5468 = vpop.f32.mrf.mxu0
      %v5469 = vadd.f32 %v5380, %v5468
      %5470 = vdwg.mxu0
      %5471 = vmatpush.bf16.msra.mxu0 0
      %5472 = vmatpush.bf16.msra.mxu0 0
      %5473 = vmatpush.bf16.msra.mxu0 0
      %5474 = vmatpush.bf16.msra.mxu0 0
      %5475 = vmatpush.bf16.msra.mxu0 %v5441
      %5476 = vmatpush.bf16.msra.mxu0 %v5440
      %5477 = vmatpush.bf16.msra.mxu0 %v5439
      %5478 = vmatpush.bf16.msra.mxu0 %v5438
      %5479 = vmatmul.bf16.gmra.mxu0 %v5455
      %v5480 = vpop.f32.mrf.mxu0
      %v5481 = vadd.f32 %v5467, %v5480
      %v5482 = vpop.f32.mrf.mxu0
      %v5483 = vadd.f32 %v5469, %v5482
      %5484 = vdwg.mxu0
      %v5485 = vmax.f32 %v5481, 0.0
      %v5486 = vmax.f32 %v5483, 0.0
      %v5488 = vsel %vm659, %v5486, 0
      %5490 = vmatpush.msra.mxu0 0.0
      %5491 = vmatpush.msra.mxu0 0.0
      %5492 = vmatpush.msra.mxu0 0.0
      %5493 = vmatpush.msra.mxu0 0.0
      %5494 = vmatpush.msra.mxu0 0.0
      %5495 = vmatpush.msra.mxu0 0.0
      %5496 = vmatpush.msra.mxu0 0.0
      %5497 = vmatpush.msra.mxu0 0.0
      %5498 = vmatpush.msra.mxu0 0.0
      %5499 = vmatpush.msra.mxu0 0.0
      %5500 = vmatpush.msra.mxu0 0.0
      %5501 = vmatpush.msra.mxu0 0.0
      %5502 = vmatpush.msra.mxu0 0.0
      %5503 = vmatpush.msra.mxu0 0.0
      %5504 = vmatpush.msra.mxu0 %v5488
      %5505 = vmatpush.msra.mxu0 %v5485
      %5506 = vmatmul.f32.gmra.mxu0 %v657
      %v5507 = vpop.f32.mrf.mxu0
      %v5508 = vadd.f32 0.0, %v5507
      %5509 = vdwg.mxu0
      %5510 = vmatpush.msra.mxu0 0.0
      %5511 = vmatpush.msra.mxu0 0.0
      %5512 = vmatpush.msra.mxu0 0.0
      %5513 = vmatpush.msra.mxu0 0.0
      %5514 = vmatpush.msra.mxu0 0.0
      %5515 = vmatpush.msra.mxu0 0.0
      %5516 = vmatpush.msra.mxu0 0.0
      %5517 = vmatpush.msra.mxu0 0.0
      %5518 = vmatpush.msra.mxu0 0.0
      %5519 = vmatpush.msra.mxu0 0.0
      %5520 = vmatpush.msra.mxu0 0.0
      %5521 = vmatpush.msra.mxu0 0.0
      %5522 = vmatpush.msra.mxu0 0.0
      %5523 = vmatpush.msra.mxu0 0.0
      %5524 = vmatpush.msra.mxu0 %v5488
      %5525 = vmatpush.msra.mxu0 %v5485
      %5526 = vmatmul.f32.gmra.mxu0 %v684
      %v5527 = vpop.f32.mrf.mxu0
      %v5528 = vadd.f32 0.0, %v5527
      %5529 = vdwg.mxu0
      %5531 = vrot.lane.b32.xlu0 %v5528, 8
      %v5532 = vpop.permute.xlu0 %5531
      %v5534 = vsel %vm710, %v5508, %v5532
      %s5535 = scalar_lea.vmem [#allocation2], 104
      %5536 = vst.msk [vmem:[%s5535] sm:$0x7f] %vm712, %v5534
      %v5537 = vld [vmem:[%s5182] sm:$0xff]
      %v5538 = vld [vmem:[%s5182 + $0x8] sm:$0x7f]
      %v5539 = vld [vmem:[%s5182 + $0x1] sm:$0xff]
      %v5540 = vld [vmem:[%s5182 + $0x9] sm:$0x7f]
      %v5541 = vld [vmem:[%s5187] sm:$0xff]
      %v5542 = vld [vmem:[%s5187 + $0x8] sm:$0x7f]
      %v5543 = vld [vmem:[%s5187 + $0x1] sm:$0xff]
      %v5544 = vld [vmem:[%s5187 + $0x9] sm:$0x7f]
      %v5545 = vld [vmem:[%s5192] sm:$0xff]
      %v5546 = vld [vmem:[%s5192 + $0x8] sm:$0x7f]
      %v5547 = vld [vmem:[%s5192 + $0x1] sm:$0xff]
      %v5548 = vld [vmem:[%s5192 + $0x9] sm:$0x7f]
      %v5549 = vld [vmem:[%s5197] sm:$0xff]
      %v5550 = vld [vmem:[%s5197 + $0x8] sm:$0x7f]
      %v5551 = vld [vmem:[%s5197 + $0x1] sm:$0xff]
      %v5552 = vld [vmem:[%s5197 + $0x9] sm:$0x7f]
      %s5553 = scalar_lea.vmem %s298, 960
      %v5554 = vld [vmem:[%s5553] sm:$0xff]
      %v5555 = vld [vmem:[%s5553 + $0x8] sm:$0x7f]
      %v5556 = vld [vmem:[%s5553 + $0x1] sm:$0xff]
      %v5557 = vld [vmem:[%s5553 + $0x9] sm:$0x7f]
      %s5558 = scalar_lea.vmem %s298, 976
      %v5559 = vld [vmem:[%s5558] sm:$0xff]
      %v5560 = vld [vmem:[%s5558 + $0x8] sm:$0x7f]
      %v5561 = vld [vmem:[%s5558 + $0x1] sm:$0xff]
      %v5562 = vld [vmem:[%s5558 + $0x9] sm:$0x7f]
      %s5563 = scalar_lea.vmem %s298, 992
      %v5564 = vld [vmem:[%s5563] sm:$0xff]
      %v5565 = vld [vmem:[%s5563 + $0x8] sm:$0x7f]
      %v5566 = vld [vmem:[%s5563 + $0x1] sm:$0xff]
      %v5567 = vld [vmem:[%s5563 + $0x9] sm:$0x7f]
      %s5568 = scalar_lea.vmem %s298, 1008
      %v5569 = vld [vmem:[%s5568] sm:$0xff]
      %v5570 = vld [vmem:[%s5568 + $0x8] sm:$0x7f]
      %v5571 = vld [vmem:[%s5568 + $0x1] sm:$0xff]
      %v5572 = vld [vmem:[%s5568 + $0x9] sm:$0x7f]
      %5575 = vrot.lane.b32.xlu0 %v5539, 12
      %v5576 = vpop.permute.xlu0 %5575
      %5577 = vrot.lane.b32.xlu0 %v5540, 12
      %v5578 = vpop.permute.xlu0 %5577
      %5583 = vrot.lane.b32.xlu0 %v5541, 24
      %v5584 = vpop.permute.xlu0 %5583
      %5585 = vrot.lane.b32.xlu0 %v5542, 24
      %v5586 = vpop.permute.xlu0 %5585
      %5591 = vrot.lane.b32.xlu0 %v5543, 36
      %v5592 = vpop.permute.xlu0 %5591
      %5593 = vrot.lane.b32.xlu0 %v5544, 36
      %v5594 = vpop.permute.xlu0 %5593
      %5599 = vrot.lane.b32.xlu0 %v5545, 48
      %v5600 = vpop.permute.xlu0 %5599
      %5601 = vrot.lane.b32.xlu0 %v5546, 48
      %v5602 = vpop.permute.xlu0 %5601
      %5607 = vrot.lane.b32.xlu0 %v5547, 60
      %v5608 = vpop.permute.xlu0 %5607
      %5609 = vrot.lane.b32.xlu0 %v5548, 60
      %v5610 = vpop.permute.xlu0 %5609
      %5615 = vrot.lane.b32.xlu0 %v5549, 72
      %v5616 = vpop.permute.xlu0 %5615
      %5617 = vrot.lane.b32.xlu0 %v5550, 72
      %v5618 = vpop.permute.xlu0 %5617
      %5623 = vrot.lane.b32.xlu0 %v5551, 84
      %v5624 = vpop.permute.xlu0 %5623
      %5625 = vrot.lane.b32.xlu0 %v5552, 84
      %v5626 = vpop.permute.xlu0 %5625
      %5631 = vrot.lane.b32.xlu0 %v5554, 96
      %v5632 = vpop.permute.xlu0 %5631
      %5633 = vrot.lane.b32.xlu0 %v5555, 96
      %v5634 = vpop.permute.xlu0 %5633
      %5639 = vrot.lane.b32.xlu0 %v5556, 108
      %v5640 = vpop.permute.xlu0 %5639
      %5641 = vrot.lane.b32.xlu0 %v5557, 108
      %v5642 = vpop.permute.xlu0 %5641
      %5647 = vrot.lane.b32.xlu0 %v5559, 120
      %v5648 = vpop.permute.xlu0 %5647
      %5649 = vrot.lane.b32.xlu0 %v5560, 120
      %v5650 = vpop.permute.xlu0 %5649
      %5655 = vrot.lane.b32.xlu0 %v5561, 4
      %v5656 = vpop.permute.xlu0 %5655
      %5657 = vrot.lane.b32.xlu0 %v5562, 4
      %v5658 = vpop.permute.xlu0 %5657
      %5663 = vrot.lane.b32.xlu0 %v5564, 16
      %v5664 = vpop.permute.xlu0 %5663
      %5665 = vrot.lane.b32.xlu0 %v5565, 16
      %v5666 = vpop.permute.xlu0 %5665
      %5671 = vrot.lane.b32.xlu0 %v5566, 28
      %v5672 = vpop.permute.xlu0 %5671
      %5673 = vrot.lane.b32.xlu0 %v5567, 28
      %v5674 = vpop.permute.xlu0 %5673
      %5679 = vrot.lane.b32.xlu0 %v5569, 40
      %v5680 = vpop.permute.xlu0 %5679
      %5681 = vrot.lane.b32.xlu0 %v5570, 40
      %v5682 = vpop.permute.xlu0 %5681
      %5687 = vrot.lane.b32.xlu0 %v5571, 52
      %v5688 = vpop.permute.xlu0 %5687
      %5689 = vrot.lane.b32.xlu0 %v5572, 52
      %v5690 = vpop.permute.xlu0 %5689
      %v5693 = vsel %vm474, %v5537, %v5576
      %v5694 = vsel %vm474, %v5538, %v5578
      %v5695 = vsel %vm477, %v5693, %v5584
      %v5696 = vsel %vm477, %v5694, %v5586
      %v5697 = vsel %vm480, %v5695, %v5592
      %v5698 = vsel %vm480, %v5696, %v5594
      %v5699 = vsel %vm483, %v5697, %v5600
      %v5700 = vsel %vm483, %v5698, %v5602
      %v5701 = vsel %vm486, %v5699, %v5608
      %v5702 = vsel %vm486, %v5700, %v5610
      %v5703 = vsel %vm489, %v5701, %v5616
      %v5704 = vsel %vm489, %v5702, %v5618
      %v5705 = vsel %vm492, %v5703, %v5624
      %v5706 = vsel %vm492, %v5704, %v5626
      %v5707 = vsel %vm495, %v5705, %v5632
      %v5708 = vsel %vm495, %v5706, %v5634
      %v5709 = vsel %vm498, %v5707, %v5640
      %v5710 = vsel %vm498, %v5708, %v5642
      %v5711 = vsel %vm501, %v5709, %v5648
      %v5712 = vsel %vm501, %v5710, %v5650
      %v5713 = vsel %vm504, %v5648, %v5656
      %v5714 = vsel %vm504, %v5650, %v5658
      %v5715 = vsel %vm507, %v5713, %v5664
      %v5716 = vsel %vm507, %v5714, %v5666
      %v5717 = vsel %vm510, %v5715, %v5672
      %v5718 = vsel %vm510, %v5716, %v5674
      %v5719 = vsel %vm513, %v5717, %v5680
      %v5720 = vsel %vm513, %v5718, %v5682
      %v5721 = vsel %vm516, %v5719, %v5688
      %v5722 = vsel %vm516, %v5720, %v5690
      %v5723 = vpack.c.bf16 %v5712, %v5711
      %v5724 = vpack.c.bf16 %v5722, %v5721
      %v5725 = vld [vmem:[%s2] sm:$0xf]
      %v5726 = vld [vmem:[%s2 + $0x4] sm:$0xf]
      %v5727 = vld [vmem:[%s2 + $0x8] sm:$0xf]
      %v5728 = vld [vmem:[%s2 + $0xc] sm:$0xf]
      %v5729 = vld [vmem:[%s2 + $0x10] sm:$0xf]
      %v5730 = vld [vmem:[%s2 + $0x14] sm:$0xf]
      %v5731 = vld [vmem:[%s2 + $0x18] sm:$0xf]
      %v5732 = vld [vmem:[%s2 + $0x1c] sm:$0xf]
      %v5733 = vld [vmem:[%s2 + $0x20] sm:$0xf]
      %v5734 = vld [vmem:[%s2 + $0x24] sm:$0xf]
      %v5735 = vld [vmem:[%s2 + $0x28] sm:$0xf]
      %v5736 = vld [vmem:[%s2 + $0x2c] sm:$0xf]
      %v5737 = vld [vmem:[%s2 + $0x30] sm:$0xf]
      %v5738 = vld [vmem:[%s2 + $0x34] sm:$0xf]
      %v5739 = vld [vmem:[%s2 + $0x38] sm:$0xf]
      %v5740 = vld [vmem:[%s2 + $0x3c] sm:$0xf]
      %v5741 = vld [vmem:[%s2 + $0x40] sm:$0xf]
      %v5742 = vld [vmem:[%s2 + $0x44] sm:$0xf]
      %v5743 = vld [vmem:[%s2 + $0x48] sm:$0xf]
      %v5744 = vld [vmem:[%s2 + $0x4c] sm:$0xf]
      %v5745 = vld [vmem:[%s2 + $0x50] sm:$0xf]
      %v5746 = vld [vmem:[%s2 + $0x54] sm:$0xf]
      %v5747 = vld [vmem:[%s2 + $0x58] sm:$0xf]
      %v5748 = vld [vmem:[%s2 + $0x5c] sm:$0xf]
      %v5749 = vld [vmem:[%s3] sm:$0x1]
      %v5751 = vperm.slane %v5749, 0
      %v5777 = vunpack.c.l.b16 %v5725
      %v5778 = vunpack.c.l.b16 %v5726
      %v5779 = vunpack.c.l.b16 %v5727
      %v5780 = vunpack.c.l.b16 %v5728
      %v5781 = vunpack.c.l.b16 %v5729
      %v5782 = vunpack.c.l.b16 %v5730
      %v5783 = vunpack.c.l.b16 %v5731
      %v5784 = vunpack.c.l.b16 %v5732
      %v5785 = vunpack.c.l.b16 %v5733
      %v5786 = vunpack.c.l.b16 %v5734
      %v5787 = vunpack.c.l.b16 %v5735
      %v5788 = vunpack.c.l.b16 %v5736
      %v5789 = vunpack.c.l.b16 %v5737
      %v5790 = vunpack.c.l.b16 %v5738
      %v5791 = vunpack.c.l.b16 %v5739
      %v5792 = vunpack.c.l.b16 %v5740
      %v5793 = vunpack.c.l.b16 %v5741
      %v5794 = vunpack.c.l.b16 %v5742
      %v5795 = vunpack.c.l.b16 %v5743
      %v5796 = vunpack.c.l.b16 %v5744
      %v5797 = vunpack.c.l.b16 %v5745
      %v5798 = vunpack.c.l.b16 %v5746
      %v5799 = vunpack.c.l.b16 %v5747
      %v5800 = vunpack.c.l.b16 %v5748
      %v5801 = vpack.c.b16 %v5778, %v5777
      %v5802 = vpack.c.b16 %v5780, %v5779
      %v5803 = vpack.c.b16 %v5782, %v5781
      %v5804 = vpack.c.b16 %v5784, %v5783
      %v5805 = vpack.c.b16 %v5786, %v5785
      %v5806 = vpack.c.b16 %v5788, %v5787
      %v5807 = vpack.c.b16 %v5790, %v5789
      %v5808 = vpack.c.b16 %v5792, %v5791
      %v5809 = vpack.c.b16 %v5794, %v5793
      %v5810 = vpack.c.b16 %v5796, %v5795
      %v5811 = vpack.c.b16 %v5798, %v5797
      %v5812 = vpack.c.b16 %v5800, %v5799
      %v5826 = vsel %vm621, %v5724, 0
      %5828 = vmatpush.bf16.msra.mxu0 %v5808
      %5829 = vmatpush.bf16.msra.mxu0 %v5807
      %5830 = vmatpush.bf16.msra.mxu0 %v5806
      %5831 = vmatpush.bf16.msra.mxu0 %v5805
      %5832 = vmatpush.bf16.msra.mxu0 %v5804
      %5833 = vmatpush.bf16.msra.mxu0 %v5803
      %5834 = vmatpush.bf16.msra.mxu0 %v5802
      %5835 = vmatpush.bf16.msra.mxu0 %v5801
      %5836 = vmatmul.bf16.gmra.mxu0 %v5723
      %v5837 = vpop.f32.mrf.mxu0
      %v5838 = vadd.f32 %v5751, %v5837
      %v5839 = vpop.f32.mrf.mxu0
      %v5840 = vadd.f32 %v5751, %v5839
      %5841 = vdwg.mxu0
      %5842 = vmatpush.bf16.msra.mxu0 0
      %5843 = vmatpush.bf16.msra.mxu0 0
      %5844 = vmatpush.bf16.msra.mxu0 0
      %5845 = vmatpush.bf16.msra.mxu0 0
      %5846 = vmatpush.bf16.msra.mxu0 %v5812
      %5847 = vmatpush.bf16.msra.mxu0 %v5811
      %5848 = vmatpush.bf16.msra.mxu0 %v5810
      %5849 = vmatpush.bf16.msra.mxu0 %v5809
      %5850 = vmatmul.bf16.gmra.mxu0 %v5826
      %v5851 = vpop.f32.mrf.mxu0
      %v5852 = vadd.f32 %v5838, %v5851
      %v5853 = vpop.f32.mrf.mxu0
      %v5854 = vadd.f32 %v5840, %v5853
      %5855 = vdwg.mxu0
      %v5856 = vmax.f32 %v5852, 0.0
      %v5857 = vmax.f32 %v5854, 0.0
      %v5859 = vsel %vm659, %v5857, 0
      %5861 = vmatpush.msra.mxu0 0.0
      %5862 = vmatpush.msra.mxu0 0.0
      %5863 = vmatpush.msra.mxu0 0.0
      %5864 = vmatpush.msra.mxu0 0.0
      %5865 = vmatpush.msra.mxu0 0.0
      %5866 = vmatpush.msra.mxu0 0.0
      %5867 = vmatpush.msra.mxu0 0.0
      %5868 = vmatpush.msra.mxu0 0.0
      %5869 = vmatpush.msra.mxu0 0.0
      %5870 = vmatpush.msra.mxu0 0.0
      %5871 = vmatpush.msra.mxu0 0.0
      %5872 = vmatpush.msra.mxu0 0.0
      %5873 = vmatpush.msra.mxu0 0.0
      %5874 = vmatpush.msra.mxu0 0.0
      %5875 = vmatpush.msra.mxu0 %v5859
      %5876 = vmatpush.msra.mxu0 %v5856
      %5877 = vmatmul.f32.gmra.mxu0 %v657
      %v5878 = vpop.f32.mrf.mxu0
      %v5879 = vadd.f32 0.0, %v5878
      %5880 = vdwg.mxu0
      %5881 = vmatpush.msra.mxu0 0.0
      %5882 = vmatpush.msra.mxu0 0.0
      %5883 = vmatpush.msra.mxu0 0.0
      %5884 = vmatpush.msra.mxu0 0.0
      %5885 = vmatpush.msra.mxu0 0.0
      %5886 = vmatpush.msra.mxu0 0.0
      %5887 = vmatpush.msra.mxu0 0.0
      %5888 = vmatpush.msra.mxu0 0.0
      %5889 = vmatpush.msra.mxu0 0.0
      %5890 = vmatpush.msra.mxu0 0.0
      %5891 = vmatpush.msra.mxu0 0.0
      %5892 = vmatpush.msra.mxu0 0.0
      %5893 = vmatpush.msra.mxu0 0.0
      %5894 = vmatpush.msra.mxu0 0.0
      %5895 = vmatpush.msra.mxu0 %v5859
      %5896 = vmatpush.msra.mxu0 %v5856
      %5897 = vmatmul.f32.gmra.mxu0 %v684
      %v5898 = vpop.f32.mrf.mxu0
      %v5899 = vadd.f32 0.0, %v5898
      %5900 = vdwg.mxu0
      %5902 = vrot.lane.b32.xlu0 %v5899, 8
      %v5903 = vpop.permute.xlu0 %5902
      %v5905 = vsel %vm710, %v5879, %v5903
      %s5906 = scalar_lea.vmem [#allocation2], 112
      %5907 = vst.msk [vmem:[%s5906] sm:$0x7f] %vm712, %v5905
      %v5908 = vld [vmem:[#allocation2] sm:$0x3f]
      %v5909 = vld [vmem:[#allocation2 + $0x1] sm:$0x3f]
      %v5910 = vld [vmem:[%s1083] sm:$0x3f]
      %v5911 = vld [vmem:[%s1083 + $0x1] sm:$0x3f]
      %v5912 = vld [vmem:[%s1454] sm:$0x3f]
      %v5913 = vld [vmem:[%s1454 + $0x1] sm:$0x3f]
      %v5914 = vld [vmem:[%s1825] sm:$0x3f]
      %v5915 = vld [vmem:[%s1825 + $0x1] sm:$0x3f]
      %5917 = vrot.lane.b32.xlu0 %v5909, 16
      %v5918 = vpop.permute.xlu0 %5917
      %5921 = vrot.lane.b32.xlu0 %v5910, 32
      %v5922 = vpop.permute.xlu0 %5921
      %5925 = vrot.lane.b32.xlu0 %v5911, 48
      %v5926 = vpop.permute.xlu0 %5925
      %5929 = vrot.lane.b32.xlu0 %v5912, 64
      %v5930 = vpop.permute.xlu0 %5929
      %5933 = vrot.lane.b32.xlu0 %v5913, 80
      %v5934 = vpop.permute.xlu0 %5933
      %5937 = vrot.lane.b32.xlu0 %v5914, 96
      %v5938 = vpop.permute.xlu0 %5937
      %5941 = vrot.lane.b32.xlu0 %v5915, 112
      %v5942 = vpop.permute.xlu0 %5941
      %v5944 = vsel %vm507, %v5908, %v5918
      %vm5945 = vcmask 261120
      %v5946 = vsel %vm5945, %v5944, %v5922
      %v5947 = vsel %vm483, %v5946, %v5926
      %v5948 = vsel %vm621, %v5947, %v5930
      %vm5949 = vcmask 654336
      %v5950 = vsel %vm5949, %v5948, %v5934
      %v5951 = vsel %vm495, %v5950, %v5938
      %vm5952 = vcmask 916480
      %v5953 = vsel %vm5952, %v5951, %v5942
      %v5954 = vpack.c.bf16 %v5953, %v5953
      %v5955 = vld [vmem:[%s4] sm:$0xf]
      %v5956 = vld [vmem:[%s4 + $0x4] sm:$0xf]
      %v5957 = vld [vmem:[%s4 + $0x8] sm:$0xf]
      %v5958 = vld [vmem:[%s4 + $0xc] sm:$0xf]
      %v5959 = vld [vmem:[%s4 + $0x10] sm:$0xf]
      %v5960 = vld [vmem:[%s4 + $0x14] sm:$0xf]
      %v5961 = vld [vmem:[%s4 + $0x18] sm:$0xf]
      %v5962 = vld [vmem:[%s4 + $0x1c] sm:$0xf]
      %v5963 = vld [vmem:[%s4 + $0x20] sm:$0xf]
      %v5964 = vld [vmem:[%s4 + $0x24] sm:$0xf]
      %v5965 = vld [vmem:[%s4 + $0x28] sm:$0xf]
      %v5966 = vld [vmem:[%s4 + $0x2c] sm:$0xf]
      %v5967 = vld [vmem:[%s4 + $0x30] sm:$0xf]
      %v5968 = vld [vmem:[%s4 + $0x34] sm:$0xf]
      %v5969 = vld [vmem:[%s4 + $0x38] sm:$0xf]
      %v5970 = vld [vmem:[%s4 + $0x3c] sm:$0xf]
      %v5971 = vld [vmem:[%s5] sm:$0x1]
      %v5973 = vperm.slane %v5971, 0
      %v5991 = vunpack.c.l.b16 %v5955
      %v5992 = vunpack.c.l.b16 %v5956
      %v5993 = vunpack.c.l.b16 %v5957
      %v5994 = vunpack.c.l.b16 %v5958
      %v5995 = vunpack.c.l.b16 %v5959
      %v5996 = vunpack.c.l.b16 %v5960
      %v5997 = vunpack.c.l.b16 %v5961
      %v5998 = vunpack.c.l.b16 %v5962
      %v5999 = vunpack.c.l.b16 %v5963
      %v6000 = vunpack.c.l.b16 %v5964
      %v6001 = vunpack.c.l.b16 %v5965
      %v6002 = vunpack.c.l.b16 %v5966
      %v6003 = vunpack.c.l.b16 %v5967
      %v6004 = vunpack.c.l.b16 %v5968
      %v6005 = vunpack.c.l.b16 %v5969
      %v6006 = vunpack.c.l.b16 %v5970
      %v6007 = vpack.c.b16 %v5992, %v5991
      %v6008 = vpack.c.b16 %v5994, %v5993
      %v6009 = vpack.c.b16 %v5996, %v5995
      %v6010 = vpack.c.b16 %v5998, %v5997
      %v6011 = vpack.c.b16 %v6000, %v5999
      %v6012 = vpack.c.b16 %v6002, %v6001
      %v6013 = vpack.c.b16 %v6004, %v6003
      %v6014 = vpack.c.b16 %v6006, %v6005
      %6023 = vmatpush.bf16.msra.mxu0 %v6014
      %6024 = vmatpush.bf16.msra.mxu0 %v6013
      %6025 = vmatpush.bf16.msra.mxu0 %v6012
      %6026 = vmatpush.bf16.msra.mxu0 %v6011
      %6027 = vmatpush.bf16.msra.mxu0 %v6010
      %6028 = vmatpush.bf16.msra.mxu0 %v6009
      %6029 = vmatpush.bf16.msra.mxu0 %v6008
      %6030 = vmatpush.bf16.msra.mxu0 %v6007
      %6031 = vmatmul.bf16.gmra.mxu0 %v5954
      %v6032 = vpop.f32.mrf.mxu0
      %v6033 = vadd.f32 %v5973, %v6032
      %v6034 = vpop.f32.mrf.mxu0
      %6035 = vdwg.mxu0
      %v6036 = vmax.f32 %v6033, 0.0
      %vm6037 = vcmask 128000
      %6038 = vst.msk [vmem:[#allocation3] sm:$0x3f] %vm6037, %v6036
      %v6039 = vld [vmem:[%s1454] sm:$0x3f]
      %v6040 = vld [vmem:[%s1454 + $0x1] sm:$0x3f]
      %v6041 = vld [vmem:[%s1825] sm:$0x3f]
      %v6042 = vld [vmem:[%s1825 + $0x1] sm:$0x3f]
      %v6043 = vld [vmem:[%s2196] sm:$0x3f]
      %v6044 = vld [vmem:[%s2196 + $0x1] sm:$0x3f]
      %v6045 = vld [vmem:[%s2567] sm:$0x3f]
      %v6046 = vld [vmem:[%s2567 + $0x1] sm:$0x3f]
      %6048 = vrot.lane.b32.xlu0 %v6040, 16
      %v6049 = vpop.permute.xlu0 %6048
      %6052 = vrot.lane.b32.xlu0 %v6041, 32
      %v6053 = vpop.permute.xlu0 %6052
      %6056 = vrot.lane.b32.xlu0 %v6042, 48
      %v6057 = vpop.permute.xlu0 %6056
      %6060 = vrot.lane.b32.xlu0 %v6043, 64
      %v6061 = vpop.permute.xlu0 %6060
      %6064 = vrot.lane.b32.xlu0 %v6044, 80
      %v6065 = vpop.permute.xlu0 %6064
      %6068 = vrot.lane.b32.xlu0 %v6045, 96
      %v6069 = vpop.permute.xlu0 %6068
      %6072 = vrot.lane.b32.xlu0 %v6046, 112
      %v6073 = vpop.permute.xlu0 %6072
      %v6075 = vsel %vm507, %v6039, %v6049
      %v6076 = vsel %vm5945, %v6075, %v6053
      %v6077 = vsel %vm483, %v6076, %v6057
      %v6078 = vsel %vm621, %v6077, %v6061
      %v6079 = vsel %vm5949, %v6078, %v6065
      %v6080 = vsel %vm495, %v6079, %v6069
      %v6081 = vsel %vm5952, %v6080, %v6073
      %v6082 = vpack.c.bf16 %v6081, %v6081
      %v6083 = vld [vmem:[%s4] sm:$0xf]
      %v6084 = vld [vmem:[%s4 + $0x4] sm:$0xf]
      %v6085 = vld [vmem:[%s4 + $0x8] sm:$0xf]
      %v6086 = vld [vmem:[%s4 + $0xc] sm:$0xf]
      %v6087 = vld [vmem:[%s4 + $0x10] sm:$0xf]
      %v6088 = vld [vmem:[%s4 + $0x14] sm:$0xf]
      %v6089 = vld [vmem:[%s4 + $0x18] sm:$0xf]
      %v6090 = vld [vmem:[%s4 + $0x1c] sm:$0xf]
      %v6091 = vld [vmem:[%s4 + $0x20] sm:$0xf]
      %v6092 = vld [vmem:[%s4 + $0x24] sm:$0xf]
      %v6093 = vld [vmem:[%s4 + $0x28] sm:$0xf]
      %v6094 = vld [vmem:[%s4 + $0x2c] sm:$0xf]
      %v6095 = vld [vmem:[%s4 + $0x30] sm:$0xf]
      %v6096 = vld [vmem:[%s4 + $0x34] sm:$0xf]
      %v6097 = vld [vmem:[%s4 + $0x38] sm:$0xf]
      %v6098 = vld [vmem:[%s4 + $0x3c] sm:$0xf]
      %v6099 = vld [vmem:[%s5] sm:$0x1]
      %v6101 = vperm.slane %v6099, 0
      %v6119 = vunpack.c.l.b16 %v6083
      %v6120 = vunpack.c.l.b16 %v6084
      %v6121 = vunpack.c.l.b16 %v6085
      %v6122 = vunpack.c.l.b16 %v6086
      %v6123 = vunpack.c.l.b16 %v6087
      %v6124 = vunpack.c.l.b16 %v6088
      %v6125 = vunpack.c.l.b16 %v6089
      %v6126 = vunpack.c.l.b16 %v6090
      %v6127 = vunpack.c.l.b16 %v6091
      %v6128 = vunpack.c.l.b16 %v6092
      %v6129 = vunpack.c.l.b16 %v6093
      %v6130 = vunpack.c.l.b16 %v6094
      %v6131 = vunpack.c.l.b16 %v6095
      %v6132 = vunpack.c.l.b16 %v6096
      %v6133 = vunpack.c.l.b16 %v6097
      %v6134 = vunpack.c.l.b16 %v6098
      %v6135 = vpack.c.b16 %v6120, %v6119
      %v6136 = vpack.c.b16 %v6122, %v6121
      %v6137 = vpack.c.b16 %v6124, %v6123
      %v6138 = vpack.c.b16 %v6126, %v6125
      %v6139 = vpack.c.b16 %v6128, %v6127
      %v6140 = vpack.c.b16 %v6130, %v6129
      %v6141 = vpack.c.b16 %v6132, %v6131
      %v6142 = vpack.c.b16 %v6134, %v6133
      %6151 = vmatpush.bf16.msra.mxu0 %v6142
      %6152 = vmatpush.bf16.msra.mxu0 %v6141
      %6153 = vmatpush.bf16.msra.mxu0 %v6140
      %6154 = vmatpush.bf16.msra.mxu0 %v6139
      %6155 = vmatpush.bf16.msra.mxu0 %v6138
      %6156 = vmatpush.bf16.msra.mxu0 %v6137
      %6157 = vmatpush.bf16.msra.mxu0 %v6136
      %6158 = vmatpush.bf16.msra.mxu0 %v6135
      %6159 = vmatmul.bf16.gmra.mxu0 %v6082
      %v6160 = vpop.f32.mrf.mxu0
      %v6161 = vadd.f32 %v6101, %v6160
      %v6162 = vpop.f32.mrf.mxu0
      %6163 = vdwg.mxu0
      %v6164 = vmax.f32 %v6161, 0.0
      %s6165 = scalar_lea.vmem [#allocation3], 8
      %6166 = vst.msk [vmem:[%s6165] sm:$0x3f] %vm6037, %v6164
      %v6167 = vld [vmem:[%s2196] sm:$0x3f]
      %v6168 = vld [vmem:[%s2196 + $0x1] sm:$0x3f]
      %v6169 = vld [vmem:[%s2567] sm:$0x3f]
      %v6170 = vld [vmem:[%s2567 + $0x1] sm:$0x3f]
      %v6171 = vld [vmem:[%s2938] sm:$0x3f]
      %v6172 = vld [vmem:[%s2938 + $0x1] sm:$0x3f]
      %v6173 = vld [vmem:[%s3309] sm:$0x3f]
      %v6174 = vld [vmem:[%s3309 + $0x1] sm:$0x3f]
      %6176 = vrot.lane.b32.xlu0 %v6168, 16
      %v6177 = vpop.permute.xlu0 %6176
      %6180 = vrot.lane.b32.xlu0 %v6169, 32
      %v6181 = vpop.permute.xlu0 %6180
      %6184 = vrot.lane.b32.xlu0 %v6170, 48
      %v6185 = vpop.permute.xlu0 %6184
      %6188 = vrot.lane.b32.xlu0 %v6171, 64
      %v6189 = vpop.permute.xlu0 %6188
      %6192 = vrot.lane.b32.xlu0 %v6172, 80
      %v6193 = vpop.permute.xlu0 %6192
      %6196 = vrot.lane.b32.xlu0 %v6173, 96
      %v6197 = vpop.permute.xlu0 %6196
      %6200 = vrot.lane.b32.xlu0 %v6174, 112
      %v6201 = vpop.permute.xlu0 %6200
      %v6203 = vsel %vm507, %v6167, %v6177
      %v6204 = vsel %vm5945, %v6203, %v6181
      %v6205 = vsel %vm483, %v6204, %v6185
      %v6206 = vsel %vm621, %v6205, %v6189
      %v6207 = vsel %vm5949, %v6206, %v6193
      %v6208 = vsel %vm495, %v6207, %v6197
      %v6209 = vsel %vm5952, %v6208, %v6201
      %v6210 = vpack.c.bf16 %v6209, %v6209
      %v6211 = vld [vmem:[%s4] sm:$0xf]
      %v6212 = vld [vmem:[%s4 + $0x4] sm:$0xf]
      %v6213 = vld [vmem:[%s4 + $0x8] sm:$0xf]
      %v6214 = vld [vmem:[%s4 + $0xc] sm:$0xf]
      %v6215 = vld [vmem:[%s4 + $0x10] sm:$0xf]
      %v6216 = vld [vmem:[%s4 + $0x14] sm:$0xf]
      %v6217 = vld [vmem:[%s4 + $0x18] sm:$0xf]
      %v6218 = vld [vmem:[%s4 + $0x1c] sm:$0xf]
      %v6219 = vld [vmem:[%s4 + $0x20] sm:$0xf]
      %v6220 = vld [vmem:[%s4 + $0x24] sm:$0xf]
      %v6221 = vld [vmem:[%s4 + $0x28] sm:$0xf]
      %v6222 = vld [vmem:[%s4 + $0x2c] sm:$0xf]
      %v6223 = vld [vmem:[%s4 + $0x30] sm:$0xf]
      %v6224 = vld [vmem:[%s4 + $0x34] sm:$0xf]
      %v6225 = vld [vmem:[%s4 + $0x38] sm:$0xf]
      %v6226 = vld [vmem:[%s4 + $0x3c] sm:$0xf]
      %v6227 = vld [vmem:[%s5] sm:$0x1]
      %v6229 = vperm.slane %v6227, 0
      %v6247 = vunpack.c.l.b16 %v6211
      %v6248 = vunpack.c.l.b16 %v6212
      %v6249 = vunpack.c.l.b16 %v6213
      %v6250 = vunpack.c.l.b16 %v6214
      %v6251 = vunpack.c.l.b16 %v6215
      %v6252 = vunpack.c.l.b16 %v6216
      %v6253 = vunpack.c.l.b16 %v6217
      %v6254 = vunpack.c.l.b16 %v6218
      %v6255 = vunpack.c.l.b16 %v6219
      %v6256 = vunpack.c.l.b16 %v6220
      %v6257 = vunpack.c.l.b16 %v6221
      %v6258 = vunpack.c.l.b16 %v6222
      %v6259 = vunpack.c.l.b16 %v6223
      %v6260 = vunpack.c.l.b16 %v6224
      %v6261 = vunpack.c.l.b16 %v6225
      %v6262 = vunpack.c.l.b16 %v6226
      %v6263 = vpack.c.b16 %v6248, %v6247
      %v6264 = vpack.c.b16 %v6250, %v6249
      %v6265 = vpack.c.b16 %v6252, %v6251
      %v6266 = vpack.c.b16 %v6254, %v6253
      %v6267 = vpack.c.b16 %v6256, %v6255
      %v6268 = vpack.c.b16 %v6258, %v6257
      %v6269 = vpack.c.b16 %v6260, %v6259
      %v6270 = vpack.c.b16 %v6262, %v6261
      %6279 = vmatpush.bf16.msra.mxu0 %v6270
      %6280 = vmatpush.bf16.msra.mxu0 %v6269
      %6281 = vmatpush.bf16.msra.mxu0 %v6268
      %6282 = vmatpush.bf16.msra.mxu0 %v6267
      %6283 = vmatpush.bf16.msra.mxu0 %v6266
      %6284 = vmatpush.bf16.msra.mxu0 %v6265
      %6285 = vmatpush.bf16.msra.mxu0 %v6264
      %6286 = vmatpush.bf16.msra.mxu0 %v6263
      %6287 = vmatmul.bf16.gmra.mxu0 %v6210
      %v6288 = vpop.f32.mrf.mxu0
      %v6289 = vadd.f32 %v6229, %v6288
      %v6290 = vpop.f32.mrf.mxu0
      %6291 = vdwg.mxu0
      %v6292 = vmax.f32 %v6289, 0.0
      %s6293 = scalar_lea.vmem [#allocation3], 16
      %6294 = vst.msk [vmem:[%s6293] sm:$0x3f] %vm6037, %v6292
      %v6295 = vld [vmem:[%s2938] sm:$0x3f]
      %v6296 = vld [vmem:[%s2938 + $0x1] sm:$0x3f]
      %v6297 = vld [vmem:[%s3309] sm:$0x3f]
      %v6298 = vld [vmem:[%s3309 + $0x1] sm:$0x3f]
      %v6299 = vld [vmem:[%s3680] sm:$0x3f]
      %v6300 = vld [vmem:[%s3680 + $0x1] sm:$0x3f]
      %v6301 = vld [vmem:[%s4051] sm:$0x3f]
      %v6302 = vld [vmem:[%s4051 + $0x1] sm:$0x3f]
      %6304 = vrot.lane.b32.xlu0 %v6296, 16
      %v6305 = vpop.permute.xlu0 %6304
      %6308 = vrot.lane.b32.xlu0 %v6297, 32
      %v6309 = vpop.permute.xlu0 %6308
      %6312 = vrot.lane.b32.xlu0 %v6298, 48
      %v6313 = vpop.permute.xlu0 %6312
      %6316 = vrot.lane.b32.xlu0 %v6299, 64
      %v6317 = vpop.permute.xlu0 %6316
      %6320 = vrot.lane.b32.xlu0 %v6300, 80
      %v6321 = vpop.permute.xlu0 %6320
      %6324 = vrot.lane.b32.xlu0 %v6301, 96
      %v6325 = vpop.permute.xlu0 %6324
      %6328 = vrot.lane.b32.xlu0 %v6302, 112
      %v6329 = vpop.permute.xlu0 %6328
      %v6331 = vsel %vm507, %v6295, %v6305
      %v6332 = vsel %vm5945, %v6331, %v6309
      %v6333 = vsel %vm483, %v6332, %v6313
      %v6334 = vsel %vm621, %v6333, %v6317
      %v6335 = vsel %vm5949, %v6334, %v6321
      %v6336 = vsel %vm495, %v6335, %v6325
      %v6337 = vsel %vm5952, %v6336, %v6329
      %v6338 = vpack.c.bf16 %v6337, %v6337
      %v6339 = vld [vmem:[%s4] sm:$0xf]
      %v6340 = vld [vmem:[%s4 + $0x4] sm:$0xf]
      %v6341 = vld [vmem:[%s4 + $0x8] sm:$0xf]
      %v6342 = vld [vmem:[%s4 + $0xc] sm:$0xf]
      %v6343 = vld [vmem:[%s4 + $0x10] sm:$0xf]
      %v6344 = vld [vmem:[%s4 + $0x14] sm:$0xf]
      %v6345 = vld [vmem:[%s4 + $0x18] sm:$0xf]
      %v6346 = vld [vmem:[%s4 + $0x1c] sm:$0xf]
      %v6347 = vld [vmem:[%s4 + $0x20] sm:$0xf]
      %v6348 = vld [vmem:[%s4 + $0x24] sm:$0xf]
      %v6349 = vld [vmem:[%s4 + $0x28] sm:$0xf]
      %v6350 = vld [vmem:[%s4 + $0x2c] sm:$0xf]
      %v6351 = vld [vmem:[%s4 + $0x30] sm:$0xf]
      %v6352 = vld [vmem:[%s4 + $0x34] sm:$0xf]
      %v6353 = vld [vmem:[%s4 + $0x38] sm:$0xf]
      %v6354 = vld [vmem:[%s4 + $0x3c] sm:$0xf]
      %v6355 = vld [vmem:[%s5] sm:$0x1]
      %v6357 = vperm.slane %v6355, 0
      %v6375 = vunpack.c.l.b16 %v6339
      %v6376 = vunpack.c.l.b16 %v6340
      %v6377 = vunpack.c.l.b16 %v6341
      %v6378 = vunpack.c.l.b16 %v6342
      %v6379 = vunpack.c.l.b16 %v6343
      %v6380 = vunpack.c.l.b16 %v6344
      %v6381 = vunpack.c.l.b16 %v6345
      %v6382 = vunpack.c.l.b16 %v6346
      %v6383 = vunpack.c.l.b16 %v6347
      %v6384 = vunpack.c.l.b16 %v6348
      %v6385 = vunpack.c.l.b16 %v6349
      %v6386 = vunpack.c.l.b16 %v6350
      %v6387 = vunpack.c.l.b16 %v6351
      %v6388 = vunpack.c.l.b16 %v6352
      %v6389 = vunpack.c.l.b16 %v6353
      %v6390 = vunpack.c.l.b16 %v6354
      %v6391 = vpack.c.b16 %v6376, %v6375
      %v6392 = vpack.c.b16 %v6378, %v6377
      %v6393 = vpack.c.b16 %v6380, %v6379
      %v6394 = vpack.c.b16 %v6382, %v6381
      %v6395 = vpack.c.b16 %v6384, %v6383
      %v6396 = vpack.c.b16 %v6386, %v6385
      %v6397 = vpack.c.b16 %v6388, %v6387
      %v6398 = vpack.c.b16 %v6390, %v6389
      %6407 = vmatpush.bf16.msra.mxu0 %v6398
      %6408 = vmatpush.bf16.msra.mxu0 %v6397
      %6409 = vmatpush.bf16.msra.mxu0 %v6396
      %6410 = vmatpush.bf16.msra.mxu0 %v6395
      %6411 = vmatpush.bf16.msra.mxu0 %v6394
      %6412 = vmatpush.bf16.msra.mxu0 %v6393
      %6413 = vmatpush.bf16.msra.mxu0 %v6392
      %6414 = vmatpush.bf16.msra.mxu0 %v6391
      %6415 = vmatmul.bf16.gmra.mxu0 %v6338
      %v6416 = vpop.f32.mrf.mxu0
      %v6417 = vadd.f32 %v6357, %v6416
      %v6418 = vpop.f32.mrf.mxu0
      %6419 = vdwg.mxu0
      %v6420 = vmax.f32 %v6417, 0.0
      %s6421 = scalar_lea.vmem [#allocation3], 24
      %6422 = vst.msk [vmem:[%s6421] sm:$0x3f] %vm6037, %v6420
      %v6423 = vld [vmem:[%s3680] sm:$0x3f]
      %v6424 = vld [vmem:[%s3680 + $0x1] sm:$0x3f]
      %v6425 = vld [vmem:[%s4051] sm:$0x3f]
      %v6426 = vld [vmem:[%s4051 + $0x1] sm:$0x3f]
      %v6427 = vld [vmem:[%s4422] sm:$0x3f]
      %v6428 = vld [vmem:[%s4422 + $0x1] sm:$0x3f]
      %v6429 = vld [vmem:[%s4793] sm:$0x3f]
      %v6430 = vld [vmem:[%s4793 + $0x1] sm:$0x3f]
      %6432 = vrot.lane.b32.xlu0 %v6424, 16
      %v6433 = vpop.permute.xlu0 %6432
      %6436 = vrot.lane.b32.xlu0 %v6425, 32
      %v6437 = vpop.permute.xlu0 %6436
      %6440 = vrot.lane.b32.xlu0 %v6426, 48
      %v6441 = vpop.permute.xlu0 %6440
      %6444 = vrot.lane.b32.xlu0 %v6427, 64
      %v6445 = vpop.permute.xlu0 %6444
      %6448 = vrot.lane.b32.xlu0 %v6428, 80
      %v6449 = vpop.permute.xlu0 %6448
      %6452 = vrot.lane.b32.xlu0 %v6429, 96
      %v6453 = vpop.permute.xlu0 %6452
      %6456 = vrot.lane.b32.xlu0 %v6430, 112
      %v6457 = vpop.permute.xlu0 %6456
      %v6459 = vsel %vm507, %v6423, %v6433
      %v6460 = vsel %vm5945, %v6459, %v6437
      %v6461 = vsel %vm483, %v6460, %v6441
      %v6462 = vsel %vm621, %v6461, %v6445
      %v6463 = vsel %vm5949, %v6462, %v6449
      %v6464 = vsel %vm495, %v6463, %v6453
      %v6465 = vsel %vm5952, %v6464, %v6457
      %v6466 = vpack.c.bf16 %v6465, %v6465
      %v6467 = vld [vmem:[%s4] sm:$0xf]
      %v6468 = vld [vmem:[%s4 + $0x4] sm:$0xf]
      %v6469 = vld [vmem:[%s4 + $0x8] sm:$0xf]
      %v6470 = vld [vmem:[%s4 + $0xc] sm:$0xf]
      %v6471 = vld [vmem:[%s4 + $0x10] sm:$0xf]
      %v6472 = vld [vmem:[%s4 + $0x14] sm:$0xf]
      %v6473 = vld [vmem:[%s4 + $0x18] sm:$0xf]
      %v6474 = vld [vmem:[%s4 + $0x1c] sm:$0xf]
      %v6475 = vld [vmem:[%s4 + $0x20] sm:$0xf]
      %v6476 = vld [vmem:[%s4 + $0x24] sm:$0xf]
      %v6477 = vld [vmem:[%s4 + $0x28] sm:$0xf]
      %v6478 = vld [vmem:[%s4 + $0x2c] sm:$0xf]
      %v6479 = vld [vmem:[%s4 + $0x30] sm:$0xf]
      %v6480 = vld [vmem:[%s4 + $0x34] sm:$0xf]
      %v6481 = vld [vmem:[%s4 + $0x38] sm:$0xf]
      %v6482 = vld [vmem:[%s4 + $0x3c] sm:$0xf]
      %v6483 = vld [vmem:[%s5] sm:$0x1]
      %v6485 = vperm.slane %v6483, 0
      %v6503 = vunpack.c.l.b16 %v6467
      %v6504 = vunpack.c.l.b16 %v6468
      %v6505 = vunpack.c.l.b16 %v6469
      %v6506 = vunpack.c.l.b16 %v6470
      %v6507 = vunpack.c.l.b16 %v6471
      %v6508 = vunpack.c.l.b16 %v6472
      %v6509 = vunpack.c.l.b16 %v6473
      %v6510 = vunpack.c.l.b16 %v6474
      %v6511 = vunpack.c.l.b16 %v6475
      %v6512 = vunpack.c.l.b16 %v6476
      %v6513 = vunpack.c.l.b16 %v6477
      %v6514 = vunpack.c.l.b16 %v6478
      %v6515 = vunpack.c.l.b16 %v6479
      %v6516 = vunpack.c.l.b16 %v6480
      %v6517 = vunpack.c.l.b16 %v6481
      %v6518 = vunpack.c.l.b16 %v6482
      %v6519 = vpack.c.b16 %v6504, %v6503
      %v6520 = vpack.c.b16 %v6506, %v6505
      %v6521 = vpack.c.b16 %v6508, %v6507
      %v6522 = vpack.c.b16 %v6510, %v6509
      %v6523 = vpack.c.b16 %v6512, %v6511
      %v6524 = vpack.c.b16 %v6514, %v6513
      %v6525 = vpack.c.b16 %v6516, %v6515
      %v6526 = vpack.c.b16 %v6518, %v6517
      %6535 = vmatpush.bf16.msra.mxu0 %v6526
      %6536 = vmatpush.bf16.msra.mxu0 %v6525
      %6537 = vmatpush.bf16.msra.mxu0 %v6524
      %6538 = vmatpush.bf16.msra.mxu0 %v6523
      %6539 = vmatpush.bf16.msra.mxu0 %v6522
      %6540 = vmatpush.bf16.msra.mxu0 %v6521
      %6541 = vmatpush.bf16.msra.mxu0 %v6520
      %6542 = vmatpush.bf16.msra.mxu0 %v6519
      %6543 = vmatmul.bf16.gmra.mxu0 %v6466
      %v6544 = vpop.f32.mrf.mxu0
      %v6545 = vadd.f32 %v6485, %v6544
      %v6546 = vpop.f32.mrf.mxu0
      %6547 = vdwg.mxu0
      %v6548 = vmax.f32 %v6545, 0.0
      %s6549 = scalar_lea.vmem [#allocation3], 32
      %6550 = vst.msk [vmem:[%s6549] sm:$0x3f] %vm6037, %v6548
      %v6551 = vld [vmem:[%s4422] sm:$0x3f]
      %v6552 = vld [vmem:[%s4422 + $0x1] sm:$0x3f]
      %v6553 = vld [vmem:[%s4793] sm:$0x3f]
      %v6554 = vld [vmem:[%s4793 + $0x1] sm:$0x3f]
      %v6555 = vld [vmem:[%s5164] sm:$0x3f]
      %v6556 = vld [vmem:[%s5164 + $0x1] sm:$0x3f]
      %v6557 = vld [vmem:[%s5535] sm:$0x3f]
      %v6558 = vld [vmem:[%s5535 + $0x1] sm:$0x3f]
      %6560 = vrot.lane.b32.xlu0 %v6552, 16
      %v6561 = vpop.permute.xlu0 %6560
      %6564 = vrot.lane.b32.xlu0 %v6553, 32
      %v6565 = vpop.permute.xlu0 %6564
      %6568 = vrot.lane.b32.xlu0 %v6554, 48
      %v6569 = vpop.permute.xlu0 %6568
      %6572 = vrot.lane.b32.xlu0 %v6555, 64
      %v6573 = vpop.permute.xlu0 %6572
      %6576 = vrot.lane.b32.xlu0 %v6556, 80
      %v6577 = vpop.permute.xlu0 %6576
      %6580 = vrot.lane.b32.xlu0 %v6557, 96
      %v6581 = vpop.permute.xlu0 %6580
      %6584 = vrot.lane.b32.xlu0 %v6558, 112
      %v6585 = vpop.permute.xlu0 %6584
      %v6587 = vsel %vm507, %v6551, %v6561
      %v6588 = vsel %vm5945, %v6587, %v6565
      %v6589 = vsel %vm483, %v6588, %v6569
      %v6590 = vsel %vm621, %v6589, %v6573
      %v6591 = vsel %vm5949, %v6590, %v6577
      %v6592 = vsel %vm495, %v6591, %v6581
      %v6593 = vsel %vm5952, %v6592, %v6585
      %v6594 = vpack.c.bf16 %v6593, %v6593
      %v6595 = vld [vmem:[%s4] sm:$0xf]
      %v6596 = vld [vmem:[%s4 + $0x4] sm:$0xf]
      %v6597 = vld [vmem:[%s4 + $0x8] sm:$0xf]
      %v6598 = vld [vmem:[%s4 + $0xc] sm:$0xf]
      %v6599 = vld [vmem:[%s4 + $0x10] sm:$0xf]
      %v6600 = vld [vmem:[%s4 + $0x14] sm:$0xf]
      %v6601 = vld [vmem:[%s4 + $0x18] sm:$0xf]
      %v6602 = vld [vmem:[%s4 + $0x1c] sm:$0xf]
      %v6603 = vld [vmem:[%s4 + $0x20] sm:$0xf]
      %v6604 = vld [vmem:[%s4 + $0x24] sm:$0xf]
      %v6605 = vld [vmem:[%s4 + $0x28] sm:$0xf]
      %v6606 = vld [vmem:[%s4 + $0x2c] sm:$0xf]
      %v6607 = vld [vmem:[%s4 + $0x30] sm:$0xf]
      %v6608 = vld [vmem:[%s4 + $0x34] sm:$0xf]
      %v6609 = vld [vmem:[%s4 + $0x38] sm:$0xf]
      %v6610 = vld [vmem:[%s4 + $0x3c] sm:$0xf]
      %v6611 = vld [vmem:[%s5] sm:$0x1]
      %v6613 = vperm.slane %v6611, 0
      %v6631 = vunpack.c.l.b16 %v6595
      %v6632 = vunpack.c.l.b16 %v6596
      %v6633 = vunpack.c.l.b16 %v6597
      %v6634 = vunpack.c.l.b16 %v6598
      %v6635 = vunpack.c.l.b16 %v6599
      %v6636 = vunpack.c.l.b16 %v6600
      %v6637 = vunpack.c.l.b16 %v6601
      %v6638 = vunpack.c.l.b16 %v6602
      %v6639 = vunpack.c.l.b16 %v6603
      %v6640 = vunpack.c.l.b16 %v6604
      %v6641 = vunpack.c.l.b16 %v6605
      %v6642 = vunpack.c.l.b16 %v6606
      %v6643 = vunpack.c.l.b16 %v6607
      %v6644 = vunpack.c.l.b16 %v6608
      %v6645 = vunpack.c.l.b16 %v6609
      %v6646 = vunpack.c.l.b16 %v6610
      %v6647 = vpack.c.b16 %v6632, %v6631
      %v6648 = vpack.c.b16 %v6634, %v6633
      %v6649 = vpack.c.b16 %v6636, %v6635
      %v6650 = vpack.c.b16 %v6638, %v6637
      %v6651 = vpack.c.b16 %v6640, %v6639
      %v6652 = vpack.c.b16 %v6642, %v6641
      %v6653 = vpack.c.b16 %v6644, %v6643
      %v6654 = vpack.c.b16 %v6646, %v6645
      %6663 = vmatpush.bf16.msra.mxu0 %v6654
      %6664 = vmatpush.bf16.msra.mxu0 %v6653
      %6665 = vmatpush.bf16.msra.mxu0 %v6652
      %6666 = vmatpush.bf16.msra.mxu0 %v6651
      %6667 = vmatpush.bf16.msra.mxu0 %v6650
      %6668 = vmatpush.bf16.msra.mxu0 %v6649
      %6669 = vmatpush.bf16.msra.mxu0 %v6648
      %6670 = vmatpush.bf16.msra.mxu0 %v6647
      %6671 = vmatmul.bf16.gmra.mxu0 %v6594
      %v6672 = vpop.f32.mrf.mxu0
      %v6673 = vadd.f32 %v6613, %v6672
      %v6674 = vpop.f32.mrf.mxu0
      %6675 = vdwg.mxu0
      %v6676 = vmax.f32 %v6673, 0.0
      %s6677 = scalar_lea.vmem [#allocation3], 40
      %6678 = vst.msk [vmem:[%s6677] sm:$0x3f] %vm6037, %v6676
      %v6679 = vld [vmem:[#allocation3] sm:$0xf]
      %v6680 = vld [vmem:[#allocation3 + $0x1] sm:$0xf]
      %v6681 = vld [vmem:[#allocation3 + $0x2] sm:$0xf]
      %v6682 = vld [vmem:[%s6165] sm:$0xf]
      %v6683 = vld [vmem:[%s6165 + $0x1] sm:$0xf]
      %v6684 = vld [vmem:[%s6165 + $0x2] sm:$0xf]
      %v6685 = vld [vmem:[%s6293] sm:$0xf]
      %v6686 = vld [vmem:[%s6293 + $0x1] sm:$0xf]
      %v6687 = vld [vmem:[%s6293 + $0x2] sm:$0xf]
      %6689 = vrot.lane.b32.xlu0 %v6680, 16
      %v6690 = vpop.permute.xlu0 %6689
      %6693 = vrot.lane.b32.xlu0 %v6681, 32
      %v6694 = vpop.permute.xlu0 %6693
      %6697 = vrot.lane.b32.xlu0 %v6682, 48
      %v6698 = vpop.permute.xlu0 %6697
      %6701 = vrot.lane.b32.xlu0 %v6683, 64
      %v6702 = vpop.permute.xlu0 %6701
      %6705 = vrot.lane.b32.xlu0 %v6684, 80
      %v6706 = vpop.permute.xlu0 %6705
      %6709 = vrot.lane.b32.xlu0 %v6685, 96
      %v6710 = vpop.permute.xlu0 %6709
      %6713 = vrot.lane.b32.xlu0 %v6686, 112
      %v6714 = vpop.permute.xlu0 %6713
      %v6716 = vsel %vm507, %v6679, %v6690
      %v6717 = vsel %vm5945, %v6716, %v6694
      %v6718 = vsel %vm483, %v6717, %v6698
      %v6719 = vsel %vm621, %v6718, %v6702
      %v6720 = vsel %vm5949, %v6719, %v6706
      %v6721 = vsel %vm495, %v6720, %v6710
      %v6722 = vsel %vm5952, %v6721, %v6714
      %v6723 = vpack.c.bf16 %v6722, %v6722
      %v6724 = vpack.c.bf16 %v6687, %v6687
      %v6725 = vld [vmem:[%s6] sm:$0xf]
      %v6726 = vld [vmem:[%s6 + $0x4] sm:$0xf]
      %v6727 = vld [vmem:[%s6 + $0x8] sm:$0xf]
      %v6728 = vld [vmem:[%s6 + $0xc] sm:$0xf]
      %v6729 = vld [vmem:[%s6 + $0x10] sm:$0xf]
      %v6730 = vld [vmem:[%s6 + $0x14] sm:$0xf]
      %v6731 = vld [vmem:[%s6 + $0x18] sm:$0xf]
      %v6732 = vld [vmem:[%s6 + $0x1c] sm:$0xf]
      %v6733 = vld [vmem:[%s6 + $0x20] sm:$0xf]
      %v6734 = vld [vmem:[%s6 + $0x24] sm:$0xf]
      %v6735 = vld [vmem:[%s6 + $0x28] sm:$0xf]
      %v6736 = vld [vmem:[%s6 + $0x2c] sm:$0xf]
      %v6737 = vld [vmem:[%s6 + $0x30] sm:$0xf]
      %v6738 = vld [vmem:[%s6 + $0x34] sm:$0xf]
      %v6739 = vld [vmem:[%s6 + $0x38] sm:$0xf]
      %v6740 = vld [vmem:[%s6 + $0x3c] sm:$0xf]
      %v6741 = vld [vmem:[%s6 + $0x40] sm:$0xf]
      %v6742 = vld [vmem:[%s6 + $0x44] sm:$0xf]
      %v6743 = vld [vmem:[%s7] sm:$0x1]
      %v6745 = vperm.slane %v6743, 0
      %v6765 = vunpack.c.l.b16 %v6725
      %v6766 = vunpack.c.l.b16 %v6726
      %v6767 = vunpack.c.l.b16 %v6727
      %v6768 = vunpack.c.l.b16 %v6728
      %v6769 = vunpack.c.l.b16 %v6729
      %v6770 = vunpack.c.l.b16 %v6730
      %v6771 = vunpack.c.l.b16 %v6731
      %v6772 = vunpack.c.l.b16 %v6732
      %v6773 = vunpack.c.l.b16 %v6733
      %v6774 = vunpack.c.l.b16 %v6734
      %v6775 = vunpack.c.l.b16 %v6735
      %v6776 = vunpack.c.l.b16 %v6736
      %v6777 = vunpack.c.l.b16 %v6737
      %v6778 = vunpack.c.l.b16 %v6738
      %v6779 = vunpack.c.l.b16 %v6739
      %v6780 = vunpack.c.l.b16 %v6740
      %v6781 = vunpack.c.l.b16 %v6741
      %v6782 = vunpack.c.l.b16 %v6742
      %v6783 = vpack.c.b16 %v6766, %v6765
      %v6784 = vpack.c.b16 %v6768, %v6767
      %v6785 = vpack.c.b16 %v6770, %v6769
      %v6786 = vpack.c.b16 %v6772, %v6771
      %v6787 = vpack.c.b16 %v6774, %v6773
      %v6788 = vpack.c.b16 %v6776, %v6775
      %v6789 = vpack.c.b16 %v6778, %v6777
      %v6790 = vpack.c.b16 %v6780, %v6779
      %v6791 = vpack.c.b16 %v6782, %v6781
      %v6802 = vsel %vm507, %v6724, 0
      %6804 = vmatpush.bf16.msra.mxu0 %v6790
      %6805 = vmatpush.bf16.msra.mxu0 %v6789
      %6806 = vmatpush.bf16.msra.mxu0 %v6788
      %6807 = vmatpush.bf16.msra.mxu0 %v6787
      %6808 = vmatpush.bf16.msra.mxu0 %v6786
      %6809 = vmatpush.bf16.msra.mxu0 %v6785
      %6810 = vmatpush.bf16.msra.mxu0 %v6784
      %6811 = vmatpush.bf16.msra.mxu0 %v6783
      %6812 = vmatmul.bf16.gmra.mxu0 %v6723
      %v6813 = vpop.f32.mrf.mxu0
      %v6814 = vadd.f32 %v6745, %v6813
      %v6815 = vpop.f32.mrf.mxu0
      %6816 = vdwg.mxu0
      %6817 = vmatpush.bf16.msra.mxu0 0
      %6818 = vmatpush.bf16.msra.mxu0 0
      %6819 = vmatpush.bf16.msra.mxu0 0
      %6820 = vmatpush.bf16.msra.mxu0 0
      %6821 = vmatpush.bf16.msra.mxu0 0
      %6822 = vmatpush.bf16.msra.mxu0 0
      %6823 = vmatpush.bf16.msra.mxu0 0
      %6824 = vmatpush.bf16.msra.mxu0 %v6791
      %6825 = vmatmul.bf16.gmra.mxu0 %v6802
      %v6826 = vpop.f32.mrf.mxu0
      %v6827 = vadd.f32 %v6814, %v6826
      %v6828 = vpop.f32.mrf.mxu0
      %6829 = vdwg.mxu0
      %v6830 = vmax.f32 %v6827, 0.0
      %vm6831 = vcmask 125952
      %6832 = vst.msk [vmem:[#allocation4] sm:$0xf] %vm6831, %v6830
      %v6833 = vld [vmem:[%s6165] sm:$0xf]
      %v6834 = vld [vmem:[%s6165 + $0x1] sm:$0xf]
      %v6835 = vld [vmem:[%s6165 + $0x2] sm:$0xf]
      %v6836 = vld [vmem:[%s6293] sm:$0xf]
      %v6837 = vld [vmem:[%s6293 + $0x1] sm:$0xf]
      %v6838 = vld [vmem:[%s6293 + $0x2] sm:$0xf]
      %v6839 = vld [vmem:[%s6421] sm:$0xf]
      %v6840 = vld [vmem:[%s6421 + $0x1] sm:$0xf]
      %v6841 = vld [vmem:[%s6421 + $0x2] sm:$0xf]
      %6843 = vrot.lane.b32.xlu0 %v6834, 16
      %v6844 = vpop.permute.xlu0 %6843
      %6847 = vrot.lane.b32.xlu0 %v6835, 32
      %v6848 = vpop.permute.xlu0 %6847
      %6851 = vrot.lane.b32.xlu0 %v6836, 48
      %v6852 = vpop.permute.xlu0 %6851
      %6855 = vrot.lane.b32.xlu0 %v6837, 64
      %v6856 = vpop.permute.xlu0 %6855
      %6859 = vrot.lane.b32.xlu0 %v6838, 80
      %v6860 = vpop.permute.xlu0 %6859
      %6863 = vrot.lane.b32.xlu0 %v6839, 96
      %v6864 = vpop.permute.xlu0 %6863
      %6867 = vrot.lane.b32.xlu0 %v6840, 112
      %v6868 = vpop.permute.xlu0 %6867
      %v6870 = vsel %vm507, %v6833, %v6844
      %v6871 = vsel %vm5945, %v6870, %v6848
      %v6872 = vsel %vm483, %v6871, %v6852
      %v6873 = vsel %vm621, %v6872, %v6856
      %v6874 = vsel %vm5949, %v6873, %v6860
      %v6875 = vsel %vm495, %v6874, %v6864
      %v6876 = vsel %vm5952, %v6875, %v6868
      %v6877 = vpack.c.bf16 %v6876, %v6876
      %v6878 = vpack.c.bf16 %v6841, %v6841
      %v6879 = vld [vmem:[%s6] sm:$0xf]
      %v6880 = vld [vmem:[%s6 + $0x4] sm:$0xf]
      %v6881 = vld [vmem:[%s6 + $0x8] sm:$0xf]
      %v6882 = vld [vmem:[%s6 + $0xc] sm:$0xf]
      %v6883 = vld [vmem:[%s6 + $0x10] sm:$0xf]
      %v6884 = vld [vmem:[%s6 + $0x14] sm:$0xf]
      %v6885 = vld [vmem:[%s6 + $0x18] sm:$0xf]
      %v6886 = vld [vmem:[%s6 + $0x1c] sm:$0xf]
      %v6887 = vld [vmem:[%s6 + $0x20] sm:$0xf]
      %v6888 = vld [vmem:[%s6 + $0x24] sm:$0xf]
      %v6889 = vld [vmem:[%s6 + $0x28] sm:$0xf]
      %v6890 = vld [vmem:[%s6 + $0x2c] sm:$0xf]
      %v6891 = vld [vmem:[%s6 + $0x30] sm:$0xf]
      %v6892 = vld [vmem:[%s6 + $0x34] sm:$0xf]
      %v6893 = vld [vmem:[%s6 + $0x38] sm:$0xf]
      %v6894 = vld [vmem:[%s6 + $0x3c] sm:$0xf]
      %v6895 = vld [vmem:[%s6 + $0x40] sm:$0xf]
      %v6896 = vld [vmem:[%s6 + $0x44] sm:$0xf]
      %v6897 = vld [vmem:[%s7] sm:$0x1]
      %v6899 = vperm.slane %v6897, 0
      %v6919 = vunpack.c.l.b16 %v6879
      %v6920 = vunpack.c.l.b16 %v6880
      %v6921 = vunpack.c.l.b16 %v6881
      %v6922 = vunpack.c.l.b16 %v6882
      %v6923 = vunpack.c.l.b16 %v6883
      %v6924 = vunpack.c.l.b16 %v6884
      %v6925 = vunpack.c.l.b16 %v6885
      %v6926 = vunpack.c.l.b16 %v6886
      %v6927 = vunpack.c.l.b16 %v6887
      %v6928 = vunpack.c.l.b16 %v6888
      %v6929 = vunpack.c.l.b16 %v6889
      %v6930 = vunpack.c.l.b16 %v6890
      %v6931 = vunpack.c.l.b16 %v6891
      %v6932 = vunpack.c.l.b16 %v6892
      %v6933 = vunpack.c.l.b16 %v6893
      %v6934 = vunpack.c.l.b16 %v6894
      %v6935 = vunpack.c.l.b16 %v6895
      %v6936 = vunpack.c.l.b16 %v6896
      %v6937 = vpack.c.b16 %v6920, %v6919
      %v6938 = vpack.c.b16 %v6922, %v6921
      %v6939 = vpack.c.b16 %v6924, %v6923
      %v6940 = vpack.c.b16 %v6926, %v6925
      %v6941 = vpack.c.b16 %v6928, %v6927
      %v6942 = vpack.c.b16 %v6930, %v6929
      %v6943 = vpack.c.b16 %v6932, %v6931
      %v6944 = vpack.c.b16 %v6934, %v6933
      %v6945 = vpack.c.b16 %v6936, %v6935
      %v6956 = vsel %vm507, %v6878, 0
      %6958 = vmatpush.bf16.msra.mxu0 %v6944
      %6959 = vmatpush.bf16.msra.mxu0 %v6943
      %6960 = vmatpush.bf16.msra.mxu0 %v6942
      %6961 = vmatpush.bf16.msra.mxu0 %v6941
      %6962 = vmatpush.bf16.msra.mxu0 %v6940
      %6963 = vmatpush.bf16.msra.mxu0 %v6939
      %6964 = vmatpush.bf16.msra.mxu0 %v6938
      %6965 = vmatpush.bf16.msra.mxu0 %v6937
      %6966 = vmatmul.bf16.gmra.mxu0 %v6877
      %v6967 = vpop.f32.mrf.mxu0
      %v6968 = vadd.f32 %v6899, %v6967
      %v6969 = vpop.f32.mrf.mxu0
      %6970 = vdwg.mxu0
      %6971 = vmatpush.bf16.msra.mxu0 0
      %6972 = vmatpush.bf16.msra.mxu0 0
      %6973 = vmatpush.bf16.msra.mxu0 0
      %6974 = vmatpush.bf16.msra.mxu0 0
      %6975 = vmatpush.bf16.msra.mxu0 0
      %6976 = vmatpush.bf16.msra.mxu0 0
      %6977 = vmatpush.bf16.msra.mxu0 0
      %6978 = vmatpush.bf16.msra.mxu0 %v6945
      %6979 = vmatmul.bf16.gmra.mxu0 %v6956
      %v6980 = vpop.f32.mrf.mxu0
      %v6981 = vadd.f32 %v6968, %v6980
      %v6982 = vpop.f32.mrf.mxu0
      %6983 = vdwg.mxu0
      %v6984 = vmax.f32 %v6981, 0.0
      %6985 = vst.msk [vmem:[#allocation4 + $0x4] sm:$0xf] %vm6831, %v6984
      %v6986 = vld [vmem:[%s6293] sm:$0xf]
      %v6987 = vld [vmem:[%s6293 + $0x1] sm:$0xf]
      %v6988 = vld [vmem:[%s6293 + $0x2] sm:$0xf]
      %v6989 = vld [vmem:[%s6421] sm:$0xf]
      %v6990 = vld [vmem:[%s6421 + $0x1] sm:$0xf]
      %v6991 = vld [vmem:[%s6421 + $0x2] sm:$0xf]
      %v6992 = vld [vmem:[%s6549] sm:$0xf]
      %v6993 = vld [vmem:[%s6549 + $0x1] sm:$0xf]
      %v6994 = vld [vmem:[%s6549 + $0x2] sm:$0xf]
      %6996 = vrot.lane.b32.xlu0 %v6987, 16
      %v6997 = vpop.permute.xlu0 %6996
      %7000 = vrot.lane.b32.xlu0 %v6988, 32
      %v7001 = vpop.permute.xlu0 %7000
      %7004 = vrot.lane.b32.xlu0 %v6989, 48
      %v7005 = vpop.permute.xlu0 %7004
      %7008 = vrot.lane.b32.xlu0 %v6990, 64
      %v7009 = vpop.permute.xlu0 %7008
      %7012 = vrot.lane.b32.xlu0 %v6991, 80
      %v7013 = vpop.permute.xlu0 %7012
      %7016 = vrot.lane.b32.xlu0 %v6992, 96
      %v7017 = vpop.permute.xlu0 %7016
      %7020 = vrot.lane.b32.xlu0 %v6993, 112
      %v7021 = vpop.permute.xlu0 %7020
      %v7023 = vsel %vm507, %v6986, %v6997
      %v7024 = vsel %vm5945, %v7023, %v7001
      %v7025 = vsel %vm483, %v7024, %v7005
      %v7026 = vsel %vm621, %v7025, %v7009
      %v7027 = vsel %vm5949, %v7026, %v7013
      %v7028 = vsel %vm495, %v7027, %v7017
      %v7029 = vsel %vm5952, %v7028, %v7021
      %v7030 = vpack.c.bf16 %v7029, %v7029
      %v7031 = vpack.c.bf16 %v6994, %v6994
      %v7032 = vld [vmem:[%s6] sm:$0xf]
      %v7033 = vld [vmem:[%s6 + $0x4] sm:$0xf]
      %v7034 = vld [vmem:[%s6 + $0x8] sm:$0xf]
      %v7035 = vld [vmem:[%s6 + $0xc] sm:$0xf]
      %v7036 = vld [vmem:[%s6 + $0x10] sm:$0xf]
      %v7037 = vld [vmem:[%s6 + $0x14] sm:$0xf]
      %v7038 = vld [vmem:[%s6 + $0x18] sm:$0xf]
      %v7039 = vld [vmem:[%s6 + $0x1c] sm:$0xf]
      %v7040 = vld [vmem:[%s6 + $0x20] sm:$0xf]
      %v7041 = vld [vmem:[%s6 + $0x24] sm:$0xf]
      %v7042 = vld [vmem:[%s6 + $0x28] sm:$0xf]
      %v7043 = vld [vmem:[%s6 + $0x2c] sm:$0xf]
      %v7044 = vld [vmem:[%s6 + $0x30] sm:$0xf]
      %v7045 = vld [vmem:[%s6 + $0x34] sm:$0xf]
      %v7046 = vld [vmem:[%s6 + $0x38] sm:$0xf]
      %v7047 = vld [vmem:[%s6 + $0x3c] sm:$0xf]
      %v7048 = vld [vmem:[%s6 + $0x40] sm:$0xf]
      %v7049 = vld [vmem:[%s6 + $0x44] sm:$0xf]
      %v7050 = vld [vmem:[%s7] sm:$0x1]
      %v7052 = vperm.slane %v7050, 0
      %v7072 = vunpack.c.l.b16 %v7032
      %v7073 = vunpack.c.l.b16 %v7033
      %v7074 = vunpack.c.l.b16 %v7034
      %v7075 = vunpack.c.l.b16 %v7035
      %v7076 = vunpack.c.l.b16 %v7036
      %v7077 = vunpack.c.l.b16 %v7037
      %v7078 = vunpack.c.l.b16 %v7038
      %v7079 = vunpack.c.l.b16 %v7039
      %v7080 = vunpack.c.l.b16 %v7040
      %v7081 = vunpack.c.l.b16 %v7041
      %v7082 = vunpack.c.l.b16 %v7042
      %v7083 = vunpack.c.l.b16 %v7043
      %v7084 = vunpack.c.l.b16 %v7044
      %v7085 = vunpack.c.l.b16 %v7045
      %v7086 = vunpack.c.l.b16 %v7046
      %v7087 = vunpack.c.l.b16 %v7047
      %v7088 = vunpack.c.l.b16 %v7048
      %v7089 = vunpack.c.l.b16 %v7049
      %v7090 = vpack.c.b16 %v7073, %v7072
      %v7091 = vpack.c.b16 %v7075, %v7074
      %v7092 = vpack.c.b16 %v7077, %v7076
      %v7093 = vpack.c.b16 %v7079, %v7078
      %v7094 = vpack.c.b16 %v7081, %v7080
      %v7095 = vpack.c.b16 %v7083, %v7082
      %v7096 = vpack.c.b16 %v7085, %v7084
      %v7097 = vpack.c.b16 %v7087, %v7086
      %v7098 = vpack.c.b16 %v7089, %v7088
      %v7109 = vsel %vm507, %v7031, 0
      %7111 = vmatpush.bf16.msra.mxu0 %v7097
      %7112 = vmatpush.bf16.msra.mxu0 %v7096
      %7113 = vmatpush.bf16.msra.mxu0 %v7095
      %7114 = vmatpush.bf16.msra.mxu0 %v7094
      %7115 = vmatpush.bf16.msra.mxu0 %v7093
      %7116 = vmatpush.bf16.msra.mxu0 %v7092
      %7117 = vmatpush.bf16.msra.mxu0 %v7091
      %7118 = vmatpush.bf16.msra.mxu0 %v7090
      %7119 = vmatmul.bf16.gmra.mxu0 %v7030
      %v7120 = vpop.f32.mrf.mxu0
      %v7121 = vadd.f32 %v7052, %v7120
      %v7122 = vpop.f32.mrf.mxu0
      %7123 = vdwg.mxu0
      %7124 = vmatpush.bf16.msra.mxu0 0
      %7125 = vmatpush.bf16.msra.mxu0 0
      %7126 = vmatpush.bf16.msra.mxu0 0
      %7127 = vmatpush.bf16.msra.mxu0 0
      %7128 = vmatpush.bf16.msra.mxu0 0
      %7129 = vmatpush.bf16.msra.mxu0 0
      %7130 = vmatpush.bf16.msra.mxu0 0
      %7131 = vmatpush.bf16.msra.mxu0 %v7098
      %7132 = vmatmul.bf16.gmra.mxu0 %v7109
      %v7133 = vpop.f32.mrf.mxu0
      %v7134 = vadd.f32 %v7121, %v7133
      %v7135 = vpop.f32.mrf.mxu0
      %7136 = vdwg.mxu0
      %v7137 = vmax.f32 %v7134, 0.0
      %7138 = vst.msk [vmem:[#allocation4 + $0x8] sm:$0xf] %vm6831, %v7137
      %v7139 = vld [vmem:[%s6421] sm:$0xf]
      %v7140 = vld [vmem:[%s6421 + $0x1] sm:$0xf]
      %v7141 = vld [vmem:[%s6421 + $0x2] sm:$0xf]
      %v7142 = vld [vmem:[%s6549] sm:$0xf]
      %v7143 = vld [vmem:[%s6549 + $0x1] sm:$0xf]
      %v7144 = vld [vmem:[%s6549 + $0x2] sm:$0xf]
      %v7145 = vld [vmem:[%s6677] sm:$0xf]
      %v7146 = vld [vmem:[%s6677 + $0x1] sm:$0xf]
      %v7147 = vld [vmem:[%s6677 + $0x2] sm:$0xf]
      %7149 = vrot.lane.b32.xlu0 %v7140, 16
      %v7150 = vpop.permute.xlu0 %7149
      %7153 = vrot.lane.b32.xlu0 %v7141, 32
      %v7154 = vpop.permute.xlu0 %7153
      %7157 = vrot.lane.b32.xlu0 %v7142, 48
      %v7158 = vpop.permute.xlu0 %7157
      %7161 = vrot.lane.b32.xlu0 %v7143, 64
      %v7162 = vpop.permute.xlu0 %7161
      %7165 = vrot.lane.b32.xlu0 %v7144, 80
      %v7166 = vpop.permute.xlu0 %7165
      %7169 = vrot.lane.b32.xlu0 %v7145, 96
      %v7170 = vpop.permute.xlu0 %7169
      %7173 = vrot.lane.b32.xlu0 %v7146, 112
      %v7174 = vpop.permute.xlu0 %7173
      %v7176 = vsel %vm507, %v7139, %v7150
      %v7177 = vsel %vm5945, %v7176, %v7154
      %v7178 = vsel %vm483, %v7177, %v7158
      %v7179 = vsel %vm621, %v7178, %v7162
      %v7180 = vsel %vm5949, %v7179, %v7166
      %v7181 = vsel %vm495, %v7180, %v7170
      %v7182 = vsel %vm5952, %v7181, %v7174
      %v7183 = vpack.c.bf16 %v7182, %v7182
      %v7184 = vpack.c.bf16 %v7147, %v7147
      %v7185 = vld [vmem:[%s6] sm:$0xf]
      %v7186 = vld [vmem:[%s6 + $0x4] sm:$0xf]
      %v7187 = vld [vmem:[%s6 + $0x8] sm:$0xf]
      %v7188 = vld [vmem:[%s6 + $0xc] sm:$0xf]
      %v7189 = vld [vmem:[%s6 + $0x10] sm:$0xf]
      %v7190 = vld [vmem:[%s6 + $0x14] sm:$0xf]
      %v7191 = vld [vmem:[%s6 + $0x18] sm:$0xf]
      %v7192 = vld [vmem:[%s6 + $0x1c] sm:$0xf]
      %v7193 = vld [vmem:[%s6 + $0x20] sm:$0xf]
      %v7194 = vld [vmem:[%s6 + $0x24] sm:$0xf]
      %v7195 = vld [vmem:[%s6 + $0x28] sm:$0xf]
      %v7196 = vld [vmem:[%s6 + $0x2c] sm:$0xf]
      %v7197 = vld [vmem:[%s6 + $0x30] sm:$0xf]
      %v7198 = vld [vmem:[%s6 + $0x34] sm:$0xf]
      %v7199 = vld [vmem:[%s6 + $0x38] sm:$0xf]
      %v7200 = vld [vmem:[%s6 + $0x3c] sm:$0xf]
      %v7201 = vld [vmem:[%s6 + $0x40] sm:$0xf]
      %v7202 = vld [vmem:[%s6 + $0x44] sm:$0xf]
      %v7203 = vld [vmem:[%s7] sm:$0x1]
      %v7205 = vperm.slane %v7203, 0
      %v7225 = vunpack.c.l.b16 %v7185
      %v7226 = vunpack.c.l.b16 %v7186
      %v7227 = vunpack.c.l.b16 %v7187
      %v7228 = vunpack.c.l.b16 %v7188
      %v7229 = vunpack.c.l.b16 %v7189
      %v7230 = vunpack.c.l.b16 %v7190
      %v7231 = vunpack.c.l.b16 %v7191
      %v7232 = vunpack.c.l.b16 %v7192
      %v7233 = vunpack.c.l.b16 %v7193
      %v7234 = vunpack.c.l.b16 %v7194
      %v7235 = vunpack.c.l.b16 %v7195
      %v7236 = vunpack.c.l.b16 %v7196
      %v7237 = vunpack.c.l.b16 %v7197
      %v7238 = vunpack.c.l.b16 %v7198
      %v7239 = vunpack.c.l.b16 %v7199
      %v7240 = vunpack.c.l.b16 %v7200
      %v7241 = vunpack.c.l.b16 %v7201
      %v7242 = vunpack.c.l.b16 %v7202
      %v7243 = vpack.c.b16 %v7226, %v7225
      %v7244 = vpack.c.b16 %v7228, %v7227
      %v7245 = vpack.c.b16 %v7230, %v7229
      %v7246 = vpack.c.b16 %v7232, %v7231
      %v7247 = vpack.c.b16 %v7234, %v7233
      %v7248 = vpack.c.b16 %v7236, %v7235
      %v7249 = vpack.c.b16 %v7238, %v7237
      %v7250 = vpack.c.b16 %v7240, %v7239
      %v7251 = vpack.c.b16 %v7242, %v7241
      %v7262 = vsel %vm507, %v7184, 0
      %7264 = vmatpush.bf16.msra.mxu0 %v7250
      %7265 = vmatpush.bf16.msra.mxu0 %v7249
      %7266 = vmatpush.bf16.msra.mxu0 %v7248
      %7267 = vmatpush.bf16.msra.mxu0 %v7247
      %7268 = vmatpush.bf16.msra.mxu0 %v7246
      %7269 = vmatpush.bf16.msra.mxu0 %v7245
      %7270 = vmatpush.bf16.msra.mxu0 %v7244
      %7271 = vmatpush.bf16.msra.mxu0 %v7243
      %7272 = vmatmul.bf16.gmra.mxu0 %v7183
      %v7273 = vpop.f32.mrf.mxu0
      %v7274 = vadd.f32 %v7205, %v7273
      %v7275 = vpop.f32.mrf.mxu0
      %7276 = vdwg.mxu0
      %7277 = vmatpush.bf16.msra.mxu0 0
      %7278 = vmatpush.bf16.msra.mxu0 0
      %7279 = vmatpush.bf16.msra.mxu0 0
      %7280 = vmatpush.bf16.msra.mxu0 0
      %7281 = vmatpush.bf16.msra.mxu0 0
      %7282 = vmatpush.bf16.msra.mxu0 0
      %7283 = vmatpush.bf16.msra.mxu0 0
      %7284 = vmatpush.bf16.msra.mxu0 %v7251
      %7285 = vmatmul.bf16.gmra.mxu0 %v7262
      %v7286 = vpop.f32.mrf.mxu0
      %v7287 = vadd.f32 %v7274, %v7286
      %v7288 = vpop.f32.mrf.mxu0
      %7289 = vdwg.mxu0
      %v7290 = vmax.f32 %v7287, 0.0
      %7291 = vst.msk [vmem:[#allocation4 + $0xc] sm:$0xf] %vm6831, %v7290
      %v7292 = vld [vmem:[#allocation4] sm:$0xff]
      %v7293 = vld [vmem:[#allocation4 + $0x8] sm:$0xff]
      %v7294 = vsel %vm507, %v7292, -inf
      %v7295 = vsel %vm507, %v7293, -inf
      %v7296 = vmax.f32 %v7294, %v7295
      %v7297 = vrot.slane %v7296, 4
      %v7298 = vmax.f32 %v7296, %v7297
      %v7299 = vrot.slane %v7298, 2
      %v7300 = vmax.f32 %v7298, %v7299
      %v7301 = vrot.slane %v7300, 1
      %v7302 = vmax.f32 %v7300, %v7301
      %v7303 = vsub.f32 %v7292, %v7302
      %v7304 = vsub.f32 %v7293, %v7302
      %v7305 = vmul.f32 %v7303, 1.442695
      %v7306 = vpow.pop %v7305
      %v7307 = vmul.f32 %v7304, 1.442695
      %v7308 = vpow.pop %v7307
      %v7309 = vsel %vm507, %v7306, 0.0
      %v7310 = vsel %vm507, %v7308, 0.0
      %v7311 = vadd.f32 %v7309, %v7310
      %v7312 = vrot.slane %v7311, 4
      %v7313 = vadd.f32 %v7311, %v7312
      %v7314 = vrot.slane %v7313, 2
      %v7315 = vadd.f32 %v7313, %v7314
      %v7316 = vrot.slane %v7315, 1
      %v7317 = vadd.f32 %v7315, %v7316
      %v7318 = vrcp.pop %v7317
      %v7319 = vmul.f32 %v7306, %v7318
      %v7320 = vmul.f32 %v7308, %v7318
      %v7321 = vld [vmem:[%s1] sm:$0x3]
      %v7323 = vsel %vm507, %v7321, 0
      %7325 = vmatpush.msra.mxu0 0.0
      %7326 = vmatpush.msra.mxu0 0.0
      %7327 = vmatpush.msra.mxu0 0.0
      %7328 = vmatpush.msra.mxu0 0.0
      %7329 = vmatpush.msra.mxu0 0.0
      %7330 = vmatpush.msra.mxu0 0.0
      %7331 = vmatpush.msra.mxu0 0.0
      %7332 = vmatpush.msra.mxu0 0.0
      %7333 = vmatpush.msra.mxu0 0.0
      %7334 = vmatpush.msra.mxu0 0.0
      %7335 = vmatpush.msra.mxu0 0.0
      %7336 = vmatpush.msra.mxu0 0.0
      %7337 = vmatpush.msra.mxu0 0.0
      %7338 = vmatpush.msra.mxu0 0.0
      %7339 = vmatpush.msra.mxu0 %v7320
      %7340 = vmatpush.msra.mxu0 %v7319
      %7341 = vmatmul.f32.gmra.mxu0 %v7323
      %v7342 = vpop.f32.mrf.mxu0
      %v7343 = vadd.f32 0.0, %v7342
      %7344 = vdwg.mxu0
      %v7345 = vadd.s32 %v304, 8
      %v7346 = vmul.u32 %v7345, 2
      %vm7347 = vcmp.eq.s32.totalorder %v306, %v7346
      %v7348 = vsel %vm7347, 1, 0
      %v7349 = vcvt.s32.f32 %v7348
      %v7350 = vadd.s32 %v7346, 1
      %vm7351 = vcmp.eq.s32.totalorder %v306, %v7350
      %v7352 = vsel %vm7351, 1, 0
      %v7353 = vcvt.s32.f32 %v7352
      %v7355 = vrot.slane %v7343, 1
      %v7356 = vsel %vm507, %v7355, 0
      %7358 = vmatpush.msra.mxu0 0.0
      %7359 = vmatpush.msra.mxu0 0.0
      %7360 = vmatpush.msra.mxu0 0.0
      %7361 = vmatpush.msra.mxu0 0.0
      %7362 = vmatpush.msra.mxu0 0.0
      %7363 = vmatpush.msra.mxu0 0.0
      %7364 = vmatpush.msra.mxu0 0.0
      %7365 = vmatpush.msra.mxu0 0.0
      %7366 = vmatpush.msra.mxu0 0.0
      %7367 = vmatpush.msra.mxu0 0.0
      %7368 = vmatpush.msra.mxu0 0.0
      %7369 = vmatpush.msra.mxu0 0.0
      %7370 = vmatpush.msra.mxu0 0.0
      %7371 = vmatpush.msra.mxu0 0.0
      %7372 = vmatpush.msra.mxu0 %v7353
      %7373 = vmatpush.msra.mxu0 %v314
      %7374 = vmatmul.f32.gmra.mxu0 %v7356
      %v7375 = vpop.f32.mrf.mxu0
      %v7376 = vadd.f32 0.0, %v7375
      %7377 = vdwg.mxu0
      %v7378 = vsel %vm507, %v7343, 0
      %7380 = vmatpush.msra.mxu0 0.0
      %7381 = vmatpush.msra.mxu0 0.0
      %7382 = vmatpush.msra.mxu0 0.0
      %7383 = vmatpush.msra.mxu0 0.0
      %7384 = vmatpush.msra.mxu0 0.0
      %7385 = vmatpush.msra.mxu0 0.0
      %7386 = vmatpush.msra.mxu0 0.0
      %7387 = vmatpush.msra.mxu0 0.0
      %7388 = vmatpush.msra.mxu0 0.0
      %7389 = vmatpush.msra.mxu0 0.0
      %7390 = vmatpush.msra.mxu0 0.0
      %7391 = vmatpush.msra.mxu0 0.0
      %7392 = vmatpush.msra.mxu0 0.0
      %7393 = vmatpush.msra.mxu0 0.0
      %7394 = vmatpush.msra.mxu0 %v7349
      %7395 = vmatpush.msra.mxu0 %v310
      %7396 = vmatmul.f32.gmra.mxu0 %v7378
      %v7397 = vpop.f32.mrf.mxu0
      %v7398 = vadd.f32 %v7376, %v7397
      %7399 = vdwg.mxu0
      %vm7400 = vcmask 253952
      %7401 = vst.msk [vmem:[%s301] sm:$0x1] %vm7400, %v7398
      %p7402 = scmp.lt.s32.totalorder %s19, 3
      %s7403 = scalar_select %p7402, %s19, 3
      %s7404 = scalar_lea.vmem %s8, %s7403
      // Predicated region
      $region53: #{visual_motion_prior_forward.1} parent=51 // pred_check
        %p7405 = pneg %p210
      $region54: #{visual_motion_prior_forward.1} parent=51 // pred_check_branch
        %7407 = sbr.rel (%p7405) target = $region56
      $region55: #{visual_motion_prior_forward.1} parent=51 // pred_region
        _
      $region56: #{visual_motion_prior_forward.1} parent=51 // pred_fallthru
        _
    $region52: #{visual_motion_prior_forward.1} parent=5 // pred_fallthru
      _
    %p7408 = scmp.le.s32.totalorder 2, %s14
    // Predicated region
    $region57: #{visual_motion_prior_forward.1} parent=5 // pred_check
      %p7409 = pneg %p7408
    $region58: #{visual_motion_prior_forward.1} parent=5 // pred_check_branch
      %7411 = sbr.rel (%p7409) target = $region60
    $region59: #{visual_motion_prior_forward.1} parent=5 // pred_region
      %s7412 = ssub.s32 %s14, 2
      // Predicated region
      $region61: #{visual_motion_prior_forward.1} parent=59 // pred_check
        %p7413 = pneg %p216
      $region62: #{visual_motion_prior_forward.1} parent=59 // pred_check_branch
        %7415 = sbr.rel (%p7413) target = $region64
      $region63: #{visual_motion_prior_forward.1} parent=59 // pred_region
        %p7416 = scmp.lt.s32.totalorder %s20, 3
        %s7417 = scalar_select %p7416, %s20, 3
        %s7418 = scalar_lea.vmem %s8, %s7417
      $region64: #{visual_motion_prior_forward.1} parent=59 // pred_fallthru
        _
    $region60: #{visual_motion_prior_forward.1} parent=5 // pred_fallthru
      _
  $region6: #{visual_motion_prior_forward.1} parent=0 // loop_footer
    %s18 = sadd.s32 1, %s14
  $region7: #{visual_motion_prior_forward.1} parent=0 // loop_footer_branch
    %13 = sbr.rel target = $region3
  $region8: #{visual_motion_prior_forward.1} parent=0 // loop_exit
    _

</llo_original>
